<compile_context>
chip_gen: v6e
topology: v6e:2x2x1
jax: 0.10.0
libtpu: 0.0.40
codegen_flags: <defaults>
</compile_context>

<pallas_src>
import functools

import jax
import jax.numpy as jnp
from jax.experimental import pallas as pl
from jax.experimental.pallas import tpu as pltpu  # noqa: F401  (kept for TPU backend)

# ------------------------- model hyper-parameters (small) -------------------------
EMBED_DIM = 32
DEPTH = 2
NUM_HEADS = 4
IMAGE_SIZE = 16
PATCH_SIZE = 4
NUM_CLASSES = 4
IN_CH = 6 * 3            # TinyViT patch_embed expects 18 input channels
LN_EPS = 1e-5            # nn.LayerNorm default
BN_EPS = 1e-5            # nn.BatchNorm2d default


# ----------------------------- in-kernel math helpers ------------------------------
def _layernorm(x, g, b):
    mu = jnp.mean(x, axis=-1, keepdims=True)
    var = jnp.mean(jnp.square(x - mu), axis=-1, keepdims=True)
    return (x - mu) * jax.lax.rsqrt(var + LN_EPS) * g + b


def _erf(x):
    # Abramowitz & Stegun 7.1.26 polynomial; |abs error| < 1.5e-7 (~ f32 epsilon),
    # so nn.GELU() (exact erf-based GELU) is matched to float32 precision.
    t = 1.0 / (1.0 + 0.3275911 * jnp.abs(x))
    poly = ((((1.061405429 * t - 1.453152027) * t + 1.421413741) * t
             - 0.284496736) * t + 0.254829592) * t
    e = 1.0 - poly * jnp.exp(-x * x)
    return jnp.where(x < 0.0, -e, e)


def _gelu_exact(x):
    return 0.5 * x * (1.0 + _erf(x * 0.7071067811865476))


# --------------------------- fused transformer kernel ------------------------------
def _vit_kernel(*refs, n_blocks, batch, seq, num_heads):
    """Patch embed + pos embed + all transformer blocks + final LayerNorm, one call.

    refs = [patch_rows(B*N, C*P*P), pos(N, D), patch_w(C*P*P, D), patch_b(1, D),
            per block: ln1_g, ln1_b, wqkv(D,3D), bqkv, wo(D,D), bo,
                       ln2_g, ln2_b, w1(D,4D), b1, w2(4D,D), b2,
            norm_g, norm_b, out(B*N, D)]
    """
    patch_ref, pos_ref, pw_ref, pb_ref = refs[:4]
    rest = refs[4:]
    block_refs = [rest[i * 12:(i + 1) * 12] for i in range(n_blocks)]
    ng_ref, nb_ref, o_ref = rest[12 * n_blocks:]

    # patch embedding + positional embedding (pos broadcast over batch in-kernel)
    x = (jnp.dot(patch_ref[...], pw_ref[...], preferred_element_type=jnp.float32)
         + pb_ref[...])                                                 # (B*N, D)
    pos = pos_ref[...]                                                  # (N, D)
    x = x + (pos if batch == 1 else jnp.concatenate([pos] * batch, axis=0))

    d = x.shape[-1]
    hd = d // num_heads
    scale = 1.0 / (hd ** 0.5)

    for (g1, b1, wqkv, bqkv, wo, bo, g2, b2, w1, bb1, w2, bb2) in block_refs:
        # ----- attention branch (pre-LN); per-head results folded straight into -----
        # ----- the out-projection so no packed head layout is ever materialised -----
        h = _layernorm(x, g1[...], b1[...])
        qkv = jnp.dot(h, wqkv[...], preferred_element_type=jnp.float32) + bqkv[...]
        wo_v = wo[...]
        parts = []
        for bi in range(batch):                 # static loops: B*H tiny sub-blocks
            r0 = bi * seq
            acc = None
            for hh in range(num_heads):
                q0, k0, v0 = hh * hd, d + hh * hd, 2 * d + hh * hd
                qh = qkv[r0:r0 + seq, q0:q0 + hd]
                kh = qkv[r0:r0 + seq, k0:k0 + hd]
                vh = qkv[r0:r0 + seq, v0:v0 + hd]
                s = jax.lax.dot_general(
                    qh, kh, (((1,), (1,)), ((), ())),
                    preferred_element_type=jnp.float32) * scale         # (N, N)
                s = s - jnp.max(s, axis=-1, keepdims=True)               # stable softmax
                p = jnp.exp(s)
                p = p / jnp.sum(p, axis=-1, keepdims=True)
                ho = jnp.dot(p, vh, preferred_element_type=jnp.float32)  # (N, hd)
                # (softmax(QK^T)V) @ Wo[head rows]  -> (N, D), accumulate over heads
                contrib = jnp.dot(ho, wo_v[hh * hd:(hh + 1) * hd, :],
                                  preferred_element_type=jnp.float32)
                acc = contrib if acc is None else acc + contrib
            parts.append(acc)
        ao = (parts[0] if batch == 1 else jnp.concatenate(parts, axis=0)) + bo[...]
        x = x + ao                                                      # residual 1

        # ----- MLP branch (pre-LN) with exact GELU fused in the epilogue -----
        h2 = _layernorm(x, g2[...], b2[...])
        h2 = jnp.dot(h2, w1[...], preferred_element_type=jnp.float32) + bb1[...]
        h2 = _gelu_exact(h2)
        h2 = jnp.dot(h2, w2[...], preferred_element_type=jnp.float32) + bb2[...]
        x = x + h2                                                      # residual 2

    o_ref[...] = _layernorm(x, ng_ref[...], nb_ref[...])


# ------------------------ fused segmentation-head kernels --------------------------
def _convt_bn_relu_kernel(cols_ref, w_ref, b_ref, g_ref, beta_ref, o_ref):
    """ConvTranspose2d (im2col matmul) + BatchNorm2d (training-mode batch stats) + ReLU."""
    y = jnp.dot(cols_ref[...], w_ref[...], preferred_element_type=jnp.float32) + b_ref[...]
    mu = jnp.mean(y, axis=0, keepdims=True)
    var = jnp.mean(jnp.square(y - mu), axis=0, keepdims=True)
    y = (y - mu) * jax.lax.rsqrt(var + BN_EPS) * g_ref[...] + beta_ref[...]
    o_ref[...] = jnp.maximum(y, 0.0)


def _convt_bn_relu_cls_kernel(cols_ref, w_ref, b_ref, g_ref, beta_ref,
                              cw_ref, cb_ref, o_ref):
    """Same as above, plus the fused 1x1 classifier conv; only this hits HBM."""
    y = jnp.dot(cols_ref[...], w_ref[...], preferred_element_type=jnp.float32) + b_ref[...]
    mu = jnp.mean(y, axis=0, keepdims=True)
    var = jnp.mean(jnp.square(y - mu), axis=0, keepdims=True)
    y = (y - mu) * jax.lax.rsqrt(var + BN_EPS) * g_ref[...] + beta_ref[...]
    y = jnp.maximum(y, 0.0)
    o_ref[...] = jnp.dot(y, cw_ref[...], preferred_element_type=jnp.float32) + cb_ref[...]


# ----------------------------- XLA glue (data movement) ----------------------------
def _convT_cols(x, k=3, s=2, p=1, op=1):
    """im2col slab for ConvTranspose2d (dilate + pad + shifted windows), channels-last.

    x: (B, H, W, C) -> (rows=(B*Ho*Wo), feats=k*k*C) in (kh, kw, c) order; Ho = Wo = s*H.
    """
    B, H, W, C = x.shape
    Hd, Wd = (H - 1) * s + 1, (W - 1) * s + 1
    xd = jnp.zeros((B, Hd, Wd, C), x.dtype).at[:, ::s, ::s, :].set(x)
    lo, hi = k - 1 - p, k - 1 - p + op
    xp = jnp.pad(xd, ((0, 0), (lo, hi), (lo, hi), (0, 0)))
    Ho, Wo = Hd + lo + hi - k + 1, Wd + lo + hi - k + 1
    cols = jnp.concatenate(
        [xp[:, kh:kh + Ho, kw:kw + Wo, :] for kh in range(k) for kw in range(k)],
        axis=-1)
    return cols.reshape(B * Ho * Wo, k * k * C), Ho, Wo


# ------------------------------------ forward ---------------------------------------
def tiny_vit_forward(params, img):
    B = img.shape[0]
    if img.ndim == 5:                                  # (B, 6, 3, H, W) -> (B, 18, H, W)
        img = img.reshape(B, -1, img.shape[3], img.shape[4])
    C, H, W = img.shape[1:]
    P = PATCH_SIZE
    fs = H // P
    N = fs * fs
    D = EMBED_DIM

    # ---- fused transformer: ONE pallas_call, everything resident in VMEM/vregs ----
    patches = (img.reshape(B, C, fs, P, fs, P)
                  .transpose(0, 2, 4, 1, 3, 5)
                  .reshape(B * N, C * P * P))          # rows (b,i,j); feats (c,ph,pw)
    pos = params["pos_embed"][0, :N, :]                # (N, D); batch-broadcast in kernel

    inputs = [patches, pos, params["patch_w"], params["patch_b"]]
    for bp in params["blocks"]:
        inputs += [bp["ln1_g"], bp["ln1_b"], bp["wqkv"], bp["bqkv"],
                   bp["wo"], bp["bo"], bp["ln2_g"], bp["ln2_b"],
                   bp["w1"], bp["b1"], bp["w2"], bp["b2"]]
    inputs += [params["norm_g"], params["norm_b"]]

    tokens = pl.pallas_call(
        functools.partial(_vit_kernel, n_blocks=len(params["blocks"]),
                          batch=B, seq=N, num_heads=NUM_HEADS),
        out_shape=jax.ShapeDtypeStruct((B * N, D), jnp.float32),
    )(*inputs)

    # ---- segmentation head: TWO pallas_calls, channels-last throughout ----
    feat = tokens.reshape(B, fs, fs, D)                # == permute(0,2,1).reshape in NHWC
    cols1, H1, W1 = _convT_cols(feat)                  # (B*2fs*2fs, 9*D)
    y1 = pl.pallas_call(
        _convt_bn_relu_kernel,
        out_shape=jax.ShapeDtypeStruct((B * H1 * W1, D // 2), jnp.float32),
    )(cols1, params["ct1_w"], params["ct1_b"], params["bn1_g"], params["bn1_b"])

    cols2, H2, W2 = _convT_cols(y1.reshape(B, H1, W1, D // 2))     # (B*4fs*4fs, 9*D/2)
    out = pl.pallas_call(
        _convt_bn_relu_cls_kernel,
        out_shape=jax.ShapeDtypeStruct((B * H2 * W2, NUM_CLASSES), jnp.float32),
    )(cols2, params["ct2_w"], params["ct2_b"], params["bn2_g"], params["bn2_b"],
      params["cls_w"], params["cls_b"])

    return out.reshape(B, H2, W2, NUM_CLASSES).transpose(0, 3, 1, 2)   # NCHW like PyTorch


# --------------------------------- parameter init -----------------------------------
def init_params(key):
    """Parameters in the PyTorch module's native layouts."""
    D = EMBED_DIM
    keys = iter(jax.random.split(key, 128))

    def nrm(shape, scale=0.02):
        return (scale * jax.random.normal(next(keys), shape)).astype(jnp.float32)

    params = {
        "patch_w": nrm((D, IN_CH, PATCH_SIZE, PATCH_SIZE)),  # Conv2d (Cout, Cin, k, k)
        "patch_b": nrm((D,)),
        "pos_embed": nrm((1, 3 * (IMAGE_SIZE // PATCH_SIZE) ** 2, D)),
        "norm_g": jnp.ones((D,), jnp.float32),
        "norm_b": jnp.zeros((D,), jnp.float32),
        "ct1_w": nrm((D, D // 2, 3, 3)),                     # ConvTranspose2d (Cin, Cout, k, k)
        "ct1_b": nrm((D // 2,)),
        "bn1_g": jnp.ones((D // 2,), jnp.float32),
        "bn1_b": jnp.zeros((D // 2,), jnp.float32),
        "ct2_w": nrm((D // 2, D // 4, 3, 3)),
        "ct2_b": nrm((D // 4,)),
        "bn2_g": jnp.ones((D // 4,), jnp.float32),
        "bn2_b": jnp.zeros((D // 4,), jnp.float32),
        "cls_w": nrm((NUM_CLASSES, D // 4, 1, 1)),           # Conv2d 1x1 (Cout, Cin, 1, 1)
        "cls_b": nrm((NUM_CLASSES,)),
        "blocks": [],
    }
    hidden = 4 * D
    for _ in range(DEPTH):
        params["blocks"].append({
            "ln1_g": jnp.ones((D,), jnp.float32),
            "ln1_b": jnp.zeros((D,), jnp.float32),
            "in_proj_w": nrm((3 * D, D)),
            "in_proj_b": nrm((3 * D,)),
            "out_proj_w": nrm((D, D)),
            "out_proj_b": nrm((D,)),
            "ln2_g": jnp.ones((D,), jnp.float32),
            "ln2_b": jnp.zeros((D,), jnp.float32),
            "mlp_w1": nrm((hidden, D)),
            "mlp_b1": nrm((hidden,)),
            "mlp_w2": nrm((D, hidden)),
            "mlp_b2": nrm((D,)),
        })
    return params


def _convT_weight_slab(w_t):
    """(Cin, Cout, k, k) ConvTranspose2d weight -> (k*k*Cin, Cout) matmul slab
    matching the (kh, kw, c) feature order produced by _convT_cols."""
    k = w_t.shape[-1]
    wf = jnp.flip(w_t, axis=(2, 3))                          # flipped taps
    return wf.transpose(2, 3, 0, 1).reshape(k * k * w_t.shape[0], w_t.shape[1])


def prepare_params(p):
    """One-time packing: pre-transpose/flatten every weight into kernel (K, N) layout."""
    D = EMBED_DIM

    def row(v):
        return v.reshape(1, -1)

    out = {
        "patch_w": p["patch_w"].reshape(D, -1).T,            # (Cin*P*P, D)
        "patch_b": row(p["patch_b"]),
        "pos_embed": p["pos_embed"],
        "norm_g": row(p["norm_g"]), "norm_b": row(p["norm_b"]),
        "ct1_w": _convT_weight_slab(p["ct1_w"]), "ct1_b": row(p["ct1_b"]),
        "bn1_g": row(p["bn1_g"]), "bn1_b": row(p["bn1_b"]),
        "ct2_w": _convT_weight_slab(p["ct2_w"]), "ct2_b": row(p["ct2_b"]),
        "bn2_g": row(p["bn2_g"]), "bn2_b": row(p["bn2_b"]),
        "cls_w": p["cls_w"].reshape(NUM_CLASSES, -1).T,      # (D//4, num_classes)
        "cls_b": row(p["cls_b"]),
        "blocks": [],
    }
    for bp in p["blocks"]:
        out["blocks"].append({
            "ln1_g": row(bp["ln1_g"]), "ln1_b": row(bp["ln1_b"]),
            "wqkv": bp["in_proj_w"].T, "bqkv": row(bp["in_proj_b"]),
            "wo": bp["out_proj_w"].T, "bo": row(bp["out_proj_b"]),
            "ln2_g": row(bp["ln2_g"]), "ln2_b": row(bp["ln2_b"]),
            "w1": bp["mlp_w1"].T, "b1": row(bp["mlp_b1"]),
            "w2": bp["mlp_w2"].T, "b2": row(bp["mlp_b2"]),
        })
    return out


# -------------------------------------- main ----------------------------------------
if __name__ == "__main__":
    key = jax.random.PRNGKey(0)
    pkey, xkey = jax.random.split(key)
    params = prepare_params(init_params(pkey))

    # 5-D input (B, T=6, C=3, H, W) like InstaGeo temporal stacks; forward reshapes it.
    img = jax.random.normal(xkey, (2, 6, 3, IMAGE_SIZE, IMAGE_SIZE), dtype=jnp.float32)

    out = jax.jit(tiny_vit_forward)(params, img)
    out = jax.block_until_ready(out)

    assert out.shape == (2, NUM_CLASSES, IMAGE_SIZE, IMAGE_SIZE), out.shape
    assert bool(jnp.all(jnp.isfinite(out)))
    print("KERNEL_OK")
</pallas_src>

<mosaic_0001>
module attributes {stable_mosaic.version = 11 : i64} {
  func.func @_vit_kernel(%arg0: memref<32x288xf32, #tpu.memory_space<vmem>>, %arg1: memref<16x32xf32, #tpu.memory_space<vmem>>, %arg2: memref<288x32xf32, #tpu.memory_space<vmem>>, %arg3: memref<1x32xf32, #tpu.memory_space<vmem>>, %arg4: memref<1x32xf32, #tpu.memory_space<vmem>>, %arg5: memref<1x32xf32, #tpu.memory_space<vmem>>, %arg6: memref<32x96xf32, #tpu.memory_space<vmem>>, %arg7: memref<1x96xf32, #tpu.memory_space<vmem>>, %arg8: memref<32x32xf32, #tpu.memory_space<vmem>>, %arg9: memref<1x32xf32, #tpu.memory_space<vmem>>, %arg10: memref<1x32xf32, #tpu.memory_space<vmem>>, %arg11: memref<1x32xf32, #tpu.memory_space<vmem>>, %arg12: memref<32x128xf32, #tpu.memory_space<vmem>>, %arg13: memref<1x128xf32, #tpu.memory_space<vmem>>, %arg14: memref<128x32xf32, #tpu.memory_space<vmem>>, %arg15: memref<1x32xf32, #tpu.memory_space<vmem>>, %arg16: memref<1x32xf32, #tpu.memory_space<vmem>>, %arg17: memref<1x32xf32, #tpu.memory_space<vmem>>, %arg18: memref<32x96xf32, #tpu.memory_space<vmem>>, %arg19: memref<1x96xf32, #tpu.memory_space<vmem>>, %arg20: memref<32x32xf32, #tpu.memory_space<vmem>>, %arg21: memref<1x32xf32, #tpu.memory_space<vmem>>, %arg22: memref<1x32xf32, #tpu.memory_space<vmem>>, %arg23: memref<1x32xf32, #tpu.memory_space<vmem>>, %arg24: memref<32x128xf32, #tpu.memory_space<vmem>>, %arg25: memref<1x128xf32, #tpu.memory_space<vmem>>, %arg26: memref<128x32xf32, #tpu.memory_space<vmem>>, %arg27: memref<1x32xf32, #tpu.memory_space<vmem>>, %arg28: memref<1x32xf32, #tpu.memory_space<vmem>>, %arg29: memref<1x32xf32, #tpu.memory_space<vmem>>, %arg30: memref<32x32xf32, #tpu.memory_space<vmem>>) attributes {dimension_semantics = [], scalar_prefetch = 0 : i64, scratch_operands = 0 : i64, tpu.core_type = #tpu.core_type<tc>} {
    %c0 = arith.constant 0 : index
    %c0_0 = arith.constant 0 : index
    %0 = vector.load %arg0[%c0, %c0_0] : memref<32x288xf32, #tpu.memory_space<vmem>>, vector<32x288xf32>
    %c0_1 = arith.constant 0 : index
    %c0_2 = arith.constant 0 : index
    %1 = vector.load %arg2[%c0_1, %c0_2] : memref<288x32xf32, #tpu.memory_space<vmem>>, vector<288x32xf32>
    %cst = arith.constant dense<0.000000e+00> : vector<32x32xf32>
    %2 = tpu.matmul %0, %1, %cst {dimension_numbers = #tpu.dot_dimension_numbers<[1], [0], [0], [1], [0, 0, 1, 1], [], []>} : vector<32x288xf32>, vector<288x32xf32>, vector<32x32xf32> -> vector<32x32xf32>
    %c0_3 = arith.constant 0 : index
    %c0_4 = arith.constant 0 : index
    %3 = vector.load %arg3[%c0_3, %c0_4] : memref<1x32xf32, #tpu.memory_space<vmem>>, vector<1x32xf32>
    %4 = vector.broadcast %3 : vector<1x32xf32> to vector<32x32xf32>
    %5 = arith.addf %2, %4 : vector<32x32xf32>
    %c0_5 = arith.constant 0 : index
    %c0_6 = arith.constant 0 : index
    %6 = vector.load %arg1[%c0_5, %c0_6] : memref<16x32xf32, #tpu.memory_space<vmem>>, vector<16x32xf32>
    %7 = tpu.concatenate %6, %6 in 0 : vector<16x32xf32>, vector<16x32xf32> -> vector<32x32xf32>
    %8 = arith.addf %5, %7 : vector<32x32xf32>
    %c0_7 = arith.constant 0 : index
    %c0_8 = arith.constant 0 : index
    %9 = vector.load %arg4[%c0_7, %c0_8] : memref<1x32xf32, #tpu.memory_space<vmem>>, vector<1x32xf32>
    %c0_9 = arith.constant 0 : index
    %c0_10 = arith.constant 0 : index
    %10 = vector.load %arg5[%c0_9, %c0_10] : memref<1x32xf32, #tpu.memory_space<vmem>>, vector<1x32xf32>
    %cst_11 = arith.constant dense<0.000000e+00> : vector<32xf32>
    %11 = vector.multi_reduction <add>, %8, %cst_11 [1] : vector<32x32xf32> to vector<32xf32>
    %12 = vector.shape_cast %11 : vector<32xf32> to vector<32x1xf32>
    %cst_12 = arith.constant 3.200000e+01 : f32
    %13 = vector.broadcast %cst_12 : f32 to vector<32x1xf32>
    %14 = arith.divf %12, %13 : vector<32x1xf32>
    %15 = vector.broadcast %14 : vector<32x1xf32> to vector<32x32xf32>
    %16 = arith.subf %8, %15 : vector<32x32xf32>
    %17 = arith.mulf %16, %16 : vector<32x32xf32>
    %cst_13 = arith.constant dense<0.000000e+00> : vector<32xf32>
    %18 = vector.multi_reduction <add>, %17, %cst_13 [1] : vector<32x32xf32> to vector<32xf32>
    %19 = vector.shape_cast %18 : vector<32xf32> to vector<32x1xf32>
    %cst_14 = arith.constant 3.200000e+01 : f32
    %20 = vector.broadcast %cst_14 : f32 to vector<32x1xf32>
    %21 = arith.divf %19, %20 : vector<32x1xf32>
    %22 = vector.broadcast %14 : vector<32x1xf32> to vector<32x32xf32>
    %23 = arith.subf %8, %22 : vector<32x32xf32>
    %cst_15 = arith.constant 9.99999974E-6 : f32
    %24 = vector.broadcast %cst_15 : f32 to vector<32x1xf32>
    %25 = arith.addf %21, %24 : vector<32x1xf32>
    %26 = math.rsqrt %25 : vector<32x1xf32>
    %27 = vector.broadcast %26 : vector<32x1xf32> to vector<32x32xf32>
    %28 = arith.mulf %23, %27 : vector<32x32xf32>
    %29 = vector.broadcast %9 : vector<1x32xf32> to vector<32x32xf32>
    %30 = arith.mulf %28, %29 : vector<32x32xf32>
    %31 = vector.broadcast %10 : vector<1x32xf32> to vector<32x32xf32>
    %32 = arith.addf %30, %31 : vector<32x32xf32>
    %c0_16 = arith.constant 0 : index
    %c0_17 = arith.constant 0 : index
    %33 = vector.load %arg6[%c0_16, %c0_17] : memref<32x96xf32, #tpu.memory_space<vmem>>, vector<32x96xf32>
    %cst_18 = arith.constant dense<0.000000e+00> : vector<32x96xf32>
    %34 = tpu.matmul %32, %33, %cst_18 {dimension_numbers = #tpu.dot_dimension_numbers<[1], [0], [0], [1], [0, 0, 1, 1], [], []>} : vector<32x32xf32>, vector<32x96xf32>, vector<32x96xf32> -> vector<32x96xf32>
    %c0_19 = arith.constant 0 : index
    %c0_20 = arith.constant 0 : index
    %35 = vector.load %arg7[%c0_19, %c0_20] : memref<1x96xf32, #tpu.memory_space<vmem>>, vector<1x96xf32>
    %36 = vector.broadcast %35 : vector<1x96xf32> to vector<32x96xf32>
    %37 = arith.addf %34, %36 : vector<32x96xf32>
    %c0_21 = arith.constant 0 : index
    %c0_22 = arith.constant 0 : index
    %38 = vector.load %arg8[%c0_21, %c0_22] : memref<32x32xf32, #tpu.memory_space<vmem>>, vector<32x32xf32>
    %39 = vector.extract_strided_slice %37 {offsets = [0, 0], sizes = [16, 8], strides = [1, 1]} : vector<32x96xf32> to vector<16x8xf32>
    %40 = vector.extract_strided_slice %37 {offsets = [0, 32], sizes = [16, 8], strides = [1, 1]} : vector<32x96xf32> to vector<16x8xf32>
    %41 = vector.extract_strided_slice %37 {offsets = [0, 64], sizes = [16, 8], strides = [1, 1]} : vector<32x96xf32> to vector<16x8xf32>
    %cst_23 = arith.constant dense<0.000000e+00> : vector<16x16xf32>
    %42 = tpu.matmul %39, %40, %cst_23 {dimension_numbers = #tpu.dot_dimension_numbers<[1], [1], [0], [0], [0, 0, 1, 0], [], []>} : vector<16x8xf32>, vector<16x8xf32>, vector<16x16xf32> -> vector<16x16xf32>
    %cst_24 = arith.constant 0.353553385 : f32
    %43 = vector.broadcast %cst_24 : f32 to vector<16x16xf32>
    %44 = arith.mulf %42, %43 : vector<16x16xf32>
    %cst_25 = arith.constant dense<0xFF800000> : vector<16xf32>
    %45 = vector.multi_reduction <maximumf>, %44, %cst_25 [1] : vector<16x16xf32> to vector<16xf32>
    %46 = vector.shape_cast %45 : vector<16xf32> to vector<16x1xf32>
    %47 = vector.broadcast %46 : vector<16x1xf32> to vector<16x16xf32>
    %48 = arith.subf %44, %47 : vector<16x16xf32>
    %49 = math.exp %48 : vector<16x16xf32>
    %cst_26 = arith.constant dense<0.000000e+00> : vector<16xf32>
    %50 = vector.multi_reduction <add>, %49, %cst_26 [1] : vector<16x16xf32> to vector<16xf32>
    %51 = vector.shape_cast %50 : vector<16xf32> to vector<16x1xf32>
    %52 = vector.broadcast %51 : vector<16x1xf32> to vector<16x16xf32>
    %53 = arith.divf %49, %52 : vector<16x16xf32>
    %cst_27 = arith.constant dense<0.000000e+00> : vector<16x8xf32>
    %54 = tpu.matmul %53, %41, %cst_27 {dimension_numbers = #tpu.dot_dimension_numbers<[1], [0], [0], [1], [0, 0, 1, 1], [], []>} : vector<16x16xf32>, vector<16x8xf32>, vector<16x8xf32> -> vector<16x8xf32>
    %55 = vector.extract_strided_slice %38 {offsets = [0, 0], sizes = [8, 32], strides = [1, 1]} : vector<32x32xf32> to vector<8x32xf32>
    %cst_28 = arith.constant dense<0.000000e+00> : vector<16x32xf32>
    %56 = tpu.matmul %54, %55, %cst_28 {dimension_numbers = #tpu.dot_dimension_numbers<[1], [0], [0], [1], [0, 0, 1, 1], [], []>} : vector<16x8xf32>, vector<8x32xf32>, vector<16x32xf32> -> vector<16x32xf32>
    %57 = vector.extract_strided_slice %37 {offsets = [0, 8], sizes = [16, 8], strides = [1, 1]} : vector<32x96xf32> to vector<16x8xf32>
    %58 = vector.extract_strided_slice %37 {offsets = [0, 40], sizes = [16, 8], strides = [1, 1]} : vector<32x96xf32> to vector<16x8xf32>
    %59 = vector.extract_strided_slice %37 {offsets = [0, 72], sizes = [16, 8], strides = [1, 1]} : vector<32x96xf32> to vector<16x8xf32>
    %cst_29 = arith.constant dense<0.000000e+00> : vector<16x16xf32>
    %60 = tpu.matmul %57, %58, %cst_29 {dimension_numbers = #tpu.dot_dimension_numbers<[1], [1], [0], [0], [0, 0, 1, 0], [], []>} : vector<16x8xf32>, vector<16x8xf32>, vector<16x16xf32> -> vector<16x16xf32>
    %cst_30 = arith.constant 0.353553385 : f32
    %61 = vector.broadcast %cst_30 : f32 to vector<16x16xf32>
    %62 = arith.mulf %60, %61 : vector<16x16xf32>
    %cst_31 = arith.constant dense<0xFF800000> : vector<16xf32>
    %63 = vector.multi_reduction <maximumf>, %62, %cst_31 [1] : vector<16x16xf32> to vector<16xf32>
    %64 = vector.shape_cast %63 : vector<16xf32> to vector<16x1xf32>
    %65 = vector.broadcast %64 : vector<16x1xf32> to vector<16x16xf32>
    %66 = arith.subf %62, %65 : vector<16x16xf32>
    %67 = math.exp %66 : vector<16x16xf32>
    %cst_32 = arith.constant dense<0.000000e+00> : vector<16xf32>
    %68 = vector.multi_reduction <add>, %67, %cst_32 [1] : vector<16x16xf32> to vector<16xf32>
    %69 = vector.shape_cast %68 : vector<16xf32> to vector<16x1xf32>
    %70 = vector.broadcast %69 : vector<16x1xf32> to vector<16x16xf32>
    %71 = arith.divf %67, %70 : vector<16x16xf32>
    %cst_33 = arith.constant dense<0.000000e+00> : vector<16x8xf32>
    %72 = tpu.matmul %71, %59, %cst_33 {dimension_numbers = #tpu.dot_dimension_numbers<[1], [0], [0], [1], [0, 0, 1, 1], [], []>} : vector<16x16xf32>, vector<16x8xf32>, vector<16x8xf32> -> vector<16x8xf32>
    %73 = vector.extract_strided_slice %38 {offsets = [8, 0], sizes = [8, 32], strides = [1, 1]} : vector<32x32xf32> to vector<8x32xf32>
    %cst_34 = arith.constant dense<0.000000e+00> : vector<16x32xf32>
    %74 = tpu.matmul %72, %73, %cst_34 {dimension_numbers = #tpu.dot_dimension_numbers<[1], [0], [0], [1], [0, 0, 1, 1], [], []>} : vector<16x8xf32>, vector<8x32xf32>, vector<16x32xf32> -> vector<16x32xf32>
    %75 = arith.addf %56, %74 : vector<16x32xf32>
    %76 = vector.extract_strided_slice %37 {offsets = [0, 16], sizes = [16, 8], strides = [1, 1]} : vector<32x96xf32> to vector<16x8xf32>
    %77 = vector.extract_strided_slice %37 {offsets = [0, 48], sizes = [16, 8], strides = [1, 1]} : vector<32x96xf32> to vector<16x8xf32>
    %78 = vector.extract_strided_slice %37 {offsets = [0, 80], sizes = [16, 8], strides = [1, 1]} : vector<32x96xf32> to vector<16x8xf32>
    %cst_35 = arith.constant dense<0.000000e+00> : vector<16x16xf32>
    %79 = tpu.matmul %76, %77, %cst_35 {dimension_numbers = #tpu.dot_dimension_numbers<[1], [1], [0], [0], [0, 0, 1, 0], [], []>} : vector<16x8xf32>, vector<16x8xf32>, vector<16x16xf32> -> vector<16x16xf32>
    %cst_36 = arith.constant 0.353553385 : f32
    %80 = vector.broadcast %cst_36 : f32 to vector<16x16xf32>
    %81 = arith.mulf %79, %80 : vector<16x16xf32>
    %cst_37 = arith.constant dense<0xFF800000> : vector<16xf32>
    %82 = vector.multi_reduction <maximumf>, %81, %cst_37 [1] : vector<16x16xf32> to vector<16xf32>
    %83 = vector.shape_cast %82 : vector<16xf32> to vector<16x1xf32>
    %84 = vector.broadcast %83 : vector<16x1xf32> to vector<16x16xf32>
    %85 = arith.subf %81, %84 : vector<16x16xf32>
    %86 = math.exp %85 : vector<16x16xf32>
    %cst_38 = arith.constant dense<0.000000e+00> : vector<16xf32>
    %87 = vector.multi_reduction <add>, %86, %cst_38 [1] : vector<16x16xf32> to vector<16xf32>
    %88 = vector.shape_cast %87 : vector<16xf32> to vector<16x1xf32>
    %89 = vector.broadcast %88 : vector<16x1xf32> to vector<16x16xf32>
    %90 = arith.divf %86, %89 : vector<16x16xf32>
    %cst_39 = arith.constant dense<0.000000e+00> : vector<16x8xf32>
    %91 = tpu.matmul %90, %78, %cst_39 {dimension_numbers = #tpu.dot_dimension_numbers<[1], [0], [0], [1], [0, 0, 1, 1], [], []>} : vector<16x16xf32>, vector<16x8xf32>, vector<16x8xf32> -> vector<16x8xf32>
    %92 = vector.extract_strided_slice %38 {offsets = [16, 0], sizes = [8, 32], strides = [1, 1]} : vector<32x32xf32> to vector<8x32xf32>
    %cst_40 = arith.constant dense<0.000000e+00> : vector<16x32xf32>
    %93 = tpu.matmul %91, %92, %cst_40 {dimension_numbers = #tpu.dot_dimension_numbers<[1], [0], [0], [1], [0, 0, 1, 1], [], []>} : vector<16x8xf32>, vector<8x32xf32>, vector<16x32xf32> -> vector<16x32xf32>
    %94 = arith.addf %75, %93 : vector<16x32xf32>
    %95 = vector.extract_strided_slice %37 {offsets = [0, 24], sizes = [16, 8], strides = [1, 1]} : vector<32x96xf32> to vector<16x8xf32>
    %96 = vector.extract_strided_slice %37 {offsets = [0, 56], sizes = [16, 8], strides = [1, 1]} : vector<32x96xf32> to vector<16x8xf32>
    %97 = vector.extract_strided_slice %37 {offsets = [0, 88], sizes = [16, 8], strides = [1, 1]} : vector<32x96xf32> to vector<16x8xf32>
    %cst_41 = arith.constant dense<0.000000e+00> : vector<16x16xf32>
    %98 = tpu.matmul %95, %96, %cst_41 {dimension_numbers = #tpu.dot_dimension_numbers<[1], [1], [0], [0], [0, 0, 1, 0], [], []>} : vector<16x8xf32>, vector<16x8xf32>, vector<16x16xf32> -> vector<16x16xf32>
    %cst_42 = arith.constant 0.353553385 : f32
    %99 = vector.broadcast %cst_42 : f32 to vector<16x16xf32>
    %100 = arith.mulf %98, %99 : vector<16x16xf32>
    %cst_43 = arith.constant dense<0xFF800000> : vector<16xf32>
    %101 = vector.multi_reduction <maximumf>, %100, %cst_43 [1] : vector<16x16xf32> to vector<16xf32>
    %102 = vector.shape_cast %101 : vector<16xf32> to vector<16x1xf32>
    %103 = vector.broadcast %102 : vector<16x1xf32> to vector<16x16xf32>
    %104 = arith.subf %100, %103 : vector<16x16xf32>
    %105 = math.exp %104 : vector<16x16xf32>
    %cst_44 = arith.constant dense<0.000000e+00> : vector<16xf32>
    %106 = vector.multi_reduction <add>, %105, %cst_44 [1] : vector<16x16xf32> to vector<16xf32>
    %107 = vector.shape_cast %106 : vector<16xf32> to vector<16x1xf32>
    %108 = vector.broadcast %107 : vector<16x1xf32> to vector<16x16xf32>
    %109 = arith.divf %105, %108 : vector<16x16xf32>
    %cst_45 = arith.constant dense<0.000000e+00> : vector<16x8xf32>
    %110 = tpu.matmul %109, %97, %cst_45 {dimension_numbers = #tpu.dot_dimension_numbers<[1], [0], [0], [1], [0, 0, 1, 1], [], []>} : vector<16x16xf32>, vector<16x8xf32>, vector<16x8xf32> -> vector<16x8xf32>
    %111 = vector.extract_strided_slice %38 {offsets = [24, 0], sizes = [8, 32], strides = [1, 1]} : vector<32x32xf32> to vector<8x32xf32>
    %cst_46 = arith.constant dense<0.000000e+00> : vector<16x32xf32>
    %112 = tpu.matmul %110, %111, %cst_46 {dimension_numbers = #tpu.dot_dimension_numbers<[1], [0], [0], [1], [0, 0, 1, 1], [], []>} : vector<16x8xf32>, vector<8x32xf32>, vector<16x32xf32> -> vector<16x32xf32>
    %113 = arith.addf %94, %112 : vector<16x32xf32>
    %114 = vector.extract_strided_slice %37 {offsets = [16, 0], sizes = [16, 8], strides = [1, 1]} : vector<32x96xf32> to vector<16x8xf32>
    %115 = vector.extract_strided_slice %37 {offsets = [16, 32], sizes = [16, 8], strides = [1, 1]} : vector<32x96xf32> to vector<16x8xf32>
    %116 = vector.extract_strided_slice %37 {offsets = [16, 64], sizes = [16, 8], strides = [1, 1]} : vector<32x96xf32> to vector<16x8xf32>
    %cst_47 = arith.constant dense<0.000000e+00> : vector<16x16xf32>
    %117 = tpu.matmul %114, %115, %cst_47 {dimension_numbers = #tpu.dot_dimension_numbers<[1], [1], [0], [0], [0, 0, 1, 0], [], []>} : vector<16x8xf32>, vector<16x8xf32>, vector<16x16xf32> -> vector<16x16xf32>
    %cst_48 = arith.constant 0.353553385 : f32
    %118 = vector.broadcast %cst_48 : f32 to vector<16x16xf32>
    %119 = arith.mulf %117, %118 : vector<16x16xf32>
    %cst_49 = arith.constant dense<0xFF800000> : vector<16xf32>
    %120 = vector.multi_reduction <maximumf>, %119, %cst_49 [1] : vector<16x16xf32> to vector<16xf32>
    %121 = vector.shape_cast %120 : vector<16xf32> to vector<16x1xf32>
    %122 = vector.broadcast %121 : vector<16x1xf32> to vector<16x16xf32>
    %123 = arith.subf %119, %122 : vector<16x16xf32>
    %124 = math.exp %123 : vector<16x16xf32>
    %cst_50 = arith.constant dense<0.000000e+00> : vector<16xf32>
    %125 = vector.multi_reduction <add>, %124, %cst_50 [1] : vector<16x16xf32> to vector<16xf32>
    %126 = vector.shape_cast %125 : vector<16xf32> to vector<16x1xf32>
    %127 = vector.broadcast %126 : vector<16x1xf32> to vector<16x16xf32>
    %128 = arith.divf %124, %127 : vector<16x16xf32>
    %cst_51 = arith.constant dense<0.000000e+00> : vector<16x8xf32>
    %129 = tpu.matmul %128, %116, %cst_51 {dimension_numbers = #tpu.dot_dimension_numbers<[1], [0], [0], [1], [0, 0, 1, 1], [], []>} : vector<16x16xf32>, vector<16x8xf32>, vector<16x8xf32> -> vector<16x8xf32>
    %130 = vector.extract_strided_slice %38 {offsets = [0, 0], sizes = [8, 32], strides = [1, 1]} : vector<32x32xf32> to vector<8x32xf32>
    %cst_52 = arith.constant dense<0.000000e+00> : vector<16x32xf32>
    %131 = tpu.matmul %129, %130, %cst_52 {dimension_numbers = #tpu.dot_dimension_numbers<[1], [0], [0], [1], [0, 0, 1, 1], [], []>} : vector<16x8xf32>, vector<8x32xf32>, vector<16x32xf32> -> vector<16x32xf32>
    %132 = vector.extract_strided_slice %37 {offsets = [16, 8], sizes = [16, 8], strides = [1, 1]} : vector<32x96xf32> to vector<16x8xf32>
    %133 = vector.extract_strided_slice %37 {offsets = [16, 40], sizes = [16, 8], strides = [1, 1]} : vector<32x96xf32> to vector<16x8xf32>
    %134 = vector.extract_strided_slice %37 {offsets = [16, 72], sizes = [16, 8], strides = [1, 1]} : vector<32x96xf32> to vector<16x8xf32>
    %cst_53 = arith.constant dense<0.000000e+00> : vector<16x16xf32>
    %135 = tpu.matmul %132, %133, %cst_53 {dimension_numbers = #tpu.dot_dimension_numbers<[1], [1], [0], [0], [0, 0, 1, 0], [], []>} : vector<16x8xf32>, vector<16x8xf32>, vector<16x16xf32> -> vector<16x16xf32>
    %cst_54 = arith.constant 0.353553385 : f32
    %136 = vector.broadcast %cst_54 : f32 to vector<16x16xf32>
    %137 = arith.mulf %135, %136 : vector<16x16xf32>
    %cst_55 = arith.constant dense<0xFF800000> : vector<16xf32>
    %138 = vector.multi_reduction <maximumf>, %137, %cst_55 [1] : vector<16x16xf32> to vector<16xf32>
    %139 = vector.shape_cast %138 : vector<16xf32> to vector<16x1xf32>
    %140 = vector.broadcast %139 : vector<16x1xf32> to vector<16x16xf32>
    %141 = arith.subf %137, %140 : vector<16x16xf32>
    %142 = math.exp %141 : vector<16x16xf32>
    %cst_56 = arith.constant dense<0.000000e+00> : vector<16xf32>
    %143 = vector.multi_reduction <add>, %142, %cst_56 [1] : vector<16x16xf32> to vector<16xf32>
    %144 = vector.shape_cast %143 : vector<16xf32> to vector<16x1xf32>
    %145 = vector.broadcast %144 : vector<16x1xf32> to vector<16x16xf32>
    %146 = arith.divf %142, %145 : vector<16x16xf32>
    %cst_57 = arith.constant dense<0.000000e+00> : vector<16x8xf32>
    %147 = tpu.matmul %146, %134, %cst_57 {dimension_numbers = #tpu.dot_dimension_numbers<[1], [0], [0], [1], [0, 0, 1, 1], [], []>} : vector<16x16xf32>, vector<16x8xf32>, vector<16x8xf32> -> vector<16x8xf32>
    %148 = vector.extract_strided_slice %38 {offsets = [8, 0], sizes = [8, 32], strides = [1, 1]} : vector<32x32xf32> to vector<8x32xf32>
    %cst_58 = arith.constant dense<0.000000e+00> : vector<16x32xf32>
    %149 = tpu.matmul %147, %148, %cst_58 {dimension_numbers = #tpu.dot_dimension_numbers<[1], [0], [0], [1], [0, 0, 1, 1], [], []>} : vector<16x8xf32>, vector<8x32xf32>, vector<16x32xf32> -> vector<16x32xf32>
    %150 = arith.addf %131, %149 : vector<16x32xf32>
    %151 = vector.extract_strided_slice %37 {offsets = [16, 16], sizes = [16, 8], strides = [1, 1]} : vector<32x96xf32> to vector<16x8xf32>
    %152 = vector.extract_strided_slice %37 {offsets = [16, 48], sizes = [16, 8], strides = [1, 1]} : vector<32x96xf32> to vector<16x8xf32>
    %153 = vector.extract_strided_slice %37 {offsets = [16, 80], sizes = [16, 8], strides = [1, 1]} : vector<32x96xf32> to vector<16x8xf32>
    %cst_59 = arith.constant dense<0.000000e+00> : vector<16x16xf32>
    %154 = tpu.matmul %151, %152, %cst_59 {dimension_numbers = #tpu.dot_dimension_numbers<[1], [1], [0], [0], [0, 0, 1, 0], [], []>} : vector<16x8xf32>, vector<16x8xf32>, vector<16x16xf32> -> vector<16x16xf32>
    %cst_60 = arith.constant 0.353553385 : f32
    %155 = vector.broadcast %cst_60 : f32 to vector<16x16xf32>
    %156 = arith.mulf %154, %155 : vector<16x16xf32>
    %cst_61 = arith.constant dense<0xFF800000> : vector<16xf32>
    %157 = vector.multi_reduction <maximumf>, %156, %cst_61 [1] : vector<16x16xf32> to vector<16xf32>
    %158 = vector.shape_cast %157 : vector<16xf32> to vector<16x1xf32>
    %159 = vector.broadcast %158 : vector<16x1xf32> to vector<16x16xf32>
    %160 = arith.subf %156, %159 : vector<16x16xf32>
    %161 = math.exp %160 : vector<16x16xf32>
    %cst_62 = arith.constant dense<0.000000e+00> : vector<16xf32>
    %162 = vector.multi_reduction <add>, %161, %cst_62 [1] : vector<16x16xf32> to vector<16xf32>
    %163 = vector.shape_cast %162 : vector<16xf32> to vector<16x1xf32>
    %164 = vector.broadcast %163 : vector<16x1xf32> to vector<16x16xf32>
    %165 = arith.divf %161, %164 : vector<16x16xf32>
    %cst_63 = arith.constant dense<0.000000e+00> : vector<16x8xf32>
    %166 = tpu.matmul %165, %153, %cst_63 {dimension_numbers = #tpu.dot_dimension_numbers<[1], [0], [0], [1], [0, 0, 1, 1], [], []>} : vector<16x16xf32>, vector<16x8xf32>, vector<16x8xf32> -> vector<16x8xf32>
    %167 = vector.extract_strided_slice %38 {offsets = [16, 0], sizes = [8, 32], strides = [1, 1]} : vector<32x32xf32> to vector<8x32xf32>
    %cst_64 = arith.constant dense<0.000000e+00> : vector<16x32xf32>
    %168 = tpu.matmul %166, %167, %cst_64 {dimension_numbers = #tpu.dot_dimension_numbers<[1], [0], [0], [1], [0, 0, 1, 1], [], []>} : vector<16x8xf32>, vector<8x32xf32>, vector<16x32xf32> -> vector<16x32xf32>
    %169 = arith.addf %150, %168 : vector<16x32xf32>
    %170 = vector.extract_strided_slice %37 {offsets = [16, 24], sizes = [16, 8], strides = [1, 1]} : vector<32x96xf32> to vector<16x8xf32>
    %171 = vector.extract_strided_slice %37 {offsets = [16, 56], sizes = [16, 8], strides = [1, 1]} : vector<32x96xf32> to vector<16x8xf32>
    %172 = vector.extract_strided_slice %37 {offsets = [16, 88], sizes = [16, 8], strides = [1, 1]} : vector<32x96xf32> to vector<16x8xf32>
    %cst_65 = arith.constant dense<0.000000e+00> : vector<16x16xf32>
    %173 = tpu.matmul %170, %171, %cst_65 {dimension_numbers = #tpu.dot_dimension_numbers<[1], [1], [0], [0], [0, 0, 1, 0], [], []>} : vector<16x8xf32>, vector<16x8xf32>, vector<16x16xf32> -> vector<16x16xf32>
    %cst_66 = arith.constant 0.353553385 : f32
    %174 = vector.broadcast %cst_66 : f32 to vector<16x16xf32>
    %175 = arith.mulf %173, %174 : vector<16x16xf32>
    %cst_67 = arith.constant dense<0xFF800000> : vector<16xf32>
    %176 = vector.multi_reduction <maximumf>, %175, %cst_67 [1] : vector<16x16xf32> to vector<16xf32>
    %177 = vector.shape_cast %176 : vector<16xf32> to vector<16x1xf32>
    %178 = vector.broadcast %177 : vector<16x1xf32> to vector<16x16xf32>
    %179 = arith.subf %175, %178 : vector<16x16xf32>
    %180 = math.exp %179 : vector<16x16xf32>
    %cst_68 = arith.constant dense<0.000000e+00> : vector<16xf32>
    %181 = vector.multi_reduction <add>, %180, %cst_68 [1] : vector<16x16xf32> to vector<16xf32>
    %182 = vector.shape_cast %181 : vector<16xf32> to vector<16x1xf32>
    %183 = vector.broadcast %182 : vector<16x1xf32> to vector<16x16xf32>
    %184 = arith.divf %180, %183 : vector<16x16xf32>
    %cst_69 = arith.constant dense<0.000000e+00> : vector<16x8xf32>
    %185 = tpu.matmul %184, %172, %cst_69 {dimension_numbers = #tpu.dot_dimension_numbers<[1], [0], [0], [1], [0, 0, 1, 1], [], []>} : vector<16x16xf32>, vector<16x8xf32>, vector<16x8xf32> -> vector<16x8xf32>
    %186 = vector.extract_strided_slice %38 {offsets = [24, 0], sizes = [8, 32], strides = [1, 1]} : vector<32x32xf32> to vector<8x32xf32>
    %cst_70 = arith.constant dense<0.000000e+00> : vector<16x32xf32>
    %187 = tpu.matmul %185, %186, %cst_70 {dimension_numbers = #tpu.dot_dimension_numbers<[1], [0], [0], [1], [0, 0, 1, 1], [], []>} : vector<16x8xf32>, vector<8x32xf32>, vector<16x32xf32> -> vector<16x32xf32>
    %188 = arith.addf %169, %187 : vector<16x32xf32>
    %189 = tpu.concatenate %113, %188 in 0 : vector<16x32xf32>, vector<16x32xf32> -> vector<32x32xf32>
    %c0_71 = arith.constant 0 : index
    %c0_72 = arith.constant 0 : index
    %190 = vector.load %arg9[%c0_71, %c0_72] : memref<1x32xf32, #tpu.memory_space<vmem>>, vector<1x32xf32>
    %191 = vector.broadcast %190 : vector<1x32xf32> to vector<32x32xf32>
    %192 = arith.addf %189, %191 : vector<32x32xf32>
    %193 = arith.addf %8, %192 : vector<32x32xf32>
    %c0_73 = arith.constant 0 : index
    %c0_74 = arith.constant 0 : index
    %194 = vector.load %arg10[%c0_73, %c0_74] : memref<1x32xf32, #tpu.memory_space<vmem>>, vector<1x32xf32>
    %c0_75 = arith.constant 0 : index
    %c0_76 = arith.constant 0 : index
    %195 = vector.load %arg11[%c0_75, %c0_76] : memref<1x32xf32, #tpu.memory_space<vmem>>, vector<1x32xf32>
    %cst_77 = arith.constant dense<0.000000e+00> : vector<32xf32>
    %196 = vector.multi_reduction <add>, %193, %cst_77 [1] : vector<32x32xf32> to vector<32xf32>
    %197 = vector.shape_cast %196 : vector<32xf32> to vector<32x1xf32>
    %cst_78 = arith.constant 3.200000e+01 : f32
    %198 = vector.broadcast %cst_78 : f32 to vector<32x1xf32>
    %199 = arith.divf %197, %198 : vector<32x1xf32>
    %200 = vector.broadcast %199 : vector<32x1xf32> to vector<32x32xf32>
    %201 = arith.subf %193, %200 : vector<32x32xf32>
    %202 = arith.mulf %201, %201 : vector<32x32xf32>
    %cst_79 = arith.constant dense<0.000000e+00> : vector<32xf32>
    %203 = vector.multi_reduction <add>, %202, %cst_79 [1] : vector<32x32xf32> to vector<32xf32>
    %204 = vector.shape_cast %203 : vector<32xf32> to vector<32x1xf32>
    %cst_80 = arith.constant 3.200000e+01 : f32
    %205 = vector.broadcast %cst_80 : f32 to vector<32x1xf32>
    %206 = arith.divf %204, %205 : vector<32x1xf32>
    %207 = vector.broadcast %199 : vector<32x1xf32> to vector<32x32xf32>
    %208 = arith.subf %193, %207 : vector<32x32xf32>
    %cst_81 = arith.constant 9.99999974E-6 : f32
    %209 = vector.broadcast %cst_81 : f32 to vector<32x1xf32>
    %210 = arith.addf %206, %209 : vector<32x1xf32>
    %211 = math.rsqrt %210 : vector<32x1xf32>
    %212 = vector.broadcast %211 : vector<32x1xf32> to vector<32x32xf32>
    %213 = arith.mulf %208, %212 : vector<32x32xf32>
    %214 = vector.broadcast %194 : vector<1x32xf32> to vector<32x32xf32>
    %215 = arith.mulf %213, %214 : vector<32x32xf32>
    %216 = vector.broadcast %195 : vector<1x32xf32> to vector<32x32xf32>
    %217 = arith.addf %215, %216 : vector<32x32xf32>
    %c0_82 = arith.constant 0 : index
    %c0_83 = arith.constant 0 : index
    %218 = vector.load %arg12[%c0_82, %c0_83] : memref<32x128xf32, #tpu.memory_space<vmem>>, vector<32x128xf32>
    %cst_84 = arith.constant dense<0.000000e+00> : vector<32x128xf32>
    %219 = tpu.matmul %217, %218, %cst_84 {dimension_numbers = #tpu.dot_dimension_numbers<[1], [0], [0], [1], [0, 0, 1, 1], [], []>} : vector<32x32xf32>, vector<32x128xf32>, vector<32x128xf32> -> vector<32x128xf32>
    %c0_85 = arith.constant 0 : index
    %c0_86 = arith.constant 0 : index
    %220 = vector.load %arg13[%c0_85, %c0_86] : memref<1x128xf32, #tpu.memory_space<vmem>>, vector<1x128xf32>
    %221 = vector.broadcast %220 : vector<1x128xf32> to vector<32x128xf32>
    %222 = arith.addf %219, %221 : vector<32x128xf32>
    %cst_87 = arith.constant 5.000000e-01 : f32
    %223 = vector.broadcast %cst_87 : f32 to vector<32x128xf32>
    %224 = arith.mulf %223, %222 : vector<32x128xf32>
    %cst_88 = arith.constant 0.707106769 : f32
    %225 = vector.broadcast %cst_88 : f32 to vector<32x128xf32>
    %226 = arith.mulf %222, %225 : vector<32x128xf32>
    %227 = math.absf %226 : vector<32x128xf32>
    %cst_89 = arith.constant 0.327591091 : f32
    %228 = vector.broadcast %cst_89 : f32 to vector<32x128xf32>
    %229 = arith.mulf %228, %227 : vector<32x128xf32>
    %cst_90 = arith.constant 1.000000e+00 : f32
    %230 = vector.broadcast %cst_90 : f32 to vector<32x128xf32>
    %231 = arith.addf %230, %229 : vector<32x128xf32>
    %cst_91 = arith.constant 1.000000e+00 : f32
    %232 = vector.broadcast %cst_91 : f32 to vector<32x128xf32>
    %233 = arith.divf %232, %231 : vector<32x128xf32>
    %cst_92 = arith.constant 1.06140542 : f32
    %234 = vector.broadcast %cst_92 : f32 to vector<32x128xf32>
    %235 = arith.mulf %234, %233 : vector<32x128xf32>
    %cst_93 = arith.constant 1.45315206 : f32
    %236 = vector.broadcast %cst_93 : f32 to vector<32x128xf32>
    %237 = arith.subf %235, %236 : vector<32x128xf32>
    %238 = arith.mulf %237, %233 : vector<32x128xf32>
    %cst_94 = arith.constant 1.42141378 : f32
    %239 = vector.broadcast %cst_94 : f32 to vector<32x128xf32>
    %240 = arith.addf %238, %239 : vector<32x128xf32>
    %241 = arith.mulf %240, %233 : vector<32x128xf32>
    %cst_95 = arith.constant 0.284496725 : f32
    %242 = vector.broadcast %cst_95 : f32 to vector<32x128xf32>
    %243 = arith.subf %241, %242 : vector<32x128xf32>
    %244 = arith.mulf %243, %233 : vector<32x128xf32>
    %cst_96 = arith.constant 0.254829586 : f32
    %245 = vector.broadcast %cst_96 : f32 to vector<32x128xf32>
    %246 = arith.addf %244, %245 : vector<32x128xf32>
    %247 = arith.mulf %246, %233 : vector<32x128xf32>
    %cst_97 = arith.constant 0.000000e+00 : f32
    %248 = vector.broadcast %cst_97 : f32 to vector<32x128xf32>
    %249 = arith.subf %248, %226 : vector<32x128xf32>
    %250 = arith.mulf %249, %226 : vector<32x128xf32>
    %251 = math.exp %250 : vector<32x128xf32>
    %252 = arith.mulf %247, %251 : vector<32x128xf32>
    %cst_98 = arith.constant 1.000000e+00 : f32
    %253 = vector.broadcast %cst_98 : f32 to vector<32x128xf32>
    %254 = arith.subf %253, %252 : vector<32x128xf32>
    %cst_99 = arith.constant 0.000000e+00 : f32
    %255 = vector.broadcast %cst_99 : f32 to vector<32x128xf32>
    %256 = arith.cmpf olt, %226, %255 : vector<32x128xf32>
    %cst_100 = arith.constant 0.000000e+00 : f32
    %257 = vector.broadcast %cst_100 : f32 to vector<32x128xf32>
    %258 = arith.subf %257, %254 : vector<32x128xf32>
    %259 = arith.select %256, %258, %254 : vector<32x128xi1>, vector<32x128xf32>
    %cst_101 = arith.constant 1.000000e+00 : f32
    %260 = vector.broadcast %cst_101 : f32 to vector<32x128xf32>
    %261 = arith.addf %260, %259 : vector<32x128xf32>
    %262 = arith.mulf %224, %261 : vector<32x128xf32>
    %c0_102 = arith.constant 0 : index
    %c0_103 = arith.constant 0 : index
    %263 = vector.load %arg14[%c0_102, %c0_103] : memref<128x32xf32, #tpu.memory_space<vmem>>, vector<128x32xf32>
    %cst_104 = arith.constant dense<0.000000e+00> : vector<32x32xf32>
    %264 = tpu.matmul %262, %263, %cst_104 {dimension_numbers = #tpu.dot_dimension_numbers<[1], [0], [0], [1], [0, 0, 1, 1], [], []>} : vector<32x128xf32>, vector<128x32xf32>, vector<32x32xf32> -> vector<32x32xf32>
    %c0_105 = arith.constant 0 : index
    %c0_106 = arith.constant 0 : index
    %265 = vector.load %arg15[%c0_105, %c0_106] : memref<1x32xf32, #tpu.memory_space<vmem>>, vector<1x32xf32>
    %266 = vector.broadcast %265 : vector<1x32xf32> to vector<32x32xf32>
    %267 = arith.addf %264, %266 : vector<32x32xf32>
    %268 = arith.addf %193, %267 : vector<32x32xf32>
    %c0_107 = arith.constant 0 : index
    %c0_108 = arith.constant 0 : index
    %269 = vector.load %arg16[%c0_107, %c0_108] : memref<1x32xf32, #tpu.memory_space<vmem>>, vector<1x32xf32>
    %c0_109 = arith.constant 0 : index
    %c0_110 = arith.constant 0 : index
    %270 = vector.load %arg17[%c0_109, %c0_110] : memref<1x32xf32, #tpu.memory_space<vmem>>, vector<1x32xf32>
    %cst_111 = arith.constant dense<0.000000e+00> : vector<32xf32>
    %271 = vector.multi_reduction <add>, %268, %cst_111 [1] : vector<32x32xf32> to vector<32xf32>
    %272 = vector.shape_cast %271 : vector<32xf32> to vector<32x1xf32>
    %cst_112 = arith.constant 3.200000e+01 : f32
    %273 = vector.broadcast %cst_112 : f32 to vector<32x1xf32>
    %274 = arith.divf %272, %273 : vector<32x1xf32>
    %275 = vector.broadcast %274 : vector<32x1xf32> to vector<32x32xf32>
    %276 = arith.subf %268, %275 : vector<32x32xf32>
    %277 = arith.mulf %276, %276 : vector<32x32xf32>
    %cst_113 = arith.constant dense<0.000000e+00> : vector<32xf32>
    %278 = vector.multi_reduction <add>, %277, %cst_113 [1] : vector<32x32xf32> to vector<32xf32>
    %279 = vector.shape_cast %278 : vector<32xf32> to vector<32x1xf32>
    %cst_114 = arith.constant 3.200000e+01 : f32
    %280 = vector.broadcast %cst_114 : f32 to vector<32x1xf32>
    %281 = arith.divf %279, %280 : vector<32x1xf32>
    %282 = vector.broadcast %274 : vector<32x1xf32> to vector<32x32xf32>
    %283 = arith.subf %268, %282 : vector<32x32xf32>
    %cst_115 = arith.constant 9.99999974E-6 : f32
    %284 = vector.broadcast %cst_115 : f32 to vector<32x1xf32>
    %285 = arith.addf %281, %284 : vector<32x1xf32>
    %286 = math.rsqrt %285 : vector<32x1xf32>
    %287 = vector.broadcast %286 : vector<32x1xf32> to vector<32x32xf32>
    %288 = arith.mulf %283, %287 : vector<32x32xf32>
    %289 = vector.broadcast %269 : vector<1x32xf32> to vector<32x32xf32>
    %290 = arith.mulf %288, %289 : vector<32x32xf32>
    %291 = vector.broadcast %270 : vector<1x32xf32> to vector<32x32xf32>
    %292 = arith.addf %290, %291 : vector<32x32xf32>
    %c0_116 = arith.constant 0 : index
    %c0_117 = arith.constant 0 : index
    %293 = vector.load %arg18[%c0_116, %c0_117] : memref<32x96xf32, #tpu.memory_space<vmem>>, vector<32x96xf32>
    %cst_118 = arith.constant dense<0.000000e+00> : vector<32x96xf32>
    %294 = tpu.matmul %292, %293, %cst_118 {dimension_numbers = #tpu.dot_dimension_numbers<[1], [0], [0], [1], [0, 0, 1, 1], [], []>} : vector<32x32xf32>, vector<32x96xf32>, vector<32x96xf32> -> vector<32x96xf32>
    %c0_119 = arith.constant 0 : index
    %c0_120 = arith.constant 0 : index
    %295 = vector.load %arg19[%c0_119, %c0_120] : memref<1x96xf32, #tpu.memory_space<vmem>>, vector<1x96xf32>
    %296 = vector.broadcast %295 : vector<1x96xf32> to vector<32x96xf32>
    %297 = arith.addf %294, %296 : vector<32x96xf32>
    %c0_121 = arith.constant 0 : index
    %c0_122 = arith.constant 0 : index
    %298 = vector.load %arg20[%c0_121, %c0_122] : memref<32x32xf32, #tpu.memory_space<vmem>>, vector<32x32xf32>
    %299 = vector.extract_strided_slice %297 {offsets = [0, 0], sizes = [16, 8], strides = [1, 1]} : vector<32x96xf32> to vector<16x8xf32>
    %300 = vector.extract_strided_slice %297 {offsets = [0, 32], sizes = [16, 8], strides = [1, 1]} : vector<32x96xf32> to vector<16x8xf32>
    %301 = vector.extract_strided_slice %297 {offsets = [0, 64], sizes = [16, 8], strides = [1, 1]} : vector<32x96xf32> to vector<16x8xf32>
    %cst_123 = arith.constant dense<0.000000e+00> : vector<16x16xf32>
    %302 = tpu.matmul %299, %300, %cst_123 {dimension_numbers = #tpu.dot_dimension_numbers<[1], [1], [0], [0], [0, 0, 1, 0], [], []>} : vector<16x8xf32>, vector<16x8xf32>, vector<16x16xf32> -> vector<16x16xf32>
    %cst_124 = arith.constant 0.353553385 : f32
    %303 = vector.broadcast %cst_124 : f32 to vector<16x16xf32>
    %304 = arith.mulf %302, %303 : vector<16x16xf32>
    %cst_125 = arith.constant dense<0xFF800000> : vector<16xf32>
    %305 = vector.multi_reduction <maximumf>, %304, %cst_125 [1] : vector<16x16xf32> to vector<16xf32>
    %306 = vector.shape_cast %305 : vector<16xf32> to vector<16x1xf32>
    %307 = vector.broadcast %306 : vector<16x1xf32> to vector<16x16xf32>
    %308 = arith.subf %304, %307 : vector<16x16xf32>
    %309 = math.exp %308 : vector<16x16xf32>
    %cst_126 = arith.constant dense<0.000000e+00> : vector<16xf32>
    %310 = vector.multi_reduction <add>, %309, %cst_126 [1] : vector<16x16xf32> to vector<16xf32>
    %311 = vector.shape_cast %310 : vector<16xf32> to vector<16x1xf32>
    %312 = vector.broadcast %311 : vector<16x1xf32> to vector<16x16xf32>
    %313 = arith.divf %309, %312 : vector<16x16xf32>
    %cst_127 = arith.constant dense<0.000000e+00> : vector<16x8xf32>
    %314 = tpu.matmul %313, %301, %cst_127 {dimension_numbers = #tpu.dot_dimension_numbers<[1], [0], [0], [1], [0, 0, 1, 1], [], []>} : vector<16x16xf32>, vector<16x8xf32>, vector<16x8xf32> -> vector<16x8xf32>
    %315 = vector.extract_strided_slice %298 {offsets = [0, 0], sizes = [8, 32], strides = [1, 1]} : vector<32x32xf32> to vector<8x32xf32>
    %cst_128 = arith.constant dense<0.000000e+00> : vector<16x32xf32>
    %316 = tpu.matmul %314, %315, %cst_128 {dimension_numbers = #tpu.dot_dimension_numbers<[1], [0], [0], [1], [0, 0, 1, 1], [], []>} : vector<16x8xf32>, vector<8x32xf32>, vector<16x32xf32> -> vector<16x32xf32>
    %317 = vector.extract_strided_slice %297 {offsets = [0, 8], sizes = [16, 8], strides = [1, 1]} : vector<32x96xf32> to vector<16x8xf32>
    %318 = vector.extract_strided_slice %297 {offsets = [0, 40], sizes = [16, 8], strides = [1, 1]} : vector<32x96xf32> to vector<16x8xf32>
    %319 = vector.extract_strided_slice %297 {offsets = [0, 72], sizes = [16, 8], strides = [1, 1]} : vector<32x96xf32> to vector<16x8xf32>
    %cst_129 = arith.constant dense<0.000000e+00> : vector<16x16xf32>
    %320 = tpu.matmul %317, %318, %cst_129 {dimension_numbers = #tpu.dot_dimension_numbers<[1], [1], [0], [0], [0, 0, 1, 0], [], []>} : vector<16x8xf32>, vector<16x8xf32>, vector<16x16xf32> -> vector<16x16xf32>
    %cst_130 = arith.constant 0.353553385 : f32
    %321 = vector.broadcast %cst_130 : f32 to vector<16x16xf32>
    %322 = arith.mulf %320, %321 : vector<16x16xf32>
    %cst_131 = arith.constant dense<0xFF800000> : vector<16xf32>
    %323 = vector.multi_reduction <maximumf>, %322, %cst_131 [1] : vector<16x16xf32> to vector<16xf32>
    %324 = vector.shape_cast %323 : vector<16xf32> to vector<16x1xf32>
    %325 = vector.broadcast %324 : vector<16x1xf32> to vector<16x16xf32>
    %326 = arith.subf %322, %325 : vector<16x16xf32>
    %327 = math.exp %326 : vector<16x16xf32>
    %cst_132 = arith.constant dense<0.000000e+00> : vector<16xf32>
    %328 = vector.multi_reduction <add>, %327, %cst_132 [1] : vector<16x16xf32> to vector<16xf32>
    %329 = vector.shape_cast %328 : vector<16xf32> to vector<16x1xf32>
    %330 = vector.broadcast %329 : vector<16x1xf32> to vector<16x16xf32>
    %331 = arith.divf %327, %330 : vector<16x16xf32>
    %cst_133 = arith.constant dense<0.000000e+00> : vector<16x8xf32>
    %332 = tpu.matmul %331, %319, %cst_133 {dimension_numbers = #tpu.dot_dimension_numbers<[1], [0], [0], [1], [0, 0, 1, 1], [], []>} : vector<16x16xf32>, vector<16x8xf32>, vector<16x8xf32> -> vector<16x8xf32>
    %333 = vector.extract_strided_slice %298 {offsets = [8, 0], sizes = [8, 32], strides = [1, 1]} : vector<32x32xf32> to vector<8x32xf32>
    %cst_134 = arith.constant dense<0.000000e+00> : vector<16x32xf32>
    %334 = tpu.matmul %332, %333, %cst_134 {dimension_numbers = #tpu.dot_dimension_numbers<[1], [0], [0], [1], [0, 0, 1, 1], [], []>} : vector<16x8xf32>, vector<8x32xf32>, vector<16x32xf32> -> vector<16x32xf32>
    %335 = arith.addf %316, %334 : vector<16x32xf32>
    %336 = vector.extract_strided_slice %297 {offsets = [0, 16], sizes = [16, 8], strides = [1, 1]} : vector<32x96xf32> to vector<16x8xf32>
    %337 = vector.extract_strided_slice %297 {offsets = [0, 48], sizes = [16, 8], strides = [1, 1]} : vector<32x96xf32> to vector<16x8xf32>
    %338 = vector.extract_strided_slice %297 {offsets = [0, 80], sizes = [16, 8], strides = [1, 1]} : vector<32x96xf32> to vector<16x8xf32>
    %cst_135 = arith.constant dense<0.000000e+00> : vector<16x16xf32>
    %339 = tpu.matmul %336, %337, %cst_135 {dimension_numbers = #tpu.dot_dimension_numbers<[1], [1], [0], [0], [0, 0, 1, 0], [], []>} : vector<16x8xf32>, vector<16x8xf32>, vector<16x16xf32> -> vector<16x16xf32>
    %cst_136 = arith.constant 0.353553385 : f32
    %340 = vector.broadcast %cst_136 : f32 to vector<16x16xf32>
    %341 = arith.mulf %339, %340 : vector<16x16xf32>
    %cst_137 = arith.constant dense<0xFF800000> : vector<16xf32>
    %342 = vector.multi_reduction <maximumf>, %341, %cst_137 [1] : vector<16x16xf32> to vector<16xf32>
    %343 = vector.shape_cast %342 : vector<16xf32> to vector<16x1xf32>
    %344 = vector.broadcast %343 : vector<16x1xf32> to vector<16x16xf32>
    %345 = arith.subf %341, %344 : vector<16x16xf32>
    %346 = math.exp %345 : vector<16x16xf32>
    %cst_138 = arith.constant dense<0.000000e+00> : vector<16xf32>
    %347 = vector.multi_reduction <add>, %346, %cst_138 [1] : vector<16x16xf32> to vector<16xf32>
    %348 = vector.shape_cast %347 : vector<16xf32> to vector<16x1xf32>
    %349 = vector.broadcast %348 : vector<16x1xf32> to vector<16x16xf32>
    %350 = arith.divf %346, %349 : vector<16x16xf32>
    %cst_139 = arith.constant dense<0.000000e+00> : vector<16x8xf32>
    %351 = tpu.matmul %350, %338, %cst_139 {dimension_numbers = #tpu.dot_dimension_numbers<[1], [0], [0], [1], [0, 0, 1, 1], [], []>} : vector<16x16xf32>, vector<16x8xf32>, vector<16x8xf32> -> vector<16x8xf32>
    %352 = vector.extract_strided_slice %298 {offsets = [16, 0], sizes = [8, 32], strides = [1, 1]} : vector<32x32xf32> to vector<8x32xf32>
    %cst_140 = arith.constant dense<0.000000e+00> : vector<16x32xf32>
    %353 = tpu.matmul %351, %352, %cst_140 {dimension_numbers = #tpu.dot_dimension_numbers<[1], [0], [0], [1], [0, 0, 1, 1], [], []>} : vector<16x8xf32>, vector<8x32xf32>, vector<16x32xf32> -> vector<16x32xf32>
    %354 = arith.addf %335, %353 : vector<16x32xf32>
    %355 = vector.extract_strided_slice %297 {offsets = [0, 24], sizes = [16, 8], strides = [1, 1]} : vector<32x96xf32> to vector<16x8xf32>
    %356 = vector.extract_strided_slice %297 {offsets = [0, 56], sizes = [16, 8], strides = [1, 1]} : vector<32x96xf32> to vector<16x8xf32>
    %357 = vector.extract_strided_slice %297 {offsets = [0, 88], sizes = [16, 8], strides = [1, 1]} : vector<32x96xf32> to vector<16x8xf32>
    %cst_141 = arith.constant dense<0.000000e+00> : vector<16x16xf32>
    %358 = tpu.matmul %355, %356, %cst_141 {dimension_numbers = #tpu.dot_dimension_numbers<[1], [1], [0], [0], [0, 0, 1, 0], [], []>} : vector<16x8xf32>, vector<16x8xf32>, vector<16x16xf32> -> vector<16x16xf32>
    %cst_142 = arith.constant 0.353553385 : f32
    %359 = vector.broadcast %cst_142 : f32 to vector<16x16xf32>
    %360 = arith.mulf %358, %359 : vector<16x16xf32>
    %cst_143 = arith.constant dense<0xFF800000> : vector<16xf32>
    %361 = vector.multi_reduction <maximumf>, %360, %cst_143 [1] : vector<16x16xf32> to vector<16xf32>
    %362 = vector.shape_cast %361 : vector<16xf32> to vector<16x1xf32>
    %363 = vector.broadcast %362 : vector<16x1xf32> to vector<16x16xf32>
    %364 = arith.subf %360, %363 : vector<16x16xf32>
    %365 = math.exp %364 : vector<16x16xf32>
    %cst_144 = arith.constant dense<0.000000e+00> : vector<16xf32>
    %366 = vector.multi_reduction <add>, %365, %cst_144 [1] : vector<16x16xf32> to vector<16xf32>
    %367 = vector.shape_cast %366 : vector<16xf32> to vector<16x1xf32>
    %368 = vector.broadcast %367 : vector<16x1xf32> to vector<16x16xf32>
    %369 = arith.divf %365, %368 : vector<16x16xf32>
    %cst_145 = arith.constant dense<0.000000e+00> : vector<16x8xf32>
    %370 = tpu.matmul %369, %357, %cst_145 {dimension_numbers = #tpu.dot_dimension_numbers<[1], [0], [0], [1], [0, 0, 1, 1], [], []>} : vector<16x16xf32>, vector<16x8xf32>, vector<16x8xf32> -> vector<16x8xf32>
    %371 = vector.extract_strided_slice %298 {offsets = [24, 0], sizes = [8, 32], strides = [1, 1]} : vector<32x32xf32> to vector<8x32xf32>
    %cst_146 = arith.constant dense<0.000000e+00> : vector<16x32xf32>
    %372 = tpu.matmul %370, %371, %cst_146 {dimension_numbers = #tpu.dot_dimension_numbers<[1], [0], [0], [1], [0, 0, 1, 1], [], []>} : vector<16x8xf32>, vector<8x32xf32>, vector<16x32xf32> -> vector<16x32xf32>
    %373 = arith.addf %354, %372 : vector<16x32xf32>
    %374 = vector.extract_strided_slice %297 {offsets = [16, 0], sizes = [16, 8], strides = [1, 1]} : vector<32x96xf32> to vector<16x8xf32>
    %375 = vector.extract_strided_slice %297 {offsets = [16, 32], sizes = [16, 8], strides = [1, 1]} : vector<32x96xf32> to vector<16x8xf32>
    %376 = vector.extract_strided_slice %297 {offsets = [16, 64], sizes = [16, 8], strides = [1, 1]} : vector<32x96xf32> to vector<16x8xf32>
    %cst_147 = arith.constant dense<0.000000e+00> : vector<16x16xf32>
    %377 = tpu.matmul %374, %375, %cst_147 {dimension_numbers = #tpu.dot_dimension_numbers<[1], [1], [0], [0], [0, 0, 1, 0], [], []>} : vector<16x8xf32>, vector<16x8xf32>, vector<16x16xf32> -> vector<16x16xf32>
    %cst_148 = arith.constant 0.353553385 : f32
    %378 = vector.broadcast %cst_148 : f32 to vector<16x16xf32>
    %379 = arith.mulf %377, %378 : vector<16x16xf32>
    %cst_149 = arith.constant dense<0xFF800000> : vector<16xf32>
    %380 = vector.multi_reduction <maximumf>, %379, %cst_149 [1] : vector<16x16xf32> to vector<16xf32>
    %381 = vector.shape_cast %380 : vector<16xf32> to vector<16x1xf32>
    %382 = vector.broadcast %381 : vector<16x1xf32> to vector<16x16xf32>
    %383 = arith.subf %379, %382 : vector<16x16xf32>
    %384 = math.exp %383 : vector<16x16xf32>
    %cst_150 = arith.constant dense<0.000000e+00> : vector<16xf32>
    %385 = vector.multi_reduction <add>, %384, %cst_150 [1] : vector<16x16xf32> to vector<16xf32>
    %386 = vector.shape_cast %385 : vector<16xf32> to vector<16x1xf32>
    %387 = vector.broadcast %386 : vector<16x1xf32> to vector<16x16xf32>
    %388 = arith.divf %384, %387 : vector<16x16xf32>
    %cst_151 = arith.constant dense<0.000000e+00> : vector<16x8xf32>
    %389 = tpu.matmul %388, %376, %cst_151 {dimension_numbers = #tpu.dot_dimension_numbers<[1], [0], [0], [1], [0, 0, 1, 1], [], []>} : vector<16x16xf32>, vector<16x8xf32>, vector<16x8xf32> -> vector<16x8xf32>
    %390 = vector.extract_strided_slice %298 {offsets = [0, 0], sizes = [8, 32], strides = [1, 1]} : vector<32x32xf32> to vector<8x32xf32>
    %cst_152 = arith.constant dense<0.000000e+00> : vector<16x32xf32>
    %391 = tpu.matmul %389, %390, %cst_152 {dimension_numbers = #tpu.dot_dimension_numbers<[1], [0], [0], [1], [0, 0, 1, 1], [], []>} : vector<16x8xf32>, vector<8x32xf32>, vector<16x32xf32> -> vector<16x32xf32>
    %392 = vector.extract_strided_slice %297 {offsets = [16, 8], sizes = [16, 8], strides = [1, 1]} : vector<32x96xf32> to vector<16x8xf32>
    %393 = vector.extract_strided_slice %297 {offsets = [16, 40], sizes = [16, 8], strides = [1, 1]} : vector<32x96xf32> to vector<16x8xf32>
    %394 = vector.extract_strided_slice %297 {offsets = [16, 72], sizes = [16, 8], strides = [1, 1]} : vector<32x96xf32> to vector<16x8xf32>
    %cst_153 = arith.constant dense<0.000000e+00> : vector<16x16xf32>
    %395 = tpu.matmul %392, %393, %cst_153 {dimension_numbers = #tpu.dot_dimension_numbers<[1], [1], [0], [0], [0, 0, 1, 0], [], []>} : vector<16x8xf32>, vector<16x8xf32>, vector<16x16xf32> -> vector<16x16xf32>
    %cst_154 = arith.constant 0.353553385 : f32
    %396 = vector.broadcast %cst_154 : f32 to vector<16x16xf32>
    %397 = arith.mulf %395, %396 : vector<16x16xf32>
    %cst_155 = arith.constant dense<0xFF800000> : vector<16xf32>
    %398 = vector.multi_reduction <maximumf>, %397, %cst_155 [1] : vector<16x16xf32> to vector<16xf32>
    %399 = vector.shape_cast %398 : vector<16xf32> to vector<16x1xf32>
    %400 = vector.broadcast %399 : vector<16x1xf32> to vector<16x16xf32>
    %401 = arith.subf %397, %400 : vector<16x16xf32>
    %402 = math.exp %401 : vector<16x16xf32>
    %cst_156 = arith.constant dense<0.000000e+00> : vector<16xf32>
    %403 = vector.multi_reduction <add>, %402, %cst_156 [1] : vector<16x16xf32> to vector<16xf32>
    %404 = vector.shape_cast %403 : vector<16xf32> to vector<16x1xf32>
    %405 = vector.broadcast %404 : vector<16x1xf32> to vector<16x16xf32>
    %406 = arith.divf %402, %405 : vector<16x16xf32>
    %cst_157 = arith.constant dense<0.000000e+00> : vector<16x8xf32>
    %407 = tpu.matmul %406, %394, %cst_157 {dimension_numbers = #tpu.dot_dimension_numbers<[1], [0], [0], [1], [0, 0, 1, 1], [], []>} : vector<16x16xf32>, vector<16x8xf32>, vector<16x8xf32> -> vector<16x8xf32>
    %408 = vector.extract_strided_slice %298 {offsets = [8, 0], sizes = [8, 32], strides = [1, 1]} : vector<32x32xf32> to vector<8x32xf32>
    %cst_158 = arith.constant dense<0.000000e+00> : vector<16x32xf32>
    %409 = tpu.matmul %407, %408, %cst_158 {dimension_numbers = #tpu.dot_dimension_numbers<[1], [0], [0], [1], [0, 0, 1, 1], [], []>} : vector<16x8xf32>, vector<8x32xf32>, vector<16x32xf32> -> vector<16x32xf32>
    %410 = arith.addf %391, %409 : vector<16x32xf32>
    %411 = vector.extract_strided_slice %297 {offsets = [16, 16], sizes = [16, 8], strides = [1, 1]} : vector<32x96xf32> to vector<16x8xf32>
    %412 = vector.extract_strided_slice %297 {offsets = [16, 48], sizes = [16, 8], strides = [1, 1]} : vector<32x96xf32> to vector<16x8xf32>
    %413 = vector.extract_strided_slice %297 {offsets = [16, 80], sizes = [16, 8], strides = [1, 1]} : vector<32x96xf32> to vector<16x8xf32>
    %cst_159 = arith.constant dense<0.000000e+00> : vector<16x16xf32>
    %414 = tpu.matmul %411, %412, %cst_159 {dimension_numbers = #tpu.dot_dimension_numbers<[1], [1], [0], [0], [0, 0, 1, 0], [], []>} : vector<16x8xf32>, vector<16x8xf32>, vector<16x16xf32> -> vector<16x16xf32>
    %cst_160 = arith.constant 0.353553385 : f32
    %415 = vector.broadcast %cst_160 : f32 to vector<16x16xf32>
    %416 = arith.mulf %414, %415 : vector<16x16xf32>
    %cst_161 = arith.constant dense<0xFF800000> : vector<16xf32>
    %417 = vector.multi_reduction <maximumf>, %416, %cst_161 [1] : vector<16x16xf32> to vector<16xf32>
    %418 = vector.shape_cast %417 : vector<16xf32> to vector<16x1xf32>
    %419 = vector.broadcast %418 : vector<16x1xf32> to vector<16x16xf32>
    %420 = arith.subf %416, %419 : vector<16x16xf32>
    %421 = math.exp %420 : vector<16x16xf32>
    %cst_162 = arith.constant dense<0.000000e+00> : vector<16xf32>
    %422 = vector.multi_reduction <add>, %421, %cst_162 [1] : vector<16x16xf32> to vector<16xf32>
    %423 = vector.shape_cast %422 : vector<16xf32> to vector<16x1xf32>
    %424 = vector.broadcast %423 : vector<16x1xf32> to vector<16x16xf32>
    %425 = arith.divf %421, %424 : vector<16x16xf32>
    %cst_163 = arith.constant dense<0.000000e+00> : vector<16x8xf32>
    %426 = tpu.matmul %425, %413, %cst_163 {dimension_numbers = #tpu.dot_dimension_numbers<[1], [0], [0], [1], [0, 0, 1, 1], [], []>} : vector<16x16xf32>, vector<16x8xf32>, vector<16x8xf32> -> vector<16x8xf32>
    %427 = vector.extract_strided_slice %298 {offsets = [16, 0], sizes = [8, 32], strides = [1, 1]} : vector<32x32xf32> to vector<8x32xf32>
    %cst_164 = arith.constant dense<0.000000e+00> : vector<16x32xf32>
    %428 = tpu.matmul %426, %427, %cst_164 {dimension_numbers = #tpu.dot_dimension_numbers<[1], [0], [0], [1], [0, 0, 1, 1], [], []>} : vector<16x8xf32>, vector<8x32xf32>, vector<16x32xf32> -> vector<16x32xf32>
    %429 = arith.addf %410, %428 : vector<16x32xf32>
    %430 = vector.extract_strided_slice %297 {offsets = [16, 24], sizes = [16, 8], strides = [1, 1]} : vector<32x96xf32> to vector<16x8xf32>
    %431 = vector.extract_strided_slice %297 {offsets = [16, 56], sizes = [16, 8], strides = [1, 1]} : vector<32x96xf32> to vector<16x8xf32>
    %432 = vector.extract_strided_slice %297 {offsets = [16, 88], sizes = [16, 8], strides = [1, 1]} : vector<32x96xf32> to vector<16x8xf32>
    %cst_165 = arith.constant dense<0.000000e+00> : vector<16x16xf32>
    %433 = tpu.matmul %430, %431, %cst_165 {dimension_numbers = #tpu.dot_dimension_numbers<[1], [1], [0], [0], [0, 0, 1, 0], [], []>} : vector<16x8xf32>, vector<16x8xf32>, vector<16x16xf32> -> vector<16x16xf32>
    %cst_166 = arith.constant 0.353553385 : f32
    %434 = vector.broadcast %cst_166 : f32 to vector<16x16xf32>
    %435 = arith.mulf %433, %434 : vector<16x16xf32>
    %cst_167 = arith.constant dense<0xFF800000> : vector<16xf32>
    %436 = vector.multi_reduction <maximumf>, %435, %cst_167 [1] : vector<16x16xf32> to vector<16xf32>
    %437 = vector.shape_cast %436 : vector<16xf32> to vector<16x1xf32>
    %438 = vector.broadcast %437 : vector<16x1xf32> to vector<16x16xf32>
    %439 = arith.subf %435, %438 : vector<16x16xf32>
    %440 = math.exp %439 : vector<16x16xf32>
    %cst_168 = arith.constant dense<0.000000e+00> : vector<16xf32>
    %441 = vector.multi_reduction <add>, %440, %cst_168 [1] : vector<16x16xf32> to vector<16xf32>
    %442 = vector.shape_cast %441 : vector<16xf32> to vector<16x1xf32>
    %443 = vector.broadcast %442 : vector<16x1xf32> to vector<16x16xf32>
    %444 = arith.divf %440, %443 : vector<16x16xf32>
    %cst_169 = arith.constant dense<0.000000e+00> : vector<16x8xf32>
    %445 = tpu.matmul %444, %432, %cst_169 {dimension_numbers = #tpu.dot_dimension_numbers<[1], [0], [0], [1], [0, 0, 1, 1], [], []>} : vector<16x16xf32>, vector<16x8xf32>, vector<16x8xf32> -> vector<16x8xf32>
    %446 = vector.extract_strided_slice %298 {offsets = [24, 0], sizes = [8, 32], strides = [1, 1]} : vector<32x32xf32> to vector<8x32xf32>
    %cst_170 = arith.constant dense<0.000000e+00> : vector<16x32xf32>
    %447 = tpu.matmul %445, %446, %cst_170 {dimension_numbers = #tpu.dot_dimension_numbers<[1], [0], [0], [1], [0, 0, 1, 1], [], []>} : vector<16x8xf32>, vector<8x32xf32>, vector<16x32xf32> -> vector<16x32xf32>
    %448 = arith.addf %429, %447 : vector<16x32xf32>
    %449 = tpu.concatenate %373, %448 in 0 : vector<16x32xf32>, vector<16x32xf32> -> vector<32x32xf32>
    %c0_171 = arith.constant 0 : index
    %c0_172 = arith.constant 0 : index
    %450 = vector.load %arg21[%c0_171, %c0_172] : memref<1x32xf32, #tpu.memory_space<vmem>>, vector<1x32xf32>
    %451 = vector.broadcast %450 : vector<1x32xf32> to vector<32x32xf32>
    %452 = arith.addf %449, %451 : vector<32x32xf32>
    %453 = arith.addf %268, %452 : vector<32x32xf32>
    %c0_173 = arith.constant 0 : index
    %c0_174 = arith.constant 0 : index
    %454 = vector.load %arg22[%c0_173, %c0_174] : memref<1x32xf32, #tpu.memory_space<vmem>>, vector<1x32xf32>
    %c0_175 = arith.constant 0 : index
    %c0_176 = arith.constant 0 : index
    %455 = vector.load %arg23[%c0_175, %c0_176] : memref<1x32xf32, #tpu.memory_space<vmem>>, vector<1x32xf32>
    %cst_177 = arith.constant dense<0.000000e+00> : vector<32xf32>
    %456 = vector.multi_reduction <add>, %453, %cst_177 [1] : vector<32x32xf32> to vector<32xf32>
    %457 = vector.shape_cast %456 : vector<32xf32> to vector<32x1xf32>
    %cst_178 = arith.constant 3.200000e+01 : f32
    %458 = vector.broadcast %cst_178 : f32 to vector<32x1xf32>
    %459 = arith.divf %457, %458 : vector<32x1xf32>
    %460 = vector.broadcast %459 : vector<32x1xf32> to vector<32x32xf32>
    %461 = arith.subf %453, %460 : vector<32x32xf32>
    %462 = arith.mulf %461, %461 : vector<32x32xf32>
    %cst_179 = arith.constant dense<0.000000e+00> : vector<32xf32>
    %463 = vector.multi_reduction <add>, %462, %cst_179 [1] : vector<32x32xf32> to vector<32xf32>
    %464 = vector.shape_cast %463 : vector<32xf32> to vector<32x1xf32>
    %cst_180 = arith.constant 3.200000e+01 : f32
    %465 = vector.broadcast %cst_180 : f32 to vector<32x1xf32>
    %466 = arith.divf %464, %465 : vector<32x1xf32>
    %467 = vector.broadcast %459 : vector<32x1xf32> to vector<32x32xf32>
    %468 = arith.subf %453, %467 : vector<32x32xf32>
    %cst_181 = arith.constant 9.99999974E-6 : f32
    %469 = vector.broadcast %cst_181 : f32 to vector<32x1xf32>
    %470 = arith.addf %466, %469 : vector<32x1xf32>
    %471 = math.rsqrt %470 : vector<32x1xf32>
    %472 = vector.broadcast %471 : vector<32x1xf32> to vector<32x32xf32>
    %473 = arith.mulf %468, %472 : vector<32x32xf32>
    %474 = vector.broadcast %454 : vector<1x32xf32> to vector<32x32xf32>
    %475 = arith.mulf %473, %474 : vector<32x32xf32>
    %476 = vector.broadcast %455 : vector<1x32xf32> to vector<32x32xf32>
    %477 = arith.addf %475, %476 : vector<32x32xf32>
    %c0_182 = arith.constant 0 : index
    %c0_183 = arith.constant 0 : index
    %478 = vector.load %arg24[%c0_182, %c0_183] : memref<32x128xf32, #tpu.memory_space<vmem>>, vector<32x128xf32>
    %cst_184 = arith.constant dense<0.000000e+00> : vector<32x128xf32>
    %479 = tpu.matmul %477, %478, %cst_184 {dimension_numbers = #tpu.dot_dimension_numbers<[1], [0], [0], [1], [0, 0, 1, 1], [], []>} : vector<32x32xf32>, vector<32x128xf32>, vector<32x128xf32> -> vector<32x128xf32>
    %c0_185 = arith.constant 0 : index
    %c0_186 = arith.constant 0 : index
    %480 = vector.load %arg25[%c0_185, %c0_186] : memref<1x128xf32, #tpu.memory_space<vmem>>, vector<1x128xf32>
    %481 = vector.broadcast %480 : vector<1x128xf32> to vector<32x128xf32>
    %482 = arith.addf %479, %481 : vector<32x128xf32>
    %cst_187 = arith.constant 5.000000e-01 : f32
    %483 = vector.broadcast %cst_187 : f32 to vector<32x128xf32>
    %484 = arith.mulf %483, %482 : vector<32x128xf32>
    %cst_188 = arith.constant 0.707106769 : f32
    %485 = vector.broadcast %cst_188 : f32 to vector<32x128xf32>
    %486 = arith.mulf %482, %485 : vector<32x128xf32>
    %487 = math.absf %486 : vector<32x128xf32>
    %cst_189 = arith.constant 0.327591091 : f32
    %488 = vector.broadcast %cst_189 : f32 to vector<32x128xf32>
    %489 = arith.mulf %488, %487 : vector<32x128xf32>
    %cst_190 = arith.constant 1.000000e+00 : f32
    %490 = vector.broadcast %cst_190 : f32 to vector<32x128xf32>
    %491 = arith.addf %490, %489 : vector<32x128xf32>
    %cst_191 = arith.constant 1.000000e+00 : f32
    %492 = vector.broadcast %cst_191 : f32 to vector<32x128xf32>
    %493 = arith.divf %492, %491 : vector<32x128xf32>
    %cst_192 = arith.constant 1.06140542 : f32
    %494 = vector.broadcast %cst_192 : f32 to vector<32x128xf32>
    %495 = arith.mulf %494, %493 : vector<32x128xf32>
    %cst_193 = arith.constant 1.45315206 : f32
    %496 = vector.broadcast %cst_193 : f32 to vector<32x128xf32>
    %497 = arith.subf %495, %496 : vector<32x128xf32>
    %498 = arith.mulf %497, %493 : vector<32x128xf32>
    %cst_194 = arith.constant 1.42141378 : f32
    %499 = vector.broadcast %cst_194 : f32 to vector<32x128xf32>
    %500 = arith.addf %498, %499 : vector<32x128xf32>
    %501 = arith.mulf %500, %493 : vector<32x128xf32>
    %cst_195 = arith.constant 0.284496725 : f32
    %502 = vector.broadcast %cst_195 : f32 to vector<32x128xf32>
    %503 = arith.subf %501, %502 : vector<32x128xf32>
    %504 = arith.mulf %503, %493 : vector<32x128xf32>
    %cst_196 = arith.constant 0.254829586 : f32
    %505 = vector.broadcast %cst_196 : f32 to vector<32x128xf32>
    %506 = arith.addf %504, %505 : vector<32x128xf32>
    %507 = arith.mulf %506, %493 : vector<32x128xf32>
    %cst_197 = arith.constant 0.000000e+00 : f32
    %508 = vector.broadcast %cst_197 : f32 to vector<32x128xf32>
    %509 = arith.subf %508, %486 : vector<32x128xf32>
    %510 = arith.mulf %509, %486 : vector<32x128xf32>
    %511 = math.exp %510 : vector<32x128xf32>
    %512 = arith.mulf %507, %511 : vector<32x128xf32>
    %cst_198 = arith.constant 1.000000e+00 : f32
    %513 = vector.broadcast %cst_198 : f32 to vector<32x128xf32>
    %514 = arith.subf %513, %512 : vector<32x128xf32>
    %cst_199 = arith.constant 0.000000e+00 : f32
    %515 = vector.broadcast %cst_199 : f32 to vector<32x128xf32>
    %516 = arith.cmpf olt, %486, %515 : vector<32x128xf32>
    %cst_200 = arith.constant 0.000000e+00 : f32
    %517 = vector.broadcast %cst_200 : f32 to vector<32x128xf32>
    %518 = arith.subf %517, %514 : vector<32x128xf32>
    %519 = arith.select %516, %518, %514 : vector<32x128xi1>, vector<32x128xf32>
    %cst_201 = arith.constant 1.000000e+00 : f32
    %520 = vector.broadcast %cst_201 : f32 to vector<32x128xf32>
    %521 = arith.addf %520, %519 : vector<32x128xf32>
    %522 = arith.mulf %484, %521 : vector<32x128xf32>
    %c0_202 = arith.constant 0 : index
    %c0_203 = arith.constant 0 : index
    %523 = vector.load %arg26[%c0_202, %c0_203] : memref<128x32xf32, #tpu.memory_space<vmem>>, vector<128x32xf32>
    %cst_204 = arith.constant dense<0.000000e+00> : vector<32x32xf32>
    %524 = tpu.matmul %522, %523, %cst_204 {dimension_numbers = #tpu.dot_dimension_numbers<[1], [0], [0], [1], [0, 0, 1, 1], [], []>} : vector<32x128xf32>, vector<128x32xf32>, vector<32x32xf32> -> vector<32x32xf32>
    %c0_205 = arith.constant 0 : index
    %c0_206 = arith.constant 0 : index
    %525 = vector.load %arg27[%c0_205, %c0_206] : memref<1x32xf32, #tpu.memory_space<vmem>>, vector<1x32xf32>
    %526 = vector.broadcast %525 : vector<1x32xf32> to vector<32x32xf32>
    %527 = arith.addf %524, %526 : vector<32x32xf32>
    %528 = arith.addf %453, %527 : vector<32x32xf32>
    %c0_207 = arith.constant 0 : index
    %c0_208 = arith.constant 0 : index
    %529 = vector.load %arg28[%c0_207, %c0_208] : memref<1x32xf32, #tpu.memory_space<vmem>>, vector<1x32xf32>
    %c0_209 = arith.constant 0 : index
    %c0_210 = arith.constant 0 : index
    %530 = vector.load %arg29[%c0_209, %c0_210] : memref<1x32xf32, #tpu.memory_space<vmem>>, vector<1x32xf32>
    %cst_211 = arith.constant dense<0.000000e+00> : vector<32xf32>
    %531 = vector.multi_reduction <add>, %528, %cst_211 [1] : vector<32x32xf32> to vector<32xf32>
    %532 = vector.shape_cast %531 : vector<32xf32> to vector<32x1xf32>
    %cst_212 = arith.constant 3.200000e+01 : f32
    %533 = vector.broadcast %cst_212 : f32 to vector<32x1xf32>
    %534 = arith.divf %532, %533 : vector<32x1xf32>
    %535 = vector.broadcast %534 : vector<32x1xf32> to vector<32x32xf32>
    %536 = arith.subf %528, %535 : vector<32x32xf32>
    %537 = arith.mulf %536, %536 : vector<32x32xf32>
    %cst_213 = arith.constant dense<0.000000e+00> : vector<32xf32>
    %538 = vector.multi_reduction <add>, %537, %cst_213 [1] : vector<32x32xf32> to vector<32xf32>
    %539 = vector.shape_cast %538 : vector<32xf32> to vector<32x1xf32>
    %cst_214 = arith.constant 3.200000e+01 : f32
    %540 = vector.broadcast %cst_214 : f32 to vector<32x1xf32>
    %541 = arith.divf %539, %540 : vector<32x1xf32>
    %542 = vector.broadcast %534 : vector<32x1xf32> to vector<32x32xf32>
    %543 = arith.subf %528, %542 : vector<32x32xf32>
    %cst_215 = arith.constant 9.99999974E-6 : f32
    %544 = vector.broadcast %cst_215 : f32 to vector<32x1xf32>
    %545 = arith.addf %541, %544 : vector<32x1xf32>
    %546 = math.rsqrt %545 : vector<32x1xf32>
    %547 = vector.broadcast %546 : vector<32x1xf32> to vector<32x32xf32>
    %548 = arith.mulf %543, %547 : vector<32x32xf32>
    %549 = vector.broadcast %529 : vector<1x32xf32> to vector<32x32xf32>
    %550 = arith.mulf %548, %549 : vector<32x32xf32>
    %551 = vector.broadcast %530 : vector<1x32xf32> to vector<32x32xf32>
    %552 = arith.addf %550, %551 : vector<32x32xf32>
    %c0_216 = arith.constant 0 : index
    %c0_217 = arith.constant 0 : index
    %553 = vector.load %arg30[%c0_216, %c0_217] : memref<32x32xf32, #tpu.memory_space<vmem>>, vector<32x32xf32>
    tpu.vector_store %arg30[%c0_216, %c0_217], %552 {strides = array<i32>} : memref<32x32xf32, #tpu.memory_space<vmem>>, vector<32x32xf32>,
    return
  }
}

module attributes {stable_mosaic.version = 11 : i64} {
  func.func @_convt_bn_relu_kernel(%arg0: memref<128x288xf32, #tpu.memory_space<vmem>>, %arg1: memref<288x16xf32, #tpu.memory_space<vmem>>, %arg2: memref<1x16xf32, #tpu.memory_space<vmem>>, %arg3: memref<1x16xf32, #tpu.memory_space<vmem>>, %arg4: memref<1x16xf32, #tpu.memory_space<vmem>>, %arg5: memref<128x16xf32, #tpu.memory_space<vmem>>) attributes {dimension_semantics = [], scalar_prefetch = 0 : i64, scratch_operands = 0 : i64, tpu.core_type = #tpu.core_type<tc>} {
    %c0 = arith.constant 0 : index
    %c0_0 = arith.constant 0 : index
    %0 = vector.load %arg0[%c0, %c0_0] : memref<128x288xf32, #tpu.memory_space<vmem>>, vector<128x288xf32>
    %c0_1 = arith.constant 0 : index
    %c0_2 = arith.constant 0 : index
    %1 = vector.load %arg1[%c0_1, %c0_2] : memref<288x16xf32, #tpu.memory_space<vmem>>, vector<288x16xf32>
    %cst = arith.constant dense<0.000000e+00> : vector<128x16xf32>
    %2 = tpu.matmul %0, %1, %cst {dimension_numbers = #tpu.dot_dimension_numbers<[1], [0], [0], [1], [0, 0, 1, 1], [], []>} : vector<128x288xf32>, vector<288x16xf32>, vector<128x16xf32> -> vector<128x16xf32>
    %c0_3 = arith.constant 0 : index
    %c0_4 = arith.constant 0 : index
    %3 = vector.load %arg2[%c0_3, %c0_4] : memref<1x16xf32, #tpu.memory_space<vmem>>, vector<1x16xf32>
    %4 = vector.broadcast %3 : vector<1x16xf32> to vector<128x16xf32>
    %5 = arith.addf %2, %4 : vector<128x16xf32>
    %cst_5 = arith.constant dense<0.000000e+00> : vector<16xf32>
    %6 = vector.multi_reduction <add>, %5, %cst_5 [0] : vector<128x16xf32> to vector<16xf32>
    %7 = vector.shape_cast %6 : vector<16xf32> to vector<1x16xf32>
    %cst_6 = arith.constant 1.280000e+02 : f32
    %8 = vector.broadcast %cst_6 : f32 to vector<1x16xf32>
    %9 = arith.divf %7, %8 : vector<1x16xf32>
    %10 = vector.broadcast %9 : vector<1x16xf32> to vector<128x16xf32>
    %11 = arith.subf %5, %10 : vector<128x16xf32>
    %12 = arith.mulf %11, %11 : vector<128x16xf32>
    %cst_7 = arith.constant dense<0.000000e+00> : vector<16xf32>
    %13 = vector.multi_reduction <add>, %12, %cst_7 [0] : vector<128x16xf32> to vector<16xf32>
    %14 = vector.shape_cast %13 : vector<16xf32> to vector<1x16xf32>
    %cst_8 = arith.constant 1.280000e+02 : f32
    %15 = vector.broadcast %cst_8 : f32 to vector<1x16xf32>
    %16 = arith.divf %14, %15 : vector<1x16xf32>
    %17 = vector.broadcast %9 : vector<1x16xf32> to vector<128x16xf32>
    %18 = arith.subf %5, %17 : vector<128x16xf32>
    %cst_9 = arith.constant 9.99999974E-6 : f32
    %19 = vector.broadcast %cst_9 : f32 to vector<1x16xf32>
    %20 = arith.addf %16, %19 : vector<1x16xf32>
    %21 = math.rsqrt %20 : vector<1x16xf32>
    %22 = vector.broadcast %21 : vector<1x16xf32> to vector<128x16xf32>
    %23 = arith.mulf %18, %22 : vector<128x16xf32>
    %c0_10 = arith.constant 0 : index
    %c0_11 = arith.constant 0 : index
    %24 = vector.load %arg3[%c0_10, %c0_11] : memref<1x16xf32, #tpu.memory_space<vmem>>, vector<1x16xf32>
    %25 = vector.broadcast %24 : vector<1x16xf32> to vector<128x16xf32>
    %26 = arith.mulf %23, %25 : vector<128x16xf32>
    %c0_12 = arith.constant 0 : index
    %c0_13 = arith.constant 0 : index
    %27 = vector.load %arg4[%c0_12, %c0_13] : memref<1x16xf32, #tpu.memory_space<vmem>>, vector<1x16xf32>
    %28 = vector.broadcast %27 : vector<1x16xf32> to vector<128x16xf32>
    %29 = arith.addf %26, %28 : vector<128x16xf32>
    %cst_14 = arith.constant 0.000000e+00 : f32
    %30 = vector.broadcast %cst_14 : f32 to vector<128x16xf32>
    %31 = arith.maximumf %29, %30 : vector<128x16xf32>
    %c0_15 = arith.constant 0 : index
    %c0_16 = arith.constant 0 : index
    %32 = vector.load %arg5[%c0_15, %c0_16] : memref<128x16xf32, #tpu.memory_space<vmem>>, vector<128x16xf32>
    tpu.vector_store %arg5[%c0_15, %c0_16], %31 {strides = array<i32>} : memref<128x16xf32, #tpu.memory_space<vmem>>, vector<128x16xf32>,
    return
  }
}

module attributes {stable_mosaic.version = 11 : i64} {
  func.func @_convt_bn_relu_cls_kernel(%arg0: memref<512x144xf32, #tpu.memory_space<vmem>>, %arg1: memref<144x8xf32, #tpu.memory_space<vmem>>, %arg2: memref<1x8xf32, #tpu.memory_space<vmem>>, %arg3: memref<1x8xf32, #tpu.memory_space<vmem>>, %arg4: memref<1x8xf32, #tpu.memory_space<vmem>>, %arg5: memref<8x4xf32, #tpu.memory_space<vmem>>, %arg6: memref<1x4xf32, #tpu.memory_space<vmem>>, %arg7: memref<512x4xf32, #tpu.memory_space<vmem>>) attributes {dimension_semantics = [], scalar_prefetch = 0 : i64, scratch_operands = 0 : i64, tpu.core_type = #tpu.core_type<tc>} {
    %c0 = arith.constant 0 : index
    %c0_0 = arith.constant 0 : index
    %0 = vector.load %arg0[%c0, %c0_0] : memref<512x144xf32, #tpu.memory_space<vmem>>, vector<512x144xf32>
    %c0_1 = arith.constant 0 : index
    %c0_2 = arith.constant 0 : index
    %1 = vector.load %arg1[%c0_1, %c0_2] : memref<144x8xf32, #tpu.memory_space<vmem>>, vector<144x8xf32>
    %cst = arith.constant dense<0.000000e+00> : vector<512x8xf32>
    %2 = tpu.matmul %0, %1, %cst {dimension_numbers = #tpu.dot_dimension_numbers<[1], [0], [0], [1], [0, 0, 1, 1], [], []>} : vector<512x144xf32>, vector<144x8xf32>, vector<512x8xf32> -> vector<512x8xf32>
    %c0_3 = arith.constant 0 : index
    %c0_4 = arith.constant 0 : index
    %3 = vector.load %arg2[%c0_3, %c0_4] : memref<1x8xf32, #tpu.memory_space<vmem>>, vector<1x8xf32>
    %4 = vector.broadcast %3 : vector<1x8xf32> to vector<512x8xf32>
    %5 = arith.addf %2, %4 : vector<512x8xf32>
    %cst_5 = arith.constant dense<0.000000e+00> : vector<8xf32>
    %6 = vector.multi_reduction <add>, %5, %cst_5 [0] : vector<512x8xf32> to vector<8xf32>
    %7 = vector.shape_cast %6 : vector<8xf32> to vector<1x8xf32>
    %cst_6 = arith.constant 5.120000e+02 : f32
    %8 = vector.broadcast %cst_6 : f32 to vector<1x8xf32>
    %9 = arith.divf %7, %8 : vector<1x8xf32>
    %10 = vector.broadcast %9 : vector<1x8xf32> to vector<512x8xf32>
    %11 = arith.subf %5, %10 : vector<512x8xf32>
    %12 = arith.mulf %11, %11 : vector<512x8xf32>
    %cst_7 = arith.constant dense<0.000000e+00> : vector<8xf32>
    %13 = vector.multi_reduction <add>, %12, %cst_7 [0] : vector<512x8xf32> to vector<8xf32>
    %14 = vector.shape_cast %13 : vector<8xf32> to vector<1x8xf32>
    %cst_8 = arith.constant 5.120000e+02 : f32
    %15 = vector.broadcast %cst_8 : f32 to vector<1x8xf32>
    %16 = arith.divf %14, %15 : vector<1x8xf32>
    %17 = vector.broadcast %9 : vector<1x8xf32> to vector<512x8xf32>
    %18 = arith.subf %5, %17 : vector<512x8xf32>
    %cst_9 = arith.constant 9.99999974E-6 : f32
    %19 = vector.broadcast %cst_9 : f32 to vector<1x8xf32>
    %20 = arith.addf %16, %19 : vector<1x8xf32>
    %21 = math.rsqrt %20 : vector<1x8xf32>
    %22 = vector.broadcast %21 : vector<1x8xf32> to vector<512x8xf32>
    %23 = arith.mulf %18, %22 : vector<512x8xf32>
    %c0_10 = arith.constant 0 : index
    %c0_11 = arith.constant 0 : index
    %24 = vector.load %arg3[%c0_10, %c0_11] : memref<1x8xf32, #tpu.memory_space<vmem>>, vector<1x8xf32>
    %25 = vector.broadcast %24 : vector<1x8xf32> to vector<512x8xf32>
    %26 = arith.mulf %23, %25 : vector<512x8xf32>
    %c0_12 = arith.constant 0 : index
    %c0_13 = arith.constant 0 : index
    %27 = vector.load %arg4[%c0_12, %c0_13] : memref<1x8xf32, #tpu.memory_space<vmem>>, vector<1x8xf32>
    %28 = vector.broadcast %27 : vector<1x8xf32> to vector<512x8xf32>
    %29 = arith.addf %26, %28 : vector<512x8xf32>
    %cst_14 = arith.constant 0.000000e+00 : f32
    %30 = vector.broadcast %cst_14 : f32 to vector<512x8xf32>
    %31 = arith.maximumf %29, %30 : vector<512x8xf32>
    %c0_15 = arith.constant 0 : index
    %c0_16 = arith.constant 0 : index
    %32 = vector.load %arg5[%c0_15, %c0_16] : memref<8x4xf32, #tpu.memory_space<vmem>>, vector<8x4xf32>
    %cst_17 = arith.constant dense<0.000000e+00> : vector<512x4xf32>
    %33 = tpu.matmul %31, %32, %cst_17 {dimension_numbers = #tpu.dot_dimension_numbers<[1], [0], [0], [1], [0, 0, 1, 1], [], []>} : vector<512x8xf32>, vector<8x4xf32>, vector<512x4xf32> -> vector<512x4xf32>
    %c0_18 = arith.constant 0 : index
    %c0_19 = arith.constant 0 : index
    %34 = vector.load %arg6[%c0_18, %c0_19] : memref<1x4xf32, #tpu.memory_space<vmem>>, vector<1x4xf32>
    %35 = vector.broadcast %34 : vector<1x4xf32> to vector<512x4xf32>
    %36 = arith.addf %33, %35 : vector<512x4xf32>
    %c0_20 = arith.constant 0 : index
    %c0_21 = arith.constant 0 : index
    %37 = vector.load %arg7[%c0_20, %c0_21] : memref<512x4xf32, #tpu.memory_space<vmem>>, vector<512x4xf32>
    tpu.vector_store %arg7[%c0_20, %c0_21], %36 {strides = array<i32>} : memref<512x4xf32, #tpu.memory_space<vmem>>, vector<512x4xf32>,
    return
  }
}

</mosaic_0001>

<llo_original>
// kernel: tiny_vit_forward.4
$region0: #{tiny_vit_forward.4}
  #allocation0 [shape = 'u32[]', space=smem, size = 0x4, offset = 0x4, fixed_abs, tag = 'smem constant byte address 0x4 - core index']
  #allocation1 [shape = 'u32[144,128]{1,0:T(1,128)}', space=vmem, size = 0x12000, scoped, tag = 'internal scratch']
  %s0 = inlined_call_operand.vmem [shape: f32[128,288], index: 0, kind: input, shape index: {}]
  %s1 = inlined_call_operand.vmem [shape: f32[288,16], index: 1, kind: input, shape index: {}]
  %s2 = inlined_call_operand.vmem [shape: f32[1,16], index: 2, kind: input, shape index: {}]
  %s3 = inlined_call_operand.vmem [shape: f32[1,16], index: 3, kind: input, shape index: {}]
  %s4 = inlined_call_operand.vmem [shape: f32[1,16], index: 4, kind: input, shape index: {}]
  %s5 = inlined_call_operand.vmem [shape: f32[128,16], index: 5, kind: output, shape index: {}]
  %s6 = sld [smem:[#allocation0]]
  $region30: #{tiny_vit_forward.4} parent=0
    _
  %s8 = ssub.s32 1, %s6
  %s9 = scalar_select 0, %s8, %s6
  // Predicated region
  $region2: #{tiny_vit_forward.4} parent=0 // pred_check
    _
  $region3: #{tiny_vit_forward.4} parent=0 // pred_check_branch
    %11 = sbr.rel (0) target = $region5
  $region4: #{tiny_vit_forward.4} parent=0 // pred_region
    _
  $region5: #{tiny_vit_forward.4} parent=0 // pred_fallthru
    _
  // Predicated region
  $region6: #{tiny_vit_forward.4} parent=0 // pred_check
    _
  $region7: #{tiny_vit_forward.4} parent=0 // pred_check_branch
    %13 = sbr.rel (0) target = $region9
  $region8: #{tiny_vit_forward.4} parent=0 // pred_region
    _
  $region9: #{tiny_vit_forward.4} parent=0 // pred_fallthru
    _
  // Predicated region
  $region10: #{tiny_vit_forward.4} parent=0 // pred_check
    _
  $region11: #{tiny_vit_forward.4} parent=0 // pred_check_branch
    %15 = sbr.rel (0) target = $region13
  $region12: #{tiny_vit_forward.4} parent=0 // pred_region
    _
  $region13: #{tiny_vit_forward.4} parent=0 // pred_fallthru
    _
  // Predicated region
  $region14: #{tiny_vit_forward.4} parent=0 // pred_check
    _
  $region15: #{tiny_vit_forward.4} parent=0 // pred_check_branch
    %17 = sbr.rel (0) target = $region17
  $region16: #{tiny_vit_forward.4} parent=0 // pred_region
    _
  $region17: #{tiny_vit_forward.4} parent=0 // pred_fallthru
    _
  // Predicated region
  $region18: #{tiny_vit_forward.4} parent=0 // pred_check
    _
  $region19: #{tiny_vit_forward.4} parent=0 // pred_check_branch
    %19 = sbr.rel (0) target = $region21
  $region20: #{tiny_vit_forward.4} parent=0 // pred_region
    _
  $region21: #{tiny_vit_forward.4} parent=0 // pred_fallthru
    _
  %v20 = vld [vmem:[%s0] sm:$0xff]
  %v21 = vld [vmem:[%s0 + $0x8] sm:$0xff]
  %v22 = vld [vmem:[%s0 + $0x10] sm:$0xff]
  %v23 = vld [vmem:[%s0 + $0x18] sm:$0xff]
  %v24 = vld [vmem:[%s0 + $0x20] sm:$0xff]
  %v25 = vld [vmem:[%s0 + $0x28] sm:$0xff]
  %v26 = vld [vmem:[%s0 + $0x30] sm:$0xff]
  %v27 = vld [vmem:[%s0 + $0x38] sm:$0xff]
  %v28 = vld [vmem:[%s0 + $0x40] sm:$0xff]
  %v29 = vld [vmem:[%s0 + $0x48] sm:$0xff]
  %v30 = vld [vmem:[%s0 + $0x50] sm:$0xff]
  %v31 = vld [vmem:[%s0 + $0x58] sm:$0xff]
  %v32 = vld [vmem:[%s0 + $0x60] sm:$0xff]
  %v33 = vld [vmem:[%s0 + $0x68] sm:$0xff]
  %v34 = vld [vmem:[%s0 + $0x70] sm:$0xff]
  %v35 = vld [vmem:[%s0 + $0x78] sm:$0xff]
  %v36 = vld [vmem:[%s0 + $0x80] sm:$0xff]
  %v37 = vld [vmem:[%s0 + $0x88] sm:$0xff]
  %v38 = vld [vmem:[%s0 + $0x90] sm:$0xff]
  %v39 = vld [vmem:[%s0 + $0x98] sm:$0xff]
  %v40 = vld [vmem:[%s0 + $0xa0] sm:$0xff]
  %v41 = vld [vmem:[%s0 + $0xa8] sm:$0xff]
  %v42 = vld [vmem:[%s0 + $0xb0] sm:$0xff]
  %v43 = vld [vmem:[%s0 + $0xb8] sm:$0xff]
  %v44 = vld [vmem:[%s0 + $0xc0] sm:$0xff]
  %v45 = vld [vmem:[%s0 + $0xc8] sm:$0xff]
  %v46 = vld [vmem:[%s0 + $0xd0] sm:$0xff]
  %v47 = vld [vmem:[%s0 + $0xd8] sm:$0xff]
  %v48 = vld [vmem:[%s0 + $0xe0] sm:$0xff]
  %v49 = vld [vmem:[%s0 + $0xe8] sm:$0xff]
  %v50 = vld [vmem:[%s0 + $0xf0] sm:$0xff]
  %v51 = vld [vmem:[%s0 + $0xf8] sm:$0xff]
  %v52 = vld [vmem:[%s0 + $0x100] sm:$0xff]
  %v53 = vld [vmem:[%s0 + $0x108] sm:$0xff]
  %v54 = vld [vmem:[%s0 + $0x110] sm:$0xff]
  %v55 = vld [vmem:[%s0 + $0x118] sm:$0xff]
  %v56 = vld [vmem:[%s0 + $0x120] sm:$0xff]
  %v57 = vld [vmem:[%s0 + $0x128] sm:$0xff]
  %v58 = vld [vmem:[%s0 + $0x130] sm:$0xff]
  %v59 = vld [vmem:[%s0 + $0x138] sm:$0xff]
  %v60 = vld [vmem:[%s0 + $0x140] sm:$0xff]
  %v61 = vld [vmem:[%s0 + $0x148] sm:$0xff]
  %v62 = vld [vmem:[%s0 + $0x150] sm:$0xff]
  %v63 = vld [vmem:[%s0 + $0x158] sm:$0xff]
  %v64 = vld [vmem:[%s0 + $0x160] sm:$0xff]
  %v65 = vld [vmem:[%s0 + $0x168] sm:$0xff]
  %v66 = vld [vmem:[%s0 + $0x170] sm:$0xff]
  %v67 = vld [vmem:[%s0 + $0x178] sm:$0xff]
  %v68 = vld [vmem:[%s1] sm:$0xff]
  %v69 = vld [vmem:[%s1 + $0x8] sm:$0xff]
  %v70 = vld [vmem:[%s1 + $0x10] sm:$0xff]
  %v71 = vld [vmem:[%s1 + $0x18] sm:$0xff]
  %v72 = vld [vmem:[%s1 + $0x20] sm:$0xff]
  %v73 = vld [vmem:[%s1 + $0x28] sm:$0xff]
  %v74 = vld [vmem:[%s1 + $0x30] sm:$0xff]
  %v75 = vld [vmem:[%s1 + $0x38] sm:$0xff]
  %v76 = vld [vmem:[%s1 + $0x40] sm:$0xff]
  %v77 = vld [vmem:[%s1 + $0x48] sm:$0xff]
  %v78 = vld [vmem:[%s1 + $0x50] sm:$0xff]
  %v79 = vld [vmem:[%s1 + $0x58] sm:$0xff]
  %v80 = vld [vmem:[%s1 + $0x60] sm:$0xff]
  %v81 = vld [vmem:[%s1 + $0x68] sm:$0xff]
  %v82 = vld [vmem:[%s1 + $0x70] sm:$0xff]
  %v83 = vld [vmem:[%s1 + $0x78] sm:$0xff]
  %v84 = vld [vmem:[%s1 + $0x80] sm:$0xff]
  %v85 = vld [vmem:[%s1 + $0x88] sm:$0xff]
  %v86 = vld [vmem:[%s1 + $0x90] sm:$0xff]
  %v87 = vld [vmem:[%s1 + $0x98] sm:$0xff]
  %v88 = vld [vmem:[%s1 + $0xa0] sm:$0xff]
  %v89 = vld [vmem:[%s1 + $0xa8] sm:$0xff]
  %v90 = vld [vmem:[%s1 + $0xb0] sm:$0xff]
  %v91 = vld [vmem:[%s1 + $0xb8] sm:$0xff]
  %v92 = vld [vmem:[%s1 + $0xc0] sm:$0xff]
  %v93 = vld [vmem:[%s1 + $0xc8] sm:$0xff]
  %v94 = vld [vmem:[%s1 + $0xd0] sm:$0xff]
  %v95 = vld [vmem:[%s1 + $0xd8] sm:$0xff]
  %v96 = vld [vmem:[%s1 + $0xe0] sm:$0xff]
  %v97 = vld [vmem:[%s1 + $0xe8] sm:$0xff]
  %v98 = vld [vmem:[%s1 + $0xf0] sm:$0xff]
  %v99 = vld [vmem:[%s1 + $0xf8] sm:$0xff]
  %v100 = vld [vmem:[%s1 + $0x100] sm:$0xff]
  %v101 = vld [vmem:[%s1 + $0x108] sm:$0xff]
  %v102 = vld [vmem:[%s1 + $0x110] sm:$0xff]
  %v103 = vld [vmem:[%s1 + $0x118] sm:$0xff]
  %v104 = vld [vmem:[%s2] sm:$0x1]
  %v106 = vlaneseq
  %v107 = vshrl.u32 %v106, 7
  %v108 = vsub.s32 0, %v107
  %v109 = vrot.slane %v104, %v108
  %vm111 = vcmask 261120
  %v113 = vsel %vm111, %v22, 0
  %v116 = vsel %vm111, %v25, 0
  %v119 = vsel %vm111, %v28, 0
  %v122 = vsel %vm111, %v31, 0
  %v125 = vsel %vm111, %v34, 0
  %v128 = vsel %vm111, %v37, 0
  %v131 = vsel %vm111, %v40, 0
  %v134 = vsel %vm111, %v43, 0
  %v137 = vsel %vm111, %v46, 0
  %v140 = vsel %vm111, %v49, 0
  %v143 = vsel %vm111, %v52, 0
  %v146 = vsel %vm111, %v55, 0
  %v149 = vsel %vm111, %v58, 0
  %v152 = vsel %vm111, %v61, 0
  %v155 = vsel %vm111, %v64, 0
  %v158 = vsel %vm111, %v67, 0
  %160 = vmatprep.subr.mxu0 0.0
  %161 = vmatpush1.msra.mxu0 %v83
  %162 = vmatprep.subr.mxu0 0.0
  %163 = vmatpush1.msra.mxu0 %v82
  %164 = vmatprep.subr.mxu0 0.0
  %165 = vmatpush1.msra.mxu0 %v81
  %166 = vmatprep.subr.mxu0 0.0
  %167 = vmatpush1.msra.mxu0 %v80
  %168 = vmatprep.subr.mxu0 0.0
  %169 = vmatpush1.msra.mxu0 %v79
  %170 = vmatprep.subr.mxu0 0.0
  %171 = vmatpush1.msra.mxu0 %v78
  %172 = vmatprep.subr.mxu0 0.0
  %173 = vmatpush1.msra.mxu0 %v77
  %174 = vmatprep.subr.mxu0 0.0
  %175 = vmatpush1.msra.mxu0 %v76
  %176 = vmatprep.subr.mxu0 0.0
  %177 = vmatpush1.msra.mxu0 %v75
  %178 = vmatprep.subr.mxu0 0.0
  %179 = vmatpush1.msra.mxu0 %v74
  %180 = vmatprep.subr.mxu0 0.0
  %181 = vmatpush1.msra.mxu0 %v73
  %182 = vmatprep.subr.mxu0 0.0
  %183 = vmatpush1.msra.mxu0 %v72
  %184 = vmatprep.subr.mxu0 0.0
  %185 = vmatpush1.msra.mxu0 %v71
  %186 = vmatprep.subr.mxu0 0.0
  %187 = vmatpush1.msra.mxu0 %v70
  %188 = vmatprep.subr.mxu0 0.0
  %189 = vmatpush1.msra.mxu0 %v69
  %190 = vmatprep.subr.mxu0 0.0
  %191 = vmatpush1.msra.mxu0 %v68
  %192 = vmatprep.subr.mxu0 0.0
  %193 = vmatpush2.msra.mxu0 %v99
  %194 = vmatprep.subr.mxu0 0.0
  %195 = vmatpush2.msra.mxu0 %v98
  %196 = vmatprep.subr.mxu0 0.0
  %197 = vmatpush2.msra.mxu0 %v97
  %198 = vmatprep.subr.mxu0 0.0
  %199 = vmatpush2.msra.mxu0 %v96
  %200 = vmatprep.subr.mxu0 0.0
  %201 = vmatpush2.msra.mxu0 %v95
  %202 = vmatprep.subr.mxu0 0.0
  %203 = vmatpush2.msra.mxu0 %v94
  %204 = vmatprep.subr.mxu0 0.0
  %205 = vmatpush2.msra.mxu0 %v93
  %206 = vmatprep.subr.mxu0 0.0
  %207 = vmatpush2.msra.mxu0 %v92
  %208 = vmatprep.subr.mxu0 0.0
  %209 = vmatpush2.msra.mxu0 %v91
  %210 = vmatprep.subr.mxu0 0.0
  %211 = vmatpush2.msra.mxu0 %v90
  %212 = vmatprep.subr.mxu0 0.0
  %213 = vmatpush2.msra.mxu0 %v89
  %214 = vmatprep.subr.mxu0 0.0
  %215 = vmatpush2.msra.mxu0 %v88
  %216 = vmatprep.subr.mxu0 0.0
  %217 = vmatpush2.msra.mxu0 %v87
  %218 = vmatprep.subr.mxu0 0.0
  %219 = vmatpush2.msra.mxu0 %v86
  %220 = vmatprep.subr.mxu0 0.0
  %221 = vmatpush2.msra.mxu0 %v85
  %222 = vmatprep.subr.mxu0 0.0
  %223 = vmatpush2.msra.mxu0 %v84
  %224 = vmatprep.mubr.f32.mxu0 %v21
  %225 = vmatmul.mubr.f32.gmra.mxu0 %v20
  %v226 = vpop.f32.mrf.mxu0
  %v227 = vadd.f32 %v109, %v226
  %v228 = vpop.f32.mrf.mxu0
  %229 = vmatprep.mubr.f32.mxu0 %v24
  %230 = vmatmul.mubr.f32.gmra.mxu0 %v23
  %v231 = vpop.f32.mrf.mxu0
  %v232 = vadd.f32 %v109, %v231
  %v233 = vpop.f32.mrf.mxu0
  %234 = vmatprep.mubr.f32.mxu0 %v27
  %235 = vmatmul.mubr.f32.gmra.mxu0 %v26
  %v236 = vpop.f32.mrf.mxu0
  %v237 = vadd.f32 %v109, %v236
  %v238 = vpop.f32.mrf.mxu0
  %239 = vmatprep.mubr.f32.mxu0 %v30
  %240 = vmatmul.mubr.f32.gmra.mxu0 %v29
  %v241 = vpop.f32.mrf.mxu0
  %v242 = vadd.f32 %v109, %v241
  %v243 = vpop.f32.mrf.mxu0
  %244 = vmatprep.mubr.f32.mxu0 %v33
  %245 = vmatmul.mubr.f32.gmra.mxu0 %v32
  %v246 = vpop.f32.mrf.mxu0
  %v247 = vadd.f32 %v109, %v246
  %v248 = vpop.f32.mrf.mxu0
  %249 = vmatprep.mubr.f32.mxu0 %v36
  %250 = vmatmul.mubr.f32.gmra.mxu0 %v35
  %v251 = vpop.f32.mrf.mxu0
  %v252 = vadd.f32 %v109, %v251
  %v253 = vpop.f32.mrf.mxu0
  %254 = vmatprep.mubr.f32.mxu0 %v39
  %255 = vmatmul.mubr.f32.gmra.mxu0 %v38
  %v256 = vpop.f32.mrf.mxu0
  %v257 = vadd.f32 %v109, %v256
  %v258 = vpop.f32.mrf.mxu0
  %259 = vmatprep.mubr.f32.mxu0 %v42
  %260 = vmatmul.mubr.f32.gmra.mxu0 %v41
  %v261 = vpop.f32.mrf.mxu0
  %v262 = vadd.f32 %v109, %v261
  %v263 = vpop.f32.mrf.mxu0
  %264 = vmatprep.mubr.f32.mxu0 %v45
  %265 = vmatmul.mubr.f32.gmra.mxu0 %v44
  %v266 = vpop.f32.mrf.mxu0
  %v267 = vadd.f32 %v109, %v266
  %v268 = vpop.f32.mrf.mxu0
  %269 = vmatprep.mubr.f32.mxu0 %v48
  %270 = vmatmul.mubr.f32.gmra.mxu0 %v47
  %v271 = vpop.f32.mrf.mxu0
  %v272 = vadd.f32 %v109, %v271
  %v273 = vpop.f32.mrf.mxu0
  %274 = vmatprep.mubr.f32.mxu0 %v51
  %275 = vmatmul.mubr.f32.gmra.mxu0 %v50
  %v276 = vpop.f32.mrf.mxu0
  %v277 = vadd.f32 %v109, %v276
  %v278 = vpop.f32.mrf.mxu0
  %279 = vmatprep.mubr.f32.mxu0 %v54
  %280 = vmatmul.mubr.f32.gmra.mxu0 %v53
  %v281 = vpop.f32.mrf.mxu0
  %v282 = vadd.f32 %v109, %v281
  %v283 = vpop.f32.mrf.mxu0
  %284 = vmatprep.mubr.f32.mxu0 %v57
  %285 = vmatmul.mubr.f32.gmra.mxu0 %v56
  %v286 = vpop.f32.mrf.mxu0
  %v287 = vadd.f32 %v109, %v286
  %v288 = vpop.f32.mrf.mxu0
  %289 = vmatprep.mubr.f32.mxu0 %v60
  %290 = vmatmul.mubr.f32.gmra.mxu0 %v59
  %v291 = vpop.f32.mrf.mxu0
  %v292 = vadd.f32 %v109, %v291
  %v293 = vpop.f32.mrf.mxu0
  %294 = vmatprep.mubr.f32.mxu0 %v63
  %295 = vmatmul.mubr.f32.gmra.mxu0 %v62
  %v296 = vpop.f32.mrf.mxu0
  %v297 = vadd.f32 %v109, %v296
  %v298 = vpop.f32.mrf.mxu0
  %299 = vmatprep.mubr.f32.mxu0 %v66
  %300 = vmatmul.mubr.f32.gmra.mxu0 %v65
  %v301 = vpop.f32.mrf.mxu0
  %v302 = vadd.f32 %v109, %v301
  %v303 = vpop.f32.mrf.mxu0
  %304 = vdwg.mxu0
  %305 = vmatprep.subr.mxu0 0.0
  %306 = vmatpush1.msra.mxu0 0.0
  %307 = vmatprep.subr.mxu0 0.0
  %308 = vmatpush1.msra.mxu0 0.0
  %309 = vmatprep.subr.mxu0 0.0
  %310 = vmatpush1.msra.mxu0 0.0
  %311 = vmatprep.subr.mxu0 0.0
  %312 = vmatpush1.msra.mxu0 0.0
  %313 = vmatprep.subr.mxu0 0.0
  %314 = vmatpush1.msra.mxu0 0.0
  %315 = vmatprep.subr.mxu0 0.0
  %316 = vmatpush1.msra.mxu0 0.0
  %317 = vmatprep.subr.mxu0 0.0
  %318 = vmatpush1.msra.mxu0 0.0
  %319 = vmatprep.subr.mxu0 0.0
  %320 = vmatpush1.msra.mxu0 0.0
  %321 = vmatprep.subr.mxu0 0.0
  %322 = vmatpush1.msra.mxu0 0.0
  %323 = vmatprep.subr.mxu0 0.0
  %324 = vmatpush1.msra.mxu0 0.0
  %325 = vmatprep.subr.mxu0 0.0
  %326 = vmatpush1.msra.mxu0 0.0
  %327 = vmatprep.subr.mxu0 0.0
  %328 = vmatpush1.msra.mxu0 0.0
  %329 = vmatprep.subr.mxu0 0.0
  %330 = vmatpush1.msra.mxu0 %v103
  %331 = vmatprep.subr.mxu0 0.0
  %332 = vmatpush1.msra.mxu0 %v102
  %333 = vmatprep.subr.mxu0 0.0
  %334 = vmatpush1.msra.mxu0 %v101
  %335 = vmatprep.subr.mxu0 0.0
  %336 = vmatpush1.msra.mxu0 %v100
  %337 = vmatprep.subr.mxu0 0.0
  %338 = vmatpush2.msra.mxu0 0.0
  %339 = vmatprep.subr.mxu0 0.0
  %340 = vmatpush2.msra.mxu0 0.0
  %341 = vmatprep.subr.mxu0 0.0
  %342 = vmatpush2.msra.mxu0 0.0
  %343 = vmatprep.subr.mxu0 0.0
  %344 = vmatpush2.msra.mxu0 0.0
  %345 = vmatprep.subr.mxu0 0.0
  %346 = vmatpush2.msra.mxu0 0.0
  %347 = vmatprep.subr.mxu0 0.0
  %348 = vmatpush2.msra.mxu0 0.0
  %349 = vmatprep.subr.mxu0 0.0
  %350 = vmatpush2.msra.mxu0 0.0
  %351 = vmatprep.subr.mxu0 0.0
  %352 = vmatpush2.msra.mxu0 0.0
  %353 = vmatprep.subr.mxu0 0.0
  %354 = vmatpush2.msra.mxu0 0.0
  %355 = vmatprep.subr.mxu0 0.0
  %356 = vmatpush2.msra.mxu0 0.0
  %357 = vmatprep.subr.mxu0 0.0
  %358 = vmatpush2.msra.mxu0 0.0
  %359 = vmatprep.subr.mxu0 0.0
  %360 = vmatpush2.msra.mxu0 0.0
  %361 = vmatprep.subr.mxu0 0.0
  %362 = vmatpush2.msra.mxu0 0.0
  %363 = vmatprep.subr.mxu0 0.0
  %364 = vmatpush2.msra.mxu0 0.0
  %365 = vmatprep.subr.mxu0 0.0
  %366 = vmatpush2.msra.mxu0 0.0
  %367 = vmatprep.subr.mxu0 0.0
  %368 = vmatpush2.msra.mxu0 0.0
  %369 = vmatprep.mubr.f32.mxu0 0.0
  %370 = vmatmul.mubr.f32.gmra.mxu0 %v113
  %v371 = vpop.f32.mrf.mxu0
  %v372 = vadd.f32 %v227, %v371
  %v373 = vpop.f32.mrf.mxu0
  %374 = vmatprep.mubr.f32.mxu0 0.0
  %375 = vmatmul.mubr.f32.gmra.mxu0 %v116
  %v376 = vpop.f32.mrf.mxu0
  %v377 = vadd.f32 %v232, %v376
  %v378 = vpop.f32.mrf.mxu0
  %379 = vmatprep.mubr.f32.mxu0 0.0
  %380 = vmatmul.mubr.f32.gmra.mxu0 %v119
  %v381 = vpop.f32.mrf.mxu0
  %v382 = vadd.f32 %v237, %v381
  %v383 = vpop.f32.mrf.mxu0
  %384 = vmatprep.mubr.f32.mxu0 0.0
  %385 = vmatmul.mubr.f32.gmra.mxu0 %v122
  %v386 = vpop.f32.mrf.mxu0
  %v387 = vadd.f32 %v242, %v386
  %v388 = vpop.f32.mrf.mxu0
  %389 = vmatprep.mubr.f32.mxu0 0.0
  %390 = vmatmul.mubr.f32.gmra.mxu0 %v125
  %v391 = vpop.f32.mrf.mxu0
  %v392 = vadd.f32 %v247, %v391
  %v393 = vpop.f32.mrf.mxu0
  %394 = vmatprep.mubr.f32.mxu0 0.0
  %395 = vmatmul.mubr.f32.gmra.mxu0 %v128
  %v396 = vpop.f32.mrf.mxu0
  %v397 = vadd.f32 %v252, %v396
  %v398 = vpop.f32.mrf.mxu0
  %399 = vmatprep.mubr.f32.mxu0 0.0
  %400 = vmatmul.mubr.f32.gmra.mxu0 %v131
  %v401 = vpop.f32.mrf.mxu0
  %v402 = vadd.f32 %v257, %v401
  %v403 = vpop.f32.mrf.mxu0
  %404 = vmatprep.mubr.f32.mxu0 0.0
  %405 = vmatmul.mubr.f32.gmra.mxu0 %v134
  %v406 = vpop.f32.mrf.mxu0
  %v407 = vadd.f32 %v262, %v406
  %v408 = vpop.f32.mrf.mxu0
  %409 = vmatprep.mubr.f32.mxu0 0.0
  %410 = vmatmul.mubr.f32.gmra.mxu0 %v137
  %v411 = vpop.f32.mrf.mxu0
  %v412 = vadd.f32 %v267, %v411
  %v413 = vpop.f32.mrf.mxu0
  %414 = vmatprep.mubr.f32.mxu0 0.0
  %415 = vmatmul.mubr.f32.gmra.mxu0 %v140
  %v416 = vpop.f32.mrf.mxu0
  %v417 = vadd.f32 %v272, %v416
  %v418 = vpop.f32.mrf.mxu0
  %419 = vmatprep.mubr.f32.mxu0 0.0
  %420 = vmatmul.mubr.f32.gmra.mxu0 %v143
  %v421 = vpop.f32.mrf.mxu0
  %v422 = vadd.f32 %v277, %v421
  %v423 = vpop.f32.mrf.mxu0
  %424 = vmatprep.mubr.f32.mxu0 0.0
  %425 = vmatmul.mubr.f32.gmra.mxu0 %v146
  %v426 = vpop.f32.mrf.mxu0
  %v427 = vadd.f32 %v282, %v426
  %v428 = vpop.f32.mrf.mxu0
  %429 = vmatprep.mubr.f32.mxu0 0.0
  %430 = vmatmul.mubr.f32.gmra.mxu0 %v149
  %v431 = vpop.f32.mrf.mxu0
  %v432 = vadd.f32 %v287, %v431
  %v433 = vpop.f32.mrf.mxu0
  %434 = vmatprep.mubr.f32.mxu0 0.0
  %435 = vmatmul.mubr.f32.gmra.mxu0 %v152
  %v436 = vpop.f32.mrf.mxu0
  %v437 = vadd.f32 %v292, %v436
  %v438 = vpop.f32.mrf.mxu0
  %439 = vmatprep.mubr.f32.mxu0 0.0
  %440 = vmatmul.mubr.f32.gmra.mxu0 %v155
  %v441 = vpop.f32.mrf.mxu0
  %v442 = vadd.f32 %v297, %v441
  %v443 = vpop.f32.mrf.mxu0
  %444 = vmatprep.mubr.f32.mxu0 0.0
  %445 = vmatmul.mubr.f32.gmra.mxu0 %v158
  %v446 = vpop.f32.mrf.mxu0
  %v447 = vadd.f32 %v302, %v446
  %v448 = vpop.f32.mrf.mxu0
  %449 = vdwg.mxu0
  %vm450 = vcmask 130048
  %v451 = vsel %vm450, %v372, 0.0
  %v452 = vsel %vm450, %v377, 0.0
  %v453 = vadd.f32 %v451, %v452
  %v454 = vsel %vm450, %v382, 0.0
  %v455 = vadd.f32 %v453, %v454
  %v456 = vsel %vm450, %v387, 0.0
  %v457 = vadd.f32 %v455, %v456
  %v458 = vsel %vm450, %v392, 0.0
  %v459 = vadd.f32 %v457, %v458
  %v460 = vsel %vm450, %v397, 0.0
  %v461 = vadd.f32 %v459, %v460
  %v462 = vsel %vm450, %v402, 0.0
  %v463 = vadd.f32 %v461, %v462
  %v464 = vsel %vm450, %v407, 0.0
  %v465 = vadd.f32 %v463, %v464
  %v466 = vsel %vm450, %v412, 0.0
  %v467 = vadd.f32 %v465, %v466
  %v468 = vsel %vm450, %v417, 0.0
  %v469 = vadd.f32 %v467, %v468
  %v470 = vsel %vm450, %v422, 0.0
  %v471 = vadd.f32 %v469, %v470
  %v472 = vsel %vm450, %v427, 0.0
  %v473 = vadd.f32 %v471, %v472
  %v474 = vsel %vm450, %v432, 0.0
  %v475 = vadd.f32 %v473, %v474
  %v476 = vsel %vm450, %v437, 0.0
  %v477 = vadd.f32 %v475, %v476
  %v478 = vsel %vm450, %v442, 0.0
  %v479 = vadd.f32 %v477, %v478
  %v480 = vsel %vm450, %v447, 0.0
  %v481 = vadd.f32 %v479, %v480
  %v482 = vrot.slane %v481, 4
  %v483 = vadd.f32 %v481, %v482
  %v484 = vrot.slane %v483, 2
  %v485 = vadd.f32 %v483, %v484
  %v486 = vrot.slane %v485, 1
  %v487 = vadd.f32 %v485, %v486
  %v488 = vrcp.pop 128.0
  %v489 = vmul.f32 %v487, %v488
  %v490 = vsub.f32 %v372, %v489
  %v491 = vsub.f32 %v377, %v489
  %v492 = vsub.f32 %v382, %v489
  %v493 = vsub.f32 %v387, %v489
  %v494 = vsub.f32 %v392, %v489
  %v495 = vsub.f32 %v397, %v489
  %v496 = vsub.f32 %v402, %v489
  %v497 = vsub.f32 %v407, %v489
  %v498 = vsub.f32 %v412, %v489
  %v499 = vsub.f32 %v417, %v489
  %v500 = vsub.f32 %v422, %v489
  %v501 = vsub.f32 %v427, %v489
  %v502 = vsub.f32 %v432, %v489
  %v503 = vsub.f32 %v437, %v489
  %v504 = vsub.f32 %v442, %v489
  %v505 = vsub.f32 %v447, %v489
  %v506 = vmul.f32 %v490, %v490
  %v507 = vmul.f32 %v491, %v491
  %v508 = vmul.f32 %v492, %v492
  %v509 = vmul.f32 %v493, %v493
  %v510 = vmul.f32 %v494, %v494
  %v511 = vmul.f32 %v495, %v495
  %v512 = vmul.f32 %v496, %v496
  %v513 = vmul.f32 %v497, %v497
  %v514 = vmul.f32 %v498, %v498
  %v515 = vmul.f32 %v499, %v499
  %v516 = vmul.f32 %v500, %v500
  %v517 = vmul.f32 %v501, %v501
  %v518 = vmul.f32 %v502, %v502
  %v519 = vmul.f32 %v503, %v503
  %v520 = vmul.f32 %v504, %v504
  %v521 = vmul.f32 %v505, %v505
  %v522 = vsel %vm450, %v506, 0.0
  %v523 = vsel %vm450, %v507, 0.0
  %v524 = vadd.f32 %v522, %v523
  %v525 = vsel %vm450, %v508, 0.0
  %v526 = vadd.f32 %v524, %v525
  %v527 = vsel %vm450, %v509, 0.0
  %v528 = vadd.f32 %v526, %v527
  %v529 = vsel %vm450, %v510, 0.0
  %v530 = vadd.f32 %v528, %v529
  %v531 = vsel %vm450, %v511, 0.0
  %v532 = vadd.f32 %v530, %v531
  %v533 = vsel %vm450, %v512, 0.0
  %v534 = vadd.f32 %v532, %v533
  %v535 = vsel %vm450, %v513, 0.0
  %v536 = vadd.f32 %v534, %v535
  %v537 = vsel %vm450, %v514, 0.0
  %v538 = vadd.f32 %v536, %v537
  %v539 = vsel %vm450, %v515, 0.0
  %v540 = vadd.f32 %v538, %v539
  %v541 = vsel %vm450, %v516, 0.0
  %v542 = vadd.f32 %v540, %v541
  %v543 = vsel %vm450, %v517, 0.0
  %v544 = vadd.f32 %v542, %v543
  %v545 = vsel %vm450, %v518, 0.0
  %v546 = vadd.f32 %v544, %v545
  %v547 = vsel %vm450, %v519, 0.0
  %v548 = vadd.f32 %v546, %v547
  %v549 = vsel %vm450, %v520, 0.0
  %v550 = vadd.f32 %v548, %v549
  %v551 = vsel %vm450, %v521, 0.0
  %v552 = vadd.f32 %v550, %v551
  %v553 = vrot.slane %v552, 4
  %v554 = vadd.f32 %v552, %v553
  %v555 = vrot.slane %v554, 2
  %v556 = vadd.f32 %v554, %v555
  %v557 = vrot.slane %v556, 1
  %v558 = vadd.f32 %v556, %v557
  %v559 = vmul.f32 %v558, %v488
  %v560 = vadd.f32 %v559, 1e-05
  %v561 = vrsqrt.pop %v560
  %v562 = vmul.f32 %v490, %v561
  %v563 = vmul.f32 %v491, %v561
  %v564 = vmul.f32 %v492, %v561
  %v565 = vmul.f32 %v493, %v561
  %v566 = vmul.f32 %v494, %v561
  %v567 = vmul.f32 %v495, %v561
  %v568 = vmul.f32 %v496, %v561
  %v569 = vmul.f32 %v497, %v561
  %v570 = vmul.f32 %v498, %v561
  %v571 = vmul.f32 %v499, %v561
  %v572 = vmul.f32 %v500, %v561
  %v573 = vmul.f32 %v501, %v561
  %v574 = vmul.f32 %v502, %v561
  %v575 = vmul.f32 %v503, %v561
  %v576 = vmul.f32 %v504, %v561
  %v577 = vmul.f32 %v505, %v561
  %v578 = vld [vmem:[%s3] sm:$0x1]
  %v580 = vlaneseq
  %v581 = vshrl.u32 %v580, 7
  %v582 = vsub.s32 0, %v581
  %v583 = vrot.slane %v578, %v582
  %v585 = vmul.f32 %v562, %v583
  %v586 = vmul.f32 %v563, %v583
  %v587 = vmul.f32 %v564, %v583
  %v588 = vmul.f32 %v565, %v583
  %v589 = vmul.f32 %v566, %v583
  %v590 = vmul.f32 %v567, %v583
  %v591 = vmul.f32 %v568, %v583
  %v592 = vmul.f32 %v569, %v583
  %v593 = vmul.f32 %v570, %v583
  %v594 = vmul.f32 %v571, %v583
  %v595 = vmul.f32 %v572, %v583
  %v596 = vmul.f32 %v573, %v583
  %v597 = vmul.f32 %v574, %v583
  %v598 = vmul.f32 %v575, %v583
  %v599 = vmul.f32 %v576, %v583
  %v600 = vmul.f32 %v577, %v583
  %v601 = vld [vmem:[%s4] sm:$0x1]
  %v603 = vlaneseq
  %v604 = vshrl.u32 %v603, 7
  %v605 = vsub.s32 0, %v604
  %v606 = vrot.slane %v601, %v605
  %v608 = vadd.f32 %v585, %v606
  %v609 = vadd.f32 %v586, %v606
  %v610 = vadd.f32 %v587, %v606
  %v611 = vadd.f32 %v588, %v606
  %v612 = vadd.f32 %v589, %v606
  %v613 = vadd.f32 %v590, %v606
  %v614 = vadd.f32 %v591, %v606
  %v615 = vadd.f32 %v592, %v606
  %v616 = vadd.f32 %v593, %v606
  %v617 = vadd.f32 %v594, %v606
  %v618 = vadd.f32 %v595, %v606
  %v619 = vadd.f32 %v596, %v606
  %v620 = vadd.f32 %v597, %v606
  %v621 = vadd.f32 %v598, %v606
  %v622 = vadd.f32 %v599, %v606
  %v623 = vadd.f32 %v600, %v606
  %v624 = vmax.f32 %v608, 0.0
  %v625 = vmax.f32 %v609, 0.0
  %v626 = vmax.f32 %v610, 0.0
  %v627 = vmax.f32 %v611, 0.0
  %v628 = vmax.f32 %v612, 0.0
  %v629 = vmax.f32 %v613, 0.0
  %v630 = vmax.f32 %v614, 0.0
  %v631 = vmax.f32 %v615, 0.0
  %v632 = vmax.f32 %v616, 0.0
  %v633 = vmax.f32 %v617, 0.0
  %v634 = vmax.f32 %v618, 0.0
  %v635 = vmax.f32 %v619, 0.0
  %v636 = vmax.f32 %v620, 0.0
  %v637 = vmax.f32 %v621, 0.0
  %v638 = vmax.f32 %v622, 0.0
  %v639 = vmax.f32 %v623, 0.0
  %640 = vst.msk [vmem:[%s5] sm:$0xff] %vm450, %v624
  %641 = vst.msk [vmem:[%s5 + $0x8] sm:$0xff] %vm450, %v625
  %642 = vst.msk [vmem:[%s5 + $0x10] sm:$0xff] %vm450, %v626
  %643 = vst.msk [vmem:[%s5 + $0x18] sm:$0xff] %vm450, %v627
  %644 = vst.msk [vmem:[%s5 + $0x20] sm:$0xff] %vm450, %v628
  %645 = vst.msk [vmem:[%s5 + $0x28] sm:$0xff] %vm450, %v629
  %646 = vst.msk [vmem:[%s5 + $0x30] sm:$0xff] %vm450, %v630
  %647 = vst.msk [vmem:[%s5 + $0x38] sm:$0xff] %vm450, %v631
  %648 = vst.msk [vmem:[%s5 + $0x40] sm:$0xff] %vm450, %v632
  %649 = vst.msk [vmem:[%s5 + $0x48] sm:$0xff] %vm450, %v633
  %650 = vst.msk [vmem:[%s5 + $0x50] sm:$0xff] %vm450, %v634
  %651 = vst.msk [vmem:[%s5 + $0x58] sm:$0xff] %vm450, %v635
  %652 = vst.msk [vmem:[%s5 + $0x60] sm:$0xff] %vm450, %v636
  %653 = vst.msk [vmem:[%s5 + $0x68] sm:$0xff] %vm450, %v637
  %654 = vst.msk [vmem:[%s5 + $0x70] sm:$0xff] %vm450, %v638
  %655 = vst.msk [vmem:[%s5 + $0x78] sm:$0xff] %vm450, %v639
  // Predicated region
  $region22: #{tiny_vit_forward.4} parent=0 // pred_check
    _
  $region23: #{tiny_vit_forward.4} parent=0 // pred_check_branch
    %657 = sbr.rel (0) target = $region25
  $region24: #{tiny_vit_forward.4} parent=0 // pred_region
    _
  $region25: #{tiny_vit_forward.4} parent=0 // pred_fallthru
    _
  // Predicated region
  $region26: #{tiny_vit_forward.4} parent=0 // pred_check
    _
  $region27: #{tiny_vit_forward.4} parent=0 // pred_check_branch
    %659 = sbr.rel (0) target = $region29
  $region28: #{tiny_vit_forward.4} parent=0 // pred_region
    _
  $region29: #{tiny_vit_forward.4} parent=0 // pred_fallthru
    _

// kernel: tiny_vit_forward.3
$region0: #{tiny_vit_forward.3}
  #allocation0 [shape = 'u32[]', space=smem, size = 0x4, offset = 0x4, fixed_abs, tag = 'smem constant byte address 0x4 - core index']
  #allocation1 [shape = 'u32[144,128]{1,0:T(1,128)}', space=vmem, size = 0x12000, scoped, tag = 'internal scratch']
  %s0 = inlined_call_operand.smem [shape: u32[31], index: -1, kind: input, shape index: {}]
  %s1 = sld [smem:[%s0]]
  %s2 = scalar_lea.smem %s0, 1
  %s3 = sld [smem:[%s2]]
  %s4 = scalar_lea.smem %s0, 2
  %s5 = sld [smem:[%s4]]
  %s6 = scalar_lea.smem %s0, 3
  %s7 = sld [smem:[%s6]]
  %s8 = scalar_lea.smem %s0, 4
  %s9 = sld [smem:[%s8]]
  %s10 = scalar_lea.smem %s0, 5
  %s11 = sld [smem:[%s10]]
  %s12 = scalar_lea.smem %s0, 6
  %s13 = sld [smem:[%s12]]
  %s14 = scalar_lea.smem %s0, 7
  %s15 = sld [smem:[%s14]]
  %s16 = scalar_lea.smem %s0, 8
  %s17 = sld [smem:[%s16]]
  %s18 = scalar_lea.smem %s0, 9
  %s19 = sld [smem:[%s18]]
  %s20 = scalar_lea.smem %s0, 10
  %s21 = sld [smem:[%s20]]
  %s22 = scalar_lea.smem %s0, 11
  %s23 = sld [smem:[%s22]]
  %s24 = scalar_lea.smem %s0, 12
  %s25 = sld [smem:[%s24]]
  %s26 = scalar_lea.smem %s0, 13
  %s27 = sld [smem:[%s26]]
  %s28 = scalar_lea.smem %s0, 14
  %s29 = sld [smem:[%s28]]
  %s30 = scalar_lea.smem %s0, 15
  %s31 = sld [smem:[%s30]]
  %s32 = scalar_lea.smem %s0, 16
  %s33 = sld [smem:[%s32]]
  %s34 = scalar_lea.smem %s0, 17
  %s35 = sld [smem:[%s34]]
  %s36 = scalar_lea.smem %s0, 18
  %s37 = sld [smem:[%s36]]
  %s38 = scalar_lea.smem %s0, 19
  %s39 = sld [smem:[%s38]]
  %s40 = scalar_lea.smem %s0, 20
  %s41 = sld [smem:[%s40]]
  %s42 = scalar_lea.smem %s0, 21
  %s43 = sld [smem:[%s42]]
  %s44 = scalar_lea.smem %s0, 22
  %s45 = sld [smem:[%s44]]
  %s46 = scalar_lea.smem %s0, 23
  %s47 = sld [smem:[%s46]]
  %s48 = scalar_lea.smem %s0, 24
  %s49 = sld [smem:[%s48]]
  %s50 = scalar_lea.smem %s0, 25
  %s51 = sld [smem:[%s50]]
  %s52 = scalar_lea.smem %s0, 26
  %s53 = sld [smem:[%s52]]
  %s54 = scalar_lea.smem %s0, 27
  %s55 = sld [smem:[%s54]]
  %s56 = scalar_lea.smem %s0, 28
  %s57 = sld [smem:[%s56]]
  %s58 = scalar_lea.smem %s0, 29
  %s59 = sld [smem:[%s58]]
  %s60 = scalar_lea.smem %s0, 30
  %s61 = sld [smem:[%s60]]
  %s62 = sld [smem:[#allocation0]]
  $region130: #{tiny_vit_forward.3} parent=0
    _
  %s64 = ssub.s32 1, %s62
  %s65 = scalar_select 0, %s64, %s62
  // Predicated region
  $region2: #{tiny_vit_forward.3} parent=0 // pred_check
    _
  $region3: #{tiny_vit_forward.3} parent=0 // pred_check_branch
    %67 = sbr.rel (0) target = $region5
  $region4: #{tiny_vit_forward.3} parent=0 // pred_region
    _
  $region5: #{tiny_vit_forward.3} parent=0 // pred_fallthru
    _
  // Predicated region
  $region6: #{tiny_vit_forward.3} parent=0 // pred_check
    _
  $region7: #{tiny_vit_forward.3} parent=0 // pred_check_branch
    %69 = sbr.rel (0) target = $region9
  $region8: #{tiny_vit_forward.3} parent=0 // pred_region
    _
  $region9: #{tiny_vit_forward.3} parent=0 // pred_fallthru
    _
  // Predicated region
  $region10: #{tiny_vit_forward.3} parent=0 // pred_check
    _
  $region11: #{tiny_vit_forward.3} parent=0 // pred_check_branch
    %71 = sbr.rel (0) target = $region13
  $region12: #{tiny_vit_forward.3} parent=0 // pred_region
    _
  $region13: #{tiny_vit_forward.3} parent=0 // pred_fallthru
    _
  // Predicated region
  $region14: #{tiny_vit_forward.3} parent=0 // pred_check
    _
  $region15: #{tiny_vit_forward.3} parent=0 // pred_check_branch
    %73 = sbr.rel (0) target = $region17
  $region16: #{tiny_vit_forward.3} parent=0 // pred_region
    _
  $region17: #{tiny_vit_forward.3} parent=0 // pred_fallthru
    _
  // Predicated region
  $region18: #{tiny_vit_forward.3} parent=0 // pred_check
    _
  $region19: #{tiny_vit_forward.3} parent=0 // pred_check_branch
    %75 = sbr.rel (0) target = $region21
  $region20: #{tiny_vit_forward.3} parent=0 // pred_region
    _
  $region21: #{tiny_vit_forward.3} parent=0 // pred_fallthru
    _
  // Predicated region
  $region22: #{tiny_vit_forward.3} parent=0 // pred_check
    _
  $region23: #{tiny_vit_forward.3} parent=0 // pred_check_branch
    %77 = sbr.rel (0) target = $region25
  $region24: #{tiny_vit_forward.3} parent=0 // pred_region
    _
  $region25: #{tiny_vit_forward.3} parent=0 // pred_fallthru
    _
  // Predicated region
  $region26: #{tiny_vit_forward.3} parent=0 // pred_check
    _
  $region27: #{tiny_vit_forward.3} parent=0 // pred_check_branch
    %79 = sbr.rel (0) target = $region29
  $region28: #{tiny_vit_forward.3} parent=0 // pred_region
    _
  $region29: #{tiny_vit_forward.3} parent=0 // pred_fallthru
    _
  // Predicated region
  $region30: #{tiny_vit_forward.3} parent=0 // pred_check
    _
  $region31: #{tiny_vit_forward.3} parent=0 // pred_check_branch
    %81 = sbr.rel (0) target = $region33
  $region32: #{tiny_vit_forward.3} parent=0 // pred_region
    _
  $region33: #{tiny_vit_forward.3} parent=0 // pred_fallthru
    _
  // Predicated region
  $region34: #{tiny_vit_forward.3} parent=0 // pred_check
    _
  $region35: #{tiny_vit_forward.3} parent=0 // pred_check_branch
    %83 = sbr.rel (0) target = $region37
  $region36: #{tiny_vit_forward.3} parent=0 // pred_region
    _
  $region37: #{tiny_vit_forward.3} parent=0 // pred_fallthru
    _
  // Predicated region
  $region38: #{tiny_vit_forward.3} parent=0 // pred_check
    _
  $region39: #{tiny_vit_forward.3} parent=0 // pred_check_branch
    %85 = sbr.rel (0) target = $region41
  $region40: #{tiny_vit_forward.3} parent=0 // pred_region
    _
  $region41: #{tiny_vit_forward.3} parent=0 // pred_fallthru
    _
  // Predicated region
  $region42: #{tiny_vit_forward.3} parent=0 // pred_check
    _
  $region43: #{tiny_vit_forward.3} parent=0 // pred_check_branch
    %87 = sbr.rel (0) target = $region45
  $region44: #{tiny_vit_forward.3} parent=0 // pred_region
    _
  $region45: #{tiny_vit_forward.3} parent=0 // pred_fallthru
    _
  // Predicated region
  $region46: #{tiny_vit_forward.3} parent=0 // pred_check
    _
  $region47: #{tiny_vit_forward.3} parent=0 // pred_check_branch
    %89 = sbr.rel (0) target = $region49
  $region48: #{tiny_vit_forward.3} parent=0 // pred_region
    _
  $region49: #{tiny_vit_forward.3} parent=0 // pred_fallthru
    _
  // Predicated region
  $region50: #{tiny_vit_forward.3} parent=0 // pred_check
    _
  $region51: #{tiny_vit_forward.3} parent=0 // pred_check_branch
    %91 = sbr.rel (0) target = $region53
  $region52: #{tiny_vit_forward.3} parent=0 // pred_region
    _
  $region53: #{tiny_vit_forward.3} parent=0 // pred_fallthru
    _
  // Predicated region
  $region54: #{tiny_vit_forward.3} parent=0 // pred_check
    _
  $region55: #{tiny_vit_forward.3} parent=0 // pred_check_branch
    %93 = sbr.rel (0) target = $region57
  $region56: #{tiny_vit_forward.3} parent=0 // pred_region
    _
  $region57: #{tiny_vit_forward.3} parent=0 // pred_fallthru
    _
  // Predicated region
  $region58: #{tiny_vit_forward.3} parent=0 // pred_check
    _
  $region59: #{tiny_vit_forward.3} parent=0 // pred_check_branch
    %95 = sbr.rel (0) target = $region61
  $region60: #{tiny_vit_forward.3} parent=0 // pred_region
    _
  $region61: #{tiny_vit_forward.3} parent=0 // pred_fallthru
    _
  // Predicated region
  $region62: #{tiny_vit_forward.3} parent=0 // pred_check
    _
  $region63: #{tiny_vit_forward.3} parent=0 // pred_check_branch
    %97 = sbr.rel (0) target = $region65
  $region64: #{tiny_vit_forward.3} parent=0 // pred_region
    _
  $region65: #{tiny_vit_forward.3} parent=0 // pred_fallthru
    _
  // Predicated region
  $region66: #{tiny_vit_forward.3} parent=0 // pred_check
    _
  $region67: #{tiny_vit_forward.3} parent=0 // pred_check_branch
    %99 = sbr.rel (0) target = $region69
  $region68: #{tiny_vit_forward.3} parent=0 // pred_region
    _
  $region69: #{tiny_vit_forward.3} parent=0 // pred_fallthru
    _
  // Predicated region
  $region70: #{tiny_vit_forward.3} parent=0 // pred_check
    _
  $region71: #{tiny_vit_forward.3} parent=0 // pred_check_branch
    %101 = sbr.rel (0) target = $region73
  $region72: #{tiny_vit_forward.3} parent=0 // pred_region
    _
  $region73: #{tiny_vit_forward.3} parent=0 // pred_fallthru
    _
  // Predicated region
  $region74: #{tiny_vit_forward.3} parent=0 // pred_check
    _
  $region75: #{tiny_vit_forward.3} parent=0 // pred_check_branch
    %103 = sbr.rel (0) target = $region77
  $region76: #{tiny_vit_forward.3} parent=0 // pred_region
    _
  $region77: #{tiny_vit_forward.3} parent=0 // pred_fallthru
    _
  // Predicated region
  $region78: #{tiny_vit_forward.3} parent=0 // pred_check
    _
  $region79: #{tiny_vit_forward.3} parent=0 // pred_check_branch
    %105 = sbr.rel (0) target = $region81
  $region80: #{tiny_vit_forward.3} parent=0 // pred_region
    _
  $region81: #{tiny_vit_forward.3} parent=0 // pred_fallthru
    _
  // Predicated region
  $region82: #{tiny_vit_forward.3} parent=0 // pred_check
    _
  $region83: #{tiny_vit_forward.3} parent=0 // pred_check_branch
    %107 = sbr.rel (0) target = $region85
  $region84: #{tiny_vit_forward.3} parent=0 // pred_region
    _
  $region85: #{tiny_vit_forward.3} parent=0 // pred_fallthru
    _
  // Predicated region
  $region86: #{tiny_vit_forward.3} parent=0 // pred_check
    _
  $region87: #{tiny_vit_forward.3} parent=0 // pred_check_branch
    %109 = sbr.rel (0) target = $region89
  $region88: #{tiny_vit_forward.3} parent=0 // pred_region
    _
  $region89: #{tiny_vit_forward.3} parent=0 // pred_fallthru
    _
  // Predicated region
  $region90: #{tiny_vit_forward.3} parent=0 // pred_check
    _
  $region91: #{tiny_vit_forward.3} parent=0 // pred_check_branch
    %111 = sbr.rel (0) target = $region93
  $region92: #{tiny_vit_forward.3} parent=0 // pred_region
    _
  $region93: #{tiny_vit_forward.3} parent=0 // pred_fallthru
    _
  // Predicated region
  $region94: #{tiny_vit_forward.3} parent=0 // pred_check
    _
  $region95: #{tiny_vit_forward.3} parent=0 // pred_check_branch
    %113 = sbr.rel (0) target = $region97
  $region96: #{tiny_vit_forward.3} parent=0 // pred_region
    _
  $region97: #{tiny_vit_forward.3} parent=0 // pred_fallthru
    _
  // Predicated region
  $region98: #{tiny_vit_forward.3} parent=0 // pred_check
    _
  $region99: #{tiny_vit_forward.3} parent=0 // pred_check_branch
    %115 = sbr.rel (0) target = $region101
  $region100: #{tiny_vit_forward.3} parent=0 // pred_region
    _
  $region101: #{tiny_vit_forward.3} parent=0 // pred_fallthru
    _
  // Predicated region
  $region102: #{tiny_vit_forward.3} parent=0 // pred_check
    _
  $region103: #{tiny_vit_forward.3} parent=0 // pred_check_branch
    %117 = sbr.rel (0) target = $region105
  $region104: #{tiny_vit_forward.3} parent=0 // pred_region
    _
  $region105: #{tiny_vit_forward.3} parent=0 // pred_fallthru
    _
  // Predicated region
  $region106: #{tiny_vit_forward.3} parent=0 // pred_check
    _
  $region107: #{tiny_vit_forward.3} parent=0 // pred_check_branch
    %119 = sbr.rel (0) target = $region109
  $region108: #{tiny_vit_forward.3} parent=0 // pred_region
    _
  $region109: #{tiny_vit_forward.3} parent=0 // pred_fallthru
    _
  // Predicated region
  $region110: #{tiny_vit_forward.3} parent=0 // pred_check
    _
  $region111: #{tiny_vit_forward.3} parent=0 // pred_check_branch
    %121 = sbr.rel (0) target = $region113
  $region112: #{tiny_vit_forward.3} parent=0 // pred_region
    _
  $region113: #{tiny_vit_forward.3} parent=0 // pred_fallthru
    _
  // Predicated region
  $region114: #{tiny_vit_forward.3} parent=0 // pred_check
    _
  $region115: #{tiny_vit_forward.3} parent=0 // pred_check_branch
    %123 = sbr.rel (0) target = $region117
  $region116: #{tiny_vit_forward.3} parent=0 // pred_region
    _
  $region117: #{tiny_vit_forward.3} parent=0 // pred_fallthru
    _
  // Predicated region
  $region118: #{tiny_vit_forward.3} parent=0 // pred_check
    _
  $region119: #{tiny_vit_forward.3} parent=0 // pred_check_branch
    %125 = sbr.rel (0) target = $region121
  $region120: #{tiny_vit_forward.3} parent=0 // pred_region
    _
  $region121: #{tiny_vit_forward.3} parent=0 // pred_fallthru
    _
  %v126 = vld [vmem:[%s1] sm:$0xff]
  %v127 = vld [vmem:[%s1 + $0x8] sm:$0xff]
  %v128 = vld [vmem:[%s1 + $0x10] sm:$0xff]
  %v129 = vld [vmem:[%s1 + $0x18] sm:$0xff]
  %v130 = vld [vmem:[%s1 + $0x20] sm:$0xff]
  %v131 = vld [vmem:[%s1 + $0x28] sm:$0xff]
  %v132 = vld [vmem:[%s1 + $0x30] sm:$0xff]
  %v133 = vld [vmem:[%s1 + $0x38] sm:$0xff]
  %v134 = vld [vmem:[%s1 + $0x40] sm:$0xff]
  %v135 = vld [vmem:[%s1 + $0x48] sm:$0xff]
  %v136 = vld [vmem:[%s1 + $0x50] sm:$0xff]
  %v137 = vld [vmem:[%s1 + $0x58] sm:$0xff]
  %v138 = vld [vmem:[%s5] sm:$0xff]
  %v139 = vld [vmem:[%s5 + $0x8] sm:$0xff]
  %v140 = vld [vmem:[%s5 + $0x10] sm:$0xff]
  %v141 = vld [vmem:[%s5 + $0x18] sm:$0xff]
  %v142 = vld [vmem:[%s5 + $0x20] sm:$0xff]
  %v143 = vld [vmem:[%s5 + $0x28] sm:$0xff]
  %v144 = vld [vmem:[%s5 + $0x30] sm:$0xff]
  %v145 = vld [vmem:[%s5 + $0x38] sm:$0xff]
  %v146 = vld [vmem:[%s5 + $0x40] sm:$0xff]
  %v147 = vld [vmem:[%s5 + $0x48] sm:$0xff]
  %v148 = vld [vmem:[%s5 + $0x50] sm:$0xff]
  %v149 = vld [vmem:[%s5 + $0x58] sm:$0xff]
  %v150 = vld [vmem:[%s5 + $0x60] sm:$0xff]
  %v151 = vld [vmem:[%s5 + $0x68] sm:$0xff]
  %v152 = vld [vmem:[%s5 + $0x70] sm:$0xff]
  %v153 = vld [vmem:[%s5 + $0x78] sm:$0xff]
  %v154 = vld [vmem:[%s5 + $0x80] sm:$0xff]
  %v155 = vld [vmem:[%s5 + $0x88] sm:$0xff]
  %v156 = vld [vmem:[%s5 + $0x90] sm:$0xff]
  %v157 = vld [vmem:[%s5 + $0x98] sm:$0xff]
  %v158 = vld [vmem:[%s5 + $0xa0] sm:$0xff]
  %v159 = vld [vmem:[%s5 + $0xa8] sm:$0xff]
  %v160 = vld [vmem:[%s5 + $0xb0] sm:$0xff]
  %v161 = vld [vmem:[%s5 + $0xb8] sm:$0xff]
  %v162 = vld [vmem:[%s5 + $0xc0] sm:$0xff]
  %v163 = vld [vmem:[%s5 + $0xc8] sm:$0xff]
  %v164 = vld [vmem:[%s5 + $0xd0] sm:$0xff]
  %v165 = vld [vmem:[%s5 + $0xd8] sm:$0xff]
  %v166 = vld [vmem:[%s5 + $0xe0] sm:$0xff]
  %v167 = vld [vmem:[%s5 + $0xe8] sm:$0xff]
  %v168 = vld [vmem:[%s5 + $0xf0] sm:$0xff]
  %v169 = vld [vmem:[%s5 + $0xf8] sm:$0xff]
  %v170 = vld [vmem:[%s5 + $0x100] sm:$0xff]
  %v171 = vld [vmem:[%s5 + $0x108] sm:$0xff]
  %v172 = vld [vmem:[%s5 + $0x110] sm:$0xff]
  %v173 = vld [vmem:[%s5 + $0x118] sm:$0xff]
  %v174 = vld [vmem:[%s7] sm:$0x1]
  %v176 = vlaneseq
  %v177 = vshrl.u32 %v176, 7
  %v178 = vsub.s32 0, %v177
  %v179 = vrot.slane %v174, %v178
  %vm181 = vcmask 261120
  %v183 = vsel %vm181, %v128, 0
  %v186 = vsel %vm181, %v131, 0
  %v189 = vsel %vm181, %v134, 0
  %v192 = vsel %vm181, %v137, 0
  %194 = vmatprep.subr.mxu0 0.0
  %195 = vmatpush1.msra.mxu0 %v153
  %196 = vmatprep.subr.mxu0 0.0
  %197 = vmatpush1.msra.mxu0 %v152
  %198 = vmatprep.subr.mxu0 0.0
  %199 = vmatpush1.msra.mxu0 %v151
  %200 = vmatprep.subr.mxu0 0.0
  %201 = vmatpush1.msra.mxu0 %v150
  %202 = vmatprep.subr.mxu0 0.0
  %203 = vmatpush1.msra.mxu0 %v149
  %204 = vmatprep.subr.mxu0 0.0
  %205 = vmatpush1.msra.mxu0 %v148
  %206 = vmatprep.subr.mxu0 0.0
  %207 = vmatpush1.msra.mxu0 %v147
  %208 = vmatprep.subr.mxu0 0.0
  %209 = vmatpush1.msra.mxu0 %v146
  %210 = vmatprep.subr.mxu0 0.0
  %211 = vmatpush1.msra.mxu0 %v145
  %212 = vmatprep.subr.mxu0 0.0
  %213 = vmatpush1.msra.mxu0 %v144
  %214 = vmatprep.subr.mxu0 0.0
  %215 = vmatpush1.msra.mxu0 %v143
  %216 = vmatprep.subr.mxu0 0.0
  %217 = vmatpush1.msra.mxu0 %v142
  %218 = vmatprep.subr.mxu0 0.0
  %219 = vmatpush1.msra.mxu0 %v141
  %220 = vmatprep.subr.mxu0 0.0
  %221 = vmatpush1.msra.mxu0 %v140
  %222 = vmatprep.subr.mxu0 0.0
  %223 = vmatpush1.msra.mxu0 %v139
  %224 = vmatprep.subr.mxu0 0.0
  %225 = vmatpush1.msra.mxu0 %v138
  %226 = vmatprep.subr.mxu0 0.0
  %227 = vmatpush2.msra.mxu0 %v169
  %228 = vmatprep.subr.mxu0 0.0
  %229 = vmatpush2.msra.mxu0 %v168
  %230 = vmatprep.subr.mxu0 0.0
  %231 = vmatpush2.msra.mxu0 %v167
  %232 = vmatprep.subr.mxu0 0.0
  %233 = vmatpush2.msra.mxu0 %v166
  %234 = vmatprep.subr.mxu0 0.0
  %235 = vmatpush2.msra.mxu0 %v165
  %236 = vmatprep.subr.mxu0 0.0
  %237 = vmatpush2.msra.mxu0 %v164
  %238 = vmatprep.subr.mxu0 0.0
  %239 = vmatpush2.msra.mxu0 %v163
  %240 = vmatprep.subr.mxu0 0.0
  %241 = vmatpush2.msra.mxu0 %v162
  %242 = vmatprep.subr.mxu0 0.0
  %243 = vmatpush2.msra.mxu0 %v161
  %244 = vmatprep.subr.mxu0 0.0
  %245 = vmatpush2.msra.mxu0 %v160
  %246 = vmatprep.subr.mxu0 0.0
  %247 = vmatpush2.msra.mxu0 %v159
  %248 = vmatprep.subr.mxu0 0.0
  %249 = vmatpush2.msra.mxu0 %v158
  %250 = vmatprep.subr.mxu0 0.0
  %251 = vmatpush2.msra.mxu0 %v157
  %252 = vmatprep.subr.mxu0 0.0
  %253 = vmatpush2.msra.mxu0 %v156
  %254 = vmatprep.subr.mxu0 0.0
  %255 = vmatpush2.msra.mxu0 %v155
  %256 = vmatprep.subr.mxu0 0.0
  %257 = vmatpush2.msra.mxu0 %v154
  %258 = vmatprep.mubr.f32.mxu0 %v127
  %259 = vmatmul.mubr.f32.gmra.mxu0 %v126
  %v260 = vpop.f32.mrf.mxu0
  %v261 = vadd.f32 %v179, %v260
  %v262 = vpop.f32.mrf.mxu0
  %263 = vmatprep.mubr.f32.mxu0 %v130
  %264 = vmatmul.mubr.f32.gmra.mxu0 %v129
  %v265 = vpop.f32.mrf.mxu0
  %v266 = vadd.f32 %v179, %v265
  %v267 = vpop.f32.mrf.mxu0
  %268 = vmatprep.mubr.f32.mxu0 %v133
  %269 = vmatmul.mubr.f32.gmra.mxu0 %v132
  %v270 = vpop.f32.mrf.mxu0
  %v271 = vadd.f32 %v179, %v270
  %v272 = vpop.f32.mrf.mxu0
  %273 = vmatprep.mubr.f32.mxu0 %v136
  %274 = vmatmul.mubr.f32.gmra.mxu0 %v135
  %v275 = vpop.f32.mrf.mxu0
  %v276 = vadd.f32 %v179, %v275
  %v277 = vpop.f32.mrf.mxu0
  %278 = vdwg.mxu0
  %279 = vmatprep.subr.mxu0 0.0
  %280 = vmatpush1.msra.mxu0 0.0
  %281 = vmatprep.subr.mxu0 0.0
  %282 = vmatpush1.msra.mxu0 0.0
  %283 = vmatprep.subr.mxu0 0.0
  %284 = vmatpush1.msra.mxu0 0.0
  %285 = vmatprep.subr.mxu0 0.0
  %286 = vmatpush1.msra.mxu0 0.0
  %287 = vmatprep.subr.mxu0 0.0
  %288 = vmatpush1.msra.mxu0 0.0
  %289 = vmatprep.subr.mxu0 0.0
  %290 = vmatpush1.msra.mxu0 0.0
  %291 = vmatprep.subr.mxu0 0.0
  %292 = vmatpush1.msra.mxu0 0.0
  %293 = vmatprep.subr.mxu0 0.0
  %294 = vmatpush1.msra.mxu0 0.0
  %295 = vmatprep.subr.mxu0 0.0
  %296 = vmatpush1.msra.mxu0 0.0
  %297 = vmatprep.subr.mxu0 0.0
  %298 = vmatpush1.msra.mxu0 0.0
  %299 = vmatprep.subr.mxu0 0.0
  %300 = vmatpush1.msra.mxu0 0.0
  %301 = vmatprep.subr.mxu0 0.0
  %302 = vmatpush1.msra.mxu0 0.0
  %303 = vmatprep.subr.mxu0 0.0
  %304 = vmatpush1.msra.mxu0 %v173
  %305 = vmatprep.subr.mxu0 0.0
  %306 = vmatpush1.msra.mxu0 %v172
  %307 = vmatprep.subr.mxu0 0.0
  %308 = vmatpush1.msra.mxu0 %v171
  %309 = vmatprep.subr.mxu0 0.0
  %310 = vmatpush1.msra.mxu0 %v170
  %311 = vmatprep.subr.mxu0 0.0
  %312 = vmatpush2.msra.mxu0 0.0
  %313 = vmatprep.subr.mxu0 0.0
  %314 = vmatpush2.msra.mxu0 0.0
  %315 = vmatprep.subr.mxu0 0.0
  %316 = vmatpush2.msra.mxu0 0.0
  %317 = vmatprep.subr.mxu0 0.0
  %318 = vmatpush2.msra.mxu0 0.0
  %319 = vmatprep.subr.mxu0 0.0
  %320 = vmatpush2.msra.mxu0 0.0
  %321 = vmatprep.subr.mxu0 0.0
  %322 = vmatpush2.msra.mxu0 0.0
  %323 = vmatprep.subr.mxu0 0.0
  %324 = vmatpush2.msra.mxu0 0.0
  %325 = vmatprep.subr.mxu0 0.0
  %326 = vmatpush2.msra.mxu0 0.0
  %327 = vmatprep.subr.mxu0 0.0
  %328 = vmatpush2.msra.mxu0 0.0
  %329 = vmatprep.subr.mxu0 0.0
  %330 = vmatpush2.msra.mxu0 0.0
  %331 = vmatprep.subr.mxu0 0.0
  %332 = vmatpush2.msra.mxu0 0.0
  %333 = vmatprep.subr.mxu0 0.0
  %334 = vmatpush2.msra.mxu0 0.0
  %335 = vmatprep.subr.mxu0 0.0
  %336 = vmatpush2.msra.mxu0 0.0
  %337 = vmatprep.subr.mxu0 0.0
  %338 = vmatpush2.msra.mxu0 0.0
  %339 = vmatprep.subr.mxu0 0.0
  %340 = vmatpush2.msra.mxu0 0.0
  %341 = vmatprep.subr.mxu0 0.0
  %342 = vmatpush2.msra.mxu0 0.0
  %343 = vmatprep.mubr.f32.mxu0 0.0
  %344 = vmatmul.mubr.f32.gmra.mxu0 %v183
  %v345 = vpop.f32.mrf.mxu0
  %v346 = vadd.f32 %v261, %v345
  %v347 = vpop.f32.mrf.mxu0
  %348 = vmatprep.mubr.f32.mxu0 0.0
  %349 = vmatmul.mubr.f32.gmra.mxu0 %v186
  %v350 = vpop.f32.mrf.mxu0
  %v351 = vadd.f32 %v266, %v350
  %v352 = vpop.f32.mrf.mxu0
  %353 = vmatprep.mubr.f32.mxu0 0.0
  %354 = vmatmul.mubr.f32.gmra.mxu0 %v189
  %v355 = vpop.f32.mrf.mxu0
  %v356 = vadd.f32 %v271, %v355
  %v357 = vpop.f32.mrf.mxu0
  %358 = vmatprep.mubr.f32.mxu0 0.0
  %359 = vmatmul.mubr.f32.gmra.mxu0 %v192
  %v360 = vpop.f32.mrf.mxu0
  %v361 = vadd.f32 %v276, %v360
  %v362 = vpop.f32.mrf.mxu0
  %363 = vdwg.mxu0
  %v364 = vld [vmem:[%s3] sm:$0xff]
  %v365 = vld [vmem:[%s3 + $0x8] sm:$0xff]
  %v366 = vadd.f32 %v346, %v364
  %v367 = vadd.f32 %v351, %v365
  %v368 = vadd.f32 %v356, %v364
  %v369 = vadd.f32 %v361, %v365
  %v370 = vld [vmem:[%s9] sm:$0x1]
  %v371 = vld [vmem:[%s11] sm:$0x1]
  %v372 = vsel %vm181, %v366, 0.0
  %373 = vadd.xlane.f32.xlu0 %v372
  %v374 = vpop.xlane.xlu0 %373
  %v375 = vsel %vm181, %v367, 0.0
  %376 = vadd.xlane.f32.xlu0 %v375
  %v377 = vpop.xlane.xlu0 %376
  %v378 = vsel %vm181, %v368, 0.0
  %379 = vadd.xlane.f32.xlu0 %v378
  %v380 = vpop.xlane.xlu0 %379
  %v381 = vsel %vm181, %v369, 0.0
  %382 = vadd.xlane.f32.xlu0 %v381
  %v383 = vpop.xlane.xlu0 %382
  %v384 = vrcp.pop 32.0
  %v385 = vmul.f32 %v374, %v384
  %v386 = vmul.f32 %v377, %v384
  %v387 = vmul.f32 %v380, %v384
  %v388 = vmul.f32 %v383, %v384
  %v389 = vsub.f32 %v366, %v385
  %v390 = vsub.f32 %v367, %v386
  %v391 = vsub.f32 %v368, %v387
  %v392 = vsub.f32 %v369, %v388
  %v393 = vmul.f32 %v389, %v389
  %v394 = vmul.f32 %v390, %v390
  %v395 = vmul.f32 %v391, %v391
  %v396 = vmul.f32 %v392, %v392
  %v397 = vsel %vm181, %v393, 0.0
  %398 = vadd.xlane.f32.xlu0 %v397
  %v399 = vpop.xlane.xlu0 %398
  %v400 = vsel %vm181, %v394, 0.0
  %401 = vadd.xlane.f32.xlu0 %v400
  %v402 = vpop.xlane.xlu0 %401
  %v403 = vsel %vm181, %v395, 0.0
  %404 = vadd.xlane.f32.xlu0 %v403
  %v405 = vpop.xlane.xlu0 %404
  %v406 = vsel %vm181, %v396, 0.0
  %407 = vadd.xlane.f32.xlu0 %v406
  %v408 = vpop.xlane.xlu0 %407
  %v409 = vmul.f32 %v399, %v384
  %v410 = vmul.f32 %v402, %v384
  %v411 = vmul.f32 %v405, %v384
  %v412 = vmul.f32 %v408, %v384
  %v413 = vadd.f32 %v409, 1e-05
  %v414 = vadd.f32 %v410, 1e-05
  %v415 = vadd.f32 %v411, 1e-05
  %v416 = vadd.f32 %v412, 1e-05
  %v417 = vrsqrt.pop %v413
  %v418 = vrsqrt.pop %v414
  %v419 = vrsqrt.pop %v415
  %v420 = vrsqrt.pop %v416
  %v421 = vmul.f32 %v389, %v417
  %v422 = vmul.f32 %v390, %v418
  %v423 = vmul.f32 %v391, %v419
  %v424 = vmul.f32 %v392, %v420
  %v426 = vlaneseq
  %v427 = vshrl.u32 %v426, 7
  %v428 = vsub.s32 0, %v427
  %v429 = vrot.slane %v370, %v428
  %v431 = vmul.f32 %v421, %v429
  %v432 = vmul.f32 %v422, %v429
  %v433 = vmul.f32 %v423, %v429
  %v434 = vmul.f32 %v424, %v429
  %v436 = vlaneseq
  %v437 = vshrl.u32 %v436, 7
  %v438 = vsub.s32 0, %v437
  %v439 = vrot.slane %v371, %v438
  %v441 = vadd.f32 %v431, %v439
  %v442 = vadd.f32 %v432, %v439
  %v443 = vadd.f32 %v433, %v439
  %v444 = vadd.f32 %v434, %v439
  %v445 = vld [vmem:[%s13] sm:$0xff]
  %v446 = vld [vmem:[%s13 + $0x8] sm:$0xff]
  %v447 = vld [vmem:[%s13 + $0x10] sm:$0xff]
  %v448 = vld [vmem:[%s13 + $0x18] sm:$0xff]
  %v449 = vld [vmem:[%s15] sm:$0x1]
  %v451 = vlaneseq
  %v452 = vshrl.u32 %v451, 7
  %v453 = vsub.s32 0, %v452
  %v454 = vrot.slane %v449, %v453
  %v457 = vsel %vm181, %v441, 0
  %v460 = vsel %vm181, %v442, 0
  %v463 = vsel %vm181, %v443, 0
  %v466 = vsel %vm181, %v444, 0
  %468 = vmatprep.subr.mxu0 0.0
  %469 = vmatpush1.msra.mxu0 0.0
  %470 = vmatprep.subr.mxu0 0.0
  %471 = vmatpush1.msra.mxu0 0.0
  %472 = vmatprep.subr.mxu0 0.0
  %473 = vmatpush1.msra.mxu0 0.0
  %474 = vmatprep.subr.mxu0 0.0
  %475 = vmatpush1.msra.mxu0 0.0
  %476 = vmatprep.subr.mxu0 0.0
  %477 = vmatpush1.msra.mxu0 0.0
  %478 = vmatprep.subr.mxu0 0.0
  %479 = vmatpush1.msra.mxu0 0.0
  %480 = vmatprep.subr.mxu0 0.0
  %481 = vmatpush1.msra.mxu0 0.0
  %482 = vmatprep.subr.mxu0 0.0
  %483 = vmatpush1.msra.mxu0 0.0
  %484 = vmatprep.subr.mxu0 0.0
  %485 = vmatpush1.msra.mxu0 0.0
  %486 = vmatprep.subr.mxu0 0.0
  %487 = vmatpush1.msra.mxu0 0.0
  %488 = vmatprep.subr.mxu0 0.0
  %489 = vmatpush1.msra.mxu0 0.0
  %490 = vmatprep.subr.mxu0 0.0
  %491 = vmatpush1.msra.mxu0 0.0
  %492 = vmatprep.subr.mxu0 0.0
  %493 = vmatpush1.msra.mxu0 %v448
  %494 = vmatprep.subr.mxu0 0.0
  %495 = vmatpush1.msra.mxu0 %v447
  %496 = vmatprep.subr.mxu0 0.0
  %497 = vmatpush1.msra.mxu0 %v446
  %498 = vmatprep.subr.mxu0 0.0
  %499 = vmatpush1.msra.mxu0 %v445
  %500 = vmatprep.subr.mxu0 0.0
  %501 = vmatpush2.msra.mxu0 0.0
  %502 = vmatprep.subr.mxu0 0.0
  %503 = vmatpush2.msra.mxu0 0.0
  %504 = vmatprep.subr.mxu0 0.0
  %505 = vmatpush2.msra.mxu0 0.0
  %506 = vmatprep.subr.mxu0 0.0
  %507 = vmatpush2.msra.mxu0 0.0
  %508 = vmatprep.subr.mxu0 0.0
  %509 = vmatpush2.msra.mxu0 0.0
  %510 = vmatprep.subr.mxu0 0.0
  %511 = vmatpush2.msra.mxu0 0.0
  %512 = vmatprep.subr.mxu0 0.0
  %513 = vmatpush2.msra.mxu0 0.0
  %514 = vmatprep.subr.mxu0 0.0
  %515 = vmatpush2.msra.mxu0 0.0
  %516 = vmatprep.subr.mxu0 0.0
  %517 = vmatpush2.msra.mxu0 0.0
  %518 = vmatprep.subr.mxu0 0.0
  %519 = vmatpush2.msra.mxu0 0.0
  %520 = vmatprep.subr.mxu0 0.0
  %521 = vmatpush2.msra.mxu0 0.0
  %522 = vmatprep.subr.mxu0 0.0
  %523 = vmatpush2.msra.mxu0 0.0
  %524 = vmatprep.subr.mxu0 0.0
  %525 = vmatpush2.msra.mxu0 0.0
  %526 = vmatprep.subr.mxu0 0.0
  %527 = vmatpush2.msra.mxu0 0.0
  %528 = vmatprep.subr.mxu0 0.0
  %529 = vmatpush2.msra.mxu0 0.0
  %530 = vmatprep.subr.mxu0 0.0
  %531 = vmatpush2.msra.mxu0 0.0
  %532 = vmatprep.mubr.f32.mxu0 0.0
  %533 = vmatmul.mubr.f32.gmra.mxu0 %v457
  %v534 = vpop.f32.mrf.mxu0
  %v535 = vadd.f32 %v454, %v534
  %v536 = vpop.f32.mrf.mxu0
  %537 = vmatprep.mubr.f32.mxu0 0.0
  %538 = vmatmul.mubr.f32.gmra.mxu0 %v460
  %v539 = vpop.f32.mrf.mxu0
  %v540 = vadd.f32 %v454, %v539
  %v541 = vpop.f32.mrf.mxu0
  %542 = vmatprep.mubr.f32.mxu0 0.0
  %543 = vmatmul.mubr.f32.gmra.mxu0 %v463
  %v544 = vpop.f32.mrf.mxu0
  %v545 = vadd.f32 %v454, %v544
  %v546 = vpop.f32.mrf.mxu0
  %547 = vmatprep.mubr.f32.mxu0 0.0
  %548 = vmatmul.mubr.f32.gmra.mxu0 %v466
  %v549 = vpop.f32.mrf.mxu0
  %v550 = vadd.f32 %v454, %v549
  %v551 = vpop.f32.mrf.mxu0
  %552 = vdwg.mxu0
  %v553 = vld [vmem:[%s17] sm:$0xff]
  %v554 = vld [vmem:[%s17 + $0x8] sm:$0xff]
  %v555 = vld [vmem:[%s17 + $0x10] sm:$0xff]
  %v556 = vld [vmem:[%s17 + $0x18] sm:$0xff]
  %559 = vrot.lane.b32.xlu0 %v535, 96
  %v560 = vpop.permute.xlu0 %559
  %561 = vrot.lane.b32.xlu0 %v540, 96
  %v562 = vpop.permute.xlu0 %561
  %vm563 = vcmask 64512
  %v564 = vsel %vm563, %v535, 0
  %v566 = vsel %vm563, %v540, 0
  %v568 = vsel %vm563, %v560, 0
  %v570 = vsel %vm563, %v562, 0
  %572 = vmatprep.subr.mxu0 0.0
  %573 = vmatpush1.xpose.msra.mxu0 0.0
  %574 = vmatprep.subr.mxu0 0.0
  %575 = vmatpush1.xpose.msra.mxu0 0.0
  %576 = vmatprep.subr.mxu0 0.0
  %577 = vmatpush1.xpose.msra.mxu0 0.0
  %578 = vmatprep.subr.mxu0 0.0
  %579 = vmatpush1.xpose.msra.mxu0 0.0
  %580 = vmatprep.subr.mxu0 0.0
  %581 = vmatpush1.xpose.msra.mxu0 0.0
  %582 = vmatprep.subr.mxu0 0.0
  %583 = vmatpush1.xpose.msra.mxu0 0.0
  %584 = vmatprep.subr.mxu0 0.0
  %585 = vmatpush1.xpose.msra.mxu0 0.0
  %586 = vmatprep.subr.mxu0 0.0
  %587 = vmatpush1.xpose.msra.mxu0 0.0
  %588 = vmatprep.subr.mxu0 0.0
  %589 = vmatpush1.xpose.msra.mxu0 0.0
  %590 = vmatprep.subr.mxu0 0.0
  %591 = vmatpush1.xpose.msra.mxu0 0.0
  %592 = vmatprep.subr.mxu0 0.0
  %593 = vmatpush1.xpose.msra.mxu0 0.0
  %594 = vmatprep.subr.mxu0 0.0
  %595 = vmatpush1.xpose.msra.mxu0 0.0
  %596 = vmatprep.subr.mxu0 0.0
  %597 = vmatpush1.xpose.msra.mxu0 0.0
  %598 = vmatprep.subr.mxu0 0.0
  %599 = vmatpush1.xpose.msra.mxu0 0.0
  %600 = vmatprep.subr.mxu0 0.0
  %601 = vmatpush1.xpose.msra.mxu0 %v570
  %602 = vmatprep.subr.mxu0 0.0
  %603 = vmatpush1.xpose.msra.mxu0 %v568
  %604 = vmatprep.subr.mxu0 0.0
  %605 = vmatpush2.xpose.msra.mxu0 0.0
  %606 = vmatprep.subr.mxu0 0.0
  %607 = vmatpush2.xpose.msra.mxu0 0.0
  %608 = vmatprep.subr.mxu0 0.0
  %609 = vmatpush2.xpose.msra.mxu0 0.0
  %610 = vmatprep.subr.mxu0 0.0
  %611 = vmatpush2.xpose.msra.mxu0 0.0
  %612 = vmatprep.subr.mxu0 0.0
  %613 = vmatpush2.xpose.msra.mxu0 0.0
  %614 = vmatprep.subr.mxu0 0.0
  %615 = vmatpush2.xpose.msra.mxu0 0.0
  %616 = vmatprep.subr.mxu0 0.0
  %617 = vmatpush2.xpose.msra.mxu0 0.0
  %618 = vmatprep.subr.mxu0 0.0
  %619 = vmatpush2.xpose.msra.mxu0 0.0
  %620 = vmatprep.subr.mxu0 0.0
  %621 = vmatpush2.xpose.msra.mxu0 0.0
  %622 = vmatprep.subr.mxu0 0.0
  %623 = vmatpush2.xpose.msra.mxu0 0.0
  %624 = vmatprep.subr.mxu0 0.0
  %625 = vmatpush2.xpose.msra.mxu0 0.0
  %626 = vmatprep.subr.mxu0 0.0
  %627 = vmatpush2.xpose.msra.mxu0 0.0
  %628 = vmatprep.subr.mxu0 0.0
  %629 = vmatpush2.xpose.msra.mxu0 0.0
  %630 = vmatprep.subr.mxu0 0.0
  %631 = vmatpush2.xpose.msra.mxu0 0.0
  %632 = vmatprep.subr.mxu0 0.0
  %633 = vmatpush2.xpose.msra.mxu0 0.0
  %634 = vmatprep.subr.mxu0 0.0
  %635 = vmatpush2.xpose.msra.mxu0 0.0
  %636 = vmatprep.mubr.f32.mxu0 0.0
  %637 = vmatmul.mubr.f32.gmra.mxu0 %v564
  %v638 = vpop.f32.mrf.mxu0
  %v639 = vadd.f32 0.0, %v638
  %v640 = vpop.f32.mrf.mxu0
  %641 = vmatprep.mubr.f32.mxu0 0.0
  %642 = vmatmul.mubr.f32.gmra.mxu0 %v566
  %v643 = vpop.f32.mrf.mxu0
  %v644 = vadd.f32 0.0, %v643
  %v645 = vpop.f32.mrf.mxu0
  %646 = vdwg.mxu0
  %v647 = vmul.f32 %v639, 0.35355338
  %v648 = vmul.f32 %v644, 0.35355338
  %vm649 = vcmask 130048
  %v650 = vsel %vm649, %v647, -inf
  %651 = vmax.xlane.f32.xlu0 %v650
  %v652 = vpop.xlane.xlu0 %651
  %v653 = vsel %vm649, %v648, -inf
  %654 = vmax.xlane.f32.xlu0 %v653
  %v655 = vpop.xlane.xlu0 %654
  %v656 = vsub.f32 %v647, %v652
  %v657 = vsub.f32 %v648, %v655
  %v658 = vmul.f32 %v656, 1.442695
  %v659 = vpow.pop %v658
  %v660 = vmul.f32 %v657, 1.442695
  %v661 = vpow.pop %v660
  %v662 = vsel %vm649, %v659, 0.0
  %663 = vadd.xlane.f32.xlu0 %v662
  %v664 = vpop.xlane.xlu0 %663
  %v665 = vsel %vm649, %v661, 0.0
  %666 = vadd.xlane.f32.xlu0 %v665
  %v667 = vpop.xlane.xlu0 %666
  %v668 = vrcp.pop %v664
  %v669 = vmul.f32 %v659, %v668
  %v670 = vrcp.pop %v667
  %v671 = vmul.f32 %v661, %v670
  %672 = vrot.lane.b32.xlu0 %v535, 64
  %v673 = vpop.permute.xlu0 %672
  %674 = vrot.lane.b32.xlu0 %v540, 64
  %v675 = vpop.permute.xlu0 %674
  %v679 = vsel %vm649, %v669, 0
  %v682 = vsel %vm649, %v671, 0
  %684 = vmatprep.subr.mxu0 0.0
  %685 = vmatpush1.msra.mxu0 0.0
  %686 = vmatprep.subr.mxu0 0.0
  %687 = vmatpush1.msra.mxu0 0.0
  %688 = vmatprep.subr.mxu0 0.0
  %689 = vmatpush1.msra.mxu0 0.0
  %690 = vmatprep.subr.mxu0 0.0
  %691 = vmatpush1.msra.mxu0 0.0
  %692 = vmatprep.subr.mxu0 0.0
  %693 = vmatpush1.msra.mxu0 0.0
  %694 = vmatprep.subr.mxu0 0.0
  %695 = vmatpush1.msra.mxu0 0.0
  %696 = vmatprep.subr.mxu0 0.0
  %697 = vmatpush1.msra.mxu0 0.0
  %698 = vmatprep.subr.mxu0 0.0
  %699 = vmatpush1.msra.mxu0 0.0
  %700 = vmatprep.subr.mxu0 0.0
  %701 = vmatpush1.msra.mxu0 0.0
  %702 = vmatprep.subr.mxu0 0.0
  %703 = vmatpush1.msra.mxu0 0.0
  %704 = vmatprep.subr.mxu0 0.0
  %705 = vmatpush1.msra.mxu0 0.0
  %706 = vmatprep.subr.mxu0 0.0
  %707 = vmatpush1.msra.mxu0 0.0
  %708 = vmatprep.subr.mxu0 0.0
  %709 = vmatpush1.msra.mxu0 0.0
  %710 = vmatprep.subr.mxu0 0.0
  %711 = vmatpush1.msra.mxu0 0.0
  %712 = vmatprep.subr.mxu0 0.0
  %713 = vmatpush1.msra.mxu0 %v675
  %714 = vmatprep.subr.mxu0 0.0
  %715 = vmatpush1.msra.mxu0 %v673
  %716 = vmatprep.subr.mxu0 0.0
  %717 = vmatpush2.msra.mxu0 0.0
  %718 = vmatprep.subr.mxu0 0.0
  %719 = vmatpush2.msra.mxu0 0.0
  %720 = vmatprep.subr.mxu0 0.0
  %721 = vmatpush2.msra.mxu0 0.0
  %722 = vmatprep.subr.mxu0 0.0
  %723 = vmatpush2.msra.mxu0 0.0
  %724 = vmatprep.subr.mxu0 0.0
  %725 = vmatpush2.msra.mxu0 0.0
  %726 = vmatprep.subr.mxu0 0.0
  %727 = vmatpush2.msra.mxu0 0.0
  %728 = vmatprep.subr.mxu0 0.0
  %729 = vmatpush2.msra.mxu0 0.0
  %730 = vmatprep.subr.mxu0 0.0
  %731 = vmatpush2.msra.mxu0 0.0
  %732 = vmatprep.subr.mxu0 0.0
  %733 = vmatpush2.msra.mxu0 0.0
  %734 = vmatprep.subr.mxu0 0.0
  %735 = vmatpush2.msra.mxu0 0.0
  %736 = vmatprep.subr.mxu0 0.0
  %737 = vmatpush2.msra.mxu0 0.0
  %738 = vmatprep.subr.mxu0 0.0
  %739 = vmatpush2.msra.mxu0 0.0
  %740 = vmatprep.subr.mxu0 0.0
  %741 = vmatpush2.msra.mxu0 0.0
  %742 = vmatprep.subr.mxu0 0.0
  %743 = vmatpush2.msra.mxu0 0.0
  %744 = vmatprep.subr.mxu0 0.0
  %745 = vmatpush2.msra.mxu0 0.0
  %746 = vmatprep.subr.mxu0 0.0
  %747 = vmatpush2.msra.mxu0 0.0
  %748 = vmatprep.mubr.f32.mxu0 0.0
  %749 = vmatmul.mubr.f32.gmra.mxu0 %v679
  %v750 = vpop.f32.mrf.mxu0
  %v751 = vadd.f32 0.0, %v750
  %v752 = vpop.f32.mrf.mxu0
  %753 = vmatprep.mubr.f32.mxu0 0.0
  %754 = vmatmul.mubr.f32.gmra.mxu0 %v682
  %v755 = vpop.f32.mrf.mxu0
  %v756 = vadd.f32 0.0, %v755
  %v757 = vpop.f32.mrf.mxu0
  %758 = vdwg.mxu0
  %759 = vrot.lane.b32.xlu0 %v535, 120
  %v760 = vpop.permute.xlu0 %759
  %761 = vrot.lane.b32.xlu0 %v540, 120
  %v762 = vpop.permute.xlu0 %761
  %763 = vrot.lane.b32.xlu0 %v535, 88
  %v764 = vpop.permute.xlu0 %763
  %765 = vrot.lane.b32.xlu0 %v540, 88
  %v766 = vpop.permute.xlu0 %765
  %v767 = vsel %vm563, %v760, 0
  %v769 = vsel %vm563, %v762, 0
  %v771 = vsel %vm563, %v764, 0
  %v773 = vsel %vm563, %v766, 0
  %775 = vmatprep.subr.mxu0 0.0
  %776 = vmatpush1.xpose.msra.mxu0 0.0
  %777 = vmatprep.subr.mxu0 0.0
  %778 = vmatpush1.xpose.msra.mxu0 0.0
  %779 = vmatprep.subr.mxu0 0.0
  %780 = vmatpush1.xpose.msra.mxu0 0.0
  %781 = vmatprep.subr.mxu0 0.0
  %782 = vmatpush1.xpose.msra.mxu0 0.0
  %783 = vmatprep.subr.mxu0 0.0
  %784 = vmatpush1.xpose.msra.mxu0 0.0
  %785 = vmatprep.subr.mxu0 0.0
  %786 = vmatpush1.xpose.msra.mxu0 0.0
  %787 = vmatprep.subr.mxu0 0.0
  %788 = vmatpush1.xpose.msra.mxu0 0.0
  %789 = vmatprep.subr.mxu0 0.0
  %790 = vmatpush1.xpose.msra.mxu0 0.0
  %791 = vmatprep.subr.mxu0 0.0
  %792 = vmatpush1.xpose.msra.mxu0 0.0
  %793 = vmatprep.subr.mxu0 0.0
  %794 = vmatpush1.xpose.msra.mxu0 0.0
  %795 = vmatprep.subr.mxu0 0.0
  %796 = vmatpush1.xpose.msra.mxu0 0.0
  %797 = vmatprep.subr.mxu0 0.0
  %798 = vmatpush1.xpose.msra.mxu0 0.0
  %799 = vmatprep.subr.mxu0 0.0
  %800 = vmatpush1.xpose.msra.mxu0 0.0
  %801 = vmatprep.subr.mxu0 0.0
  %802 = vmatpush1.xpose.msra.mxu0 0.0
  %803 = vmatprep.subr.mxu0 0.0
  %804 = vmatpush1.xpose.msra.mxu0 %v773
  %805 = vmatprep.subr.mxu0 0.0
  %806 = vmatpush1.xpose.msra.mxu0 %v771
  %807 = vmatprep.subr.mxu0 0.0
  %808 = vmatpush2.xpose.msra.mxu0 0.0
  %809 = vmatprep.subr.mxu0 0.0
  %810 = vmatpush2.xpose.msra.mxu0 0.0
  %811 = vmatprep.subr.mxu0 0.0
  %812 = vmatpush2.xpose.msra.mxu0 0.0
  %813 = vmatprep.subr.mxu0 0.0
  %814 = vmatpush2.xpose.msra.mxu0 0.0
  %815 = vmatprep.subr.mxu0 0.0
  %816 = vmatpush2.xpose.msra.mxu0 0.0
  %817 = vmatprep.subr.mxu0 0.0
  %818 = vmatpush2.xpose.msra.mxu0 0.0
  %819 = vmatprep.subr.mxu0 0.0
  %820 = vmatpush2.xpose.msra.mxu0 0.0
  %821 = vmatprep.subr.mxu0 0.0
  %822 = vmatpush2.xpose.msra.mxu0 0.0
  %823 = vmatprep.subr.mxu0 0.0
  %824 = vmatpush2.xpose.msra.mxu0 0.0
  %825 = vmatprep.subr.mxu0 0.0
  %826 = vmatpush2.xpose.msra.mxu0 0.0
  %827 = vmatprep.subr.mxu0 0.0
  %828 = vmatpush2.xpose.msra.mxu0 0.0
  %829 = vmatprep.subr.mxu0 0.0
  %830 = vmatpush2.xpose.msra.mxu0 0.0
  %831 = vmatprep.subr.mxu0 0.0
  %832 = vmatpush2.xpose.msra.mxu0 0.0
  %833 = vmatprep.subr.mxu0 0.0
  %834 = vmatpush2.xpose.msra.mxu0 0.0
  %835 = vmatprep.subr.mxu0 0.0
  %836 = vmatpush2.xpose.msra.mxu0 0.0
  %837 = vmatprep.subr.mxu0 0.0
  %838 = vmatpush2.xpose.msra.mxu0 0.0
  %839 = vmatprep.mubr.f32.mxu0 0.0
  %840 = vmatmul.mubr.f32.gmra.mxu0 %v767
  %v841 = vpop.f32.mrf.mxu0
  %v842 = vadd.f32 0.0, %v841
  %v843 = vpop.f32.mrf.mxu0
  %844 = vmatprep.mubr.f32.mxu0 0.0
  %845 = vmatmul.mubr.f32.gmra.mxu0 %v769
  %v846 = vpop.f32.mrf.mxu0
  %v847 = vadd.f32 0.0, %v846
  %v848 = vpop.f32.mrf.mxu0
  %849 = vdwg.mxu0
  %v850 = vmul.f32 %v842, 0.35355338
  %v851 = vmul.f32 %v847, 0.35355338
  %v852 = vsel %vm649, %v850, -inf
  %853 = vmax.xlane.f32.xlu0 %v852
  %v854 = vpop.xlane.xlu0 %853
  %v855 = vsel %vm649, %v851, -inf
  %856 = vmax.xlane.f32.xlu0 %v855
  %v857 = vpop.xlane.xlu0 %856
  %v858 = vsub.f32 %v850, %v854
  %v859 = vsub.f32 %v851, %v857
  %v860 = vmul.f32 %v858, 1.442695
  %v861 = vpow.pop %v860
  %v862 = vmul.f32 %v859, 1.442695
  %v863 = vpow.pop %v862
  %v864 = vsel %vm649, %v861, 0.0
  %865 = vadd.xlane.f32.xlu0 %v864
  %v866 = vpop.xlane.xlu0 %865
  %v867 = vsel %vm649, %v863, 0.0
  %868 = vadd.xlane.f32.xlu0 %v867
  %v869 = vpop.xlane.xlu0 %868
  %v870 = vrcp.pop %v866
  %v871 = vmul.f32 %v861, %v870
  %v872 = vrcp.pop %v869
  %v873 = vmul.f32 %v863, %v872
  %874 = vrot.lane.b32.xlu0 %v535, 56
  %v875 = vpop.permute.xlu0 %874
  %876 = vrot.lane.b32.xlu0 %v540, 56
  %v877 = vpop.permute.xlu0 %876
  %v881 = vsel %vm649, %v871, 0
  %v884 = vsel %vm649, %v873, 0
  %886 = vmatprep.subr.mxu0 0.0
  %887 = vmatpush1.msra.mxu0 0.0
  %888 = vmatprep.subr.mxu0 0.0
  %889 = vmatpush1.msra.mxu0 0.0
  %890 = vmatprep.subr.mxu0 0.0
  %891 = vmatpush1.msra.mxu0 0.0
  %892 = vmatprep.subr.mxu0 0.0
  %893 = vmatpush1.msra.mxu0 0.0
  %894 = vmatprep.subr.mxu0 0.0
  %895 = vmatpush1.msra.mxu0 0.0
  %896 = vmatprep.subr.mxu0 0.0
  %897 = vmatpush1.msra.mxu0 0.0
  %898 = vmatprep.subr.mxu0 0.0
  %899 = vmatpush1.msra.mxu0 0.0
  %900 = vmatprep.subr.mxu0 0.0
  %901 = vmatpush1.msra.mxu0 0.0
  %902 = vmatprep.subr.mxu0 0.0
  %903 = vmatpush1.msra.mxu0 0.0
  %904 = vmatprep.subr.mxu0 0.0
  %905 = vmatpush1.msra.mxu0 0.0
  %906 = vmatprep.subr.mxu0 0.0
  %907 = vmatpush1.msra.mxu0 0.0
  %908 = vmatprep.subr.mxu0 0.0
  %909 = vmatpush1.msra.mxu0 0.0
  %910 = vmatprep.subr.mxu0 0.0
  %911 = vmatpush1.msra.mxu0 0.0
  %912 = vmatprep.subr.mxu0 0.0
  %913 = vmatpush1.msra.mxu0 0.0
  %914 = vmatprep.subr.mxu0 0.0
  %915 = vmatpush1.msra.mxu0 %v877
  %916 = vmatprep.subr.mxu0 0.0
  %917 = vmatpush1.msra.mxu0 %v875
  %918 = vmatprep.subr.mxu0 0.0
  %919 = vmatpush2.msra.mxu0 0.0
  %920 = vmatprep.subr.mxu0 0.0
  %921 = vmatpush2.msra.mxu0 0.0
  %922 = vmatprep.subr.mxu0 0.0
  %923 = vmatpush2.msra.mxu0 0.0
  %924 = vmatprep.subr.mxu0 0.0
  %925 = vmatpush2.msra.mxu0 0.0
  %926 = vmatprep.subr.mxu0 0.0
  %927 = vmatpush2.msra.mxu0 0.0
  %928 = vmatprep.subr.mxu0 0.0
  %929 = vmatpush2.msra.mxu0 0.0
  %930 = vmatprep.subr.mxu0 0.0
  %931 = vmatpush2.msra.mxu0 0.0
  %932 = vmatprep.subr.mxu0 0.0
  %933 = vmatpush2.msra.mxu0 0.0
  %934 = vmatprep.subr.mxu0 0.0
  %935 = vmatpush2.msra.mxu0 0.0
  %936 = vmatprep.subr.mxu0 0.0
  %937 = vmatpush2.msra.mxu0 0.0
  %938 = vmatprep.subr.mxu0 0.0
  %939 = vmatpush2.msra.mxu0 0.0
  %940 = vmatprep.subr.mxu0 0.0
  %941 = vmatpush2.msra.mxu0 0.0
  %942 = vmatprep.subr.mxu0 0.0
  %943 = vmatpush2.msra.mxu0 0.0
  %944 = vmatprep.subr.mxu0 0.0
  %945 = vmatpush2.msra.mxu0 0.0
  %946 = vmatprep.subr.mxu0 0.0
  %947 = vmatpush2.msra.mxu0 0.0
  %948 = vmatprep.subr.mxu0 0.0
  %949 = vmatpush2.msra.mxu0 0.0
  %950 = vmatprep.mubr.f32.mxu0 0.0
  %951 = vmatmul.mubr.f32.gmra.mxu0 %v881
  %v952 = vpop.f32.mrf.mxu0
  %v953 = vadd.f32 0.0, %v952
  %v954 = vpop.f32.mrf.mxu0
  %955 = vmatprep.mubr.f32.mxu0 0.0
  %956 = vmatmul.mubr.f32.gmra.mxu0 %v884
  %v957 = vpop.f32.mrf.mxu0
  %v958 = vadd.f32 0.0, %v957
  %v959 = vpop.f32.mrf.mxu0
  %960 = vdwg.mxu0
  %v962 = vsel %vm563, %v953, 0
  %v965 = vsel %vm563, %v958, 0
  %967 = vmatprep.subr.mxu0 0.0
  %968 = vmatpush1.msra.mxu0 0.0
  %969 = vmatprep.subr.mxu0 0.0
  %970 = vmatpush1.msra.mxu0 0.0
  %971 = vmatprep.subr.mxu0 0.0
  %972 = vmatpush1.msra.mxu0 0.0
  %973 = vmatprep.subr.mxu0 0.0
  %974 = vmatpush1.msra.mxu0 0.0
  %975 = vmatprep.subr.mxu0 0.0
  %976 = vmatpush1.msra.mxu0 0.0
  %977 = vmatprep.subr.mxu0 0.0
  %978 = vmatpush1.msra.mxu0 0.0
  %979 = vmatprep.subr.mxu0 0.0
  %980 = vmatpush1.msra.mxu0 0.0
  %981 = vmatprep.subr.mxu0 0.0
  %982 = vmatpush1.msra.mxu0 0.0
  %983 = vmatprep.subr.mxu0 0.0
  %984 = vmatpush1.msra.mxu0 0.0
  %985 = vmatprep.subr.mxu0 0.0
  %986 = vmatpush1.msra.mxu0 0.0
  %987 = vmatprep.subr.mxu0 0.0
  %988 = vmatpush1.msra.mxu0 0.0
  %989 = vmatprep.subr.mxu0 0.0
  %990 = vmatpush1.msra.mxu0 0.0
  %991 = vmatprep.subr.mxu0 0.0
  %992 = vmatpush1.msra.mxu0 0.0
  %993 = vmatprep.subr.mxu0 0.0
  %994 = vmatpush1.msra.mxu0 0.0
  %995 = vmatprep.subr.mxu0 0.0
  %996 = vmatpush1.msra.mxu0 0.0
  %997 = vmatprep.subr.mxu0 0.0
  %998 = vmatpush1.msra.mxu0 %v554
  %999 = vmatprep.subr.mxu0 0.0
  %1000 = vmatpush2.msra.mxu0 0.0
  %1001 = vmatprep.subr.mxu0 0.0
  %1002 = vmatpush2.msra.mxu0 0.0
  %1003 = vmatprep.subr.mxu0 0.0
  %1004 = vmatpush2.msra.mxu0 0.0
  %1005 = vmatprep.subr.mxu0 0.0
  %1006 = vmatpush2.msra.mxu0 0.0
  %1007 = vmatprep.subr.mxu0 0.0
  %1008 = vmatpush2.msra.mxu0 0.0
  %1009 = vmatprep.subr.mxu0 0.0
  %1010 = vmatpush2.msra.mxu0 0.0
  %1011 = vmatprep.subr.mxu0 0.0
  %1012 = vmatpush2.msra.mxu0 0.0
  %1013 = vmatprep.subr.mxu0 0.0
  %1014 = vmatpush2.msra.mxu0 0.0
  %1015 = vmatprep.subr.mxu0 0.0
  %1016 = vmatpush2.msra.mxu0 0.0
  %1017 = vmatprep.subr.mxu0 0.0
  %1018 = vmatpush2.msra.mxu0 0.0
  %1019 = vmatprep.subr.mxu0 0.0
  %1020 = vmatpush2.msra.mxu0 0.0
  %1021 = vmatprep.subr.mxu0 0.0
  %1022 = vmatpush2.msra.mxu0 0.0
  %1023 = vmatprep.subr.mxu0 0.0
  %1024 = vmatpush2.msra.mxu0 0.0
  %1025 = vmatprep.subr.mxu0 0.0
  %1026 = vmatpush2.msra.mxu0 0.0
  %1027 = vmatprep.subr.mxu0 0.0
  %1028 = vmatpush2.msra.mxu0 0.0
  %1029 = vmatprep.subr.mxu0 0.0
  %1030 = vmatpush2.msra.mxu0 0.0
  %1031 = vmatprep.mubr.f32.mxu0 0.0
  %1032 = vmatmul.mubr.f32.gmra.mxu0 %v962
  %v1033 = vpop.f32.mrf.mxu0
  %v1034 = vadd.f32 0.0, %v1033
  %v1035 = vpop.f32.mrf.mxu0
  %1036 = vmatprep.mubr.f32.mxu0 0.0
  %1037 = vmatmul.mubr.f32.gmra.mxu0 %v965
  %v1038 = vpop.f32.mrf.mxu0
  %v1039 = vadd.f32 0.0, %v1038
  %v1040 = vpop.f32.mrf.mxu0
  %1041 = vdwg.mxu0
  %v1043 = vsel %vm563, %v751, 0
  %v1046 = vsel %vm563, %v756, 0
  %1048 = vmatprep.subr.mxu0 0.0
  %1049 = vmatpush1.msra.mxu0 0.0
  %1050 = vmatprep.subr.mxu0 0.0
  %1051 = vmatpush1.msra.mxu0 0.0
  %1052 = vmatprep.subr.mxu0 0.0
  %1053 = vmatpush1.msra.mxu0 0.0
  %1054 = vmatprep.subr.mxu0 0.0
  %1055 = vmatpush1.msra.mxu0 0.0
  %1056 = vmatprep.subr.mxu0 0.0
  %1057 = vmatpush1.msra.mxu0 0.0
  %1058 = vmatprep.subr.mxu0 0.0
  %1059 = vmatpush1.msra.mxu0 0.0
  %1060 = vmatprep.subr.mxu0 0.0
  %1061 = vmatpush1.msra.mxu0 0.0
  %1062 = vmatprep.subr.mxu0 0.0
  %1063 = vmatpush1.msra.mxu0 0.0
  %1064 = vmatprep.subr.mxu0 0.0
  %1065 = vmatpush1.msra.mxu0 0.0
  %1066 = vmatprep.subr.mxu0 0.0
  %1067 = vmatpush1.msra.mxu0 0.0
  %1068 = vmatprep.subr.mxu0 0.0
  %1069 = vmatpush1.msra.mxu0 0.0
  %1070 = vmatprep.subr.mxu0 0.0
  %1071 = vmatpush1.msra.mxu0 0.0
  %1072 = vmatprep.subr.mxu0 0.0
  %1073 = vmatpush1.msra.mxu0 0.0
  %1074 = vmatprep.subr.mxu0 0.0
  %1075 = vmatpush1.msra.mxu0 0.0
  %1076 = vmatprep.subr.mxu0 0.0
  %1077 = vmatpush1.msra.mxu0 0.0
  %1078 = vmatprep.subr.mxu0 0.0
  %1079 = vmatpush1.msra.mxu0 %v553
  %1080 = vmatprep.subr.mxu0 0.0
  %1081 = vmatpush2.msra.mxu0 0.0
  %1082 = vmatprep.subr.mxu0 0.0
  %1083 = vmatpush2.msra.mxu0 0.0
  %1084 = vmatprep.subr.mxu0 0.0
  %1085 = vmatpush2.msra.mxu0 0.0
  %1086 = vmatprep.subr.mxu0 0.0
  %1087 = vmatpush2.msra.mxu0 0.0
  %1088 = vmatprep.subr.mxu0 0.0
  %1089 = vmatpush2.msra.mxu0 0.0
  %1090 = vmatprep.subr.mxu0 0.0
  %1091 = vmatpush2.msra.mxu0 0.0
  %1092 = vmatprep.subr.mxu0 0.0
  %1093 = vmatpush2.msra.mxu0 0.0
  %1094 = vmatprep.subr.mxu0 0.0
  %1095 = vmatpush2.msra.mxu0 0.0
  %1096 = vmatprep.subr.mxu0 0.0
  %1097 = vmatpush2.msra.mxu0 0.0
  %1098 = vmatprep.subr.mxu0 0.0
  %1099 = vmatpush2.msra.mxu0 0.0
  %1100 = vmatprep.subr.mxu0 0.0
  %1101 = vmatpush2.msra.mxu0 0.0
  %1102 = vmatprep.subr.mxu0 0.0
  %1103 = vmatpush2.msra.mxu0 0.0
  %1104 = vmatprep.subr.mxu0 0.0
  %1105 = vmatpush2.msra.mxu0 0.0
  %1106 = vmatprep.subr.mxu0 0.0
  %1107 = vmatpush2.msra.mxu0 0.0
  %1108 = vmatprep.subr.mxu0 0.0
  %1109 = vmatpush2.msra.mxu0 0.0
  %1110 = vmatprep.subr.mxu0 0.0
  %1111 = vmatpush2.msra.mxu0 0.0
  %1112 = vmatprep.mubr.f32.mxu0 0.0
  %1113 = vmatmul.mubr.f32.gmra.mxu0 %v1043
  %v1114 = vpop.f32.mrf.mxu0
  %v1115 = vadd.f32 %v1034, %v1114
  %v1116 = vpop.f32.mrf.mxu0
  %1117 = vmatprep.mubr.f32.mxu0 0.0
  %1118 = vmatmul.mubr.f32.gmra.mxu0 %v1046
  %v1119 = vpop.f32.mrf.mxu0
  %v1120 = vadd.f32 %v1039, %v1119
  %v1121 = vpop.f32.mrf.mxu0
  %1122 = vdwg.mxu0
  %1123 = vrot.lane.b32.xlu0 %v535, 112
  %v1124 = vpop.permute.xlu0 %1123
  %1125 = vrot.lane.b32.xlu0 %v540, 112
  %v1126 = vpop.permute.xlu0 %1125
  %1127 = vrot.lane.b32.xlu0 %v535, 80
  %v1128 = vpop.permute.xlu0 %1127
  %1129 = vrot.lane.b32.xlu0 %v540, 80
  %v1130 = vpop.permute.xlu0 %1129
  %v1131 = vsel %vm563, %v1124, 0
  %v1133 = vsel %vm563, %v1126, 0
  %v1135 = vsel %vm563, %v1128, 0
  %v1137 = vsel %vm563, %v1130, 0
  %1139 = vmatprep.subr.mxu0 0.0
  %1140 = vmatpush1.xpose.msra.mxu0 0.0
  %1141 = vmatprep.subr.mxu0 0.0
  %1142 = vmatpush1.xpose.msra.mxu0 0.0
  %1143 = vmatprep.subr.mxu0 0.0
  %1144 = vmatpush1.xpose.msra.mxu0 0.0
  %1145 = vmatprep.subr.mxu0 0.0
  %1146 = vmatpush1.xpose.msra.mxu0 0.0
  %1147 = vmatprep.subr.mxu0 0.0
  %1148 = vmatpush1.xpose.msra.mxu0 0.0
  %1149 = vmatprep.subr.mxu0 0.0
  %1150 = vmatpush1.xpose.msra.mxu0 0.0
  %1151 = vmatprep.subr.mxu0 0.0
  %1152 = vmatpush1.xpose.msra.mxu0 0.0
  %1153 = vmatprep.subr.mxu0 0.0
  %1154 = vmatpush1.xpose.msra.mxu0 0.0
  %1155 = vmatprep.subr.mxu0 0.0
  %1156 = vmatpush1.xpose.msra.mxu0 0.0
  %1157 = vmatprep.subr.mxu0 0.0
  %1158 = vmatpush1.xpose.msra.mxu0 0.0
  %1159 = vmatprep.subr.mxu0 0.0
  %1160 = vmatpush1.xpose.msra.mxu0 0.0
  %1161 = vmatprep.subr.mxu0 0.0
  %1162 = vmatpush1.xpose.msra.mxu0 0.0
  %1163 = vmatprep.subr.mxu0 0.0
  %1164 = vmatpush1.xpose.msra.mxu0 0.0
  %1165 = vmatprep.subr.mxu0 0.0
  %1166 = vmatpush1.xpose.msra.mxu0 0.0
  %1167 = vmatprep.subr.mxu0 0.0
  %1168 = vmatpush1.xpose.msra.mxu0 %v1137
  %1169 = vmatprep.subr.mxu0 0.0
  %1170 = vmatpush1.xpose.msra.mxu0 %v1135
  %1171 = vmatprep.subr.mxu0 0.0
  %1172 = vmatpush2.xpose.msra.mxu0 0.0
  %1173 = vmatprep.subr.mxu0 0.0
  %1174 = vmatpush2.xpose.msra.mxu0 0.0
  %1175 = vmatprep.subr.mxu0 0.0
  %1176 = vmatpush2.xpose.msra.mxu0 0.0
  %1177 = vmatprep.subr.mxu0 0.0
  %1178 = vmatpush2.xpose.msra.mxu0 0.0
  %1179 = vmatprep.subr.mxu0 0.0
  %1180 = vmatpush2.xpose.msra.mxu0 0.0
  %1181 = vmatprep.subr.mxu0 0.0
  %1182 = vmatpush2.xpose.msra.mxu0 0.0
  %1183 = vmatprep.subr.mxu0 0.0
  %1184 = vmatpush2.xpose.msra.mxu0 0.0
  %1185 = vmatprep.subr.mxu0 0.0
  %1186 = vmatpush2.xpose.msra.mxu0 0.0
  %1187 = vmatprep.subr.mxu0 0.0
  %1188 = vmatpush2.xpose.msra.mxu0 0.0
  %1189 = vmatprep.subr.mxu0 0.0
  %1190 = vmatpush2.xpose.msra.mxu0 0.0
  %1191 = vmatprep.subr.mxu0 0.0
  %1192 = vmatpush2.xpose.msra.mxu0 0.0
  %1193 = vmatprep.subr.mxu0 0.0
  %1194 = vmatpush2.xpose.msra.mxu0 0.0
  %1195 = vmatprep.subr.mxu0 0.0
  %1196 = vmatpush2.xpose.msra.mxu0 0.0
  %1197 = vmatprep.subr.mxu0 0.0
  %1198 = vmatpush2.xpose.msra.mxu0 0.0
  %1199 = vmatprep.subr.mxu0 0.0
  %1200 = vmatpush2.xpose.msra.mxu0 0.0
  %1201 = vmatprep.subr.mxu0 0.0
  %1202 = vmatpush2.xpose.msra.mxu0 0.0
  %1203 = vmatprep.mubr.f32.mxu0 0.0
  %1204 = vmatmul.mubr.f32.gmra.mxu0 %v1131
  %v1205 = vpop.f32.mrf.mxu0
  %v1206 = vadd.f32 0.0, %v1205
  %v1207 = vpop.f32.mrf.mxu0
  %1208 = vmatprep.mubr.f32.mxu0 0.0
  %1209 = vmatmul.mubr.f32.gmra.mxu0 %v1133
  %v1210 = vpop.f32.mrf.mxu0
  %v1211 = vadd.f32 0.0, %v1210
  %v1212 = vpop.f32.mrf.mxu0
  %1213 = vdwg.mxu0
  %v1214 = vmul.f32 %v1206, 0.35355338
  %v1215 = vmul.f32 %v1211, 0.35355338
  %v1216 = vsel %vm649, %v1214, -inf
  %1217 = vmax.xlane.f32.xlu0 %v1216
  %v1218 = vpop.xlane.xlu0 %1217
  %v1219 = vsel %vm649, %v1215, -inf
  %1220 = vmax.xlane.f32.xlu0 %v1219
  %v1221 = vpop.xlane.xlu0 %1220
  %v1222 = vsub.f32 %v1214, %v1218
  %v1223 = vsub.f32 %v1215, %v1221
  %v1224 = vmul.f32 %v1222, 1.442695
  %v1225 = vpow.pop %v1224
  %v1226 = vmul.f32 %v1223, 1.442695
  %v1227 = vpow.pop %v1226
  %v1228 = vsel %vm649, %v1225, 0.0
  %1229 = vadd.xlane.f32.xlu0 %v1228
  %v1230 = vpop.xlane.xlu0 %1229
  %v1231 = vsel %vm649, %v1227, 0.0
  %1232 = vadd.xlane.f32.xlu0 %v1231
  %v1233 = vpop.xlane.xlu0 %1232
  %v1234 = vrcp.pop %v1230
  %v1235 = vmul.f32 %v1225, %v1234
  %v1236 = vrcp.pop %v1233
  %v1237 = vmul.f32 %v1227, %v1236
  %1238 = vrot.lane.b32.xlu0 %v535, 48
  %v1239 = vpop.permute.xlu0 %1238
  %1240 = vrot.lane.b32.xlu0 %v540, 48
  %v1241 = vpop.permute.xlu0 %1240
  %v1245 = vsel %vm649, %v1235, 0
  %v1248 = vsel %vm649, %v1237, 0
  %1250 = vmatprep.subr.mxu0 0.0
  %1251 = vmatpush1.msra.mxu0 0.0
  %1252 = vmatprep.subr.mxu0 0.0
  %1253 = vmatpush1.msra.mxu0 0.0
  %1254 = vmatprep.subr.mxu0 0.0
  %1255 = vmatpush1.msra.mxu0 0.0
  %1256 = vmatprep.subr.mxu0 0.0
  %1257 = vmatpush1.msra.mxu0 0.0
  %1258 = vmatprep.subr.mxu0 0.0
  %1259 = vmatpush1.msra.mxu0 0.0
  %1260 = vmatprep.subr.mxu0 0.0
  %1261 = vmatpush1.msra.mxu0 0.0
  %1262 = vmatprep.subr.mxu0 0.0
  %1263 = vmatpush1.msra.mxu0 0.0
  %1264 = vmatprep.subr.mxu0 0.0
  %1265 = vmatpush1.msra.mxu0 0.0
  %1266 = vmatprep.subr.mxu0 0.0
  %1267 = vmatpush1.msra.mxu0 0.0
  %1268 = vmatprep.subr.mxu0 0.0
  %1269 = vmatpush1.msra.mxu0 0.0
  %1270 = vmatprep.subr.mxu0 0.0
  %1271 = vmatpush1.msra.mxu0 0.0
  %1272 = vmatprep.subr.mxu0 0.0
  %1273 = vmatpush1.msra.mxu0 0.0
  %1274 = vmatprep.subr.mxu0 0.0
  %1275 = vmatpush1.msra.mxu0 0.0
  %1276 = vmatprep.subr.mxu0 0.0
  %1277 = vmatpush1.msra.mxu0 0.0
  %1278 = vmatprep.subr.mxu0 0.0
  %1279 = vmatpush1.msra.mxu0 %v1241
  %1280 = vmatprep.subr.mxu0 0.0
  %1281 = vmatpush1.msra.mxu0 %v1239
  %1282 = vmatprep.subr.mxu0 0.0
  %1283 = vmatpush2.msra.mxu0 0.0
  %1284 = vmatprep.subr.mxu0 0.0
  %1285 = vmatpush2.msra.mxu0 0.0
  %1286 = vmatprep.subr.mxu0 0.0
  %1287 = vmatpush2.msra.mxu0 0.0
  %1288 = vmatprep.subr.mxu0 0.0
  %1289 = vmatpush2.msra.mxu0 0.0
  %1290 = vmatprep.subr.mxu0 0.0
  %1291 = vmatpush2.msra.mxu0 0.0
  %1292 = vmatprep.subr.mxu0 0.0
  %1293 = vmatpush2.msra.mxu0 0.0
  %1294 = vmatprep.subr.mxu0 0.0
  %1295 = vmatpush2.msra.mxu0 0.0
  %1296 = vmatprep.subr.mxu0 0.0
  %1297 = vmatpush2.msra.mxu0 0.0
  %1298 = vmatprep.subr.mxu0 0.0
  %1299 = vmatpush2.msra.mxu0 0.0
  %1300 = vmatprep.subr.mxu0 0.0
  %1301 = vmatpush2.msra.mxu0 0.0
  %1302 = vmatprep.subr.mxu0 0.0
  %1303 = vmatpush2.msra.mxu0 0.0
  %1304 = vmatprep.subr.mxu0 0.0
  %1305 = vmatpush2.msra.mxu0 0.0
  %1306 = vmatprep.subr.mxu0 0.0
  %1307 = vmatpush2.msra.mxu0 0.0
  %1308 = vmatprep.subr.mxu0 0.0
  %1309 = vmatpush2.msra.mxu0 0.0
  %1310 = vmatprep.subr.mxu0 0.0
  %1311 = vmatpush2.msra.mxu0 0.0
  %1312 = vmatprep.subr.mxu0 0.0
  %1313 = vmatpush2.msra.mxu0 0.0
  %1314 = vmatprep.mubr.f32.mxu0 0.0
  %1315 = vmatmul.mubr.f32.gmra.mxu0 %v1245
  %v1316 = vpop.f32.mrf.mxu0
  %v1317 = vadd.f32 0.0, %v1316
  %v1318 = vpop.f32.mrf.mxu0
  %1319 = vmatprep.mubr.f32.mxu0 0.0
  %1320 = vmatmul.mubr.f32.gmra.mxu0 %v1248
  %v1321 = vpop.f32.mrf.mxu0
  %v1322 = vadd.f32 0.0, %v1321
  %v1323 = vpop.f32.mrf.mxu0
  %1324 = vdwg.mxu0
  %v1326 = vsel %vm563, %v1317, 0
  %v1329 = vsel %vm563, %v1322, 0
  %1331 = vmatprep.subr.mxu0 0.0
  %1332 = vmatpush1.msra.mxu0 0.0
  %1333 = vmatprep.subr.mxu0 0.0
  %1334 = vmatpush1.msra.mxu0 0.0
  %1335 = vmatprep.subr.mxu0 0.0
  %1336 = vmatpush1.msra.mxu0 0.0
  %1337 = vmatprep.subr.mxu0 0.0
  %1338 = vmatpush1.msra.mxu0 0.0
  %1339 = vmatprep.subr.mxu0 0.0
  %1340 = vmatpush1.msra.mxu0 0.0
  %1341 = vmatprep.subr.mxu0 0.0
  %1342 = vmatpush1.msra.mxu0 0.0
  %1343 = vmatprep.subr.mxu0 0.0
  %1344 = vmatpush1.msra.mxu0 0.0
  %1345 = vmatprep.subr.mxu0 0.0
  %1346 = vmatpush1.msra.mxu0 0.0
  %1347 = vmatprep.subr.mxu0 0.0
  %1348 = vmatpush1.msra.mxu0 0.0
  %1349 = vmatprep.subr.mxu0 0.0
  %1350 = vmatpush1.msra.mxu0 0.0
  %1351 = vmatprep.subr.mxu0 0.0
  %1352 = vmatpush1.msra.mxu0 0.0
  %1353 = vmatprep.subr.mxu0 0.0
  %1354 = vmatpush1.msra.mxu0 0.0
  %1355 = vmatprep.subr.mxu0 0.0
  %1356 = vmatpush1.msra.mxu0 0.0
  %1357 = vmatprep.subr.mxu0 0.0
  %1358 = vmatpush1.msra.mxu0 0.0
  %1359 = vmatprep.subr.mxu0 0.0
  %1360 = vmatpush1.msra.mxu0 0.0
  %1361 = vmatprep.subr.mxu0 0.0
  %1362 = vmatpush1.msra.mxu0 %v555
  %1363 = vmatprep.subr.mxu0 0.0
  %1364 = vmatpush2.msra.mxu0 0.0
  %1365 = vmatprep.subr.mxu0 0.0
  %1366 = vmatpush2.msra.mxu0 0.0
  %1367 = vmatprep.subr.mxu0 0.0
  %1368 = vmatpush2.msra.mxu0 0.0
  %1369 = vmatprep.subr.mxu0 0.0
  %1370 = vmatpush2.msra.mxu0 0.0
  %1371 = vmatprep.subr.mxu0 0.0
  %1372 = vmatpush2.msra.mxu0 0.0
  %1373 = vmatprep.subr.mxu0 0.0
  %1374 = vmatpush2.msra.mxu0 0.0
  %1375 = vmatprep.subr.mxu0 0.0
  %1376 = vmatpush2.msra.mxu0 0.0
  %1377 = vmatprep.subr.mxu0 0.0
  %1378 = vmatpush2.msra.mxu0 0.0
  %1379 = vmatprep.subr.mxu0 0.0
  %1380 = vmatpush2.msra.mxu0 0.0
  %1381 = vmatprep.subr.mxu0 0.0
  %1382 = vmatpush2.msra.mxu0 0.0
  %1383 = vmatprep.subr.mxu0 0.0
  %1384 = vmatpush2.msra.mxu0 0.0
  %1385 = vmatprep.subr.mxu0 0.0
  %1386 = vmatpush2.msra.mxu0 0.0
  %1387 = vmatprep.subr.mxu0 0.0
  %1388 = vmatpush2.msra.mxu0 0.0
  %1389 = vmatprep.subr.mxu0 0.0
  %1390 = vmatpush2.msra.mxu0 0.0
  %1391 = vmatprep.subr.mxu0 0.0
  %1392 = vmatpush2.msra.mxu0 0.0
  %1393 = vmatprep.subr.mxu0 0.0
  %1394 = vmatpush2.msra.mxu0 0.0
  %1395 = vmatprep.mubr.f32.mxu0 0.0
  %1396 = vmatmul.mubr.f32.gmra.mxu0 %v1326
  %v1397 = vpop.f32.mrf.mxu0
  %v1398 = vadd.f32 0.0, %v1397
  %v1399 = vpop.f32.mrf.mxu0
  %1400 = vmatprep.mubr.f32.mxu0 0.0
  %1401 = vmatmul.mubr.f32.gmra.mxu0 %v1329
  %v1402 = vpop.f32.mrf.mxu0
  %v1403 = vadd.f32 0.0, %v1402
  %v1404 = vpop.f32.mrf.mxu0
  %1405 = vdwg.mxu0
  %v1406 = vadd.f32 %v1115, %v1398
  %v1407 = vadd.f32 %v1120, %v1403
  %1408 = vrot.lane.b32.xlu0 %v535, 104
  %v1409 = vpop.permute.xlu0 %1408
  %1410 = vrot.lane.b32.xlu0 %v540, 104
  %v1411 = vpop.permute.xlu0 %1410
  %1412 = vrot.lane.b32.xlu0 %v535, 72
  %v1413 = vpop.permute.xlu0 %1412
  %1414 = vrot.lane.b32.xlu0 %v540, 72
  %v1415 = vpop.permute.xlu0 %1414
  %v1416 = vsel %vm563, %v1409, 0
  %v1418 = vsel %vm563, %v1411, 0
  %v1420 = vsel %vm563, %v1413, 0
  %v1422 = vsel %vm563, %v1415, 0
  %1424 = vmatprep.subr.mxu0 0.0
  %1425 = vmatpush1.xpose.msra.mxu0 0.0
  %1426 = vmatprep.subr.mxu0 0.0
  %1427 = vmatpush1.xpose.msra.mxu0 0.0
  %1428 = vmatprep.subr.mxu0 0.0
  %1429 = vmatpush1.xpose.msra.mxu0 0.0
  %1430 = vmatprep.subr.mxu0 0.0
  %1431 = vmatpush1.xpose.msra.mxu0 0.0
  %1432 = vmatprep.subr.mxu0 0.0
  %1433 = vmatpush1.xpose.msra.mxu0 0.0
  %1434 = vmatprep.subr.mxu0 0.0
  %1435 = vmatpush1.xpose.msra.mxu0 0.0
  %1436 = vmatprep.subr.mxu0 0.0
  %1437 = vmatpush1.xpose.msra.mxu0 0.0
  %1438 = vmatprep.subr.mxu0 0.0
  %1439 = vmatpush1.xpose.msra.mxu0 0.0
  %1440 = vmatprep.subr.mxu0 0.0
  %1441 = vmatpush1.xpose.msra.mxu0 0.0
  %1442 = vmatprep.subr.mxu0 0.0
  %1443 = vmatpush1.xpose.msra.mxu0 0.0
  %1444 = vmatprep.subr.mxu0 0.0
  %1445 = vmatpush1.xpose.msra.mxu0 0.0
  %1446 = vmatprep.subr.mxu0 0.0
  %1447 = vmatpush1.xpose.msra.mxu0 0.0
  %1448 = vmatprep.subr.mxu0 0.0
  %1449 = vmatpush1.xpose.msra.mxu0 0.0
  %1450 = vmatprep.subr.mxu0 0.0
  %1451 = vmatpush1.xpose.msra.mxu0 0.0
  %1452 = vmatprep.subr.mxu0 0.0
  %1453 = vmatpush1.xpose.msra.mxu0 %v1422
  %1454 = vmatprep.subr.mxu0 0.0
  %1455 = vmatpush1.xpose.msra.mxu0 %v1420
  %1456 = vmatprep.subr.mxu0 0.0
  %1457 = vmatpush2.xpose.msra.mxu0 0.0
  %1458 = vmatprep.subr.mxu0 0.0
  %1459 = vmatpush2.xpose.msra.mxu0 0.0
  %1460 = vmatprep.subr.mxu0 0.0
  %1461 = vmatpush2.xpose.msra.mxu0 0.0
  %1462 = vmatprep.subr.mxu0 0.0
  %1463 = vmatpush2.xpose.msra.mxu0 0.0
  %1464 = vmatprep.subr.mxu0 0.0
  %1465 = vmatpush2.xpose.msra.mxu0 0.0
  %1466 = vmatprep.subr.mxu0 0.0
  %1467 = vmatpush2.xpose.msra.mxu0 0.0
  %1468 = vmatprep.subr.mxu0 0.0
  %1469 = vmatpush2.xpose.msra.mxu0 0.0
  %1470 = vmatprep.subr.mxu0 0.0
  %1471 = vmatpush2.xpose.msra.mxu0 0.0
  %1472 = vmatprep.subr.mxu0 0.0
  %1473 = vmatpush2.xpose.msra.mxu0 0.0
  %1474 = vmatprep.subr.mxu0 0.0
  %1475 = vmatpush2.xpose.msra.mxu0 0.0
  %1476 = vmatprep.subr.mxu0 0.0
  %1477 = vmatpush2.xpose.msra.mxu0 0.0
  %1478 = vmatprep.subr.mxu0 0.0
  %1479 = vmatpush2.xpose.msra.mxu0 0.0
  %1480 = vmatprep.subr.mxu0 0.0
  %1481 = vmatpush2.xpose.msra.mxu0 0.0
  %1482 = vmatprep.subr.mxu0 0.0
  %1483 = vmatpush2.xpose.msra.mxu0 0.0
  %1484 = vmatprep.subr.mxu0 0.0
  %1485 = vmatpush2.xpose.msra.mxu0 0.0
  %1486 = vmatprep.subr.mxu0 0.0
  %1487 = vmatpush2.xpose.msra.mxu0 0.0
  %1488 = vmatprep.mubr.f32.mxu0 0.0
  %1489 = vmatmul.mubr.f32.gmra.mxu0 %v1416
  %v1490 = vpop.f32.mrf.mxu0
  %v1491 = vadd.f32 0.0, %v1490
  %v1492 = vpop.f32.mrf.mxu0
  %1493 = vmatprep.mubr.f32.mxu0 0.0
  %1494 = vmatmul.mubr.f32.gmra.mxu0 %v1418
  %v1495 = vpop.f32.mrf.mxu0
  %v1496 = vadd.f32 0.0, %v1495
  %v1497 = vpop.f32.mrf.mxu0
  %1498 = vdwg.mxu0
  %v1499 = vmul.f32 %v1491, 0.35355338
  %v1500 = vmul.f32 %v1496, 0.35355338
  %v1501 = vsel %vm649, %v1499, -inf
  %1502 = vmax.xlane.f32.xlu0 %v1501
  %v1503 = vpop.xlane.xlu0 %1502
  %v1504 = vsel %vm649, %v1500, -inf
  %1505 = vmax.xlane.f32.xlu0 %v1504
  %v1506 = vpop.xlane.xlu0 %1505
  %v1507 = vsub.f32 %v1499, %v1503
  %v1508 = vsub.f32 %v1500, %v1506
  %v1509 = vmul.f32 %v1507, 1.442695
  %v1510 = vpow.pop %v1509
  %v1511 = vmul.f32 %v1508, 1.442695
  %v1512 = vpow.pop %v1511
  %v1513 = vsel %vm649, %v1510, 0.0
  %1514 = vadd.xlane.f32.xlu0 %v1513
  %v1515 = vpop.xlane.xlu0 %1514
  %v1516 = vsel %vm649, %v1512, 0.0
  %1517 = vadd.xlane.f32.xlu0 %v1516
  %v1518 = vpop.xlane.xlu0 %1517
  %v1519 = vrcp.pop %v1515
  %v1520 = vmul.f32 %v1510, %v1519
  %v1521 = vrcp.pop %v1518
  %v1522 = vmul.f32 %v1512, %v1521
  %1523 = vrot.lane.b32.xlu0 %v535, 40
  %v1524 = vpop.permute.xlu0 %1523
  %1525 = vrot.lane.b32.xlu0 %v540, 40
  %v1526 = vpop.permute.xlu0 %1525
  %v1530 = vsel %vm649, %v1520, 0
  %v1533 = vsel %vm649, %v1522, 0
  %1535 = vmatprep.subr.mxu0 0.0
  %1536 = vmatpush1.msra.mxu0 0.0
  %1537 = vmatprep.subr.mxu0 0.0
  %1538 = vmatpush1.msra.mxu0 0.0
  %1539 = vmatprep.subr.mxu0 0.0
  %1540 = vmatpush1.msra.mxu0 0.0
  %1541 = vmatprep.subr.mxu0 0.0
  %1542 = vmatpush1.msra.mxu0 0.0
  %1543 = vmatprep.subr.mxu0 0.0
  %1544 = vmatpush1.msra.mxu0 0.0
  %1545 = vmatprep.subr.mxu0 0.0
  %1546 = vmatpush1.msra.mxu0 0.0
  %1547 = vmatprep.subr.mxu0 0.0
  %1548 = vmatpush1.msra.mxu0 0.0
  %1549 = vmatprep.subr.mxu0 0.0
  %1550 = vmatpush1.msra.mxu0 0.0
  %1551 = vmatprep.subr.mxu0 0.0
  %1552 = vmatpush1.msra.mxu0 0.0
  %1553 = vmatprep.subr.mxu0 0.0
  %1554 = vmatpush1.msra.mxu0 0.0
  %1555 = vmatprep.subr.mxu0 0.0
  %1556 = vmatpush1.msra.mxu0 0.0
  %1557 = vmatprep.subr.mxu0 0.0
  %1558 = vmatpush1.msra.mxu0 0.0
  %1559 = vmatprep.subr.mxu0 0.0
  %1560 = vmatpush1.msra.mxu0 0.0
  %1561 = vmatprep.subr.mxu0 0.0
  %1562 = vmatpush1.msra.mxu0 0.0
  %1563 = vmatprep.subr.mxu0 0.0
  %1564 = vmatpush1.msra.mxu0 %v1526
  %1565 = vmatprep.subr.mxu0 0.0
  %1566 = vmatpush1.msra.mxu0 %v1524
  %1567 = vmatprep.subr.mxu0 0.0
  %1568 = vmatpush2.msra.mxu0 0.0
  %1569 = vmatprep.subr.mxu0 0.0
  %1570 = vmatpush2.msra.mxu0 0.0
  %1571 = vmatprep.subr.mxu0 0.0
  %1572 = vmatpush2.msra.mxu0 0.0
  %1573 = vmatprep.subr.mxu0 0.0
  %1574 = vmatpush2.msra.mxu0 0.0
  %1575 = vmatprep.subr.mxu0 0.0
  %1576 = vmatpush2.msra.mxu0 0.0
  %1577 = vmatprep.subr.mxu0 0.0
  %1578 = vmatpush2.msra.mxu0 0.0
  %1579 = vmatprep.subr.mxu0 0.0
  %1580 = vmatpush2.msra.mxu0 0.0
  %1581 = vmatprep.subr.mxu0 0.0
  %1582 = vmatpush2.msra.mxu0 0.0
  %1583 = vmatprep.subr.mxu0 0.0
  %1584 = vmatpush2.msra.mxu0 0.0
  %1585 = vmatprep.subr.mxu0 0.0
  %1586 = vmatpush2.msra.mxu0 0.0
  %1587 = vmatprep.subr.mxu0 0.0
  %1588 = vmatpush2.msra.mxu0 0.0
  %1589 = vmatprep.subr.mxu0 0.0
  %1590 = vmatpush2.msra.mxu0 0.0
  %1591 = vmatprep.subr.mxu0 0.0
  %1592 = vmatpush2.msra.mxu0 0.0
  %1593 = vmatprep.subr.mxu0 0.0
  %1594 = vmatpush2.msra.mxu0 0.0
  %1595 = vmatprep.subr.mxu0 0.0
  %1596 = vmatpush2.msra.mxu0 0.0
  %1597 = vmatprep.subr.mxu0 0.0
  %1598 = vmatpush2.msra.mxu0 0.0
  %1599 = vmatprep.mubr.f32.mxu0 0.0
  %1600 = vmatmul.mubr.f32.gmra.mxu0 %v1530
  %v1601 = vpop.f32.mrf.mxu0
  %v1602 = vadd.f32 0.0, %v1601
  %v1603 = vpop.f32.mrf.mxu0
  %1604 = vmatprep.mubr.f32.mxu0 0.0
  %1605 = vmatmul.mubr.f32.gmra.mxu0 %v1533
  %v1606 = vpop.f32.mrf.mxu0
  %v1607 = vadd.f32 0.0, %v1606
  %v1608 = vpop.f32.mrf.mxu0
  %1609 = vdwg.mxu0
  %v1611 = vsel %vm563, %v1602, 0
  %v1614 = vsel %vm563, %v1607, 0
  %1616 = vmatprep.subr.mxu0 0.0
  %1617 = vmatpush1.msra.mxu0 0.0
  %1618 = vmatprep.subr.mxu0 0.0
  %1619 = vmatpush1.msra.mxu0 0.0
  %1620 = vmatprep.subr.mxu0 0.0
  %1621 = vmatpush1.msra.mxu0 0.0
  %1622 = vmatprep.subr.mxu0 0.0
  %1623 = vmatpush1.msra.mxu0 0.0
  %1624 = vmatprep.subr.mxu0 0.0
  %1625 = vmatpush1.msra.mxu0 0.0
  %1626 = vmatprep.subr.mxu0 0.0
  %1627 = vmatpush1.msra.mxu0 0.0
  %1628 = vmatprep.subr.mxu0 0.0
  %1629 = vmatpush1.msra.mxu0 0.0
  %1630 = vmatprep.subr.mxu0 0.0
  %1631 = vmatpush1.msra.mxu0 0.0
  %1632 = vmatprep.subr.mxu0 0.0
  %1633 = vmatpush1.msra.mxu0 0.0
  %1634 = vmatprep.subr.mxu0 0.0
  %1635 = vmatpush1.msra.mxu0 0.0
  %1636 = vmatprep.subr.mxu0 0.0
  %1637 = vmatpush1.msra.mxu0 0.0
  %1638 = vmatprep.subr.mxu0 0.0
  %1639 = vmatpush1.msra.mxu0 0.0
  %1640 = vmatprep.subr.mxu0 0.0
  %1641 = vmatpush1.msra.mxu0 0.0
  %1642 = vmatprep.subr.mxu0 0.0
  %1643 = vmatpush1.msra.mxu0 0.0
  %1644 = vmatprep.subr.mxu0 0.0
  %1645 = vmatpush1.msra.mxu0 0.0
  %1646 = vmatprep.subr.mxu0 0.0
  %1647 = vmatpush1.msra.mxu0 %v556
  %1648 = vmatprep.subr.mxu0 0.0
  %1649 = vmatpush2.msra.mxu0 0.0
  %1650 = vmatprep.subr.mxu0 0.0
  %1651 = vmatpush2.msra.mxu0 0.0
  %1652 = vmatprep.subr.mxu0 0.0
  %1653 = vmatpush2.msra.mxu0 0.0
  %1654 = vmatprep.subr.mxu0 0.0
  %1655 = vmatpush2.msra.mxu0 0.0
  %1656 = vmatprep.subr.mxu0 0.0
  %1657 = vmatpush2.msra.mxu0 0.0
  %1658 = vmatprep.subr.mxu0 0.0
  %1659 = vmatpush2.msra.mxu0 0.0
  %1660 = vmatprep.subr.mxu0 0.0
  %1661 = vmatpush2.msra.mxu0 0.0
  %1662 = vmatprep.subr.mxu0 0.0
  %1663 = vmatpush2.msra.mxu0 0.0
  %1664 = vmatprep.subr.mxu0 0.0
  %1665 = vmatpush2.msra.mxu0 0.0
  %1666 = vmatprep.subr.mxu0 0.0
  %1667 = vmatpush2.msra.mxu0 0.0
  %1668 = vmatprep.subr.mxu0 0.0
  %1669 = vmatpush2.msra.mxu0 0.0
  %1670 = vmatprep.subr.mxu0 0.0
  %1671 = vmatpush2.msra.mxu0 0.0
  %1672 = vmatprep.subr.mxu0 0.0
  %1673 = vmatpush2.msra.mxu0 0.0
  %1674 = vmatprep.subr.mxu0 0.0
  %1675 = vmatpush2.msra.mxu0 0.0
  %1676 = vmatprep.subr.mxu0 0.0
  %1677 = vmatpush2.msra.mxu0 0.0
  %1678 = vmatprep.subr.mxu0 0.0
  %1679 = vmatpush2.msra.mxu0 0.0
  %1680 = vmatprep.mubr.f32.mxu0 0.0
  %1681 = vmatmul.mubr.f32.gmra.mxu0 %v1611
  %v1682 = vpop.f32.mrf.mxu0
  %v1683 = vadd.f32 0.0, %v1682
  %v1684 = vpop.f32.mrf.mxu0
  %1685 = vmatprep.mubr.f32.mxu0 0.0
  %1686 = vmatmul.mubr.f32.gmra.mxu0 %v1614
  %v1687 = vpop.f32.mrf.mxu0
  %v1688 = vadd.f32 0.0, %v1687
  %v1689 = vpop.f32.mrf.mxu0
  %1690 = vdwg.mxu0
  %v1691 = vadd.f32 %v1406, %v1683
  %v1692 = vadd.f32 %v1407, %v1688
  %1695 = vrot.lane.b32.xlu0 %v545, 96
  %v1696 = vpop.permute.xlu0 %1695
  %1697 = vrot.lane.b32.xlu0 %v550, 96
  %v1698 = vpop.permute.xlu0 %1697
  %v1699 = vsel %vm563, %v545, 0
  %v1701 = vsel %vm563, %v550, 0
  %v1703 = vsel %vm563, %v1696, 0
  %v1705 = vsel %vm563, %v1698, 0
  %1707 = vmatprep.subr.mxu0 0.0
  %1708 = vmatpush1.xpose.msra.mxu0 0.0
  %1709 = vmatprep.subr.mxu0 0.0
  %1710 = vmatpush1.xpose.msra.mxu0 0.0
  %1711 = vmatprep.subr.mxu0 0.0
  %1712 = vmatpush1.xpose.msra.mxu0 0.0
  %1713 = vmatprep.subr.mxu0 0.0
  %1714 = vmatpush1.xpose.msra.mxu0 0.0
  %1715 = vmatprep.subr.mxu0 0.0
  %1716 = vmatpush1.xpose.msra.mxu0 0.0
  %1717 = vmatprep.subr.mxu0 0.0
  %1718 = vmatpush1.xpose.msra.mxu0 0.0
  %1719 = vmatprep.subr.mxu0 0.0
  %1720 = vmatpush1.xpose.msra.mxu0 0.0
  %1721 = vmatprep.subr.mxu0 0.0
  %1722 = vmatpush1.xpose.msra.mxu0 0.0
  %1723 = vmatprep.subr.mxu0 0.0
  %1724 = vmatpush1.xpose.msra.mxu0 0.0
  %1725 = vmatprep.subr.mxu0 0.0
  %1726 = vmatpush1.xpose.msra.mxu0 0.0
  %1727 = vmatprep.subr.mxu0 0.0
  %1728 = vmatpush1.xpose.msra.mxu0 0.0
  %1729 = vmatprep.subr.mxu0 0.0
  %1730 = vmatpush1.xpose.msra.mxu0 0.0
  %1731 = vmatprep.subr.mxu0 0.0
  %1732 = vmatpush1.xpose.msra.mxu0 0.0
  %1733 = vmatprep.subr.mxu0 0.0
  %1734 = vmatpush1.xpose.msra.mxu0 0.0
  %1735 = vmatprep.subr.mxu0 0.0
  %1736 = vmatpush1.xpose.msra.mxu0 %v1705
  %1737 = vmatprep.subr.mxu0 0.0
  %1738 = vmatpush1.xpose.msra.mxu0 %v1703
  %1739 = vmatprep.subr.mxu0 0.0
  %1740 = vmatpush2.xpose.msra.mxu0 0.0
  %1741 = vmatprep.subr.mxu0 0.0
  %1742 = vmatpush2.xpose.msra.mxu0 0.0
  %1743 = vmatprep.subr.mxu0 0.0
  %1744 = vmatpush2.xpose.msra.mxu0 0.0
  %1745 = vmatprep.subr.mxu0 0.0
  %1746 = vmatpush2.xpose.msra.mxu0 0.0
  %1747 = vmatprep.subr.mxu0 0.0
  %1748 = vmatpush2.xpose.msra.mxu0 0.0
  %1749 = vmatprep.subr.mxu0 0.0
  %1750 = vmatpush2.xpose.msra.mxu0 0.0
  %1751 = vmatprep.subr.mxu0 0.0
  %1752 = vmatpush2.xpose.msra.mxu0 0.0
  %1753 = vmatprep.subr.mxu0 0.0
  %1754 = vmatpush2.xpose.msra.mxu0 0.0
  %1755 = vmatprep.subr.mxu0 0.0
  %1756 = vmatpush2.xpose.msra.mxu0 0.0
  %1757 = vmatprep.subr.mxu0 0.0
  %1758 = vmatpush2.xpose.msra.mxu0 0.0
  %1759 = vmatprep.subr.mxu0 0.0
  %1760 = vmatpush2.xpose.msra.mxu0 0.0
  %1761 = vmatprep.subr.mxu0 0.0
  %1762 = vmatpush2.xpose.msra.mxu0 0.0
  %1763 = vmatprep.subr.mxu0 0.0
  %1764 = vmatpush2.xpose.msra.mxu0 0.0
  %1765 = vmatprep.subr.mxu0 0.0
  %1766 = vmatpush2.xpose.msra.mxu0 0.0
  %1767 = vmatprep.subr.mxu0 0.0
  %1768 = vmatpush2.xpose.msra.mxu0 0.0
  %1769 = vmatprep.subr.mxu0 0.0
  %1770 = vmatpush2.xpose.msra.mxu0 0.0
  %1771 = vmatprep.mubr.f32.mxu0 0.0
  %1772 = vmatmul.mubr.f32.gmra.mxu0 %v1699
  %v1773 = vpop.f32.mrf.mxu0
  %v1774 = vadd.f32 0.0, %v1773
  %v1775 = vpop.f32.mrf.mxu0
  %1776 = vmatprep.mubr.f32.mxu0 0.0
  %1777 = vmatmul.mubr.f32.gmra.mxu0 %v1701
  %v1778 = vpop.f32.mrf.mxu0
  %v1779 = vadd.f32 0.0, %v1778
  %v1780 = vpop.f32.mrf.mxu0
  %1781 = vdwg.mxu0
  %v1782 = vmul.f32 %v1774, 0.35355338
  %v1783 = vmul.f32 %v1779, 0.35355338
  %v1784 = vsel %vm649, %v1782, -inf
  %1785 = vmax.xlane.f32.xlu0 %v1784
  %v1786 = vpop.xlane.xlu0 %1785
  %v1787 = vsel %vm649, %v1783, -inf
  %1788 = vmax.xlane.f32.xlu0 %v1787
  %v1789 = vpop.xlane.xlu0 %1788
  %v1790 = vsub.f32 %v1782, %v1786
  %v1791 = vsub.f32 %v1783, %v1789
  %v1792 = vmul.f32 %v1790, 1.442695
  %v1793 = vpow.pop %v1792
  %v1794 = vmul.f32 %v1791, 1.442695
  %v1795 = vpow.pop %v1794
  %v1796 = vsel %vm649, %v1793, 0.0
  %1797 = vadd.xlane.f32.xlu0 %v1796
  %v1798 = vpop.xlane.xlu0 %1797
  %v1799 = vsel %vm649, %v1795, 0.0
  %1800 = vadd.xlane.f32.xlu0 %v1799
  %v1801 = vpop.xlane.xlu0 %1800
  %v1802 = vrcp.pop %v1798
  %v1803 = vmul.f32 %v1793, %v1802
  %v1804 = vrcp.pop %v1801
  %v1805 = vmul.f32 %v1795, %v1804
  %1806 = vrot.lane.b32.xlu0 %v545, 64
  %v1807 = vpop.permute.xlu0 %1806
  %1808 = vrot.lane.b32.xlu0 %v550, 64
  %v1809 = vpop.permute.xlu0 %1808
  %v1813 = vsel %vm649, %v1803, 0
  %v1816 = vsel %vm649, %v1805, 0
  %1818 = vmatprep.subr.mxu0 0.0
  %1819 = vmatpush1.msra.mxu0 0.0
  %1820 = vmatprep.subr.mxu0 0.0
  %1821 = vmatpush1.msra.mxu0 0.0
  %1822 = vmatprep.subr.mxu0 0.0
  %1823 = vmatpush1.msra.mxu0 0.0
  %1824 = vmatprep.subr.mxu0 0.0
  %1825 = vmatpush1.msra.mxu0 0.0
  %1826 = vmatprep.subr.mxu0 0.0
  %1827 = vmatpush1.msra.mxu0 0.0
  %1828 = vmatprep.subr.mxu0 0.0
  %1829 = vmatpush1.msra.mxu0 0.0
  %1830 = vmatprep.subr.mxu0 0.0
  %1831 = vmatpush1.msra.mxu0 0.0
  %1832 = vmatprep.subr.mxu0 0.0
  %1833 = vmatpush1.msra.mxu0 0.0
  %1834 = vmatprep.subr.mxu0 0.0
  %1835 = vmatpush1.msra.mxu0 0.0
  %1836 = vmatprep.subr.mxu0 0.0
  %1837 = vmatpush1.msra.mxu0 0.0
  %1838 = vmatprep.subr.mxu0 0.0
  %1839 = vmatpush1.msra.mxu0 0.0
  %1840 = vmatprep.subr.mxu0 0.0
  %1841 = vmatpush1.msra.mxu0 0.0
  %1842 = vmatprep.subr.mxu0 0.0
  %1843 = vmatpush1.msra.mxu0 0.0
  %1844 = vmatprep.subr.mxu0 0.0
  %1845 = vmatpush1.msra.mxu0 0.0
  %1846 = vmatprep.subr.mxu0 0.0
  %1847 = vmatpush1.msra.mxu0 %v1809
  %1848 = vmatprep.subr.mxu0 0.0
  %1849 = vmatpush1.msra.mxu0 %v1807
  %1850 = vmatprep.subr.mxu0 0.0
  %1851 = vmatpush2.msra.mxu0 0.0
  %1852 = vmatprep.subr.mxu0 0.0
  %1853 = vmatpush2.msra.mxu0 0.0
  %1854 = vmatprep.subr.mxu0 0.0
  %1855 = vmatpush2.msra.mxu0 0.0
  %1856 = vmatprep.subr.mxu0 0.0
  %1857 = vmatpush2.msra.mxu0 0.0
  %1858 = vmatprep.subr.mxu0 0.0
  %1859 = vmatpush2.msra.mxu0 0.0
  %1860 = vmatprep.subr.mxu0 0.0
  %1861 = vmatpush2.msra.mxu0 0.0
  %1862 = vmatprep.subr.mxu0 0.0
  %1863 = vmatpush2.msra.mxu0 0.0
  %1864 = vmatprep.subr.mxu0 0.0
  %1865 = vmatpush2.msra.mxu0 0.0
  %1866 = vmatprep.subr.mxu0 0.0
  %1867 = vmatpush2.msra.mxu0 0.0
  %1868 = vmatprep.subr.mxu0 0.0
  %1869 = vmatpush2.msra.mxu0 0.0
  %1870 = vmatprep.subr.mxu0 0.0
  %1871 = vmatpush2.msra.mxu0 0.0
  %1872 = vmatprep.subr.mxu0 0.0
  %1873 = vmatpush2.msra.mxu0 0.0
  %1874 = vmatprep.subr.mxu0 0.0
  %1875 = vmatpush2.msra.mxu0 0.0
  %1876 = vmatprep.subr.mxu0 0.0
  %1877 = vmatpush2.msra.mxu0 0.0
  %1878 = vmatprep.subr.mxu0 0.0
  %1879 = vmatpush2.msra.mxu0 0.0
  %1880 = vmatprep.subr.mxu0 0.0
  %1881 = vmatpush2.msra.mxu0 0.0
  %1882 = vmatprep.mubr.f32.mxu0 0.0
  %1883 = vmatmul.mubr.f32.gmra.mxu0 %v1813
  %v1884 = vpop.f32.mrf.mxu0
  %v1885 = vadd.f32 0.0, %v1884
  %v1886 = vpop.f32.mrf.mxu0
  %1887 = vmatprep.mubr.f32.mxu0 0.0
  %1888 = vmatmul.mubr.f32.gmra.mxu0 %v1816
  %v1889 = vpop.f32.mrf.mxu0
  %v1890 = vadd.f32 0.0, %v1889
  %v1891 = vpop.f32.mrf.mxu0
  %1892 = vdwg.mxu0
  %1893 = vrot.lane.b32.xlu0 %v545, 120
  %v1894 = vpop.permute.xlu0 %1893
  %1895 = vrot.lane.b32.xlu0 %v550, 120
  %v1896 = vpop.permute.xlu0 %1895
  %1897 = vrot.lane.b32.xlu0 %v545, 88
  %v1898 = vpop.permute.xlu0 %1897
  %1899 = vrot.lane.b32.xlu0 %v550, 88
  %v1900 = vpop.permute.xlu0 %1899
  %v1901 = vsel %vm563, %v1894, 0
  %v1903 = vsel %vm563, %v1896, 0
  %v1905 = vsel %vm563, %v1898, 0
  %v1907 = vsel %vm563, %v1900, 0
  %1909 = vmatprep.subr.mxu0 0.0
  %1910 = vmatpush1.xpose.msra.mxu0 0.0
  %1911 = vmatprep.subr.mxu0 0.0
  %1912 = vmatpush1.xpose.msra.mxu0 0.0
  %1913 = vmatprep.subr.mxu0 0.0
  %1914 = vmatpush1.xpose.msra.mxu0 0.0
  %1915 = vmatprep.subr.mxu0 0.0
  %1916 = vmatpush1.xpose.msra.mxu0 0.0
  %1917 = vmatprep.subr.mxu0 0.0
  %1918 = vmatpush1.xpose.msra.mxu0 0.0
  %1919 = vmatprep.subr.mxu0 0.0
  %1920 = vmatpush1.xpose.msra.mxu0 0.0
  %1921 = vmatprep.subr.mxu0 0.0
  %1922 = vmatpush1.xpose.msra.mxu0 0.0
  %1923 = vmatprep.subr.mxu0 0.0
  %1924 = vmatpush1.xpose.msra.mxu0 0.0
  %1925 = vmatprep.subr.mxu0 0.0
  %1926 = vmatpush1.xpose.msra.mxu0 0.0
  %1927 = vmatprep.subr.mxu0 0.0
  %1928 = vmatpush1.xpose.msra.mxu0 0.0
  %1929 = vmatprep.subr.mxu0 0.0
  %1930 = vmatpush1.xpose.msra.mxu0 0.0
  %1931 = vmatprep.subr.mxu0 0.0
  %1932 = vmatpush1.xpose.msra.mxu0 0.0
  %1933 = vmatprep.subr.mxu0 0.0
  %1934 = vmatpush1.xpose.msra.mxu0 0.0
  %1935 = vmatprep.subr.mxu0 0.0
  %1936 = vmatpush1.xpose.msra.mxu0 0.0
  %1937 = vmatprep.subr.mxu0 0.0
  %1938 = vmatpush1.xpose.msra.mxu0 %v1907
  %1939 = vmatprep.subr.mxu0 0.0
  %1940 = vmatpush1.xpose.msra.mxu0 %v1905
  %1941 = vmatprep.subr.mxu0 0.0
  %1942 = vmatpush2.xpose.msra.mxu0 0.0
  %1943 = vmatprep.subr.mxu0 0.0
  %1944 = vmatpush2.xpose.msra.mxu0 0.0
  %1945 = vmatprep.subr.mxu0 0.0
  %1946 = vmatpush2.xpose.msra.mxu0 0.0
  %1947 = vmatprep.subr.mxu0 0.0
  %1948 = vmatpush2.xpose.msra.mxu0 0.0
  %1949 = vmatprep.subr.mxu0 0.0
  %1950 = vmatpush2.xpose.msra.mxu0 0.0
  %1951 = vmatprep.subr.mxu0 0.0
  %1952 = vmatpush2.xpose.msra.mxu0 0.0
  %1953 = vmatprep.subr.mxu0 0.0
  %1954 = vmatpush2.xpose.msra.mxu0 0.0
  %1955 = vmatprep.subr.mxu0 0.0
  %1956 = vmatpush2.xpose.msra.mxu0 0.0
  %1957 = vmatprep.subr.mxu0 0.0
  %1958 = vmatpush2.xpose.msra.mxu0 0.0
  %1959 = vmatprep.subr.mxu0 0.0
  %1960 = vmatpush2.xpose.msra.mxu0 0.0
  %1961 = vmatprep.subr.mxu0 0.0
  %1962 = vmatpush2.xpose.msra.mxu0 0.0
  %1963 = vmatprep.subr.mxu0 0.0
  %1964 = vmatpush2.xpose.msra.mxu0 0.0
  %1965 = vmatprep.subr.mxu0 0.0
  %1966 = vmatpush2.xpose.msra.mxu0 0.0
  %1967 = vmatprep.subr.mxu0 0.0
  %1968 = vmatpush2.xpose.msra.mxu0 0.0
  %1969 = vmatprep.subr.mxu0 0.0
  %1970 = vmatpush2.xpose.msra.mxu0 0.0
  %1971 = vmatprep.subr.mxu0 0.0
  %1972 = vmatpush2.xpose.msra.mxu0 0.0
  %1973 = vmatprep.mubr.f32.mxu0 0.0
  %1974 = vmatmul.mubr.f32.gmra.mxu0 %v1901
  %v1975 = vpop.f32.mrf.mxu0
  %v1976 = vadd.f32 0.0, %v1975
  %v1977 = vpop.f32.mrf.mxu0
  %1978 = vmatprep.mubr.f32.mxu0 0.0
  %1979 = vmatmul.mubr.f32.gmra.mxu0 %v1903
  %v1980 = vpop.f32.mrf.mxu0
  %v1981 = vadd.f32 0.0, %v1980
  %v1982 = vpop.f32.mrf.mxu0
  %1983 = vdwg.mxu0
  %v1984 = vmul.f32 %v1976, 0.35355338
  %v1985 = vmul.f32 %v1981, 0.35355338
  %v1986 = vsel %vm649, %v1984, -inf
  %1987 = vmax.xlane.f32.xlu0 %v1986
  %v1988 = vpop.xlane.xlu0 %1987
  %v1989 = vsel %vm649, %v1985, -inf
  %1990 = vmax.xlane.f32.xlu0 %v1989
  %v1991 = vpop.xlane.xlu0 %1990
  %v1992 = vsub.f32 %v1984, %v1988
  %v1993 = vsub.f32 %v1985, %v1991
  %v1994 = vmul.f32 %v1992, 1.442695
  %v1995 = vpow.pop %v1994
  %v1996 = vmul.f32 %v1993, 1.442695
  %v1997 = vpow.pop %v1996
  %v1998 = vsel %vm649, %v1995, 0.0
  %1999 = vadd.xlane.f32.xlu0 %v1998
  %v2000 = vpop.xlane.xlu0 %1999
  %v2001 = vsel %vm649, %v1997, 0.0
  %2002 = vadd.xlane.f32.xlu0 %v2001
  %v2003 = vpop.xlane.xlu0 %2002
  %v2004 = vrcp.pop %v2000
  %v2005 = vmul.f32 %v1995, %v2004
  %v2006 = vrcp.pop %v2003
  %v2007 = vmul.f32 %v1997, %v2006
  %2008 = vrot.lane.b32.xlu0 %v545, 56
  %v2009 = vpop.permute.xlu0 %2008
  %2010 = vrot.lane.b32.xlu0 %v550, 56
  %v2011 = vpop.permute.xlu0 %2010
  %v2015 = vsel %vm649, %v2005, 0
  %v2018 = vsel %vm649, %v2007, 0
  %2020 = vmatprep.subr.mxu0 0.0
  %2021 = vmatpush1.msra.mxu0 0.0
  %2022 = vmatprep.subr.mxu0 0.0
  %2023 = vmatpush1.msra.mxu0 0.0
  %2024 = vmatprep.subr.mxu0 0.0
  %2025 = vmatpush1.msra.mxu0 0.0
  %2026 = vmatprep.subr.mxu0 0.0
  %2027 = vmatpush1.msra.mxu0 0.0
  %2028 = vmatprep.subr.mxu0 0.0
  %2029 = vmatpush1.msra.mxu0 0.0
  %2030 = vmatprep.subr.mxu0 0.0
  %2031 = vmatpush1.msra.mxu0 0.0
  %2032 = vmatprep.subr.mxu0 0.0
  %2033 = vmatpush1.msra.mxu0 0.0
  %2034 = vmatprep.subr.mxu0 0.0
  %2035 = vmatpush1.msra.mxu0 0.0
  %2036 = vmatprep.subr.mxu0 0.0
  %2037 = vmatpush1.msra.mxu0 0.0
  %2038 = vmatprep.subr.mxu0 0.0
  %2039 = vmatpush1.msra.mxu0 0.0
  %2040 = vmatprep.subr.mxu0 0.0
  %2041 = vmatpush1.msra.mxu0 0.0
  %2042 = vmatprep.subr.mxu0 0.0
  %2043 = vmatpush1.msra.mxu0 0.0
  %2044 = vmatprep.subr.mxu0 0.0
  %2045 = vmatpush1.msra.mxu0 0.0
  %2046 = vmatprep.subr.mxu0 0.0
  %2047 = vmatpush1.msra.mxu0 0.0
  %2048 = vmatprep.subr.mxu0 0.0
  %2049 = vmatpush1.msra.mxu0 %v2011
  %2050 = vmatprep.subr.mxu0 0.0
  %2051 = vmatpush1.msra.mxu0 %v2009
  %2052 = vmatprep.subr.mxu0 0.0
  %2053 = vmatpush2.msra.mxu0 0.0
  %2054 = vmatprep.subr.mxu0 0.0
  %2055 = vmatpush2.msra.mxu0 0.0
  %2056 = vmatprep.subr.mxu0 0.0
  %2057 = vmatpush2.msra.mxu0 0.0
  %2058 = vmatprep.subr.mxu0 0.0
  %2059 = vmatpush2.msra.mxu0 0.0
  %2060 = vmatprep.subr.mxu0 0.0
  %2061 = vmatpush2.msra.mxu0 0.0
  %2062 = vmatprep.subr.mxu0 0.0
  %2063 = vmatpush2.msra.mxu0 0.0
  %2064 = vmatprep.subr.mxu0 0.0
  %2065 = vmatpush2.msra.mxu0 0.0
  %2066 = vmatprep.subr.mxu0 0.0
  %2067 = vmatpush2.msra.mxu0 0.0
  %2068 = vmatprep.subr.mxu0 0.0
  %2069 = vmatpush2.msra.mxu0 0.0
  %2070 = vmatprep.subr.mxu0 0.0
  %2071 = vmatpush2.msra.mxu0 0.0
  %2072 = vmatprep.subr.mxu0 0.0
  %2073 = vmatpush2.msra.mxu0 0.0
  %2074 = vmatprep.subr.mxu0 0.0
  %2075 = vmatpush2.msra.mxu0 0.0
  %2076 = vmatprep.subr.mxu0 0.0
  %2077 = vmatpush2.msra.mxu0 0.0
  %2078 = vmatprep.subr.mxu0 0.0
  %2079 = vmatpush2.msra.mxu0 0.0
  %2080 = vmatprep.subr.mxu0 0.0
  %2081 = vmatpush2.msra.mxu0 0.0
  %2082 = vmatprep.subr.mxu0 0.0
  %2083 = vmatpush2.msra.mxu0 0.0
  %2084 = vmatprep.mubr.f32.mxu0 0.0
  %2085 = vmatmul.mubr.f32.gmra.mxu0 %v2015
  %v2086 = vpop.f32.mrf.mxu0
  %v2087 = vadd.f32 0.0, %v2086
  %v2088 = vpop.f32.mrf.mxu0
  %2089 = vmatprep.mubr.f32.mxu0 0.0
  %2090 = vmatmul.mubr.f32.gmra.mxu0 %v2018
  %v2091 = vpop.f32.mrf.mxu0
  %v2092 = vadd.f32 0.0, %v2091
  %v2093 = vpop.f32.mrf.mxu0
  %2094 = vdwg.mxu0
  %v2096 = vsel %vm563, %v2087, 0
  %v2099 = vsel %vm563, %v2092, 0
  %2101 = vmatprep.subr.mxu0 0.0
  %2102 = vmatpush1.msra.mxu0 0.0
  %2103 = vmatprep.subr.mxu0 0.0
  %2104 = vmatpush1.msra.mxu0 0.0
  %2105 = vmatprep.subr.mxu0 0.0
  %2106 = vmatpush1.msra.mxu0 0.0
  %2107 = vmatprep.subr.mxu0 0.0
  %2108 = vmatpush1.msra.mxu0 0.0
  %2109 = vmatprep.subr.mxu0 0.0
  %2110 = vmatpush1.msra.mxu0 0.0
  %2111 = vmatprep.subr.mxu0 0.0
  %2112 = vmatpush1.msra.mxu0 0.0
  %2113 = vmatprep.subr.mxu0 0.0
  %2114 = vmatpush1.msra.mxu0 0.0
  %2115 = vmatprep.subr.mxu0 0.0
  %2116 = vmatpush1.msra.mxu0 0.0
  %2117 = vmatprep.subr.mxu0 0.0
  %2118 = vmatpush1.msra.mxu0 0.0
  %2119 = vmatprep.subr.mxu0 0.0
  %2120 = vmatpush1.msra.mxu0 0.0
  %2121 = vmatprep.subr.mxu0 0.0
  %2122 = vmatpush1.msra.mxu0 0.0
  %2123 = vmatprep.subr.mxu0 0.0
  %2124 = vmatpush1.msra.mxu0 0.0
  %2125 = vmatprep.subr.mxu0 0.0
  %2126 = vmatpush1.msra.mxu0 0.0
  %2127 = vmatprep.subr.mxu0 0.0
  %2128 = vmatpush1.msra.mxu0 0.0
  %2129 = vmatprep.subr.mxu0 0.0
  %2130 = vmatpush1.msra.mxu0 0.0
  %2131 = vmatprep.subr.mxu0 0.0
  %2132 = vmatpush1.msra.mxu0 %v554
  %2133 = vmatprep.subr.mxu0 0.0
  %2134 = vmatpush2.msra.mxu0 0.0
  %2135 = vmatprep.subr.mxu0 0.0
  %2136 = vmatpush2.msra.mxu0 0.0
  %2137 = vmatprep.subr.mxu0 0.0
  %2138 = vmatpush2.msra.mxu0 0.0
  %2139 = vmatprep.subr.mxu0 0.0
  %2140 = vmatpush2.msra.mxu0 0.0
  %2141 = vmatprep.subr.mxu0 0.0
  %2142 = vmatpush2.msra.mxu0 0.0
  %2143 = vmatprep.subr.mxu0 0.0
  %2144 = vmatpush2.msra.mxu0 0.0
  %2145 = vmatprep.subr.mxu0 0.0
  %2146 = vmatpush2.msra.mxu0 0.0
  %2147 = vmatprep.subr.mxu0 0.0
  %2148 = vmatpush2.msra.mxu0 0.0
  %2149 = vmatprep.subr.mxu0 0.0
  %2150 = vmatpush2.msra.mxu0 0.0
  %2151 = vmatprep.subr.mxu0 0.0
  %2152 = vmatpush2.msra.mxu0 0.0
  %2153 = vmatprep.subr.mxu0 0.0
  %2154 = vmatpush2.msra.mxu0 0.0
  %2155 = vmatprep.subr.mxu0 0.0
  %2156 = vmatpush2.msra.mxu0 0.0
  %2157 = vmatprep.subr.mxu0 0.0
  %2158 = vmatpush2.msra.mxu0 0.0
  %2159 = vmatprep.subr.mxu0 0.0
  %2160 = vmatpush2.msra.mxu0 0.0
  %2161 = vmatprep.subr.mxu0 0.0
  %2162 = vmatpush2.msra.mxu0 0.0
  %2163 = vmatprep.subr.mxu0 0.0
  %2164 = vmatpush2.msra.mxu0 0.0
  %2165 = vmatprep.mubr.f32.mxu0 0.0
  %2166 = vmatmul.mubr.f32.gmra.mxu0 %v2096
  %v2167 = vpop.f32.mrf.mxu0
  %v2168 = vadd.f32 0.0, %v2167
  %v2169 = vpop.f32.mrf.mxu0
  %2170 = vmatprep.mubr.f32.mxu0 0.0
  %2171 = vmatmul.mubr.f32.gmra.mxu0 %v2099
  %v2172 = vpop.f32.mrf.mxu0
  %v2173 = vadd.f32 0.0, %v2172
  %v2174 = vpop.f32.mrf.mxu0
  %2175 = vdwg.mxu0
  %v2177 = vsel %vm563, %v1885, 0
  %v2180 = vsel %vm563, %v1890, 0
  %2182 = vmatprep.subr.mxu0 0.0
  %2183 = vmatpush1.msra.mxu0 0.0
  %2184 = vmatprep.subr.mxu0 0.0
  %2185 = vmatpush1.msra.mxu0 0.0
  %2186 = vmatprep.subr.mxu0 0.0
  %2187 = vmatpush1.msra.mxu0 0.0
  %2188 = vmatprep.subr.mxu0 0.0
  %2189 = vmatpush1.msra.mxu0 0.0
  %2190 = vmatprep.subr.mxu0 0.0
  %2191 = vmatpush1.msra.mxu0 0.0
  %2192 = vmatprep.subr.mxu0 0.0
  %2193 = vmatpush1.msra.mxu0 0.0
  %2194 = vmatprep.subr.mxu0 0.0
  %2195 = vmatpush1.msra.mxu0 0.0
  %2196 = vmatprep.subr.mxu0 0.0
  %2197 = vmatpush1.msra.mxu0 0.0
  %2198 = vmatprep.subr.mxu0 0.0
  %2199 = vmatpush1.msra.mxu0 0.0
  %2200 = vmatprep.subr.mxu0 0.0
  %2201 = vmatpush1.msra.mxu0 0.0
  %2202 = vmatprep.subr.mxu0 0.0
  %2203 = vmatpush1.msra.mxu0 0.0
  %2204 = vmatprep.subr.mxu0 0.0
  %2205 = vmatpush1.msra.mxu0 0.0
  %2206 = vmatprep.subr.mxu0 0.0
  %2207 = vmatpush1.msra.mxu0 0.0
  %2208 = vmatprep.subr.mxu0 0.0
  %2209 = vmatpush1.msra.mxu0 0.0
  %2210 = vmatprep.subr.mxu0 0.0
  %2211 = vmatpush1.msra.mxu0 0.0
  %2212 = vmatprep.subr.mxu0 0.0
  %2213 = vmatpush1.msra.mxu0 %v553
  %2214 = vmatprep.subr.mxu0 0.0
  %2215 = vmatpush2.msra.mxu0 0.0
  %2216 = vmatprep.subr.mxu0 0.0
  %2217 = vmatpush2.msra.mxu0 0.0
  %2218 = vmatprep.subr.mxu0 0.0
  %2219 = vmatpush2.msra.mxu0 0.0
  %2220 = vmatprep.subr.mxu0 0.0
  %2221 = vmatpush2.msra.mxu0 0.0
  %2222 = vmatprep.subr.mxu0 0.0
  %2223 = vmatpush2.msra.mxu0 0.0
  %2224 = vmatprep.subr.mxu0 0.0
  %2225 = vmatpush2.msra.mxu0 0.0
  %2226 = vmatprep.subr.mxu0 0.0
  %2227 = vmatpush2.msra.mxu0 0.0
  %2228 = vmatprep.subr.mxu0 0.0
  %2229 = vmatpush2.msra.mxu0 0.0
  %2230 = vmatprep.subr.mxu0 0.0
  %2231 = vmatpush2.msra.mxu0 0.0
  %2232 = vmatprep.subr.mxu0 0.0
  %2233 = vmatpush2.msra.mxu0 0.0
  %2234 = vmatprep.subr.mxu0 0.0
  %2235 = vmatpush2.msra.mxu0 0.0
  %2236 = vmatprep.subr.mxu0 0.0
  %2237 = vmatpush2.msra.mxu0 0.0
  %2238 = vmatprep.subr.mxu0 0.0
  %2239 = vmatpush2.msra.mxu0 0.0
  %2240 = vmatprep.subr.mxu0 0.0
  %2241 = vmatpush2.msra.mxu0 0.0
  %2242 = vmatprep.subr.mxu0 0.0
  %2243 = vmatpush2.msra.mxu0 0.0
  %2244 = vmatprep.subr.mxu0 0.0
  %2245 = vmatpush2.msra.mxu0 0.0
  %2246 = vmatprep.mubr.f32.mxu0 0.0
  %2247 = vmatmul.mubr.f32.gmra.mxu0 %v2177
  %v2248 = vpop.f32.mrf.mxu0
  %v2249 = vadd.f32 %v2168, %v2248
  %v2250 = vpop.f32.mrf.mxu0
  %2251 = vmatprep.mubr.f32.mxu0 0.0
  %2252 = vmatmul.mubr.f32.gmra.mxu0 %v2180
  %v2253 = vpop.f32.mrf.mxu0
  %v2254 = vadd.f32 %v2173, %v2253
  %v2255 = vpop.f32.mrf.mxu0
  %2256 = vdwg.mxu0
  %2257 = vrot.lane.b32.xlu0 %v545, 112
  %v2258 = vpop.permute.xlu0 %2257
  %2259 = vrot.lane.b32.xlu0 %v550, 112
  %v2260 = vpop.permute.xlu0 %2259
  %2261 = vrot.lane.b32.xlu0 %v545, 80
  %v2262 = vpop.permute.xlu0 %2261
  %2263 = vrot.lane.b32.xlu0 %v550, 80
  %v2264 = vpop.permute.xlu0 %2263
  %v2265 = vsel %vm563, %v2258, 0
  %v2267 = vsel %vm563, %v2260, 0
  %v2269 = vsel %vm563, %v2262, 0
  %v2271 = vsel %vm563, %v2264, 0
  %2273 = vmatprep.subr.mxu0 0.0
  %2274 = vmatpush1.xpose.msra.mxu0 0.0
  %2275 = vmatprep.subr.mxu0 0.0
  %2276 = vmatpush1.xpose.msra.mxu0 0.0
  %2277 = vmatprep.subr.mxu0 0.0
  %2278 = vmatpush1.xpose.msra.mxu0 0.0
  %2279 = vmatprep.subr.mxu0 0.0
  %2280 = vmatpush1.xpose.msra.mxu0 0.0
  %2281 = vmatprep.subr.mxu0 0.0
  %2282 = vmatpush1.xpose.msra.mxu0 0.0
  %2283 = vmatprep.subr.mxu0 0.0
  %2284 = vmatpush1.xpose.msra.mxu0 0.0
  %2285 = vmatprep.subr.mxu0 0.0
  %2286 = vmatpush1.xpose.msra.mxu0 0.0
  %2287 = vmatprep.subr.mxu0 0.0
  %2288 = vmatpush1.xpose.msra.mxu0 0.0
  %2289 = vmatprep.subr.mxu0 0.0
  %2290 = vmatpush1.xpose.msra.mxu0 0.0
  %2291 = vmatprep.subr.mxu0 0.0
  %2292 = vmatpush1.xpose.msra.mxu0 0.0
  %2293 = vmatprep.subr.mxu0 0.0
  %2294 = vmatpush1.xpose.msra.mxu0 0.0
  %2295 = vmatprep.subr.mxu0 0.0
  %2296 = vmatpush1.xpose.msra.mxu0 0.0
  %2297 = vmatprep.subr.mxu0 0.0
  %2298 = vmatpush1.xpose.msra.mxu0 0.0
  %2299 = vmatprep.subr.mxu0 0.0
  %2300 = vmatpush1.xpose.msra.mxu0 0.0
  %2301 = vmatprep.subr.mxu0 0.0
  %2302 = vmatpush1.xpose.msra.mxu0 %v2271
  %2303 = vmatprep.subr.mxu0 0.0
  %2304 = vmatpush1.xpose.msra.mxu0 %v2269
  %2305 = vmatprep.subr.mxu0 0.0
  %2306 = vmatpush2.xpose.msra.mxu0 0.0
  %2307 = vmatprep.subr.mxu0 0.0
  %2308 = vmatpush2.xpose.msra.mxu0 0.0
  %2309 = vmatprep.subr.mxu0 0.0
  %2310 = vmatpush2.xpose.msra.mxu0 0.0
  %2311 = vmatprep.subr.mxu0 0.0
  %2312 = vmatpush2.xpose.msra.mxu0 0.0
  %2313 = vmatprep.subr.mxu0 0.0
  %2314 = vmatpush2.xpose.msra.mxu0 0.0
  %2315 = vmatprep.subr.mxu0 0.0
  %2316 = vmatpush2.xpose.msra.mxu0 0.0
  %2317 = vmatprep.subr.mxu0 0.0
  %2318 = vmatpush2.xpose.msra.mxu0 0.0
  %2319 = vmatprep.subr.mxu0 0.0
  %2320 = vmatpush2.xpose.msra.mxu0 0.0
  %2321 = vmatprep.subr.mxu0 0.0
  %2322 = vmatpush2.xpose.msra.mxu0 0.0
  %2323 = vmatprep.subr.mxu0 0.0
  %2324 = vmatpush2.xpose.msra.mxu0 0.0
  %2325 = vmatprep.subr.mxu0 0.0
  %2326 = vmatpush2.xpose.msra.mxu0 0.0
  %2327 = vmatprep.subr.mxu0 0.0
  %2328 = vmatpush2.xpose.msra.mxu0 0.0
  %2329 = vmatprep.subr.mxu0 0.0
  %2330 = vmatpush2.xpose.msra.mxu0 0.0
  %2331 = vmatprep.subr.mxu0 0.0
  %2332 = vmatpush2.xpose.msra.mxu0 0.0
  %2333 = vmatprep.subr.mxu0 0.0
  %2334 = vmatpush2.xpose.msra.mxu0 0.0
  %2335 = vmatprep.subr.mxu0 0.0
  %2336 = vmatpush2.xpose.msra.mxu0 0.0
  %2337 = vmatprep.mubr.f32.mxu0 0.0
  %2338 = vmatmul.mubr.f32.gmra.mxu0 %v2265
  %v2339 = vpop.f32.mrf.mxu0
  %v2340 = vadd.f32 0.0, %v2339
  %v2341 = vpop.f32.mrf.mxu0
  %2342 = vmatprep.mubr.f32.mxu0 0.0
  %2343 = vmatmul.mubr.f32.gmra.mxu0 %v2267
  %v2344 = vpop.f32.mrf.mxu0
  %v2345 = vadd.f32 0.0, %v2344
  %v2346 = vpop.f32.mrf.mxu0
  %2347 = vdwg.mxu0
  %v2348 = vmul.f32 %v2340, 0.35355338
  %v2349 = vmul.f32 %v2345, 0.35355338
  %v2350 = vsel %vm649, %v2348, -inf
  %2351 = vmax.xlane.f32.xlu0 %v2350
  %v2352 = vpop.xlane.xlu0 %2351
  %v2353 = vsel %vm649, %v2349, -inf
  %2354 = vmax.xlane.f32.xlu0 %v2353
  %v2355 = vpop.xlane.xlu0 %2354
  %v2356 = vsub.f32 %v2348, %v2352
  %v2357 = vsub.f32 %v2349, %v2355
  %v2358 = vmul.f32 %v2356, 1.442695
  %v2359 = vpow.pop %v2358
  %v2360 = vmul.f32 %v2357, 1.442695
  %v2361 = vpow.pop %v2360
  %v2362 = vsel %vm649, %v2359, 0.0
  %2363 = vadd.xlane.f32.xlu0 %v2362
  %v2364 = vpop.xlane.xlu0 %2363
  %v2365 = vsel %vm649, %v2361, 0.0
  %2366 = vadd.xlane.f32.xlu0 %v2365
  %v2367 = vpop.xlane.xlu0 %2366
  %v2368 = vrcp.pop %v2364
  %v2369 = vmul.f32 %v2359, %v2368
  %v2370 = vrcp.pop %v2367
  %v2371 = vmul.f32 %v2361, %v2370
  %2372 = vrot.lane.b32.xlu0 %v545, 48
  %v2373 = vpop.permute.xlu0 %2372
  %2374 = vrot.lane.b32.xlu0 %v550, 48
  %v2375 = vpop.permute.xlu0 %2374
  %v2379 = vsel %vm649, %v2369, 0
  %v2382 = vsel %vm649, %v2371, 0
  %2384 = vmatprep.subr.mxu0 0.0
  %2385 = vmatpush1.msra.mxu0 0.0
  %2386 = vmatprep.subr.mxu0 0.0
  %2387 = vmatpush1.msra.mxu0 0.0
  %2388 = vmatprep.subr.mxu0 0.0
  %2389 = vmatpush1.msra.mxu0 0.0
  %2390 = vmatprep.subr.mxu0 0.0
  %2391 = vmatpush1.msra.mxu0 0.0
  %2392 = vmatprep.subr.mxu0 0.0
  %2393 = vmatpush1.msra.mxu0 0.0
  %2394 = vmatprep.subr.mxu0 0.0
  %2395 = vmatpush1.msra.mxu0 0.0
  %2396 = vmatprep.subr.mxu0 0.0
  %2397 = vmatpush1.msra.mxu0 0.0
  %2398 = vmatprep.subr.mxu0 0.0
  %2399 = vmatpush1.msra.mxu0 0.0
  %2400 = vmatprep.subr.mxu0 0.0
  %2401 = vmatpush1.msra.mxu0 0.0
  %2402 = vmatprep.subr.mxu0 0.0
  %2403 = vmatpush1.msra.mxu0 0.0
  %2404 = vmatprep.subr.mxu0 0.0
  %2405 = vmatpush1.msra.mxu0 0.0
  %2406 = vmatprep.subr.mxu0 0.0
  %2407 = vmatpush1.msra.mxu0 0.0
  %2408 = vmatprep.subr.mxu0 0.0
  %2409 = vmatpush1.msra.mxu0 0.0
  %2410 = vmatprep.subr.mxu0 0.0
  %2411 = vmatpush1.msra.mxu0 0.0
  %2412 = vmatprep.subr.mxu0 0.0
  %2413 = vmatpush1.msra.mxu0 %v2375
  %2414 = vmatprep.subr.mxu0 0.0
  %2415 = vmatpush1.msra.mxu0 %v2373
  %2416 = vmatprep.subr.mxu0 0.0
  %2417 = vmatpush2.msra.mxu0 0.0
  %2418 = vmatprep.subr.mxu0 0.0
  %2419 = vmatpush2.msra.mxu0 0.0
  %2420 = vmatprep.subr.mxu0 0.0
  %2421 = vmatpush2.msra.mxu0 0.0
  %2422 = vmatprep.subr.mxu0 0.0
  %2423 = vmatpush2.msra.mxu0 0.0
  %2424 = vmatprep.subr.mxu0 0.0
  %2425 = vmatpush2.msra.mxu0 0.0
  %2426 = vmatprep.subr.mxu0 0.0
  %2427 = vmatpush2.msra.mxu0 0.0
  %2428 = vmatprep.subr.mxu0 0.0
  %2429 = vmatpush2.msra.mxu0 0.0
  %2430 = vmatprep.subr.mxu0 0.0
  %2431 = vmatpush2.msra.mxu0 0.0
  %2432 = vmatprep.subr.mxu0 0.0
  %2433 = vmatpush2.msra.mxu0 0.0
  %2434 = vmatprep.subr.mxu0 0.0
  %2435 = vmatpush2.msra.mxu0 0.0
  %2436 = vmatprep.subr.mxu0 0.0
  %2437 = vmatpush2.msra.mxu0 0.0
  %2438 = vmatprep.subr.mxu0 0.0
  %2439 = vmatpush2.msra.mxu0 0.0
  %2440 = vmatprep.subr.mxu0 0.0
  %2441 = vmatpush2.msra.mxu0 0.0
  %2442 = vmatprep.subr.mxu0 0.0
  %2443 = vmatpush2.msra.mxu0 0.0
  %2444 = vmatprep.subr.mxu0 0.0
  %2445 = vmatpush2.msra.mxu0 0.0
  %2446 = vmatprep.subr.mxu0 0.0
  %2447 = vmatpush2.msra.mxu0 0.0
  %2448 = vmatprep.mubr.f32.mxu0 0.0
  %2449 = vmatmul.mubr.f32.gmra.mxu0 %v2379
  %v2450 = vpop.f32.mrf.mxu0
  %v2451 = vadd.f32 0.0, %v2450
  %v2452 = vpop.f32.mrf.mxu0
  %2453 = vmatprep.mubr.f32.mxu0 0.0
  %2454 = vmatmul.mubr.f32.gmra.mxu0 %v2382
  %v2455 = vpop.f32.mrf.mxu0
  %v2456 = vadd.f32 0.0, %v2455
  %v2457 = vpop.f32.mrf.mxu0
  %2458 = vdwg.mxu0
  %v2460 = vsel %vm563, %v2451, 0
  %v2463 = vsel %vm563, %v2456, 0
  %2465 = vmatprep.subr.mxu0 0.0
  %2466 = vmatpush1.msra.mxu0 0.0
  %2467 = vmatprep.subr.mxu0 0.0
  %2468 = vmatpush1.msra.mxu0 0.0
  %2469 = vmatprep.subr.mxu0 0.0
  %2470 = vmatpush1.msra.mxu0 0.0
  %2471 = vmatprep.subr.mxu0 0.0
  %2472 = vmatpush1.msra.mxu0 0.0
  %2473 = vmatprep.subr.mxu0 0.0
  %2474 = vmatpush1.msra.mxu0 0.0
  %2475 = vmatprep.subr.mxu0 0.0
  %2476 = vmatpush1.msra.mxu0 0.0
  %2477 = vmatprep.subr.mxu0 0.0
  %2478 = vmatpush1.msra.mxu0 0.0
  %2479 = vmatprep.subr.mxu0 0.0
  %2480 = vmatpush1.msra.mxu0 0.0
  %2481 = vmatprep.subr.mxu0 0.0
  %2482 = vmatpush1.msra.mxu0 0.0
  %2483 = vmatprep.subr.mxu0 0.0
  %2484 = vmatpush1.msra.mxu0 0.0
  %2485 = vmatprep.subr.mxu0 0.0
  %2486 = vmatpush1.msra.mxu0 0.0
  %2487 = vmatprep.subr.mxu0 0.0
  %2488 = vmatpush1.msra.mxu0 0.0
  %2489 = vmatprep.subr.mxu0 0.0
  %2490 = vmatpush1.msra.mxu0 0.0
  %2491 = vmatprep.subr.mxu0 0.0
  %2492 = vmatpush1.msra.mxu0 0.0
  %2493 = vmatprep.subr.mxu0 0.0
  %2494 = vmatpush1.msra.mxu0 0.0
  %2495 = vmatprep.subr.mxu0 0.0
  %2496 = vmatpush1.msra.mxu0 %v555
  %2497 = vmatprep.subr.mxu0 0.0
  %2498 = vmatpush2.msra.mxu0 0.0
  %2499 = vmatprep.subr.mxu0 0.0
  %2500 = vmatpush2.msra.mxu0 0.0
  %2501 = vmatprep.subr.mxu0 0.0
  %2502 = vmatpush2.msra.mxu0 0.0
  %2503 = vmatprep.subr.mxu0 0.0
  %2504 = vmatpush2.msra.mxu0 0.0
  %2505 = vmatprep.subr.mxu0 0.0
  %2506 = vmatpush2.msra.mxu0 0.0
  %2507 = vmatprep.subr.mxu0 0.0
  %2508 = vmatpush2.msra.mxu0 0.0
  %2509 = vmatprep.subr.mxu0 0.0
  %2510 = vmatpush2.msra.mxu0 0.0
  %2511 = vmatprep.subr.mxu0 0.0
  %2512 = vmatpush2.msra.mxu0 0.0
  %2513 = vmatprep.subr.mxu0 0.0
  %2514 = vmatpush2.msra.mxu0 0.0
  %2515 = vmatprep.subr.mxu0 0.0
  %2516 = vmatpush2.msra.mxu0 0.0
  %2517 = vmatprep.subr.mxu0 0.0
  %2518 = vmatpush2.msra.mxu0 0.0
  %2519 = vmatprep.subr.mxu0 0.0
  %2520 = vmatpush2.msra.mxu0 0.0
  %2521 = vmatprep.subr.mxu0 0.0
  %2522 = vmatpush2.msra.mxu0 0.0
  %2523 = vmatprep.subr.mxu0 0.0
  %2524 = vmatpush2.msra.mxu0 0.0
  %2525 = vmatprep.subr.mxu0 0.0
  %2526 = vmatpush2.msra.mxu0 0.0
  %2527 = vmatprep.subr.mxu0 0.0
  %2528 = vmatpush2.msra.mxu0 0.0
  %2529 = vmatprep.mubr.f32.mxu0 0.0
  %2530 = vmatmul.mubr.f32.gmra.mxu0 %v2460
  %v2531 = vpop.f32.mrf.mxu0
  %v2532 = vadd.f32 0.0, %v2531
  %v2533 = vpop.f32.mrf.mxu0
  %2534 = vmatprep.mubr.f32.mxu0 0.0
  %2535 = vmatmul.mubr.f32.gmra.mxu0 %v2463
  %v2536 = vpop.f32.mrf.mxu0
  %v2537 = vadd.f32 0.0, %v2536
  %v2538 = vpop.f32.mrf.mxu0
  %2539 = vdwg.mxu0
  %v2540 = vadd.f32 %v2249, %v2532
  %v2541 = vadd.f32 %v2254, %v2537
  %2542 = vrot.lane.b32.xlu0 %v545, 104
  %v2543 = vpop.permute.xlu0 %2542
  %2544 = vrot.lane.b32.xlu0 %v550, 104
  %v2545 = vpop.permute.xlu0 %2544
  %2546 = vrot.lane.b32.xlu0 %v545, 72
  %v2547 = vpop.permute.xlu0 %2546
  %2548 = vrot.lane.b32.xlu0 %v550, 72
  %v2549 = vpop.permute.xlu0 %2548
  %v2550 = vsel %vm563, %v2543, 0
  %v2552 = vsel %vm563, %v2545, 0
  %v2554 = vsel %vm563, %v2547, 0
  %v2556 = vsel %vm563, %v2549, 0
  %2558 = vmatprep.subr.mxu0 0.0
  %2559 = vmatpush1.xpose.msra.mxu0 0.0
  %2560 = vmatprep.subr.mxu0 0.0
  %2561 = vmatpush1.xpose.msra.mxu0 0.0
  %2562 = vmatprep.subr.mxu0 0.0
  %2563 = vmatpush1.xpose.msra.mxu0 0.0
  %2564 = vmatprep.subr.mxu0 0.0
  %2565 = vmatpush1.xpose.msra.mxu0 0.0
  %2566 = vmatprep.subr.mxu0 0.0
  %2567 = vmatpush1.xpose.msra.mxu0 0.0
  %2568 = vmatprep.subr.mxu0 0.0
  %2569 = vmatpush1.xpose.msra.mxu0 0.0
  %2570 = vmatprep.subr.mxu0 0.0
  %2571 = vmatpush1.xpose.msra.mxu0 0.0
  %2572 = vmatprep.subr.mxu0 0.0
  %2573 = vmatpush1.xpose.msra.mxu0 0.0
  %2574 = vmatprep.subr.mxu0 0.0
  %2575 = vmatpush1.xpose.msra.mxu0 0.0
  %2576 = vmatprep.subr.mxu0 0.0
  %2577 = vmatpush1.xpose.msra.mxu0 0.0
  %2578 = vmatprep.subr.mxu0 0.0
  %2579 = vmatpush1.xpose.msra.mxu0 0.0
  %2580 = vmatprep.subr.mxu0 0.0
  %2581 = vmatpush1.xpose.msra.mxu0 0.0
  %2582 = vmatprep.subr.mxu0 0.0
  %2583 = vmatpush1.xpose.msra.mxu0 0.0
  %2584 = vmatprep.subr.mxu0 0.0
  %2585 = vmatpush1.xpose.msra.mxu0 0.0
  %2586 = vmatprep.subr.mxu0 0.0
  %2587 = vmatpush1.xpose.msra.mxu0 %v2556
  %2588 = vmatprep.subr.mxu0 0.0
  %2589 = vmatpush1.xpose.msra.mxu0 %v2554
  %2590 = vmatprep.subr.mxu0 0.0
  %2591 = vmatpush2.xpose.msra.mxu0 0.0
  %2592 = vmatprep.subr.mxu0 0.0
  %2593 = vmatpush2.xpose.msra.mxu0 0.0
  %2594 = vmatprep.subr.mxu0 0.0
  %2595 = vmatpush2.xpose.msra.mxu0 0.0
  %2596 = vmatprep.subr.mxu0 0.0
  %2597 = vmatpush2.xpose.msra.mxu0 0.0
  %2598 = vmatprep.subr.mxu0 0.0
  %2599 = vmatpush2.xpose.msra.mxu0 0.0
  %2600 = vmatprep.subr.mxu0 0.0
  %2601 = vmatpush2.xpose.msra.mxu0 0.0
  %2602 = vmatprep.subr.mxu0 0.0
  %2603 = vmatpush2.xpose.msra.mxu0 0.0
  %2604 = vmatprep.subr.mxu0 0.0
  %2605 = vmatpush2.xpose.msra.mxu0 0.0
  %2606 = vmatprep.subr.mxu0 0.0
  %2607 = vmatpush2.xpose.msra.mxu0 0.0
  %2608 = vmatprep.subr.mxu0 0.0
  %2609 = vmatpush2.xpose.msra.mxu0 0.0
  %2610 = vmatprep.subr.mxu0 0.0
  %2611 = vmatpush2.xpose.msra.mxu0 0.0
  %2612 = vmatprep.subr.mxu0 0.0
  %2613 = vmatpush2.xpose.msra.mxu0 0.0
  %2614 = vmatprep.subr.mxu0 0.0
  %2615 = vmatpush2.xpose.msra.mxu0 0.0
  %2616 = vmatprep.subr.mxu0 0.0
  %2617 = vmatpush2.xpose.msra.mxu0 0.0
  %2618 = vmatprep.subr.mxu0 0.0
  %2619 = vmatpush2.xpose.msra.mxu0 0.0
  %2620 = vmatprep.subr.mxu0 0.0
  %2621 = vmatpush2.xpose.msra.mxu0 0.0
  %2622 = vmatprep.mubr.f32.mxu0 0.0
  %2623 = vmatmul.mubr.f32.gmra.mxu0 %v2550
  %v2624 = vpop.f32.mrf.mxu0
  %v2625 = vadd.f32 0.0, %v2624
  %v2626 = vpop.f32.mrf.mxu0
  %2627 = vmatprep.mubr.f32.mxu0 0.0
  %2628 = vmatmul.mubr.f32.gmra.mxu0 %v2552
  %v2629 = vpop.f32.mrf.mxu0
  %v2630 = vadd.f32 0.0, %v2629
  %v2631 = vpop.f32.mrf.mxu0
  %2632 = vdwg.mxu0
  %v2633 = vmul.f32 %v2625, 0.35355338
  %v2634 = vmul.f32 %v2630, 0.35355338
  %v2635 = vsel %vm649, %v2633, -inf
  %2636 = vmax.xlane.f32.xlu0 %v2635
  %v2637 = vpop.xlane.xlu0 %2636
  %v2638 = vsel %vm649, %v2634, -inf
  %2639 = vmax.xlane.f32.xlu0 %v2638
  %v2640 = vpop.xlane.xlu0 %2639
  %v2641 = vsub.f32 %v2633, %v2637
  %v2642 = vsub.f32 %v2634, %v2640
  %v2643 = vmul.f32 %v2641, 1.442695
  %v2644 = vpow.pop %v2643
  %v2645 = vmul.f32 %v2642, 1.442695
  %v2646 = vpow.pop %v2645
  %v2647 = vsel %vm649, %v2644, 0.0
  %2648 = vadd.xlane.f32.xlu0 %v2647
  %v2649 = vpop.xlane.xlu0 %2648
  %v2650 = vsel %vm649, %v2646, 0.0
  %2651 = vadd.xlane.f32.xlu0 %v2650
  %v2652 = vpop.xlane.xlu0 %2651
  %v2653 = vrcp.pop %v2649
  %v2654 = vmul.f32 %v2644, %v2653
  %v2655 = vrcp.pop %v2652
  %v2656 = vmul.f32 %v2646, %v2655
  %2657 = vrot.lane.b32.xlu0 %v545, 40
  %v2658 = vpop.permute.xlu0 %2657
  %2659 = vrot.lane.b32.xlu0 %v550, 40
  %v2660 = vpop.permute.xlu0 %2659
  %v2664 = vsel %vm649, %v2654, 0
  %v2667 = vsel %vm649, %v2656, 0
  %2669 = vmatprep.subr.mxu0 0.0
  %2670 = vmatpush1.msra.mxu0 0.0
  %2671 = vmatprep.subr.mxu0 0.0
  %2672 = vmatpush1.msra.mxu0 0.0
  %2673 = vmatprep.subr.mxu0 0.0
  %2674 = vmatpush1.msra.mxu0 0.0
  %2675 = vmatprep.subr.mxu0 0.0
  %2676 = vmatpush1.msra.mxu0 0.0
  %2677 = vmatprep.subr.mxu0 0.0
  %2678 = vmatpush1.msra.mxu0 0.0
  %2679 = vmatprep.subr.mxu0 0.0
  %2680 = vmatpush1.msra.mxu0 0.0
  %2681 = vmatprep.subr.mxu0 0.0
  %2682 = vmatpush1.msra.mxu0 0.0
  %2683 = vmatprep.subr.mxu0 0.0
  %2684 = vmatpush1.msra.mxu0 0.0
  %2685 = vmatprep.subr.mxu0 0.0
  %2686 = vmatpush1.msra.mxu0 0.0
  %2687 = vmatprep.subr.mxu0 0.0
  %2688 = vmatpush1.msra.mxu0 0.0
  %2689 = vmatprep.subr.mxu0 0.0
  %2690 = vmatpush1.msra.mxu0 0.0
  %2691 = vmatprep.subr.mxu0 0.0
  %2692 = vmatpush1.msra.mxu0 0.0
  %2693 = vmatprep.subr.mxu0 0.0
  %2694 = vmatpush1.msra.mxu0 0.0
  %2695 = vmatprep.subr.mxu0 0.0
  %2696 = vmatpush1.msra.mxu0 0.0
  %2697 = vmatprep.subr.mxu0 0.0
  %2698 = vmatpush1.msra.mxu0 %v2660
  %2699 = vmatprep.subr.mxu0 0.0
  %2700 = vmatpush1.msra.mxu0 %v2658
  %2701 = vmatprep.subr.mxu0 0.0
  %2702 = vmatpush2.msra.mxu0 0.0
  %2703 = vmatprep.subr.mxu0 0.0
  %2704 = vmatpush2.msra.mxu0 0.0
  %2705 = vmatprep.subr.mxu0 0.0
  %2706 = vmatpush2.msra.mxu0 0.0
  %2707 = vmatprep.subr.mxu0 0.0
  %2708 = vmatpush2.msra.mxu0 0.0
  %2709 = vmatprep.subr.mxu0 0.0
  %2710 = vmatpush2.msra.mxu0 0.0
  %2711 = vmatprep.subr.mxu0 0.0
  %2712 = vmatpush2.msra.mxu0 0.0
  %2713 = vmatprep.subr.mxu0 0.0
  %2714 = vmatpush2.msra.mxu0 0.0
  %2715 = vmatprep.subr.mxu0 0.0
  %2716 = vmatpush2.msra.mxu0 0.0
  %2717 = vmatprep.subr.mxu0 0.0
  %2718 = vmatpush2.msra.mxu0 0.0
  %2719 = vmatprep.subr.mxu0 0.0
  %2720 = vmatpush2.msra.mxu0 0.0
  %2721 = vmatprep.subr.mxu0 0.0
  %2722 = vmatpush2.msra.mxu0 0.0
  %2723 = vmatprep.subr.mxu0 0.0
  %2724 = vmatpush2.msra.mxu0 0.0
  %2725 = vmatprep.subr.mxu0 0.0
  %2726 = vmatpush2.msra.mxu0 0.0
  %2727 = vmatprep.subr.mxu0 0.0
  %2728 = vmatpush2.msra.mxu0 0.0
  %2729 = vmatprep.subr.mxu0 0.0
  %2730 = vmatpush2.msra.mxu0 0.0
  %2731 = vmatprep.subr.mxu0 0.0
  %2732 = vmatpush2.msra.mxu0 0.0
  %2733 = vmatprep.mubr.f32.mxu0 0.0
  %2734 = vmatmul.mubr.f32.gmra.mxu0 %v2664
  %v2735 = vpop.f32.mrf.mxu0
  %v2736 = vadd.f32 0.0, %v2735
  %v2737 = vpop.f32.mrf.mxu0
  %2738 = vmatprep.mubr.f32.mxu0 0.0
  %2739 = vmatmul.mubr.f32.gmra.mxu0 %v2667
  %v2740 = vpop.f32.mrf.mxu0
  %v2741 = vadd.f32 0.0, %v2740
  %v2742 = vpop.f32.mrf.mxu0
  %2743 = vdwg.mxu0
  %v2745 = vsel %vm563, %v2736, 0
  %v2748 = vsel %vm563, %v2741, 0
  %2750 = vmatprep.subr.mxu0 0.0
  %2751 = vmatpush1.msra.mxu0 0.0
  %2752 = vmatprep.subr.mxu0 0.0
  %2753 = vmatpush1.msra.mxu0 0.0
  %2754 = vmatprep.subr.mxu0 0.0
  %2755 = vmatpush1.msra.mxu0 0.0
  %2756 = vmatprep.subr.mxu0 0.0
  %2757 = vmatpush1.msra.mxu0 0.0
  %2758 = vmatprep.subr.mxu0 0.0
  %2759 = vmatpush1.msra.mxu0 0.0
  %2760 = vmatprep.subr.mxu0 0.0
  %2761 = vmatpush1.msra.mxu0 0.0
  %2762 = vmatprep.subr.mxu0 0.0
  %2763 = vmatpush1.msra.mxu0 0.0
  %2764 = vmatprep.subr.mxu0 0.0
  %2765 = vmatpush1.msra.mxu0 0.0
  %2766 = vmatprep.subr.mxu0 0.0
  %2767 = vmatpush1.msra.mxu0 0.0
  %2768 = vmatprep.subr.mxu0 0.0
  %2769 = vmatpush1.msra.mxu0 0.0
  %2770 = vmatprep.subr.mxu0 0.0
  %2771 = vmatpush1.msra.mxu0 0.0
  %2772 = vmatprep.subr.mxu0 0.0
  %2773 = vmatpush1.msra.mxu0 0.0
  %2774 = vmatprep.subr.mxu0 0.0
  %2775 = vmatpush1.msra.mxu0 0.0
  %2776 = vmatprep.subr.mxu0 0.0
  %2777 = vmatpush1.msra.mxu0 0.0
  %2778 = vmatprep.subr.mxu0 0.0
  %2779 = vmatpush1.msra.mxu0 0.0
  %2780 = vmatprep.subr.mxu0 0.0
  %2781 = vmatpush1.msra.mxu0 %v556
  %2782 = vmatprep.subr.mxu0 0.0
  %2783 = vmatpush2.msra.mxu0 0.0
  %2784 = vmatprep.subr.mxu0 0.0
  %2785 = vmatpush2.msra.mxu0 0.0
  %2786 = vmatprep.subr.mxu0 0.0
  %2787 = vmatpush2.msra.mxu0 0.0
  %2788 = vmatprep.subr.mxu0 0.0
  %2789 = vmatpush2.msra.mxu0 0.0
  %2790 = vmatprep.subr.mxu0 0.0
  %2791 = vmatpush2.msra.mxu0 0.0
  %2792 = vmatprep.subr.mxu0 0.0
  %2793 = vmatpush2.msra.mxu0 0.0
  %2794 = vmatprep.subr.mxu0 0.0
  %2795 = vmatpush2.msra.mxu0 0.0
  %2796 = vmatprep.subr.mxu0 0.0
  %2797 = vmatpush2.msra.mxu0 0.0
  %2798 = vmatprep.subr.mxu0 0.0
  %2799 = vmatpush2.msra.mxu0 0.0
  %2800 = vmatprep.subr.mxu0 0.0
  %2801 = vmatpush2.msra.mxu0 0.0
  %2802 = vmatprep.subr.mxu0 0.0
  %2803 = vmatpush2.msra.mxu0 0.0
  %2804 = vmatprep.subr.mxu0 0.0
  %2805 = vmatpush2.msra.mxu0 0.0
  %2806 = vmatprep.subr.mxu0 0.0
  %2807 = vmatpush2.msra.mxu0 0.0
  %2808 = vmatprep.subr.mxu0 0.0
  %2809 = vmatpush2.msra.mxu0 0.0
  %2810 = vmatprep.subr.mxu0 0.0
  %2811 = vmatpush2.msra.mxu0 0.0
  %2812 = vmatprep.subr.mxu0 0.0
  %2813 = vmatpush2.msra.mxu0 0.0
  %2814 = vmatprep.mubr.f32.mxu0 0.0
  %2815 = vmatmul.mubr.f32.gmra.mxu0 %v2745
  %v2816 = vpop.f32.mrf.mxu0
  %v2817 = vadd.f32 0.0, %v2816
  %v2818 = vpop.f32.mrf.mxu0
  %2819 = vmatprep.mubr.f32.mxu0 0.0
  %2820 = vmatmul.mubr.f32.gmra.mxu0 %v2748
  %v2821 = vpop.f32.mrf.mxu0
  %v2822 = vadd.f32 0.0, %v2821
  %v2823 = vpop.f32.mrf.mxu0
  %2824 = vdwg.mxu0
  %v2825 = vadd.f32 %v2540, %v2817
  %v2826 = vadd.f32 %v2541, %v2822
  %v2827 = vld [vmem:[%s19] sm:$0x1]
  %v2829 = vlaneseq
  %v2830 = vshrl.u32 %v2829, 7
  %v2831 = vsub.s32 0, %v2830
  %v2832 = vrot.slane %v2827, %v2831
  %v2834 = vadd.f32 %v1691, %v2832
  %v2835 = vadd.f32 %v1692, %v2832
  %v2836 = vadd.f32 %v2825, %v2832
  %v2837 = vadd.f32 %v2826, %v2832
  %v2838 = vadd.f32 %v366, %v2834
  %v2839 = vadd.f32 %v367, %v2835
  %v2840 = vadd.f32 %v368, %v2836
  %v2841 = vadd.f32 %v369, %v2837
  %v2842 = vld [vmem:[%s21] sm:$0x1]
  %v2843 = vld [vmem:[%s23] sm:$0x1]
  %v2844 = vsel %vm181, %v2838, 0.0
  %2845 = vadd.xlane.f32.xlu0 %v2844
  %v2846 = vpop.xlane.xlu0 %2845
  %v2847 = vsel %vm181, %v2839, 0.0
  %2848 = vadd.xlane.f32.xlu0 %v2847
  %v2849 = vpop.xlane.xlu0 %2848
  %v2850 = vsel %vm181, %v2840, 0.0
  %2851 = vadd.xlane.f32.xlu0 %v2850
  %v2852 = vpop.xlane.xlu0 %2851
  %v2853 = vsel %vm181, %v2841, 0.0
  %2854 = vadd.xlane.f32.xlu0 %v2853
  %v2855 = vpop.xlane.xlu0 %2854
  %v2856 = vmul.f32 %v2846, %v384
  %v2857 = vmul.f32 %v2849, %v384
  %v2858 = vmul.f32 %v2852, %v384
  %v2859 = vmul.f32 %v2855, %v384
  %v2860 = vsub.f32 %v2838, %v2856
  %v2861 = vsub.f32 %v2839, %v2857
  %v2862 = vsub.f32 %v2840, %v2858
  %v2863 = vsub.f32 %v2841, %v2859
  %v2864 = vmul.f32 %v2860, %v2860
  %v2865 = vmul.f32 %v2861, %v2861
  %v2866 = vmul.f32 %v2862, %v2862
  %v2867 = vmul.f32 %v2863, %v2863
  %v2868 = vsel %vm181, %v2864, 0.0
  %2869 = vadd.xlane.f32.xlu0 %v2868
  %v2870 = vpop.xlane.xlu0 %2869
  %v2871 = vsel %vm181, %v2865, 0.0
  %2872 = vadd.xlane.f32.xlu0 %v2871
  %v2873 = vpop.xlane.xlu0 %2872
  %v2874 = vsel %vm181, %v2866, 0.0
  %2875 = vadd.xlane.f32.xlu0 %v2874
  %v2876 = vpop.xlane.xlu0 %2875
  %v2877 = vsel %vm181, %v2867, 0.0
  %2878 = vadd.xlane.f32.xlu0 %v2877
  %v2879 = vpop.xlane.xlu0 %2878
  %v2880 = vmul.f32 %v2870, %v384
  %v2881 = vmul.f32 %v2873, %v384
  %v2882 = vmul.f32 %v2876, %v384
  %v2883 = vmul.f32 %v2879, %v384
  %v2884 = vadd.f32 %v2880, 1e-05
  %v2885 = vadd.f32 %v2881, 1e-05
  %v2886 = vadd.f32 %v2882, 1e-05
  %v2887 = vadd.f32 %v2883, 1e-05
  %v2888 = vrsqrt.pop %v2884
  %v2889 = vrsqrt.pop %v2885
  %v2890 = vrsqrt.pop %v2886
  %v2891 = vrsqrt.pop %v2887
  %v2892 = vmul.f32 %v2860, %v2888
  %v2893 = vmul.f32 %v2861, %v2889
  %v2894 = vmul.f32 %v2862, %v2890
  %v2895 = vmul.f32 %v2863, %v2891
  %v2897 = vlaneseq
  %v2898 = vshrl.u32 %v2897, 7
  %v2899 = vsub.s32 0, %v2898
  %v2900 = vrot.slane %v2842, %v2899
  %v2902 = vmul.f32 %v2892, %v2900
  %v2903 = vmul.f32 %v2893, %v2900
  %v2904 = vmul.f32 %v2894, %v2900
  %v2905 = vmul.f32 %v2895, %v2900
  %v2907 = vlaneseq
  %v2908 = vshrl.u32 %v2907, 7
  %v2909 = vsub.s32 0, %v2908
  %v2910 = vrot.slane %v2843, %v2909
  %v2912 = vadd.f32 %v2902, %v2910
  %v2913 = vadd.f32 %v2903, %v2910
  %v2914 = vadd.f32 %v2904, %v2910
  %v2915 = vadd.f32 %v2905, %v2910
  %v2916 = vld [vmem:[%s25] sm:$0xff]
  %v2917 = vld [vmem:[%s25 + $0x8] sm:$0xff]
  %v2918 = vld [vmem:[%s25 + $0x10] sm:$0xff]
  %v2919 = vld [vmem:[%s25 + $0x18] sm:$0xff]
  %v2920 = vld [vmem:[%s27] sm:$0x1]
  %v2922 = vlaneseq
  %v2923 = vshrl.u32 %v2922, 7
  %v2924 = vsub.s32 0, %v2923
  %v2925 = vrot.slane %v2920, %v2924
  %v2928 = vsel %vm181, %v2912, 0
  %v2931 = vsel %vm181, %v2913, 0
  %v2934 = vsel %vm181, %v2914, 0
  %v2937 = vsel %vm181, %v2915, 0
  %2939 = vmatprep.subr.mxu0 0.0
  %2940 = vmatpush1.msra.mxu0 0.0
  %2941 = vmatprep.subr.mxu0 0.0
  %2942 = vmatpush1.msra.mxu0 0.0
  %2943 = vmatprep.subr.mxu0 0.0
  %2944 = vmatpush1.msra.mxu0 0.0
  %2945 = vmatprep.subr.mxu0 0.0
  %2946 = vmatpush1.msra.mxu0 0.0
  %2947 = vmatprep.subr.mxu0 0.0
  %2948 = vmatpush1.msra.mxu0 0.0
  %2949 = vmatprep.subr.mxu0 0.0
  %2950 = vmatpush1.msra.mxu0 0.0
  %2951 = vmatprep.subr.mxu0 0.0
  %2952 = vmatpush1.msra.mxu0 0.0
  %2953 = vmatprep.subr.mxu0 0.0
  %2954 = vmatpush1.msra.mxu0 0.0
  %2955 = vmatprep.subr.mxu0 0.0
  %2956 = vmatpush1.msra.mxu0 0.0
  %2957 = vmatprep.subr.mxu0 0.0
  %2958 = vmatpush1.msra.mxu0 0.0
  %2959 = vmatprep.subr.mxu0 0.0
  %2960 = vmatpush1.msra.mxu0 0.0
  %2961 = vmatprep.subr.mxu0 0.0
  %2962 = vmatpush1.msra.mxu0 0.0
  %2963 = vmatprep.subr.mxu0 0.0
  %2964 = vmatpush1.msra.mxu0 %v2919
  %2965 = vmatprep.subr.mxu0 0.0
  %2966 = vmatpush1.msra.mxu0 %v2918
  %2967 = vmatprep.subr.mxu0 0.0
  %2968 = vmatpush1.msra.mxu0 %v2917
  %2969 = vmatprep.subr.mxu0 0.0
  %2970 = vmatpush1.msra.mxu0 %v2916
  %2971 = vmatprep.subr.mxu0 0.0
  %2972 = vmatpush2.msra.mxu0 0.0
  %2973 = vmatprep.subr.mxu0 0.0
  %2974 = vmatpush2.msra.mxu0 0.0
  %2975 = vmatprep.subr.mxu0 0.0
  %2976 = vmatpush2.msra.mxu0 0.0
  %2977 = vmatprep.subr.mxu0 0.0
  %2978 = vmatpush2.msra.mxu0 0.0
  %2979 = vmatprep.subr.mxu0 0.0
  %2980 = vmatpush2.msra.mxu0 0.0
  %2981 = vmatprep.subr.mxu0 0.0
  %2982 = vmatpush2.msra.mxu0 0.0
  %2983 = vmatprep.subr.mxu0 0.0
  %2984 = vmatpush2.msra.mxu0 0.0
  %2985 = vmatprep.subr.mxu0 0.0
  %2986 = vmatpush2.msra.mxu0 0.0
  %2987 = vmatprep.subr.mxu0 0.0
  %2988 = vmatpush2.msra.mxu0 0.0
  %2989 = vmatprep.subr.mxu0 0.0
  %2990 = vmatpush2.msra.mxu0 0.0
  %2991 = vmatprep.subr.mxu0 0.0
  %2992 = vmatpush2.msra.mxu0 0.0
  %2993 = vmatprep.subr.mxu0 0.0
  %2994 = vmatpush2.msra.mxu0 0.0
  %2995 = vmatprep.subr.mxu0 0.0
  %2996 = vmatpush2.msra.mxu0 0.0
  %2997 = vmatprep.subr.mxu0 0.0
  %2998 = vmatpush2.msra.mxu0 0.0
  %2999 = vmatprep.subr.mxu0 0.0
  %3000 = vmatpush2.msra.mxu0 0.0
  %3001 = vmatprep.subr.mxu0 0.0
  %3002 = vmatpush2.msra.mxu0 0.0
  %3003 = vmatprep.mubr.f32.mxu0 0.0
  %3004 = vmatmul.mubr.f32.gmra.mxu0 %v2928
  %v3005 = vpop.f32.mrf.mxu0
  %v3006 = vadd.f32 %v2925, %v3005
  %v3007 = vpop.f32.mrf.mxu0
  %3008 = vmatprep.mubr.f32.mxu0 0.0
  %3009 = vmatmul.mubr.f32.gmra.mxu0 %v2931
  %v3010 = vpop.f32.mrf.mxu0
  %v3011 = vadd.f32 %v2925, %v3010
  %v3012 = vpop.f32.mrf.mxu0
  %3013 = vmatprep.mubr.f32.mxu0 0.0
  %3014 = vmatmul.mubr.f32.gmra.mxu0 %v2934
  %v3015 = vpop.f32.mrf.mxu0
  %v3016 = vadd.f32 %v2925, %v3015
  %v3017 = vpop.f32.mrf.mxu0
  %3018 = vmatprep.mubr.f32.mxu0 0.0
  %3019 = vmatmul.mubr.f32.gmra.mxu0 %v2937
  %v3020 = vpop.f32.mrf.mxu0
  %v3021 = vadd.f32 %v2925, %v3020
  %v3022 = vpop.f32.mrf.mxu0
  %3023 = vdwg.mxu0
  %v3024 = vmul.f32 %v3006, 0.5
  %v3025 = vmul.f32 %v3011, 0.5
  %v3026 = vmul.f32 %v3016, 0.5
  %v3027 = vmul.f32 %v3021, 0.5
  %v3028 = vmul.f32 %v3006, 0.70710677
  %v3029 = vmul.f32 %v3011, 0.70710677
  %v3030 = vmul.f32 %v3016, 0.70710677
  %v3031 = vmul.f32 %v3021, 0.70710677
  %v3032 = vand.u32 2147483647, %v3028
  %v3033 = vand.u32 2147483647, %v3029
  %v3034 = vand.u32 2147483647, %v3030
  %v3035 = vand.u32 2147483647, %v3031
  %v3036 = vmul.f32 %v3032, 0.3275911
  %v3037 = vmul.f32 %v3033, 0.3275911
  %v3038 = vmul.f32 %v3034, 0.3275911
  %v3039 = vmul.f32 %v3035, 0.3275911
  %v3040 = vadd.f32 %v3036, 1.0
  %v3041 = vadd.f32 %v3037, 1.0
  %v3042 = vadd.f32 %v3038, 1.0
  %v3043 = vadd.f32 %v3039, 1.0
  %v3044 = vrcp.pop %v3040
  %v3045 = vmul.f32 1.0, %v3044
  %v3046 = vrcp.pop %v3041
  %v3047 = vmul.f32 1.0, %v3046
  %v3048 = vrcp.pop %v3042
  %v3049 = vmul.f32 1.0, %v3048
  %v3050 = vrcp.pop %v3043
  %v3051 = vmul.f32 1.0, %v3050
  %v3052 = vmul.f32 %v3045, 1.0614054
  %v3053 = vmul.f32 %v3047, 1.0614054
  %v3054 = vmul.f32 %v3049, 1.0614054
  %v3055 = vmul.f32 %v3051, 1.0614054
  %v3056 = vsub.f32 %v3052, 1.4531521
  %v3057 = vsub.f32 %v3053, 1.4531521
  %v3058 = vsub.f32 %v3054, 1.4531521
  %v3059 = vsub.f32 %v3055, 1.4531521
  %v3060 = vmul.f32 %v3056, %v3045
  %v3061 = vmul.f32 %v3057, %v3047
  %v3062 = vmul.f32 %v3058, %v3049
  %v3063 = vmul.f32 %v3059, %v3051
  %v3064 = vadd.f32 %v3060, 1.4214138
  %v3065 = vadd.f32 %v3061, 1.4214138
  %v3066 = vadd.f32 %v3062, 1.4214138
  %v3067 = vadd.f32 %v3063, 1.4214138
  %v3068 = vmul.f32 %v3064, %v3045
  %v3069 = vmul.f32 %v3065, %v3047
  %v3070 = vmul.f32 %v3066, %v3049
  %v3071 = vmul.f32 %v3067, %v3051
  %v3072 = vsub.f32 %v3068, 0.28449672
  %v3073 = vsub.f32 %v3069, 0.28449672
  %v3074 = vsub.f32 %v3070, 0.28449672
  %v3075 = vsub.f32 %v3071, 0.28449672
  %v3076 = vmul.f32 %v3072, %v3045
  %v3077 = vmul.f32 %v3073, %v3047
  %v3078 = vmul.f32 %v3074, %v3049
  %v3079 = vmul.f32 %v3075, %v3051
  %v3080 = vadd.f32 %v3076, 0.2548296
  %v3081 = vadd.f32 %v3077, 0.2548296
  %v3082 = vadd.f32 %v3078, 0.2548296
  %v3083 = vadd.f32 %v3079, 0.2548296
  %v3084 = vmul.f32 %v3080, %v3045
  %v3085 = vmul.f32 %v3081, %v3047
  %v3086 = vmul.f32 %v3082, %v3049
  %v3087 = vmul.f32 %v3083, %v3051
  %v3088 = vsub.f32 0.0, %v3028
  %v3089 = vsub.f32 0.0, %v3029
  %v3090 = vsub.f32 0.0, %v3030
  %v3091 = vsub.f32 0.0, %v3031
  %v3092 = vmul.f32 %v3088, %v3028
  %v3093 = vmul.f32 %v3089, %v3029
  %v3094 = vmul.f32 %v3090, %v3030
  %v3095 = vmul.f32 %v3091, %v3031
  %v3096 = vmul.f32 %v3092, 1.442695
  %v3097 = vpow.pop %v3096
  %v3098 = vmul.f32 %v3093, 1.442695
  %v3099 = vpow.pop %v3098
  %v3100 = vmul.f32 %v3094, 1.442695
  %v3101 = vpow.pop %v3100
  %v3102 = vmul.f32 %v3095, 1.442695
  %v3103 = vpow.pop %v3102
  %v3104 = vmul.f32 %v3084, %v3097
  %v3105 = vmul.f32 %v3085, %v3099
  %v3106 = vmul.f32 %v3086, %v3101
  %v3107 = vmul.f32 %v3087, %v3103
  %v3108 = vsub.f32 1.0, %v3104
  %v3109 = vsub.f32 1.0, %v3105
  %v3110 = vsub.f32 1.0, %v3106
  %v3111 = vsub.f32 1.0, %v3107
  %vm3112 = vcmp.lt.f32.partialorder %v3028, 0.0
  %vm3113 = vcmp.lt.f32.partialorder %v3029, 0.0
  %vm3114 = vcmp.lt.f32.partialorder %v3030, 0.0
  %vm3115 = vcmp.lt.f32.partialorder %v3031, 0.0
  %v3116 = vsub.f32 0.0, %v3108
  %v3117 = vsub.f32 0.0, %v3109
  %v3118 = vsub.f32 0.0, %v3110
  %v3119 = vsub.f32 0.0, %v3111
  %v3120 = vsel %vm3112, %v3116, %v3108
  %v3121 = vsel %vm3113, %v3117, %v3109
  %v3122 = vsel %vm3114, %v3118, %v3110
  %v3123 = vsel %vm3115, %v3119, %v3111
  %v3124 = vadd.f32 %v3120, 1.0
  %v3125 = vadd.f32 %v3121, 1.0
  %v3126 = vadd.f32 %v3122, 1.0
  %v3127 = vadd.f32 %v3123, 1.0
  %v3128 = vmul.f32 %v3024, %v3124
  %v3129 = vmul.f32 %v3025, %v3125
  %v3130 = vmul.f32 %v3026, %v3126
  %v3131 = vmul.f32 %v3027, %v3127
  %v3132 = vld [vmem:[%s29] sm:$0xff]
  %v3133 = vld [vmem:[%s29 + $0x8] sm:$0xff]
  %v3134 = vld [vmem:[%s29 + $0x10] sm:$0xff]
  %v3135 = vld [vmem:[%s29 + $0x18] sm:$0xff]
  %v3136 = vld [vmem:[%s29 + $0x20] sm:$0xff]
  %v3137 = vld [vmem:[%s29 + $0x28] sm:$0xff]
  %v3138 = vld [vmem:[%s29 + $0x30] sm:$0xff]
  %v3139 = vld [vmem:[%s29 + $0x38] sm:$0xff]
  %v3140 = vld [vmem:[%s29 + $0x40] sm:$0xff]
  %v3141 = vld [vmem:[%s29 + $0x48] sm:$0xff]
  %v3142 = vld [vmem:[%s29 + $0x50] sm:$0xff]
  %v3143 = vld [vmem:[%s29 + $0x58] sm:$0xff]
  %v3144 = vld [vmem:[%s29 + $0x60] sm:$0xff]
  %v3145 = vld [vmem:[%s29 + $0x68] sm:$0xff]
  %v3146 = vld [vmem:[%s29 + $0x70] sm:$0xff]
  %v3147 = vld [vmem:[%s29 + $0x78] sm:$0xff]
  %v3148 = vld [vmem:[%s31] sm:$0x1]
  %v3150 = vlaneseq
  %v3151 = vshrl.u32 %v3150, 7
  %v3152 = vsub.s32 0, %v3151
  %v3153 = vrot.slane %v3148, %v3152
  %3155 = vmatprep.subr.mxu0 0.0
  %3156 = vmatpush1.msra.mxu0 %v3147
  %3157 = vmatprep.subr.mxu0 0.0
  %3158 = vmatpush1.msra.mxu0 %v3146
  %3159 = vmatprep.subr.mxu0 0.0
  %3160 = vmatpush1.msra.mxu0 %v3145
  %3161 = vmatprep.subr.mxu0 0.0
  %3162 = vmatpush1.msra.mxu0 %v3144
  %3163 = vmatprep.subr.mxu0 0.0
  %3164 = vmatpush1.msra.mxu0 %v3143
  %3165 = vmatprep.subr.mxu0 0.0
  %3166 = vmatpush1.msra.mxu0 %v3142
  %3167 = vmatprep.subr.mxu0 0.0
  %3168 = vmatpush1.msra.mxu0 %v3141
  %3169 = vmatprep.subr.mxu0 0.0
  %3170 = vmatpush1.msra.mxu0 %v3140
  %3171 = vmatprep.subr.mxu0 0.0
  %3172 = vmatpush1.msra.mxu0 %v3139
  %3173 = vmatprep.subr.mxu0 0.0
  %3174 = vmatpush1.msra.mxu0 %v3138
  %3175 = vmatprep.subr.mxu0 0.0
  %3176 = vmatpush1.msra.mxu0 %v3137
  %3177 = vmatprep.subr.mxu0 0.0
  %3178 = vmatpush1.msra.mxu0 %v3136
  %3179 = vmatprep.subr.mxu0 0.0
  %3180 = vmatpush1.msra.mxu0 %v3135
  %3181 = vmatprep.subr.mxu0 0.0
  %3182 = vmatpush1.msra.mxu0 %v3134
  %3183 = vmatprep.subr.mxu0 0.0
  %3184 = vmatpush1.msra.mxu0 %v3133
  %3185 = vmatprep.subr.mxu0 0.0
  %3186 = vmatpush1.msra.mxu0 %v3132
  %3187 = vmatprep.subr.mxu0 0.0
  %3188 = vmatpush2.msra.mxu0 0.0
  %3189 = vmatprep.subr.mxu0 0.0
  %3190 = vmatpush2.msra.mxu0 0.0
  %3191 = vmatprep.subr.mxu0 0.0
  %3192 = vmatpush2.msra.mxu0 0.0
  %3193 = vmatprep.subr.mxu0 0.0
  %3194 = vmatpush2.msra.mxu0 0.0
  %3195 = vmatprep.subr.mxu0 0.0
  %3196 = vmatpush2.msra.mxu0 0.0
  %3197 = vmatprep.subr.mxu0 0.0
  %3198 = vmatpush2.msra.mxu0 0.0
  %3199 = vmatprep.subr.mxu0 0.0
  %3200 = vmatpush2.msra.mxu0 0.0
  %3201 = vmatprep.subr.mxu0 0.0
  %3202 = vmatpush2.msra.mxu0 0.0
  %3203 = vmatprep.subr.mxu0 0.0
  %3204 = vmatpush2.msra.mxu0 0.0
  %3205 = vmatprep.subr.mxu0 0.0
  %3206 = vmatpush2.msra.mxu0 0.0
  %3207 = vmatprep.subr.mxu0 0.0
  %3208 = vmatpush2.msra.mxu0 0.0
  %3209 = vmatprep.subr.mxu0 0.0
  %3210 = vmatpush2.msra.mxu0 0.0
  %3211 = vmatprep.subr.mxu0 0.0
  %3212 = vmatpush2.msra.mxu0 0.0
  %3213 = vmatprep.subr.mxu0 0.0
  %3214 = vmatpush2.msra.mxu0 0.0
  %3215 = vmatprep.subr.mxu0 0.0
  %3216 = vmatpush2.msra.mxu0 0.0
  %3217 = vmatprep.subr.mxu0 0.0
  %3218 = vmatpush2.msra.mxu0 0.0
  %3219 = vmatprep.mubr.f32.mxu0 0.0
  %3220 = vmatmul.mubr.f32.gmra.mxu0 %v3128
  %v3221 = vpop.f32.mrf.mxu0
  %v3222 = vadd.f32 %v3153, %v3221
  %v3223 = vpop.f32.mrf.mxu0
  %3224 = vmatprep.mubr.f32.mxu0 0.0
  %3225 = vmatmul.mubr.f32.gmra.mxu0 %v3129
  %v3226 = vpop.f32.mrf.mxu0
  %v3227 = vadd.f32 %v3153, %v3226
  %v3228 = vpop.f32.mrf.mxu0
  %3229 = vmatprep.mubr.f32.mxu0 0.0
  %3230 = vmatmul.mubr.f32.gmra.mxu0 %v3130
  %v3231 = vpop.f32.mrf.mxu0
  %v3232 = vadd.f32 %v3153, %v3231
  %v3233 = vpop.f32.mrf.mxu0
  %3234 = vmatprep.mubr.f32.mxu0 0.0
  %3235 = vmatmul.mubr.f32.gmra.mxu0 %v3131
  %v3236 = vpop.f32.mrf.mxu0
  %v3237 = vadd.f32 %v3153, %v3236
  %v3238 = vpop.f32.mrf.mxu0
  %3239 = vdwg.mxu0
  %v3240 = vadd.f32 %v2838, %v3222
  %v3241 = vadd.f32 %v2839, %v3227
  %v3242 = vadd.f32 %v2840, %v3232
  %v3243 = vadd.f32 %v2841, %v3237
  %v3244 = vld [vmem:[%s33] sm:$0x1]
  %v3245 = vld [vmem:[%s35] sm:$0x1]
  %v3246 = vsel %vm181, %v3240, 0.0
  %3247 = vadd.xlane.f32.xlu0 %v3246
  %v3248 = vpop.xlane.xlu0 %3247
  %v3249 = vsel %vm181, %v3241, 0.0
  %3250 = vadd.xlane.f32.xlu0 %v3249
  %v3251 = vpop.xlane.xlu0 %3250
  %v3252 = vsel %vm181, %v3242, 0.0
  %3253 = vadd.xlane.f32.xlu0 %v3252
  %v3254 = vpop.xlane.xlu0 %3253
  %v3255 = vsel %vm181, %v3243, 0.0
  %3256 = vadd.xlane.f32.xlu0 %v3255
  %v3257 = vpop.xlane.xlu0 %3256
  %v3258 = vmul.f32 %v3248, %v384
  %v3259 = vmul.f32 %v3251, %v384
  %v3260 = vmul.f32 %v3254, %v384
  %v3261 = vmul.f32 %v3257, %v384
  %v3262 = vsub.f32 %v3240, %v3258
  %v3263 = vsub.f32 %v3241, %v3259
  %v3264 = vsub.f32 %v3242, %v3260
  %v3265 = vsub.f32 %v3243, %v3261
  %v3266 = vmul.f32 %v3262, %v3262
  %v3267 = vmul.f32 %v3263, %v3263
  %v3268 = vmul.f32 %v3264, %v3264
  %v3269 = vmul.f32 %v3265, %v3265
  %v3270 = vsel %vm181, %v3266, 0.0
  %3271 = vadd.xlane.f32.xlu0 %v3270
  %v3272 = vpop.xlane.xlu0 %3271
  %v3273 = vsel %vm181, %v3267, 0.0
  %3274 = vadd.xlane.f32.xlu0 %v3273
  %v3275 = vpop.xlane.xlu0 %3274
  %v3276 = vsel %vm181, %v3268, 0.0
  %3277 = vadd.xlane.f32.xlu0 %v3276
  %v3278 = vpop.xlane.xlu0 %3277
  %v3279 = vsel %vm181, %v3269, 0.0
  %3280 = vadd.xlane.f32.xlu0 %v3279
  %v3281 = vpop.xlane.xlu0 %3280
  %v3282 = vmul.f32 %v3272, %v384
  %v3283 = vmul.f32 %v3275, %v384
  %v3284 = vmul.f32 %v3278, %v384
  %v3285 = vmul.f32 %v3281, %v384
  %v3286 = vadd.f32 %v3282, 1e-05
  %v3287 = vadd.f32 %v3283, 1e-05
  %v3288 = vadd.f32 %v3284, 1e-05
  %v3289 = vadd.f32 %v3285, 1e-05
  %v3290 = vrsqrt.pop %v3286
  %v3291 = vrsqrt.pop %v3287
  %v3292 = vrsqrt.pop %v3288
  %v3293 = vrsqrt.pop %v3289
  %v3294 = vmul.f32 %v3262, %v3290
  %v3295 = vmul.f32 %v3263, %v3291
  %v3296 = vmul.f32 %v3264, %v3292
  %v3297 = vmul.f32 %v3265, %v3293
  %v3299 = vlaneseq
  %v3300 = vshrl.u32 %v3299, 7
  %v3301 = vsub.s32 0, %v3300
  %v3302 = vrot.slane %v3244, %v3301
  %v3304 = vmul.f32 %v3294, %v3302
  %v3305 = vmul.f32 %v3295, %v3302
  %v3306 = vmul.f32 %v3296, %v3302
  %v3307 = vmul.f32 %v3297, %v3302
  %v3309 = vlaneseq
  %v3310 = vshrl.u32 %v3309, 7
  %v3311 = vsub.s32 0, %v3310
  %v3312 = vrot.slane %v3245, %v3311
  %v3314 = vadd.f32 %v3304, %v3312
  %v3315 = vadd.f32 %v3305, %v3312
  %v3316 = vadd.f32 %v3306, %v3312
  %v3317 = vadd.f32 %v3307, %v3312
  %v3318 = vld [vmem:[%s37] sm:$0xff]
  %v3319 = vld [vmem:[%s37 + $0x8] sm:$0xff]
  %v3320 = vld [vmem:[%s37 + $0x10] sm:$0xff]
  %v3321 = vld [vmem:[%s37 + $0x18] sm:$0xff]
  %v3322 = vld [vmem:[%s39] sm:$0x1]
  %v3324 = vlaneseq
  %v3325 = vshrl.u32 %v3324, 7
  %v3326 = vsub.s32 0, %v3325
  %v3327 = vrot.slane %v3322, %v3326
  %v3330 = vsel %vm181, %v3314, 0
  %v3333 = vsel %vm181, %v3315, 0
  %v3336 = vsel %vm181, %v3316, 0
  %v3339 = vsel %vm181, %v3317, 0
  %3341 = vmatprep.subr.mxu0 0.0
  %3342 = vmatpush1.msra.mxu0 0.0
  %3343 = vmatprep.subr.mxu0 0.0
  %3344 = vmatpush1.msra.mxu0 0.0
  %3345 = vmatprep.subr.mxu0 0.0
  %3346 = vmatpush1.msra.mxu0 0.0
  %3347 = vmatprep.subr.mxu0 0.0
  %3348 = vmatpush1.msra.mxu0 0.0
  %3349 = vmatprep.subr.mxu0 0.0
  %3350 = vmatpush1.msra.mxu0 0.0
  %3351 = vmatprep.subr.mxu0 0.0
  %3352 = vmatpush1.msra.mxu0 0.0
  %3353 = vmatprep.subr.mxu0 0.0
  %3354 = vmatpush1.msra.mxu0 0.0
  %3355 = vmatprep.subr.mxu0 0.0
  %3356 = vmatpush1.msra.mxu0 0.0
  %3357 = vmatprep.subr.mxu0 0.0
  %3358 = vmatpush1.msra.mxu0 0.0
  %3359 = vmatprep.subr.mxu0 0.0
  %3360 = vmatpush1.msra.mxu0 0.0
  %3361 = vmatprep.subr.mxu0 0.0
  %3362 = vmatpush1.msra.mxu0 0.0
  %3363 = vmatprep.subr.mxu0 0.0
  %3364 = vmatpush1.msra.mxu0 0.0
  %3365 = vmatprep.subr.mxu0 0.0
  %3366 = vmatpush1.msra.mxu0 %v3321
  %3367 = vmatprep.subr.mxu0 0.0
  %3368 = vmatpush1.msra.mxu0 %v3320
  %3369 = vmatprep.subr.mxu0 0.0
  %3370 = vmatpush1.msra.mxu0 %v3319
  %3371 = vmatprep.subr.mxu0 0.0
  %3372 = vmatpush1.msra.mxu0 %v3318
  %3373 = vmatprep.subr.mxu0 0.0
  %3374 = vmatpush2.msra.mxu0 0.0
  %3375 = vmatprep.subr.mxu0 0.0
  %3376 = vmatpush2.msra.mxu0 0.0
  %3377 = vmatprep.subr.mxu0 0.0
  %3378 = vmatpush2.msra.mxu0 0.0
  %3379 = vmatprep.subr.mxu0 0.0
  %3380 = vmatpush2.msra.mxu0 0.0
  %3381 = vmatprep.subr.mxu0 0.0
  %3382 = vmatpush2.msra.mxu0 0.0
  %3383 = vmatprep.subr.mxu0 0.0
  %3384 = vmatpush2.msra.mxu0 0.0
  %3385 = vmatprep.subr.mxu0 0.0
  %3386 = vmatpush2.msra.mxu0 0.0
  %3387 = vmatprep.subr.mxu0 0.0
  %3388 = vmatpush2.msra.mxu0 0.0
  %3389 = vmatprep.subr.mxu0 0.0
  %3390 = vmatpush2.msra.mxu0 0.0
  %3391 = vmatprep.subr.mxu0 0.0
  %3392 = vmatpush2.msra.mxu0 0.0
  %3393 = vmatprep.subr.mxu0 0.0
  %3394 = vmatpush2.msra.mxu0 0.0
  %3395 = vmatprep.subr.mxu0 0.0
  %3396 = vmatpush2.msra.mxu0 0.0
  %3397 = vmatprep.subr.mxu0 0.0
  %3398 = vmatpush2.msra.mxu0 0.0
  %3399 = vmatprep.subr.mxu0 0.0
  %3400 = vmatpush2.msra.mxu0 0.0
  %3401 = vmatprep.subr.mxu0 0.0
  %3402 = vmatpush2.msra.mxu0 0.0
  %3403 = vmatprep.subr.mxu0 0.0
  %3404 = vmatpush2.msra.mxu0 0.0
  %3405 = vmatprep.mubr.f32.mxu0 0.0
  %3406 = vmatmul.mubr.f32.gmra.mxu0 %v3330
  %v3407 = vpop.f32.mrf.mxu0
  %v3408 = vadd.f32 %v3327, %v3407
  %v3409 = vpop.f32.mrf.mxu0
  %3410 = vmatprep.mubr.f32.mxu0 0.0
  %3411 = vmatmul.mubr.f32.gmra.mxu0 %v3333
  %v3412 = vpop.f32.mrf.mxu0
  %v3413 = vadd.f32 %v3327, %v3412
  %v3414 = vpop.f32.mrf.mxu0
  %3415 = vmatprep.mubr.f32.mxu0 0.0
  %3416 = vmatmul.mubr.f32.gmra.mxu0 %v3336
  %v3417 = vpop.f32.mrf.mxu0
  %v3418 = vadd.f32 %v3327, %v3417
  %v3419 = vpop.f32.mrf.mxu0
  %3420 = vmatprep.mubr.f32.mxu0 0.0
  %3421 = vmatmul.mubr.f32.gmra.mxu0 %v3339
  %v3422 = vpop.f32.mrf.mxu0
  %v3423 = vadd.f32 %v3327, %v3422
  %v3424 = vpop.f32.mrf.mxu0
  %3425 = vdwg.mxu0
  %v3426 = vld [vmem:[%s41] sm:$0xff]
  %v3427 = vld [vmem:[%s41 + $0x8] sm:$0xff]
  %v3428 = vld [vmem:[%s41 + $0x10] sm:$0xff]
  %v3429 = vld [vmem:[%s41 + $0x18] sm:$0xff]
  %3432 = vrot.lane.b32.xlu0 %v3408, 96
  %v3433 = vpop.permute.xlu0 %3432
  %3434 = vrot.lane.b32.xlu0 %v3413, 96
  %v3435 = vpop.permute.xlu0 %3434
  %v3436 = vsel %vm563, %v3408, 0
  %v3438 = vsel %vm563, %v3413, 0
  %v3440 = vsel %vm563, %v3433, 0
  %v3442 = vsel %vm563, %v3435, 0
  %3444 = vmatprep.subr.mxu0 0.0
  %3445 = vmatpush1.xpose.msra.mxu0 0.0
  %3446 = vmatprep.subr.mxu0 0.0
  %3447 = vmatpush1.xpose.msra.mxu0 0.0
  %3448 = vmatprep.subr.mxu0 0.0
  %3449 = vmatpush1.xpose.msra.mxu0 0.0
  %3450 = vmatprep.subr.mxu0 0.0
  %3451 = vmatpush1.xpose.msra.mxu0 0.0
  %3452 = vmatprep.subr.mxu0 0.0
  %3453 = vmatpush1.xpose.msra.mxu0 0.0
  %3454 = vmatprep.subr.mxu0 0.0
  %3455 = vmatpush1.xpose.msra.mxu0 0.0
  %3456 = vmatprep.subr.mxu0 0.0
  %3457 = vmatpush1.xpose.msra.mxu0 0.0
  %3458 = vmatprep.subr.mxu0 0.0
  %3459 = vmatpush1.xpose.msra.mxu0 0.0
  %3460 = vmatprep.subr.mxu0 0.0
  %3461 = vmatpush1.xpose.msra.mxu0 0.0
  %3462 = vmatprep.subr.mxu0 0.0
  %3463 = vmatpush1.xpose.msra.mxu0 0.0
  %3464 = vmatprep.subr.mxu0 0.0
  %3465 = vmatpush1.xpose.msra.mxu0 0.0
  %3466 = vmatprep.subr.mxu0 0.0
  %3467 = vmatpush1.xpose.msra.mxu0 0.0
  %3468 = vmatprep.subr.mxu0 0.0
  %3469 = vmatpush1.xpose.msra.mxu0 0.0
  %3470 = vmatprep.subr.mxu0 0.0
  %3471 = vmatpush1.xpose.msra.mxu0 0.0
  %3472 = vmatprep.subr.mxu0 0.0
  %3473 = vmatpush1.xpose.msra.mxu0 %v3442
  %3474 = vmatprep.subr.mxu0 0.0
  %3475 = vmatpush1.xpose.msra.mxu0 %v3440
  %3476 = vmatprep.subr.mxu0 0.0
  %3477 = vmatpush2.xpose.msra.mxu0 0.0
  %3478 = vmatprep.subr.mxu0 0.0
  %3479 = vmatpush2.xpose.msra.mxu0 0.0
  %3480 = vmatprep.subr.mxu0 0.0
  %3481 = vmatpush2.xpose.msra.mxu0 0.0
  %3482 = vmatprep.subr.mxu0 0.0
  %3483 = vmatpush2.xpose.msra.mxu0 0.0
  %3484 = vmatprep.subr.mxu0 0.0
  %3485 = vmatpush2.xpose.msra.mxu0 0.0
  %3486 = vmatprep.subr.mxu0 0.0
  %3487 = vmatpush2.xpose.msra.mxu0 0.0
  %3488 = vmatprep.subr.mxu0 0.0
  %3489 = vmatpush2.xpose.msra.mxu0 0.0
  %3490 = vmatprep.subr.mxu0 0.0
  %3491 = vmatpush2.xpose.msra.mxu0 0.0
  %3492 = vmatprep.subr.mxu0 0.0
  %3493 = vmatpush2.xpose.msra.mxu0 0.0
  %3494 = vmatprep.subr.mxu0 0.0
  %3495 = vmatpush2.xpose.msra.mxu0 0.0
  %3496 = vmatprep.subr.mxu0 0.0
  %3497 = vmatpush2.xpose.msra.mxu0 0.0
  %3498 = vmatprep.subr.mxu0 0.0
  %3499 = vmatpush2.xpose.msra.mxu0 0.0
  %3500 = vmatprep.subr.mxu0 0.0
  %3501 = vmatpush2.xpose.msra.mxu0 0.0
  %3502 = vmatprep.subr.mxu0 0.0
  %3503 = vmatpush2.xpose.msra.mxu0 0.0
  %3504 = vmatprep.subr.mxu0 0.0
  %3505 = vmatpush2.xpose.msra.mxu0 0.0
  %3506 = vmatprep.subr.mxu0 0.0
  %3507 = vmatpush2.xpose.msra.mxu0 0.0
  %3508 = vmatprep.mubr.f32.mxu0 0.0
  %3509 = vmatmul.mubr.f32.gmra.mxu0 %v3436
  %v3510 = vpop.f32.mrf.mxu0
  %v3511 = vadd.f32 0.0, %v3510
  %v3512 = vpop.f32.mrf.mxu0
  %3513 = vmatprep.mubr.f32.mxu0 0.0
  %3514 = vmatmul.mubr.f32.gmra.mxu0 %v3438
  %v3515 = vpop.f32.mrf.mxu0
  %v3516 = vadd.f32 0.0, %v3515
  %v3517 = vpop.f32.mrf.mxu0
  %3518 = vdwg.mxu0
  %v3519 = vmul.f32 %v3511, 0.35355338
  %v3520 = vmul.f32 %v3516, 0.35355338
  %v3521 = vsel %vm649, %v3519, -inf
  %3522 = vmax.xlane.f32.xlu0 %v3521
  %v3523 = vpop.xlane.xlu0 %3522
  %v3524 = vsel %vm649, %v3520, -inf
  %3525 = vmax.xlane.f32.xlu0 %v3524
  %v3526 = vpop.xlane.xlu0 %3525
  %v3527 = vsub.f32 %v3519, %v3523
  %v3528 = vsub.f32 %v3520, %v3526
  %v3529 = vmul.f32 %v3527, 1.442695
  %v3530 = vpow.pop %v3529
  %v3531 = vmul.f32 %v3528, 1.442695
  %v3532 = vpow.pop %v3531
  %v3533 = vsel %vm649, %v3530, 0.0
  %3534 = vadd.xlane.f32.xlu0 %v3533
  %v3535 = vpop.xlane.xlu0 %3534
  %v3536 = vsel %vm649, %v3532, 0.0
  %3537 = vadd.xlane.f32.xlu0 %v3536
  %v3538 = vpop.xlane.xlu0 %3537
  %v3539 = vrcp.pop %v3535
  %v3540 = vmul.f32 %v3530, %v3539
  %v3541 = vrcp.pop %v3538
  %v3542 = vmul.f32 %v3532, %v3541
  %3543 = vrot.lane.b32.xlu0 %v3408, 64
  %v3544 = vpop.permute.xlu0 %3543
  %3545 = vrot.lane.b32.xlu0 %v3413, 64
  %v3546 = vpop.permute.xlu0 %3545
  %v3550 = vsel %vm649, %v3540, 0
  %v3553 = vsel %vm649, %v3542, 0
  %3555 = vmatprep.subr.mxu0 0.0
  %3556 = vmatpush1.msra.mxu0 0.0
  %3557 = vmatprep.subr.mxu0 0.0
  %3558 = vmatpush1.msra.mxu0 0.0
  %3559 = vmatprep.subr.mxu0 0.0
  %3560 = vmatpush1.msra.mxu0 0.0
  %3561 = vmatprep.subr.mxu0 0.0
  %3562 = vmatpush1.msra.mxu0 0.0
  %3563 = vmatprep.subr.mxu0 0.0
  %3564 = vmatpush1.msra.mxu0 0.0
  %3565 = vmatprep.subr.mxu0 0.0
  %3566 = vmatpush1.msra.mxu0 0.0
  %3567 = vmatprep.subr.mxu0 0.0
  %3568 = vmatpush1.msra.mxu0 0.0
  %3569 = vmatprep.subr.mxu0 0.0
  %3570 = vmatpush1.msra.mxu0 0.0
  %3571 = vmatprep.subr.mxu0 0.0
  %3572 = vmatpush1.msra.mxu0 0.0
  %3573 = vmatprep.subr.mxu0 0.0
  %3574 = vmatpush1.msra.mxu0 0.0
  %3575 = vmatprep.subr.mxu0 0.0
  %3576 = vmatpush1.msra.mxu0 0.0
  %3577 = vmatprep.subr.mxu0 0.0
  %3578 = vmatpush1.msra.mxu0 0.0
  %3579 = vmatprep.subr.mxu0 0.0
  %3580 = vmatpush1.msra.mxu0 0.0
  %3581 = vmatprep.subr.mxu0 0.0
  %3582 = vmatpush1.msra.mxu0 0.0
  %3583 = vmatprep.subr.mxu0 0.0
  %3584 = vmatpush1.msra.mxu0 %v3546
  %3585 = vmatprep.subr.mxu0 0.0
  %3586 = vmatpush1.msra.mxu0 %v3544
  %3587 = vmatprep.subr.mxu0 0.0
  %3588 = vmatpush2.msra.mxu0 0.0
  %3589 = vmatprep.subr.mxu0 0.0
  %3590 = vmatpush2.msra.mxu0 0.0
  %3591 = vmatprep.subr.mxu0 0.0
  %3592 = vmatpush2.msra.mxu0 0.0
  %3593 = vmatprep.subr.mxu0 0.0
  %3594 = vmatpush2.msra.mxu0 0.0
  %3595 = vmatprep.subr.mxu0 0.0
  %3596 = vmatpush2.msra.mxu0 0.0
  %3597 = vmatprep.subr.mxu0 0.0
  %3598 = vmatpush2.msra.mxu0 0.0
  %3599 = vmatprep.subr.mxu0 0.0
  %3600 = vmatpush2.msra.mxu0 0.0
  %3601 = vmatprep.subr.mxu0 0.0
  %3602 = vmatpush2.msra.mxu0 0.0
  %3603 = vmatprep.subr.mxu0 0.0
  %3604 = vmatpush2.msra.mxu0 0.0
  %3605 = vmatprep.subr.mxu0 0.0
  %3606 = vmatpush2.msra.mxu0 0.0
  %3607 = vmatprep.subr.mxu0 0.0
  %3608 = vmatpush2.msra.mxu0 0.0
  %3609 = vmatprep.subr.mxu0 0.0
  %3610 = vmatpush2.msra.mxu0 0.0
  %3611 = vmatprep.subr.mxu0 0.0
  %3612 = vmatpush2.msra.mxu0 0.0
  %3613 = vmatprep.subr.mxu0 0.0
  %3614 = vmatpush2.msra.mxu0 0.0
  %3615 = vmatprep.subr.mxu0 0.0
  %3616 = vmatpush2.msra.mxu0 0.0
  %3617 = vmatprep.subr.mxu0 0.0
  %3618 = vmatpush2.msra.mxu0 0.0
  %3619 = vmatprep.mubr.f32.mxu0 0.0
  %3620 = vmatmul.mubr.f32.gmra.mxu0 %v3550
  %v3621 = vpop.f32.mrf.mxu0
  %v3622 = vadd.f32 0.0, %v3621
  %v3623 = vpop.f32.mrf.mxu0
  %3624 = vmatprep.mubr.f32.mxu0 0.0
  %3625 = vmatmul.mubr.f32.gmra.mxu0 %v3553
  %v3626 = vpop.f32.mrf.mxu0
  %v3627 = vadd.f32 0.0, %v3626
  %v3628 = vpop.f32.mrf.mxu0
  %3629 = vdwg.mxu0
  %3630 = vrot.lane.b32.xlu0 %v3408, 120
  %v3631 = vpop.permute.xlu0 %3630
  %3632 = vrot.lane.b32.xlu0 %v3413, 120
  %v3633 = vpop.permute.xlu0 %3632
  %3634 = vrot.lane.b32.xlu0 %v3408, 88
  %v3635 = vpop.permute.xlu0 %3634
  %3636 = vrot.lane.b32.xlu0 %v3413, 88
  %v3637 = vpop.permute.xlu0 %3636
  %v3638 = vsel %vm563, %v3631, 0
  %v3640 = vsel %vm563, %v3633, 0
  %v3642 = vsel %vm563, %v3635, 0
  %v3644 = vsel %vm563, %v3637, 0
  %3646 = vmatprep.subr.mxu0 0.0
  %3647 = vmatpush1.xpose.msra.mxu0 0.0
  %3648 = vmatprep.subr.mxu0 0.0
  %3649 = vmatpush1.xpose.msra.mxu0 0.0
  %3650 = vmatprep.subr.mxu0 0.0
  %3651 = vmatpush1.xpose.msra.mxu0 0.0
  %3652 = vmatprep.subr.mxu0 0.0
  %3653 = vmatpush1.xpose.msra.mxu0 0.0
  %3654 = vmatprep.subr.mxu0 0.0
  %3655 = vmatpush1.xpose.msra.mxu0 0.0
  %3656 = vmatprep.subr.mxu0 0.0
  %3657 = vmatpush1.xpose.msra.mxu0 0.0
  %3658 = vmatprep.subr.mxu0 0.0
  %3659 = vmatpush1.xpose.msra.mxu0 0.0
  %3660 = vmatprep.subr.mxu0 0.0
  %3661 = vmatpush1.xpose.msra.mxu0 0.0
  %3662 = vmatprep.subr.mxu0 0.0
  %3663 = vmatpush1.xpose.msra.mxu0 0.0
  %3664 = vmatprep.subr.mxu0 0.0
  %3665 = vmatpush1.xpose.msra.mxu0 0.0
  %3666 = vmatprep.subr.mxu0 0.0
  %3667 = vmatpush1.xpose.msra.mxu0 0.0
  %3668 = vmatprep.subr.mxu0 0.0
  %3669 = vmatpush1.xpose.msra.mxu0 0.0
  %3670 = vmatprep.subr.mxu0 0.0
  %3671 = vmatpush1.xpose.msra.mxu0 0.0
  %3672 = vmatprep.subr.mxu0 0.0
  %3673 = vmatpush1.xpose.msra.mxu0 0.0
  %3674 = vmatprep.subr.mxu0 0.0
  %3675 = vmatpush1.xpose.msra.mxu0 %v3644
  %3676 = vmatprep.subr.mxu0 0.0
  %3677 = vmatpush1.xpose.msra.mxu0 %v3642
  %3678 = vmatprep.subr.mxu0 0.0
  %3679 = vmatpush2.xpose.msra.mxu0 0.0
  %3680 = vmatprep.subr.mxu0 0.0
  %3681 = vmatpush2.xpose.msra.mxu0 0.0
  %3682 = vmatprep.subr.mxu0 0.0
  %3683 = vmatpush2.xpose.msra.mxu0 0.0
  %3684 = vmatprep.subr.mxu0 0.0
  %3685 = vmatpush2.xpose.msra.mxu0 0.0
  %3686 = vmatprep.subr.mxu0 0.0
  %3687 = vmatpush2.xpose.msra.mxu0 0.0
  %3688 = vmatprep.subr.mxu0 0.0
  %3689 = vmatpush2.xpose.msra.mxu0 0.0
  %3690 = vmatprep.subr.mxu0 0.0
  %3691 = vmatpush2.xpose.msra.mxu0 0.0
  %3692 = vmatprep.subr.mxu0 0.0
  %3693 = vmatpush2.xpose.msra.mxu0 0.0
  %3694 = vmatprep.subr.mxu0 0.0
  %3695 = vmatpush2.xpose.msra.mxu0 0.0
  %3696 = vmatprep.subr.mxu0 0.0
  %3697 = vmatpush2.xpose.msra.mxu0 0.0
  %3698 = vmatprep.subr.mxu0 0.0
  %3699 = vmatpush2.xpose.msra.mxu0 0.0
  %3700 = vmatprep.subr.mxu0 0.0
  %3701 = vmatpush2.xpose.msra.mxu0 0.0
  %3702 = vmatprep.subr.mxu0 0.0
  %3703 = vmatpush2.xpose.msra.mxu0 0.0
  %3704 = vmatprep.subr.mxu0 0.0
  %3705 = vmatpush2.xpose.msra.mxu0 0.0
  %3706 = vmatprep.subr.mxu0 0.0
  %3707 = vmatpush2.xpose.msra.mxu0 0.0
  %3708 = vmatprep.subr.mxu0 0.0
  %3709 = vmatpush2.xpose.msra.mxu0 0.0
  %3710 = vmatprep.mubr.f32.mxu0 0.0
  %3711 = vmatmul.mubr.f32.gmra.mxu0 %v3638
  %v3712 = vpop.f32.mrf.mxu0
  %v3713 = vadd.f32 0.0, %v3712
  %v3714 = vpop.f32.mrf.mxu0
  %3715 = vmatprep.mubr.f32.mxu0 0.0
  %3716 = vmatmul.mubr.f32.gmra.mxu0 %v3640
  %v3717 = vpop.f32.mrf.mxu0
  %v3718 = vadd.f32 0.0, %v3717
  %v3719 = vpop.f32.mrf.mxu0
  %3720 = vdwg.mxu0
  %v3721 = vmul.f32 %v3713, 0.35355338
  %v3722 = vmul.f32 %v3718, 0.35355338
  %v3723 = vsel %vm649, %v3721, -inf
  %3724 = vmax.xlane.f32.xlu0 %v3723
  %v3725 = vpop.xlane.xlu0 %3724
  %v3726 = vsel %vm649, %v3722, -inf
  %3727 = vmax.xlane.f32.xlu0 %v3726
  %v3728 = vpop.xlane.xlu0 %3727
  %v3729 = vsub.f32 %v3721, %v3725
  %v3730 = vsub.f32 %v3722, %v3728
  %v3731 = vmul.f32 %v3729, 1.442695
  %v3732 = vpow.pop %v3731
  %v3733 = vmul.f32 %v3730, 1.442695
  %v3734 = vpow.pop %v3733
  %v3735 = vsel %vm649, %v3732, 0.0
  %3736 = vadd.xlane.f32.xlu0 %v3735
  %v3737 = vpop.xlane.xlu0 %3736
  %v3738 = vsel %vm649, %v3734, 0.0
  %3739 = vadd.xlane.f32.xlu0 %v3738
  %v3740 = vpop.xlane.xlu0 %3739
  %v3741 = vrcp.pop %v3737
  %v3742 = vmul.f32 %v3732, %v3741
  %v3743 = vrcp.pop %v3740
  %v3744 = vmul.f32 %v3734, %v3743
  %3745 = vrot.lane.b32.xlu0 %v3408, 56
  %v3746 = vpop.permute.xlu0 %3745
  %3747 = vrot.lane.b32.xlu0 %v3413, 56
  %v3748 = vpop.permute.xlu0 %3747
  %v3752 = vsel %vm649, %v3742, 0
  %v3755 = vsel %vm649, %v3744, 0
  %3757 = vmatprep.subr.mxu0 0.0
  %3758 = vmatpush1.msra.mxu0 0.0
  %3759 = vmatprep.subr.mxu0 0.0
  %3760 = vmatpush1.msra.mxu0 0.0
  %3761 = vmatprep.subr.mxu0 0.0
  %3762 = vmatpush1.msra.mxu0 0.0
  %3763 = vmatprep.subr.mxu0 0.0
  %3764 = vmatpush1.msra.mxu0 0.0
  %3765 = vmatprep.subr.mxu0 0.0
  %3766 = vmatpush1.msra.mxu0 0.0
  %3767 = vmatprep.subr.mxu0 0.0
  %3768 = vmatpush1.msra.mxu0 0.0
  %3769 = vmatprep.subr.mxu0 0.0
  %3770 = vmatpush1.msra.mxu0 0.0
  %3771 = vmatprep.subr.mxu0 0.0
  %3772 = vmatpush1.msra.mxu0 0.0
  %3773 = vmatprep.subr.mxu0 0.0
  %3774 = vmatpush1.msra.mxu0 0.0
  %3775 = vmatprep.subr.mxu0 0.0
  %3776 = vmatpush1.msra.mxu0 0.0
  %3777 = vmatprep.subr.mxu0 0.0
  %3778 = vmatpush1.msra.mxu0 0.0
  %3779 = vmatprep.subr.mxu0 0.0
  %3780 = vmatpush1.msra.mxu0 0.0
  %3781 = vmatprep.subr.mxu0 0.0
  %3782 = vmatpush1.msra.mxu0 0.0
  %3783 = vmatprep.subr.mxu0 0.0
  %3784 = vmatpush1.msra.mxu0 0.0
  %3785 = vmatprep.subr.mxu0 0.0
  %3786 = vmatpush1.msra.mxu0 %v3748
  %3787 = vmatprep.subr.mxu0 0.0
  %3788 = vmatpush1.msra.mxu0 %v3746
  %3789 = vmatprep.subr.mxu0 0.0
  %3790 = vmatpush2.msra.mxu0 0.0
  %3791 = vmatprep.subr.mxu0 0.0
  %3792 = vmatpush2.msra.mxu0 0.0
  %3793 = vmatprep.subr.mxu0 0.0
  %3794 = vmatpush2.msra.mxu0 0.0
  %3795 = vmatprep.subr.mxu0 0.0
  %3796 = vmatpush2.msra.mxu0 0.0
  %3797 = vmatprep.subr.mxu0 0.0
  %3798 = vmatpush2.msra.mxu0 0.0
  %3799 = vmatprep.subr.mxu0 0.0
  %3800 = vmatpush2.msra.mxu0 0.0
  %3801 = vmatprep.subr.mxu0 0.0
  %3802 = vmatpush2.msra.mxu0 0.0
  %3803 = vmatprep.subr.mxu0 0.0
  %3804 = vmatpush2.msra.mxu0 0.0
  %3805 = vmatprep.subr.mxu0 0.0
  %3806 = vmatpush2.msra.mxu0 0.0
  %3807 = vmatprep.subr.mxu0 0.0
  %3808 = vmatpush2.msra.mxu0 0.0
  %3809 = vmatprep.subr.mxu0 0.0
  %3810 = vmatpush2.msra.mxu0 0.0
  %3811 = vmatprep.subr.mxu0 0.0
  %3812 = vmatpush2.msra.mxu0 0.0
  %3813 = vmatprep.subr.mxu0 0.0
  %3814 = vmatpush2.msra.mxu0 0.0
  %3815 = vmatprep.subr.mxu0 0.0
  %3816 = vmatpush2.msra.mxu0 0.0
  %3817 = vmatprep.subr.mxu0 0.0
  %3818 = vmatpush2.msra.mxu0 0.0
  %3819 = vmatprep.subr.mxu0 0.0
  %3820 = vmatpush2.msra.mxu0 0.0
  %3821 = vmatprep.mubr.f32.mxu0 0.0
  %3822 = vmatmul.mubr.f32.gmra.mxu0 %v3752
  %v3823 = vpop.f32.mrf.mxu0
  %v3824 = vadd.f32 0.0, %v3823
  %v3825 = vpop.f32.mrf.mxu0
  %3826 = vmatprep.mubr.f32.mxu0 0.0
  %3827 = vmatmul.mubr.f32.gmra.mxu0 %v3755
  %v3828 = vpop.f32.mrf.mxu0
  %v3829 = vadd.f32 0.0, %v3828
  %v3830 = vpop.f32.mrf.mxu0
  %3831 = vdwg.mxu0
  %v3833 = vsel %vm563, %v3824, 0
  %v3836 = vsel %vm563, %v3829, 0
  %3838 = vmatprep.subr.mxu0 0.0
  %3839 = vmatpush1.msra.mxu0 0.0
  %3840 = vmatprep.subr.mxu0 0.0
  %3841 = vmatpush1.msra.mxu0 0.0
  %3842 = vmatprep.subr.mxu0 0.0
  %3843 = vmatpush1.msra.mxu0 0.0
  %3844 = vmatprep.subr.mxu0 0.0
  %3845 = vmatpush1.msra.mxu0 0.0
  %3846 = vmatprep.subr.mxu0 0.0
  %3847 = vmatpush1.msra.mxu0 0.0
  %3848 = vmatprep.subr.mxu0 0.0
  %3849 = vmatpush1.msra.mxu0 0.0
  %3850 = vmatprep.subr.mxu0 0.0
  %3851 = vmatpush1.msra.mxu0 0.0
  %3852 = vmatprep.subr.mxu0 0.0
  %3853 = vmatpush1.msra.mxu0 0.0
  %3854 = vmatprep.subr.mxu0 0.0
  %3855 = vmatpush1.msra.mxu0 0.0
  %3856 = vmatprep.subr.mxu0 0.0
  %3857 = vmatpush1.msra.mxu0 0.0
  %3858 = vmatprep.subr.mxu0 0.0
  %3859 = vmatpush1.msra.mxu0 0.0
  %3860 = vmatprep.subr.mxu0 0.0
  %3861 = vmatpush1.msra.mxu0 0.0
  %3862 = vmatprep.subr.mxu0 0.0
  %3863 = vmatpush1.msra.mxu0 0.0
  %3864 = vmatprep.subr.mxu0 0.0
  %3865 = vmatpush1.msra.mxu0 0.0
  %3866 = vmatprep.subr.mxu0 0.0
  %3867 = vmatpush1.msra.mxu0 0.0
  %3868 = vmatprep.subr.mxu0 0.0
  %3869 = vmatpush1.msra.mxu0 %v3427
  %3870 = vmatprep.subr.mxu0 0.0
  %3871 = vmatpush2.msra.mxu0 0.0
  %3872 = vmatprep.subr.mxu0 0.0
  %3873 = vmatpush2.msra.mxu0 0.0
  %3874 = vmatprep.subr.mxu0 0.0
  %3875 = vmatpush2.msra.mxu0 0.0
  %3876 = vmatprep.subr.mxu0 0.0
  %3877 = vmatpush2.msra.mxu0 0.0
  %3878 = vmatprep.subr.mxu0 0.0
  %3879 = vmatpush2.msra.mxu0 0.0
  %3880 = vmatprep.subr.mxu0 0.0
  %3881 = vmatpush2.msra.mxu0 0.0
  %3882 = vmatprep.subr.mxu0 0.0
  %3883 = vmatpush2.msra.mxu0 0.0
  %3884 = vmatprep.subr.mxu0 0.0
  %3885 = vmatpush2.msra.mxu0 0.0
  %3886 = vmatprep.subr.mxu0 0.0
  %3887 = vmatpush2.msra.mxu0 0.0
  %3888 = vmatprep.subr.mxu0 0.0
  %3889 = vmatpush2.msra.mxu0 0.0
  %3890 = vmatprep.subr.mxu0 0.0
  %3891 = vmatpush2.msra.mxu0 0.0
  %3892 = vmatprep.subr.mxu0 0.0
  %3893 = vmatpush2.msra.mxu0 0.0
  %3894 = vmatprep.subr.mxu0 0.0
  %3895 = vmatpush2.msra.mxu0 0.0
  %3896 = vmatprep.subr.mxu0 0.0
  %3897 = vmatpush2.msra.mxu0 0.0
  %3898 = vmatprep.subr.mxu0 0.0
  %3899 = vmatpush2.msra.mxu0 0.0
  %3900 = vmatprep.subr.mxu0 0.0
  %3901 = vmatpush2.msra.mxu0 0.0
  %3902 = vmatprep.mubr.f32.mxu0 0.0
  %3903 = vmatmul.mubr.f32.gmra.mxu0 %v3833
  %v3904 = vpop.f32.mrf.mxu0
  %v3905 = vadd.f32 0.0, %v3904
  %v3906 = vpop.f32.mrf.mxu0
  %3907 = vmatprep.mubr.f32.mxu0 0.0
  %3908 = vmatmul.mubr.f32.gmra.mxu0 %v3836
  %v3909 = vpop.f32.mrf.mxu0
  %v3910 = vadd.f32 0.0, %v3909
  %v3911 = vpop.f32.mrf.mxu0
  %3912 = vdwg.mxu0
  %v3914 = vsel %vm563, %v3622, 0
  %v3917 = vsel %vm563, %v3627, 0
  %3919 = vmatprep.subr.mxu0 0.0
  %3920 = vmatpush1.msra.mxu0 0.0
  %3921 = vmatprep.subr.mxu0 0.0
  %3922 = vmatpush1.msra.mxu0 0.0
  %3923 = vmatprep.subr.mxu0 0.0
  %3924 = vmatpush1.msra.mxu0 0.0
  %3925 = vmatprep.subr.mxu0 0.0
  %3926 = vmatpush1.msra.mxu0 0.0
  %3927 = vmatprep.subr.mxu0 0.0
  %3928 = vmatpush1.msra.mxu0 0.0
  %3929 = vmatprep.subr.mxu0 0.0
  %3930 = vmatpush1.msra.mxu0 0.0
  %3931 = vmatprep.subr.mxu0 0.0
  %3932 = vmatpush1.msra.mxu0 0.0
  %3933 = vmatprep.subr.mxu0 0.0
  %3934 = vmatpush1.msra.mxu0 0.0
  %3935 = vmatprep.subr.mxu0 0.0
  %3936 = vmatpush1.msra.mxu0 0.0
  %3937 = vmatprep.subr.mxu0 0.0
  %3938 = vmatpush1.msra.mxu0 0.0
  %3939 = vmatprep.subr.mxu0 0.0
  %3940 = vmatpush1.msra.mxu0 0.0
  %3941 = vmatprep.subr.mxu0 0.0
  %3942 = vmatpush1.msra.mxu0 0.0
  %3943 = vmatprep.subr.mxu0 0.0
  %3944 = vmatpush1.msra.mxu0 0.0
  %3945 = vmatprep.subr.mxu0 0.0
  %3946 = vmatpush1.msra.mxu0 0.0
  %3947 = vmatprep.subr.mxu0 0.0
  %3948 = vmatpush1.msra.mxu0 0.0
  %3949 = vmatprep.subr.mxu0 0.0
  %3950 = vmatpush1.msra.mxu0 %v3426
  %3951 = vmatprep.subr.mxu0 0.0
  %3952 = vmatpush2.msra.mxu0 0.0
  %3953 = vmatprep.subr.mxu0 0.0
  %3954 = vmatpush2.msra.mxu0 0.0
  %3955 = vmatprep.subr.mxu0 0.0
  %3956 = vmatpush2.msra.mxu0 0.0
  %3957 = vmatprep.subr.mxu0 0.0
  %3958 = vmatpush2.msra.mxu0 0.0
  %3959 = vmatprep.subr.mxu0 0.0
  %3960 = vmatpush2.msra.mxu0 0.0
  %3961 = vmatprep.subr.mxu0 0.0
  %3962 = vmatpush2.msra.mxu0 0.0
  %3963 = vmatprep.subr.mxu0 0.0
  %3964 = vmatpush2.msra.mxu0 0.0
  %3965 = vmatprep.subr.mxu0 0.0
  %3966 = vmatpush2.msra.mxu0 0.0
  %3967 = vmatprep.subr.mxu0 0.0
  %3968 = vmatpush2.msra.mxu0 0.0
  %3969 = vmatprep.subr.mxu0 0.0
  %3970 = vmatpush2.msra.mxu0 0.0
  %3971 = vmatprep.subr.mxu0 0.0
  %3972 = vmatpush2.msra.mxu0 0.0
  %3973 = vmatprep.subr.mxu0 0.0
  %3974 = vmatpush2.msra.mxu0 0.0
  %3975 = vmatprep.subr.mxu0 0.0
  %3976 = vmatpush2.msra.mxu0 0.0
  %3977 = vmatprep.subr.mxu0 0.0
  %3978 = vmatpush2.msra.mxu0 0.0
  %3979 = vmatprep.subr.mxu0 0.0
  %3980 = vmatpush2.msra.mxu0 0.0
  %3981 = vmatprep.subr.mxu0 0.0
  %3982 = vmatpush2.msra.mxu0 0.0
  %3983 = vmatprep.mubr.f32.mxu0 0.0
  %3984 = vmatmul.mubr.f32.gmra.mxu0 %v3914
  %v3985 = vpop.f32.mrf.mxu0
  %v3986 = vadd.f32 %v3905, %v3985
  %v3987 = vpop.f32.mrf.mxu0
  %3988 = vmatprep.mubr.f32.mxu0 0.0
  %3989 = vmatmul.mubr.f32.gmra.mxu0 %v3917
  %v3990 = vpop.f32.mrf.mxu0
  %v3991 = vadd.f32 %v3910, %v3990
  %v3992 = vpop.f32.mrf.mxu0
  %3993 = vdwg.mxu0
  %3994 = vrot.lane.b32.xlu0 %v3408, 112
  %v3995 = vpop.permute.xlu0 %3994
  %3996 = vrot.lane.b32.xlu0 %v3413, 112
  %v3997 = vpop.permute.xlu0 %3996
  %3998 = vrot.lane.b32.xlu0 %v3408, 80
  %v3999 = vpop.permute.xlu0 %3998
  %4000 = vrot.lane.b32.xlu0 %v3413, 80
  %v4001 = vpop.permute.xlu0 %4000
  %v4002 = vsel %vm563, %v3995, 0
  %v4004 = vsel %vm563, %v3997, 0
  %v4006 = vsel %vm563, %v3999, 0
  %v4008 = vsel %vm563, %v4001, 0
  %4010 = vmatprep.subr.mxu0 0.0
  %4011 = vmatpush1.xpose.msra.mxu0 0.0
  %4012 = vmatprep.subr.mxu0 0.0
  %4013 = vmatpush1.xpose.msra.mxu0 0.0
  %4014 = vmatprep.subr.mxu0 0.0
  %4015 = vmatpush1.xpose.msra.mxu0 0.0
  %4016 = vmatprep.subr.mxu0 0.0
  %4017 = vmatpush1.xpose.msra.mxu0 0.0
  %4018 = vmatprep.subr.mxu0 0.0
  %4019 = vmatpush1.xpose.msra.mxu0 0.0
  %4020 = vmatprep.subr.mxu0 0.0
  %4021 = vmatpush1.xpose.msra.mxu0 0.0
  %4022 = vmatprep.subr.mxu0 0.0
  %4023 = vmatpush1.xpose.msra.mxu0 0.0
  %4024 = vmatprep.subr.mxu0 0.0
  %4025 = vmatpush1.xpose.msra.mxu0 0.0
  %4026 = vmatprep.subr.mxu0 0.0
  %4027 = vmatpush1.xpose.msra.mxu0 0.0
  %4028 = vmatprep.subr.mxu0 0.0
  %4029 = vmatpush1.xpose.msra.mxu0 0.0
  %4030 = vmatprep.subr.mxu0 0.0
  %4031 = vmatpush1.xpose.msra.mxu0 0.0
  %4032 = vmatprep.subr.mxu0 0.0
  %4033 = vmatpush1.xpose.msra.mxu0 0.0
  %4034 = vmatprep.subr.mxu0 0.0
  %4035 = vmatpush1.xpose.msra.mxu0 0.0
  %4036 = vmatprep.subr.mxu0 0.0
  %4037 = vmatpush1.xpose.msra.mxu0 0.0
  %4038 = vmatprep.subr.mxu0 0.0
  %4039 = vmatpush1.xpose.msra.mxu0 %v4008
  %4040 = vmatprep.subr.mxu0 0.0
  %4041 = vmatpush1.xpose.msra.mxu0 %v4006
  %4042 = vmatprep.subr.mxu0 0.0
  %4043 = vmatpush2.xpose.msra.mxu0 0.0
  %4044 = vmatprep.subr.mxu0 0.0
  %4045 = vmatpush2.xpose.msra.mxu0 0.0
  %4046 = vmatprep.subr.mxu0 0.0
  %4047 = vmatpush2.xpose.msra.mxu0 0.0
  %4048 = vmatprep.subr.mxu0 0.0
  %4049 = vmatpush2.xpose.msra.mxu0 0.0
  %4050 = vmatprep.subr.mxu0 0.0
  %4051 = vmatpush2.xpose.msra.mxu0 0.0
  %4052 = vmatprep.subr.mxu0 0.0
  %4053 = vmatpush2.xpose.msra.mxu0 0.0
  %4054 = vmatprep.subr.mxu0 0.0
  %4055 = vmatpush2.xpose.msra.mxu0 0.0
  %4056 = vmatprep.subr.mxu0 0.0
  %4057 = vmatpush2.xpose.msra.mxu0 0.0
  %4058 = vmatprep.subr.mxu0 0.0
  %4059 = vmatpush2.xpose.msra.mxu0 0.0
  %4060 = vmatprep.subr.mxu0 0.0
  %4061 = vmatpush2.xpose.msra.mxu0 0.0
  %4062 = vmatprep.subr.mxu0 0.0
  %4063 = vmatpush2.xpose.msra.mxu0 0.0
  %4064 = vmatprep.subr.mxu0 0.0
  %4065 = vmatpush2.xpose.msra.mxu0 0.0
  %4066 = vmatprep.subr.mxu0 0.0
  %4067 = vmatpush2.xpose.msra.mxu0 0.0
  %4068 = vmatprep.subr.mxu0 0.0
  %4069 = vmatpush2.xpose.msra.mxu0 0.0
  %4070 = vmatprep.subr.mxu0 0.0
  %4071 = vmatpush2.xpose.msra.mxu0 0.0
  %4072 = vmatprep.subr.mxu0 0.0
  %4073 = vmatpush2.xpose.msra.mxu0 0.0
  %4074 = vmatprep.mubr.f32.mxu0 0.0
  %4075 = vmatmul.mubr.f32.gmra.mxu0 %v4002
  %v4076 = vpop.f32.mrf.mxu0
  %v4077 = vadd.f32 0.0, %v4076
  %v4078 = vpop.f32.mrf.mxu0
  %4079 = vmatprep.mubr.f32.mxu0 0.0
  %4080 = vmatmul.mubr.f32.gmra.mxu0 %v4004
  %v4081 = vpop.f32.mrf.mxu0
  %v4082 = vadd.f32 0.0, %v4081
  %v4083 = vpop.f32.mrf.mxu0
  %4084 = vdwg.mxu0
  %v4085 = vmul.f32 %v4077, 0.35355338
  %v4086 = vmul.f32 %v4082, 0.35355338
  %v4087 = vsel %vm649, %v4085, -inf
  %4088 = vmax.xlane.f32.xlu0 %v4087
  %v4089 = vpop.xlane.xlu0 %4088
  %v4090 = vsel %vm649, %v4086, -inf
  %4091 = vmax.xlane.f32.xlu0 %v4090
  %v4092 = vpop.xlane.xlu0 %4091
  %v4093 = vsub.f32 %v4085, %v4089
  %v4094 = vsub.f32 %v4086, %v4092
  %v4095 = vmul.f32 %v4093, 1.442695
  %v4096 = vpow.pop %v4095
  %v4097 = vmul.f32 %v4094, 1.442695
  %v4098 = vpow.pop %v4097
  %v4099 = vsel %vm649, %v4096, 0.0
  %4100 = vadd.xlane.f32.xlu0 %v4099
  %v4101 = vpop.xlane.xlu0 %4100
  %v4102 = vsel %vm649, %v4098, 0.0
  %4103 = vadd.xlane.f32.xlu0 %v4102
  %v4104 = vpop.xlane.xlu0 %4103
  %v4105 = vrcp.pop %v4101
  %v4106 = vmul.f32 %v4096, %v4105
  %v4107 = vrcp.pop %v4104
  %v4108 = vmul.f32 %v4098, %v4107
  %4109 = vrot.lane.b32.xlu0 %v3408, 48
  %v4110 = vpop.permute.xlu0 %4109
  %4111 = vrot.lane.b32.xlu0 %v3413, 48
  %v4112 = vpop.permute.xlu0 %4111
  %v4116 = vsel %vm649, %v4106, 0
  %v4119 = vsel %vm649, %v4108, 0
  %4121 = vmatprep.subr.mxu0 0.0
  %4122 = vmatpush1.msra.mxu0 0.0
  %4123 = vmatprep.subr.mxu0 0.0
  %4124 = vmatpush1.msra.mxu0 0.0
  %4125 = vmatprep.subr.mxu0 0.0
  %4126 = vmatpush1.msra.mxu0 0.0
  %4127 = vmatprep.subr.mxu0 0.0
  %4128 = vmatpush1.msra.mxu0 0.0
  %4129 = vmatprep.subr.mxu0 0.0
  %4130 = vmatpush1.msra.mxu0 0.0
  %4131 = vmatprep.subr.mxu0 0.0
  %4132 = vmatpush1.msra.mxu0 0.0
  %4133 = vmatprep.subr.mxu0 0.0
  %4134 = vmatpush1.msra.mxu0 0.0
  %4135 = vmatprep.subr.mxu0 0.0
  %4136 = vmatpush1.msra.mxu0 0.0
  %4137 = vmatprep.subr.mxu0 0.0
  %4138 = vmatpush1.msra.mxu0 0.0
  %4139 = vmatprep.subr.mxu0 0.0
  %4140 = vmatpush1.msra.mxu0 0.0
  %4141 = vmatprep.subr.mxu0 0.0
  %4142 = vmatpush1.msra.mxu0 0.0
  %4143 = vmatprep.subr.mxu0 0.0
  %4144 = vmatpush1.msra.mxu0 0.0
  %4145 = vmatprep.subr.mxu0 0.0
  %4146 = vmatpush1.msra.mxu0 0.0
  %4147 = vmatprep.subr.mxu0 0.0
  %4148 = vmatpush1.msra.mxu0 0.0
  %4149 = vmatprep.subr.mxu0 0.0
  %4150 = vmatpush1.msra.mxu0 %v4112
  %4151 = vmatprep.subr.mxu0 0.0
  %4152 = vmatpush1.msra.mxu0 %v4110
  %4153 = vmatprep.subr.mxu0 0.0
  %4154 = vmatpush2.msra.mxu0 0.0
  %4155 = vmatprep.subr.mxu0 0.0
  %4156 = vmatpush2.msra.mxu0 0.0
  %4157 = vmatprep.subr.mxu0 0.0
  %4158 = vmatpush2.msra.mxu0 0.0
  %4159 = vmatprep.subr.mxu0 0.0
  %4160 = vmatpush2.msra.mxu0 0.0
  %4161 = vmatprep.subr.mxu0 0.0
  %4162 = vmatpush2.msra.mxu0 0.0
  %4163 = vmatprep.subr.mxu0 0.0
  %4164 = vmatpush2.msra.mxu0 0.0
  %4165 = vmatprep.subr.mxu0 0.0
  %4166 = vmatpush2.msra.mxu0 0.0
  %4167 = vmatprep.subr.mxu0 0.0
  %4168 = vmatpush2.msra.mxu0 0.0
  %4169 = vmatprep.subr.mxu0 0.0
  %4170 = vmatpush2.msra.mxu0 0.0
  %4171 = vmatprep.subr.mxu0 0.0
  %4172 = vmatpush2.msra.mxu0 0.0
  %4173 = vmatprep.subr.mxu0 0.0
  %4174 = vmatpush2.msra.mxu0 0.0
  %4175 = vmatprep.subr.mxu0 0.0
  %4176 = vmatpush2.msra.mxu0 0.0
  %4177 = vmatprep.subr.mxu0 0.0
  %4178 = vmatpush2.msra.mxu0 0.0
  %4179 = vmatprep.subr.mxu0 0.0
  %4180 = vmatpush2.msra.mxu0 0.0
  %4181 = vmatprep.subr.mxu0 0.0
  %4182 = vmatpush2.msra.mxu0 0.0
  %4183 = vmatprep.subr.mxu0 0.0
  %4184 = vmatpush2.msra.mxu0 0.0
  %4185 = vmatprep.mubr.f32.mxu0 0.0
  %4186 = vmatmul.mubr.f32.gmra.mxu0 %v4116
  %v4187 = vpop.f32.mrf.mxu0
  %v4188 = vadd.f32 0.0, %v4187
  %v4189 = vpop.f32.mrf.mxu0
  %4190 = vmatprep.mubr.f32.mxu0 0.0
  %4191 = vmatmul.mubr.f32.gmra.mxu0 %v4119
  %v4192 = vpop.f32.mrf.mxu0
  %v4193 = vadd.f32 0.0, %v4192
  %v4194 = vpop.f32.mrf.mxu0
  %4195 = vdwg.mxu0
  %v4197 = vsel %vm563, %v4188, 0
  %v4200 = vsel %vm563, %v4193, 0
  %4202 = vmatprep.subr.mxu0 0.0
  %4203 = vmatpush1.msra.mxu0 0.0
  %4204 = vmatprep.subr.mxu0 0.0
  %4205 = vmatpush1.msra.mxu0 0.0
  %4206 = vmatprep.subr.mxu0 0.0
  %4207 = vmatpush1.msra.mxu0 0.0
  %4208 = vmatprep.subr.mxu0 0.0
  %4209 = vmatpush1.msra.mxu0 0.0
  %4210 = vmatprep.subr.mxu0 0.0
  %4211 = vmatpush1.msra.mxu0 0.0
  %4212 = vmatprep.subr.mxu0 0.0
  %4213 = vmatpush1.msra.mxu0 0.0
  %4214 = vmatprep.subr.mxu0 0.0
  %4215 = vmatpush1.msra.mxu0 0.0
  %4216 = vmatprep.subr.mxu0 0.0
  %4217 = vmatpush1.msra.mxu0 0.0
  %4218 = vmatprep.subr.mxu0 0.0
  %4219 = vmatpush1.msra.mxu0 0.0
  %4220 = vmatprep.subr.mxu0 0.0
  %4221 = vmatpush1.msra.mxu0 0.0
  %4222 = vmatprep.subr.mxu0 0.0
  %4223 = vmatpush1.msra.mxu0 0.0
  %4224 = vmatprep.subr.mxu0 0.0
  %4225 = vmatpush1.msra.mxu0 0.0
  %4226 = vmatprep.subr.mxu0 0.0
  %4227 = vmatpush1.msra.mxu0 0.0
  %4228 = vmatprep.subr.mxu0 0.0
  %4229 = vmatpush1.msra.mxu0 0.0
  %4230 = vmatprep.subr.mxu0 0.0
  %4231 = vmatpush1.msra.mxu0 0.0
  %4232 = vmatprep.subr.mxu0 0.0
  %4233 = vmatpush1.msra.mxu0 %v3428
  %4234 = vmatprep.subr.mxu0 0.0
  %4235 = vmatpush2.msra.mxu0 0.0
  %4236 = vmatprep.subr.mxu0 0.0
  %4237 = vmatpush2.msra.mxu0 0.0
  %4238 = vmatprep.subr.mxu0 0.0
  %4239 = vmatpush2.msra.mxu0 0.0
  %4240 = vmatprep.subr.mxu0 0.0
  %4241 = vmatpush2.msra.mxu0 0.0
  %4242 = vmatprep.subr.mxu0 0.0
  %4243 = vmatpush2.msra.mxu0 0.0
  %4244 = vmatprep.subr.mxu0 0.0
  %4245 = vmatpush2.msra.mxu0 0.0
  %4246 = vmatprep.subr.mxu0 0.0
  %4247 = vmatpush2.msra.mxu0 0.0
  %4248 = vmatprep.subr.mxu0 0.0
  %4249 = vmatpush2.msra.mxu0 0.0
  %4250 = vmatprep.subr.mxu0 0.0
  %4251 = vmatpush2.msra.mxu0 0.0
  %4252 = vmatprep.subr.mxu0 0.0
  %4253 = vmatpush2.msra.mxu0 0.0
  %4254 = vmatprep.subr.mxu0 0.0
  %4255 = vmatpush2.msra.mxu0 0.0
  %4256 = vmatprep.subr.mxu0 0.0
  %4257 = vmatpush2.msra.mxu0 0.0
  %4258 = vmatprep.subr.mxu0 0.0
  %4259 = vmatpush2.msra.mxu0 0.0
  %4260 = vmatprep.subr.mxu0 0.0
  %4261 = vmatpush2.msra.mxu0 0.0
  %4262 = vmatprep.subr.mxu0 0.0
  %4263 = vmatpush2.msra.mxu0 0.0
  %4264 = vmatprep.subr.mxu0 0.0
  %4265 = vmatpush2.msra.mxu0 0.0
  %4266 = vmatprep.mubr.f32.mxu0 0.0
  %4267 = vmatmul.mubr.f32.gmra.mxu0 %v4197
  %v4268 = vpop.f32.mrf.mxu0
  %v4269 = vadd.f32 0.0, %v4268
  %v4270 = vpop.f32.mrf.mxu0
  %4271 = vmatprep.mubr.f32.mxu0 0.0
  %4272 = vmatmul.mubr.f32.gmra.mxu0 %v4200
  %v4273 = vpop.f32.mrf.mxu0
  %v4274 = vadd.f32 0.0, %v4273
  %v4275 = vpop.f32.mrf.mxu0
  %4276 = vdwg.mxu0
  %v4277 = vadd.f32 %v3986, %v4269
  %v4278 = vadd.f32 %v3991, %v4274
  %4279 = vrot.lane.b32.xlu0 %v3408, 104
  %v4280 = vpop.permute.xlu0 %4279
  %4281 = vrot.lane.b32.xlu0 %v3413, 104
  %v4282 = vpop.permute.xlu0 %4281
  %4283 = vrot.lane.b32.xlu0 %v3408, 72
  %v4284 = vpop.permute.xlu0 %4283
  %4285 = vrot.lane.b32.xlu0 %v3413, 72
  %v4286 = vpop.permute.xlu0 %4285
  %v4287 = vsel %vm563, %v4280, 0
  %v4289 = vsel %vm563, %v4282, 0
  %v4291 = vsel %vm563, %v4284, 0
  %v4293 = vsel %vm563, %v4286, 0
  %4295 = vmatprep.subr.mxu0 0.0
  %4296 = vmatpush1.xpose.msra.mxu0 0.0
  %4297 = vmatprep.subr.mxu0 0.0
  %4298 = vmatpush1.xpose.msra.mxu0 0.0
  %4299 = vmatprep.subr.mxu0 0.0
  %4300 = vmatpush1.xpose.msra.mxu0 0.0
  %4301 = vmatprep.subr.mxu0 0.0
  %4302 = vmatpush1.xpose.msra.mxu0 0.0
  %4303 = vmatprep.subr.mxu0 0.0
  %4304 = vmatpush1.xpose.msra.mxu0 0.0
  %4305 = vmatprep.subr.mxu0 0.0
  %4306 = vmatpush1.xpose.msra.mxu0 0.0
  %4307 = vmatprep.subr.mxu0 0.0
  %4308 = vmatpush1.xpose.msra.mxu0 0.0
  %4309 = vmatprep.subr.mxu0 0.0
  %4310 = vmatpush1.xpose.msra.mxu0 0.0
  %4311 = vmatprep.subr.mxu0 0.0
  %4312 = vmatpush1.xpose.msra.mxu0 0.0
  %4313 = vmatprep.subr.mxu0 0.0
  %4314 = vmatpush1.xpose.msra.mxu0 0.0
  %4315 = vmatprep.subr.mxu0 0.0
  %4316 = vmatpush1.xpose.msra.mxu0 0.0
  %4317 = vmatprep.subr.mxu0 0.0
  %4318 = vmatpush1.xpose.msra.mxu0 0.0
  %4319 = vmatprep.subr.mxu0 0.0
  %4320 = vmatpush1.xpose.msra.mxu0 0.0
  %4321 = vmatprep.subr.mxu0 0.0
  %4322 = vmatpush1.xpose.msra.mxu0 0.0
  %4323 = vmatprep.subr.mxu0 0.0
  %4324 = vmatpush1.xpose.msra.mxu0 %v4293
  %4325 = vmatprep.subr.mxu0 0.0
  %4326 = vmatpush1.xpose.msra.mxu0 %v4291
  %4327 = vmatprep.subr.mxu0 0.0
  %4328 = vmatpush2.xpose.msra.mxu0 0.0
  %4329 = vmatprep.subr.mxu0 0.0
  %4330 = vmatpush2.xpose.msra.mxu0 0.0
  %4331 = vmatprep.subr.mxu0 0.0
  %4332 = vmatpush2.xpose.msra.mxu0 0.0
  %4333 = vmatprep.subr.mxu0 0.0
  %4334 = vmatpush2.xpose.msra.mxu0 0.0
  %4335 = vmatprep.subr.mxu0 0.0
  %4336 = vmatpush2.xpose.msra.mxu0 0.0
  %4337 = vmatprep.subr.mxu0 0.0
  %4338 = vmatpush2.xpose.msra.mxu0 0.0
  %4339 = vmatprep.subr.mxu0 0.0
  %4340 = vmatpush2.xpose.msra.mxu0 0.0
  %4341 = vmatprep.subr.mxu0 0.0
  %4342 = vmatpush2.xpose.msra.mxu0 0.0
  %4343 = vmatprep.subr.mxu0 0.0
  %4344 = vmatpush2.xpose.msra.mxu0 0.0
  %4345 = vmatprep.subr.mxu0 0.0
  %4346 = vmatpush2.xpose.msra.mxu0 0.0
  %4347 = vmatprep.subr.mxu0 0.0
  %4348 = vmatpush2.xpose.msra.mxu0 0.0
  %4349 = vmatprep.subr.mxu0 0.0
  %4350 = vmatpush2.xpose.msra.mxu0 0.0
  %4351 = vmatprep.subr.mxu0 0.0
  %4352 = vmatpush2.xpose.msra.mxu0 0.0
  %4353 = vmatprep.subr.mxu0 0.0
  %4354 = vmatpush2.xpose.msra.mxu0 0.0
  %4355 = vmatprep.subr.mxu0 0.0
  %4356 = vmatpush2.xpose.msra.mxu0 0.0
  %4357 = vmatprep.subr.mxu0 0.0
  %4358 = vmatpush2.xpose.msra.mxu0 0.0
  %4359 = vmatprep.mubr.f32.mxu0 0.0
  %4360 = vmatmul.mubr.f32.gmra.mxu0 %v4287
  %v4361 = vpop.f32.mrf.mxu0
  %v4362 = vadd.f32 0.0, %v4361
  %v4363 = vpop.f32.mrf.mxu0
  %4364 = vmatprep.mubr.f32.mxu0 0.0
  %4365 = vmatmul.mubr.f32.gmra.mxu0 %v4289
  %v4366 = vpop.f32.mrf.mxu0
  %v4367 = vadd.f32 0.0, %v4366
  %v4368 = vpop.f32.mrf.mxu0
  %4369 = vdwg.mxu0
  %v4370 = vmul.f32 %v4362, 0.35355338
  %v4371 = vmul.f32 %v4367, 0.35355338
  %v4372 = vsel %vm649, %v4370, -inf
  %4373 = vmax.xlane.f32.xlu0 %v4372
  %v4374 = vpop.xlane.xlu0 %4373
  %v4375 = vsel %vm649, %v4371, -inf
  %4376 = vmax.xlane.f32.xlu0 %v4375
  %v4377 = vpop.xlane.xlu0 %4376
  %v4378 = vsub.f32 %v4370, %v4374
  %v4379 = vsub.f32 %v4371, %v4377
  %v4380 = vmul.f32 %v4378, 1.442695
  %v4381 = vpow.pop %v4380
  %v4382 = vmul.f32 %v4379, 1.442695
  %v4383 = vpow.pop %v4382
  %v4384 = vsel %vm649, %v4381, 0.0
  %4385 = vadd.xlane.f32.xlu0 %v4384
  %v4386 = vpop.xlane.xlu0 %4385
  %v4387 = vsel %vm649, %v4383, 0.0
  %4388 = vadd.xlane.f32.xlu0 %v4387
  %v4389 = vpop.xlane.xlu0 %4388
  %v4390 = vrcp.pop %v4386
  %v4391 = vmul.f32 %v4381, %v4390
  %v4392 = vrcp.pop %v4389
  %v4393 = vmul.f32 %v4383, %v4392
  %4394 = vrot.lane.b32.xlu0 %v3408, 40
  %v4395 = vpop.permute.xlu0 %4394
  %4396 = vrot.lane.b32.xlu0 %v3413, 40
  %v4397 = vpop.permute.xlu0 %4396
  %v4401 = vsel %vm649, %v4391, 0
  %v4404 = vsel %vm649, %v4393, 0
  %4406 = vmatprep.subr.mxu0 0.0
  %4407 = vmatpush1.msra.mxu0 0.0
  %4408 = vmatprep.subr.mxu0 0.0
  %4409 = vmatpush1.msra.mxu0 0.0
  %4410 = vmatprep.subr.mxu0 0.0
  %4411 = vmatpush1.msra.mxu0 0.0
  %4412 = vmatprep.subr.mxu0 0.0
  %4413 = vmatpush1.msra.mxu0 0.0
  %4414 = vmatprep.subr.mxu0 0.0
  %4415 = vmatpush1.msra.mxu0 0.0
  %4416 = vmatprep.subr.mxu0 0.0
  %4417 = vmatpush1.msra.mxu0 0.0
  %4418 = vmatprep.subr.mxu0 0.0
  %4419 = vmatpush1.msra.mxu0 0.0
  %4420 = vmatprep.subr.mxu0 0.0
  %4421 = vmatpush1.msra.mxu0 0.0
  %4422 = vmatprep.subr.mxu0 0.0
  %4423 = vmatpush1.msra.mxu0 0.0
  %4424 = vmatprep.subr.mxu0 0.0
  %4425 = vmatpush1.msra.mxu0 0.0
  %4426 = vmatprep.subr.mxu0 0.0
  %4427 = vmatpush1.msra.mxu0 0.0
  %4428 = vmatprep.subr.mxu0 0.0
  %4429 = vmatpush1.msra.mxu0 0.0
  %4430 = vmatprep.subr.mxu0 0.0
  %4431 = vmatpush1.msra.mxu0 0.0
  %4432 = vmatprep.subr.mxu0 0.0
  %4433 = vmatpush1.msra.mxu0 0.0
  %4434 = vmatprep.subr.mxu0 0.0
  %4435 = vmatpush1.msra.mxu0 %v4397
  %4436 = vmatprep.subr.mxu0 0.0
  %4437 = vmatpush1.msra.mxu0 %v4395
  %4438 = vmatprep.subr.mxu0 0.0
  %4439 = vmatpush2.msra.mxu0 0.0
  %4440 = vmatprep.subr.mxu0 0.0
  %4441 = vmatpush2.msra.mxu0 0.0
  %4442 = vmatprep.subr.mxu0 0.0
  %4443 = vmatpush2.msra.mxu0 0.0
  %4444 = vmatprep.subr.mxu0 0.0
  %4445 = vmatpush2.msra.mxu0 0.0
  %4446 = vmatprep.subr.mxu0 0.0
  %4447 = vmatpush2.msra.mxu0 0.0
  %4448 = vmatprep.subr.mxu0 0.0
  %4449 = vmatpush2.msra.mxu0 0.0
  %4450 = vmatprep.subr.mxu0 0.0
  %4451 = vmatpush2.msra.mxu0 0.0
  %4452 = vmatprep.subr.mxu0 0.0
  %4453 = vmatpush2.msra.mxu0 0.0
  %4454 = vmatprep.subr.mxu0 0.0
  %4455 = vmatpush2.msra.mxu0 0.0
  %4456 = vmatprep.subr.mxu0 0.0
  %4457 = vmatpush2.msra.mxu0 0.0
  %4458 = vmatprep.subr.mxu0 0.0
  %4459 = vmatpush2.msra.mxu0 0.0
  %4460 = vmatprep.subr.mxu0 0.0
  %4461 = vmatpush2.msra.mxu0 0.0
  %4462 = vmatprep.subr.mxu0 0.0
  %4463 = vmatpush2.msra.mxu0 0.0
  %4464 = vmatprep.subr.mxu0 0.0
  %4465 = vmatpush2.msra.mxu0 0.0
  %4466 = vmatprep.subr.mxu0 0.0
  %4467 = vmatpush2.msra.mxu0 0.0
  %4468 = vmatprep.subr.mxu0 0.0
  %4469 = vmatpush2.msra.mxu0 0.0
  %4470 = vmatprep.mubr.f32.mxu0 0.0
  %4471 = vmatmul.mubr.f32.gmra.mxu0 %v4401
  %v4472 = vpop.f32.mrf.mxu0
  %v4473 = vadd.f32 0.0, %v4472
  %v4474 = vpop.f32.mrf.mxu0
  %4475 = vmatprep.mubr.f32.mxu0 0.0
  %4476 = vmatmul.mubr.f32.gmra.mxu0 %v4404
  %v4477 = vpop.f32.mrf.mxu0
  %v4478 = vadd.f32 0.0, %v4477
  %v4479 = vpop.f32.mrf.mxu0
  %4480 = vdwg.mxu0
  %v4482 = vsel %vm563, %v4473, 0
  %v4485 = vsel %vm563, %v4478, 0
  %4487 = vmatprep.subr.mxu0 0.0
  %4488 = vmatpush1.msra.mxu0 0.0
  %4489 = vmatprep.subr.mxu0 0.0
  %4490 = vmatpush1.msra.mxu0 0.0
  %4491 = vmatprep.subr.mxu0 0.0
  %4492 = vmatpush1.msra.mxu0 0.0
  %4493 = vmatprep.subr.mxu0 0.0
  %4494 = vmatpush1.msra.mxu0 0.0
  %4495 = vmatprep.subr.mxu0 0.0
  %4496 = vmatpush1.msra.mxu0 0.0
  %4497 = vmatprep.subr.mxu0 0.0
  %4498 = vmatpush1.msra.mxu0 0.0
  %4499 = vmatprep.subr.mxu0 0.0
  %4500 = vmatpush1.msra.mxu0 0.0
  %4501 = vmatprep.subr.mxu0 0.0
  %4502 = vmatpush1.msra.mxu0 0.0
  %4503 = vmatprep.subr.mxu0 0.0
  %4504 = vmatpush1.msra.mxu0 0.0
  %4505 = vmatprep.subr.mxu0 0.0
  %4506 = vmatpush1.msra.mxu0 0.0
  %4507 = vmatprep.subr.mxu0 0.0
  %4508 = vmatpush1.msra.mxu0 0.0
  %4509 = vmatprep.subr.mxu0 0.0
  %4510 = vmatpush1.msra.mxu0 0.0
  %4511 = vmatprep.subr.mxu0 0.0
  %4512 = vmatpush1.msra.mxu0 0.0
  %4513 = vmatprep.subr.mxu0 0.0
  %4514 = vmatpush1.msra.mxu0 0.0
  %4515 = vmatprep.subr.mxu0 0.0
  %4516 = vmatpush1.msra.mxu0 0.0
  %4517 = vmatprep.subr.mxu0 0.0
  %4518 = vmatpush1.msra.mxu0 %v3429
  %4519 = vmatprep.subr.mxu0 0.0
  %4520 = vmatpush2.msra.mxu0 0.0
  %4521 = vmatprep.subr.mxu0 0.0
  %4522 = vmatpush2.msra.mxu0 0.0
  %4523 = vmatprep.subr.mxu0 0.0
  %4524 = vmatpush2.msra.mxu0 0.0
  %4525 = vmatprep.subr.mxu0 0.0
  %4526 = vmatpush2.msra.mxu0 0.0
  %4527 = vmatprep.subr.mxu0 0.0
  %4528 = vmatpush2.msra.mxu0 0.0
  %4529 = vmatprep.subr.mxu0 0.0
  %4530 = vmatpush2.msra.mxu0 0.0
  %4531 = vmatprep.subr.mxu0 0.0
  %4532 = vmatpush2.msra.mxu0 0.0
  %4533 = vmatprep.subr.mxu0 0.0
  %4534 = vmatpush2.msra.mxu0 0.0
  %4535 = vmatprep.subr.mxu0 0.0
  %4536 = vmatpush2.msra.mxu0 0.0
  %4537 = vmatprep.subr.mxu0 0.0
  %4538 = vmatpush2.msra.mxu0 0.0
  %4539 = vmatprep.subr.mxu0 0.0
  %4540 = vmatpush2.msra.mxu0 0.0
  %4541 = vmatprep.subr.mxu0 0.0
  %4542 = vmatpush2.msra.mxu0 0.0
  %4543 = vmatprep.subr.mxu0 0.0
  %4544 = vmatpush2.msra.mxu0 0.0
  %4545 = vmatprep.subr.mxu0 0.0
  %4546 = vmatpush2.msra.mxu0 0.0
  %4547 = vmatprep.subr.mxu0 0.0
  %4548 = vmatpush2.msra.mxu0 0.0
  %4549 = vmatprep.subr.mxu0 0.0
  %4550 = vmatpush2.msra.mxu0 0.0
  %4551 = vmatprep.mubr.f32.mxu0 0.0
  %4552 = vmatmul.mubr.f32.gmra.mxu0 %v4482
  %v4553 = vpop.f32.mrf.mxu0
  %v4554 = vadd.f32 0.0, %v4553
  %v4555 = vpop.f32.mrf.mxu0
  %4556 = vmatprep.mubr.f32.mxu0 0.0
  %4557 = vmatmul.mubr.f32.gmra.mxu0 %v4485
  %v4558 = vpop.f32.mrf.mxu0
  %v4559 = vadd.f32 0.0, %v4558
  %v4560 = vpop.f32.mrf.mxu0
  %4561 = vdwg.mxu0
  %v4562 = vadd.f32 %v4277, %v4554
  %v4563 = vadd.f32 %v4278, %v4559
  %4566 = vrot.lane.b32.xlu0 %v3418, 96
  %v4567 = vpop.permute.xlu0 %4566
  %4568 = vrot.lane.b32.xlu0 %v3423, 96
  %v4569 = vpop.permute.xlu0 %4568
  %v4570 = vsel %vm563, %v3418, 0
  %v4572 = vsel %vm563, %v3423, 0
  %v4574 = vsel %vm563, %v4567, 0
  %v4576 = vsel %vm563, %v4569, 0
  %4578 = vmatprep.subr.mxu0 0.0
  %4579 = vmatpush1.xpose.msra.mxu0 0.0
  %4580 = vmatprep.subr.mxu0 0.0
  %4581 = vmatpush1.xpose.msra.mxu0 0.0
  %4582 = vmatprep.subr.mxu0 0.0
  %4583 = vmatpush1.xpose.msra.mxu0 0.0
  %4584 = vmatprep.subr.mxu0 0.0
  %4585 = vmatpush1.xpose.msra.mxu0 0.0
  %4586 = vmatprep.subr.mxu0 0.0
  %4587 = vmatpush1.xpose.msra.mxu0 0.0
  %4588 = vmatprep.subr.mxu0 0.0
  %4589 = vmatpush1.xpose.msra.mxu0 0.0
  %4590 = vmatprep.subr.mxu0 0.0
  %4591 = vmatpush1.xpose.msra.mxu0 0.0
  %4592 = vmatprep.subr.mxu0 0.0
  %4593 = vmatpush1.xpose.msra.mxu0 0.0
  %4594 = vmatprep.subr.mxu0 0.0
  %4595 = vmatpush1.xpose.msra.mxu0 0.0
  %4596 = vmatprep.subr.mxu0 0.0
  %4597 = vmatpush1.xpose.msra.mxu0 0.0
  %4598 = vmatprep.subr.mxu0 0.0
  %4599 = vmatpush1.xpose.msra.mxu0 0.0
  %4600 = vmatprep.subr.mxu0 0.0
  %4601 = vmatpush1.xpose.msra.mxu0 0.0
  %4602 = vmatprep.subr.mxu0 0.0
  %4603 = vmatpush1.xpose.msra.mxu0 0.0
  %4604 = vmatprep.subr.mxu0 0.0
  %4605 = vmatpush1.xpose.msra.mxu0 0.0
  %4606 = vmatprep.subr.mxu0 0.0
  %4607 = vmatpush1.xpose.msra.mxu0 %v4576
  %4608 = vmatprep.subr.mxu0 0.0
  %4609 = vmatpush1.xpose.msra.mxu0 %v4574
  %4610 = vmatprep.subr.mxu0 0.0
  %4611 = vmatpush2.xpose.msra.mxu0 0.0
  %4612 = vmatprep.subr.mxu0 0.0
  %4613 = vmatpush2.xpose.msra.mxu0 0.0
  %4614 = vmatprep.subr.mxu0 0.0
  %4615 = vmatpush2.xpose.msra.mxu0 0.0
  %4616 = vmatprep.subr.mxu0 0.0
  %4617 = vmatpush2.xpose.msra.mxu0 0.0
  %4618 = vmatprep.subr.mxu0 0.0
  %4619 = vmatpush2.xpose.msra.mxu0 0.0
  %4620 = vmatprep.subr.mxu0 0.0
  %4621 = vmatpush2.xpose.msra.mxu0 0.0
  %4622 = vmatprep.subr.mxu0 0.0
  %4623 = vmatpush2.xpose.msra.mxu0 0.0
  %4624 = vmatprep.subr.mxu0 0.0
  %4625 = vmatpush2.xpose.msra.mxu0 0.0
  %4626 = vmatprep.subr.mxu0 0.0
  %4627 = vmatpush2.xpose.msra.mxu0 0.0
  %4628 = vmatprep.subr.mxu0 0.0
  %4629 = vmatpush2.xpose.msra.mxu0 0.0
  %4630 = vmatprep.subr.mxu0 0.0
  %4631 = vmatpush2.xpose.msra.mxu0 0.0
  %4632 = vmatprep.subr.mxu0 0.0
  %4633 = vmatpush2.xpose.msra.mxu0 0.0
  %4634 = vmatprep.subr.mxu0 0.0
  %4635 = vmatpush2.xpose.msra.mxu0 0.0
  %4636 = vmatprep.subr.mxu0 0.0
  %4637 = vmatpush2.xpose.msra.mxu0 0.0
  %4638 = vmatprep.subr.mxu0 0.0
  %4639 = vmatpush2.xpose.msra.mxu0 0.0
  %4640 = vmatprep.subr.mxu0 0.0
  %4641 = vmatpush2.xpose.msra.mxu0 0.0
  %4642 = vmatprep.mubr.f32.mxu0 0.0
  %4643 = vmatmul.mubr.f32.gmra.mxu0 %v4570
  %v4644 = vpop.f32.mrf.mxu0
  %v4645 = vadd.f32 0.0, %v4644
  %v4646 = vpop.f32.mrf.mxu0
  %4647 = vmatprep.mubr.f32.mxu0 0.0
  %4648 = vmatmul.mubr.f32.gmra.mxu0 %v4572
  %v4649 = vpop.f32.mrf.mxu0
  %v4650 = vadd.f32 0.0, %v4649
  %v4651 = vpop.f32.mrf.mxu0
  %4652 = vdwg.mxu0
  %v4653 = vmul.f32 %v4645, 0.35355338
  %v4654 = vmul.f32 %v4650, 0.35355338
  %v4655 = vsel %vm649, %v4653, -inf
  %4656 = vmax.xlane.f32.xlu0 %v4655
  %v4657 = vpop.xlane.xlu0 %4656
  %v4658 = vsel %vm649, %v4654, -inf
  %4659 = vmax.xlane.f32.xlu0 %v4658
  %v4660 = vpop.xlane.xlu0 %4659
  %v4661 = vsub.f32 %v4653, %v4657
  %v4662 = vsub.f32 %v4654, %v4660
  %v4663 = vmul.f32 %v4661, 1.442695
  %v4664 = vpow.pop %v4663
  %v4665 = vmul.f32 %v4662, 1.442695
  %v4666 = vpow.pop %v4665
  %v4667 = vsel %vm649, %v4664, 0.0
  %4668 = vadd.xlane.f32.xlu0 %v4667
  %v4669 = vpop.xlane.xlu0 %4668
  %v4670 = vsel %vm649, %v4666, 0.0
  %4671 = vadd.xlane.f32.xlu0 %v4670
  %v4672 = vpop.xlane.xlu0 %4671
  %v4673 = vrcp.pop %v4669
  %v4674 = vmul.f32 %v4664, %v4673
  %v4675 = vrcp.pop %v4672
  %v4676 = vmul.f32 %v4666, %v4675
  %4677 = vrot.lane.b32.xlu0 %v3418, 64
  %v4678 = vpop.permute.xlu0 %4677
  %4679 = vrot.lane.b32.xlu0 %v3423, 64
  %v4680 = vpop.permute.xlu0 %4679
  %v4684 = vsel %vm649, %v4674, 0
  %v4687 = vsel %vm649, %v4676, 0
  %4689 = vmatprep.subr.mxu0 0.0
  %4690 = vmatpush1.msra.mxu0 0.0
  %4691 = vmatprep.subr.mxu0 0.0
  %4692 = vmatpush1.msra.mxu0 0.0
  %4693 = vmatprep.subr.mxu0 0.0
  %4694 = vmatpush1.msra.mxu0 0.0
  %4695 = vmatprep.subr.mxu0 0.0
  %4696 = vmatpush1.msra.mxu0 0.0
  %4697 = vmatprep.subr.mxu0 0.0
  %4698 = vmatpush1.msra.mxu0 0.0
  %4699 = vmatprep.subr.mxu0 0.0
  %4700 = vmatpush1.msra.mxu0 0.0
  %4701 = vmatprep.subr.mxu0 0.0
  %4702 = vmatpush1.msra.mxu0 0.0
  %4703 = vmatprep.subr.mxu0 0.0
  %4704 = vmatpush1.msra.mxu0 0.0
  %4705 = vmatprep.subr.mxu0 0.0
  %4706 = vmatpush1.msra.mxu0 0.0
  %4707 = vmatprep.subr.mxu0 0.0
  %4708 = vmatpush1.msra.mxu0 0.0
  %4709 = vmatprep.subr.mxu0 0.0
  %4710 = vmatpush1.msra.mxu0 0.0
  %4711 = vmatprep.subr.mxu0 0.0
  %4712 = vmatpush1.msra.mxu0 0.0
  %4713 = vmatprep.subr.mxu0 0.0
  %4714 = vmatpush1.msra.mxu0 0.0
  %4715 = vmatprep.subr.mxu0 0.0
  %4716 = vmatpush1.msra.mxu0 0.0
  %4717 = vmatprep.subr.mxu0 0.0
  %4718 = vmatpush1.msra.mxu0 %v4680
  %4719 = vmatprep.subr.mxu0 0.0
  %4720 = vmatpush1.msra.mxu0 %v4678
  %4721 = vmatprep.subr.mxu0 0.0
  %4722 = vmatpush2.msra.mxu0 0.0
  %4723 = vmatprep.subr.mxu0 0.0
  %4724 = vmatpush2.msra.mxu0 0.0
  %4725 = vmatprep.subr.mxu0 0.0
  %4726 = vmatpush2.msra.mxu0 0.0
  %4727 = vmatprep.subr.mxu0 0.0
  %4728 = vmatpush2.msra.mxu0 0.0
  %4729 = vmatprep.subr.mxu0 0.0
  %4730 = vmatpush2.msra.mxu0 0.0
  %4731 = vmatprep.subr.mxu0 0.0
  %4732 = vmatpush2.msra.mxu0 0.0
  %4733 = vmatprep.subr.mxu0 0.0
  %4734 = vmatpush2.msra.mxu0 0.0
  %4735 = vmatprep.subr.mxu0 0.0
  %4736 = vmatpush2.msra.mxu0 0.0
  %4737 = vmatprep.subr.mxu0 0.0
  %4738 = vmatpush2.msra.mxu0 0.0
  %4739 = vmatprep.subr.mxu0 0.0
  %4740 = vmatpush2.msra.mxu0 0.0
  %4741 = vmatprep.subr.mxu0 0.0
  %4742 = vmatpush2.msra.mxu0 0.0
  %4743 = vmatprep.subr.mxu0 0.0
  %4744 = vmatpush2.msra.mxu0 0.0
  %4745 = vmatprep.subr.mxu0 0.0
  %4746 = vmatpush2.msra.mxu0 0.0
  %4747 = vmatprep.subr.mxu0 0.0
  %4748 = vmatpush2.msra.mxu0 0.0
  %4749 = vmatprep.subr.mxu0 0.0
  %4750 = vmatpush2.msra.mxu0 0.0
  %4751 = vmatprep.subr.mxu0 0.0
  %4752 = vmatpush2.msra.mxu0 0.0
  %4753 = vmatprep.mubr.f32.mxu0 0.0
  %4754 = vmatmul.mubr.f32.gmra.mxu0 %v4684
  %v4755 = vpop.f32.mrf.mxu0
  %v4756 = vadd.f32 0.0, %v4755
  %v4757 = vpop.f32.mrf.mxu0
  %4758 = vmatprep.mubr.f32.mxu0 0.0
  %4759 = vmatmul.mubr.f32.gmra.mxu0 %v4687
  %v4760 = vpop.f32.mrf.mxu0
  %v4761 = vadd.f32 0.0, %v4760
  %v4762 = vpop.f32.mrf.mxu0
  %4763 = vdwg.mxu0
  %4764 = vrot.lane.b32.xlu0 %v3418, 120
  %v4765 = vpop.permute.xlu0 %4764
  %4766 = vrot.lane.b32.xlu0 %v3423, 120
  %v4767 = vpop.permute.xlu0 %4766
  %4768 = vrot.lane.b32.xlu0 %v3418, 88
  %v4769 = vpop.permute.xlu0 %4768
  %4770 = vrot.lane.b32.xlu0 %v3423, 88
  %v4771 = vpop.permute.xlu0 %4770
  %v4772 = vsel %vm563, %v4765, 0
  %v4774 = vsel %vm563, %v4767, 0
  %v4776 = vsel %vm563, %v4769, 0
  %v4778 = vsel %vm563, %v4771, 0
  %4780 = vmatprep.subr.mxu0 0.0
  %4781 = vmatpush1.xpose.msra.mxu0 0.0
  %4782 = vmatprep.subr.mxu0 0.0
  %4783 = vmatpush1.xpose.msra.mxu0 0.0
  %4784 = vmatprep.subr.mxu0 0.0
  %4785 = vmatpush1.xpose.msra.mxu0 0.0
  %4786 = vmatprep.subr.mxu0 0.0
  %4787 = vmatpush1.xpose.msra.mxu0 0.0
  %4788 = vmatprep.subr.mxu0 0.0
  %4789 = vmatpush1.xpose.msra.mxu0 0.0
  %4790 = vmatprep.subr.mxu0 0.0
  %4791 = vmatpush1.xpose.msra.mxu0 0.0
  %4792 = vmatprep.subr.mxu0 0.0
  %4793 = vmatpush1.xpose.msra.mxu0 0.0
  %4794 = vmatprep.subr.mxu0 0.0
  %4795 = vmatpush1.xpose.msra.mxu0 0.0
  %4796 = vmatprep.subr.mxu0 0.0
  %4797 = vmatpush1.xpose.msra.mxu0 0.0
  %4798 = vmatprep.subr.mxu0 0.0
  %4799 = vmatpush1.xpose.msra.mxu0 0.0
  %4800 = vmatprep.subr.mxu0 0.0
  %4801 = vmatpush1.xpose.msra.mxu0 0.0
  %4802 = vmatprep.subr.mxu0 0.0
  %4803 = vmatpush1.xpose.msra.mxu0 0.0
  %4804 = vmatprep.subr.mxu0 0.0
  %4805 = vmatpush1.xpose.msra.mxu0 0.0
  %4806 = vmatprep.subr.mxu0 0.0
  %4807 = vmatpush1.xpose.msra.mxu0 0.0
  %4808 = vmatprep.subr.mxu0 0.0
  %4809 = vmatpush1.xpose.msra.mxu0 %v4778
  %4810 = vmatprep.subr.mxu0 0.0
  %4811 = vmatpush1.xpose.msra.mxu0 %v4776
  %4812 = vmatprep.subr.mxu0 0.0
  %4813 = vmatpush2.xpose.msra.mxu0 0.0
  %4814 = vmatprep.subr.mxu0 0.0
  %4815 = vmatpush2.xpose.msra.mxu0 0.0
  %4816 = vmatprep.subr.mxu0 0.0
  %4817 = vmatpush2.xpose.msra.mxu0 0.0
  %4818 = vmatprep.subr.mxu0 0.0
  %4819 = vmatpush2.xpose.msra.mxu0 0.0
  %4820 = vmatprep.subr.mxu0 0.0
  %4821 = vmatpush2.xpose.msra.mxu0 0.0
  %4822 = vmatprep.subr.mxu0 0.0
  %4823 = vmatpush2.xpose.msra.mxu0 0.0
  %4824 = vmatprep.subr.mxu0 0.0
  %4825 = vmatpush2.xpose.msra.mxu0 0.0
  %4826 = vmatprep.subr.mxu0 0.0
  %4827 = vmatpush2.xpose.msra.mxu0 0.0
  %4828 = vmatprep.subr.mxu0 0.0
  %4829 = vmatpush2.xpose.msra.mxu0 0.0
  %4830 = vmatprep.subr.mxu0 0.0
  %4831 = vmatpush2.xpose.msra.mxu0 0.0
  %4832 = vmatprep.subr.mxu0 0.0
  %4833 = vmatpush2.xpose.msra.mxu0 0.0
  %4834 = vmatprep.subr.mxu0 0.0
  %4835 = vmatpush2.xpose.msra.mxu0 0.0
  %4836 = vmatprep.subr.mxu0 0.0
  %4837 = vmatpush2.xpose.msra.mxu0 0.0
  %4838 = vmatprep.subr.mxu0 0.0
  %4839 = vmatpush2.xpose.msra.mxu0 0.0
  %4840 = vmatprep.subr.mxu0 0.0
  %4841 = vmatpush2.xpose.msra.mxu0 0.0
  %4842 = vmatprep.subr.mxu0 0.0
  %4843 = vmatpush2.xpose.msra.mxu0 0.0
  %4844 = vmatprep.mubr.f32.mxu0 0.0
  %4845 = vmatmul.mubr.f32.gmra.mxu0 %v4772
  %v4846 = vpop.f32.mrf.mxu0
  %v4847 = vadd.f32 0.0, %v4846
  %v4848 = vpop.f32.mrf.mxu0
  %4849 = vmatprep.mubr.f32.mxu0 0.0
  %4850 = vmatmul.mubr.f32.gmra.mxu0 %v4774
  %v4851 = vpop.f32.mrf.mxu0
  %v4852 = vadd.f32 0.0, %v4851
  %v4853 = vpop.f32.mrf.mxu0
  %4854 = vdwg.mxu0
  %v4855 = vmul.f32 %v4847, 0.35355338
  %v4856 = vmul.f32 %v4852, 0.35355338
  %v4857 = vsel %vm649, %v4855, -inf
  %4858 = vmax.xlane.f32.xlu0 %v4857
  %v4859 = vpop.xlane.xlu0 %4858
  %v4860 = vsel %vm649, %v4856, -inf
  %4861 = vmax.xlane.f32.xlu0 %v4860
  %v4862 = vpop.xlane.xlu0 %4861
  %v4863 = vsub.f32 %v4855, %v4859
  %v4864 = vsub.f32 %v4856, %v4862
  %v4865 = vmul.f32 %v4863, 1.442695
  %v4866 = vpow.pop %v4865
  %v4867 = vmul.f32 %v4864, 1.442695
  %v4868 = vpow.pop %v4867
  %v4869 = vsel %vm649, %v4866, 0.0
  %4870 = vadd.xlane.f32.xlu0 %v4869
  %v4871 = vpop.xlane.xlu0 %4870
  %v4872 = vsel %vm649, %v4868, 0.0
  %4873 = vadd.xlane.f32.xlu0 %v4872
  %v4874 = vpop.xlane.xlu0 %4873
  %v4875 = vrcp.pop %v4871
  %v4876 = vmul.f32 %v4866, %v4875
  %v4877 = vrcp.pop %v4874
  %v4878 = vmul.f32 %v4868, %v4877
  %4879 = vrot.lane.b32.xlu0 %v3418, 56
  %v4880 = vpop.permute.xlu0 %4879
  %4881 = vrot.lane.b32.xlu0 %v3423, 56
  %v4882 = vpop.permute.xlu0 %4881
  %v4886 = vsel %vm649, %v4876, 0
  %v4889 = vsel %vm649, %v4878, 0
  %4891 = vmatprep.subr.mxu0 0.0
  %4892 = vmatpush1.msra.mxu0 0.0
  %4893 = vmatprep.subr.mxu0 0.0
  %4894 = vmatpush1.msra.mxu0 0.0
  %4895 = vmatprep.subr.mxu0 0.0
  %4896 = vmatpush1.msra.mxu0 0.0
  %4897 = vmatprep.subr.mxu0 0.0
  %4898 = vmatpush1.msra.mxu0 0.0
  %4899 = vmatprep.subr.mxu0 0.0
  %4900 = vmatpush1.msra.mxu0 0.0
  %4901 = vmatprep.subr.mxu0 0.0
  %4902 = vmatpush1.msra.mxu0 0.0
  %4903 = vmatprep.subr.mxu0 0.0
  %4904 = vmatpush1.msra.mxu0 0.0
  %4905 = vmatprep.subr.mxu0 0.0
  %4906 = vmatpush1.msra.mxu0 0.0
  %4907 = vmatprep.subr.mxu0 0.0
  %4908 = vmatpush1.msra.mxu0 0.0
  %4909 = vmatprep.subr.mxu0 0.0
  %4910 = vmatpush1.msra.mxu0 0.0
  %4911 = vmatprep.subr.mxu0 0.0
  %4912 = vmatpush1.msra.mxu0 0.0
  %4913 = vmatprep.subr.mxu0 0.0
  %4914 = vmatpush1.msra.mxu0 0.0
  %4915 = vmatprep.subr.mxu0 0.0
  %4916 = vmatpush1.msra.mxu0 0.0
  %4917 = vmatprep.subr.mxu0 0.0
  %4918 = vmatpush1.msra.mxu0 0.0
  %4919 = vmatprep.subr.mxu0 0.0
  %4920 = vmatpush1.msra.mxu0 %v4882
  %4921 = vmatprep.subr.mxu0 0.0
  %4922 = vmatpush1.msra.mxu0 %v4880
  %4923 = vmatprep.subr.mxu0 0.0
  %4924 = vmatpush2.msra.mxu0 0.0
  %4925 = vmatprep.subr.mxu0 0.0
  %4926 = vmatpush2.msra.mxu0 0.0
  %4927 = vmatprep.subr.mxu0 0.0
  %4928 = vmatpush2.msra.mxu0 0.0
  %4929 = vmatprep.subr.mxu0 0.0
  %4930 = vmatpush2.msra.mxu0 0.0
  %4931 = vmatprep.subr.mxu0 0.0
  %4932 = vmatpush2.msra.mxu0 0.0
  %4933 = vmatprep.subr.mxu0 0.0
  %4934 = vmatpush2.msra.mxu0 0.0
  %4935 = vmatprep.subr.mxu0 0.0
  %4936 = vmatpush2.msra.mxu0 0.0
  %4937 = vmatprep.subr.mxu0 0.0
  %4938 = vmatpush2.msra.mxu0 0.0
  %4939 = vmatprep.subr.mxu0 0.0
  %4940 = vmatpush2.msra.mxu0 0.0
  %4941 = vmatprep.subr.mxu0 0.0
  %4942 = vmatpush2.msra.mxu0 0.0
  %4943 = vmatprep.subr.mxu0 0.0
  %4944 = vmatpush2.msra.mxu0 0.0
  %4945 = vmatprep.subr.mxu0 0.0
  %4946 = vmatpush2.msra.mxu0 0.0
  %4947 = vmatprep.subr.mxu0 0.0
  %4948 = vmatpush2.msra.mxu0 0.0
  %4949 = vmatprep.subr.mxu0 0.0
  %4950 = vmatpush2.msra.mxu0 0.0
  %4951 = vmatprep.subr.mxu0 0.0
  %4952 = vmatpush2.msra.mxu0 0.0
  %4953 = vmatprep.subr.mxu0 0.0
  %4954 = vmatpush2.msra.mxu0 0.0
  %4955 = vmatprep.mubr.f32.mxu0 0.0
  %4956 = vmatmul.mubr.f32.gmra.mxu0 %v4886
  %v4957 = vpop.f32.mrf.mxu0
  %v4958 = vadd.f32 0.0, %v4957
  %v4959 = vpop.f32.mrf.mxu0
  %4960 = vmatprep.mubr.f32.mxu0 0.0
  %4961 = vmatmul.mubr.f32.gmra.mxu0 %v4889
  %v4962 = vpop.f32.mrf.mxu0
  %v4963 = vadd.f32 0.0, %v4962
  %v4964 = vpop.f32.mrf.mxu0
  %4965 = vdwg.mxu0
  %v4967 = vsel %vm563, %v4958, 0
  %v4970 = vsel %vm563, %v4963, 0
  %4972 = vmatprep.subr.mxu0 0.0
  %4973 = vmatpush1.msra.mxu0 0.0
  %4974 = vmatprep.subr.mxu0 0.0
  %4975 = vmatpush1.msra.mxu0 0.0
  %4976 = vmatprep.subr.mxu0 0.0
  %4977 = vmatpush1.msra.mxu0 0.0
  %4978 = vmatprep.subr.mxu0 0.0
  %4979 = vmatpush1.msra.mxu0 0.0
  %4980 = vmatprep.subr.mxu0 0.0
  %4981 = vmatpush1.msra.mxu0 0.0
  %4982 = vmatprep.subr.mxu0 0.0
  %4983 = vmatpush1.msra.mxu0 0.0
  %4984 = vmatprep.subr.mxu0 0.0
  %4985 = vmatpush1.msra.mxu0 0.0
  %4986 = vmatprep.subr.mxu0 0.0
  %4987 = vmatpush1.msra.mxu0 0.0
  %4988 = vmatprep.subr.mxu0 0.0
  %4989 = vmatpush1.msra.mxu0 0.0
  %4990 = vmatprep.subr.mxu0 0.0
  %4991 = vmatpush1.msra.mxu0 0.0
  %4992 = vmatprep.subr.mxu0 0.0
  %4993 = vmatpush1.msra.mxu0 0.0
  %4994 = vmatprep.subr.mxu0 0.0
  %4995 = vmatpush1.msra.mxu0 0.0
  %4996 = vmatprep.subr.mxu0 0.0
  %4997 = vmatpush1.msra.mxu0 0.0
  %4998 = vmatprep.subr.mxu0 0.0
  %4999 = vmatpush1.msra.mxu0 0.0
  %5000 = vmatprep.subr.mxu0 0.0
  %5001 = vmatpush1.msra.mxu0 0.0
  %5002 = vmatprep.subr.mxu0 0.0
  %5003 = vmatpush1.msra.mxu0 %v3427
  %5004 = vmatprep.subr.mxu0 0.0
  %5005 = vmatpush2.msra.mxu0 0.0
  %5006 = vmatprep.subr.mxu0 0.0
  %5007 = vmatpush2.msra.mxu0 0.0
  %5008 = vmatprep.subr.mxu0 0.0
  %5009 = vmatpush2.msra.mxu0 0.0
  %5010 = vmatprep.subr.mxu0 0.0
  %5011 = vmatpush2.msra.mxu0 0.0
  %5012 = vmatprep.subr.mxu0 0.0
  %5013 = vmatpush2.msra.mxu0 0.0
  %5014 = vmatprep.subr.mxu0 0.0
  %5015 = vmatpush2.msra.mxu0 0.0
  %5016 = vmatprep.subr.mxu0 0.0
  %5017 = vmatpush2.msra.mxu0 0.0
  %5018 = vmatprep.subr.mxu0 0.0
  %5019 = vmatpush2.msra.mxu0 0.0
  %5020 = vmatprep.subr.mxu0 0.0
  %5021 = vmatpush2.msra.mxu0 0.0
  %5022 = vmatprep.subr.mxu0 0.0
  %5023 = vmatpush2.msra.mxu0 0.0
  %5024 = vmatprep.subr.mxu0 0.0
  %5025 = vmatpush2.msra.mxu0 0.0
  %5026 = vmatprep.subr.mxu0 0.0
  %5027 = vmatpush2.msra.mxu0 0.0
  %5028 = vmatprep.subr.mxu0 0.0
  %5029 = vmatpush2.msra.mxu0 0.0
  %5030 = vmatprep.subr.mxu0 0.0
  %5031 = vmatpush2.msra.mxu0 0.0
  %5032 = vmatprep.subr.mxu0 0.0
  %5033 = vmatpush2.msra.mxu0 0.0
  %5034 = vmatprep.subr.mxu0 0.0
  %5035 = vmatpush2.msra.mxu0 0.0
  %5036 = vmatprep.mubr.f32.mxu0 0.0
  %5037 = vmatmul.mubr.f32.gmra.mxu0 %v4967
  %v5038 = vpop.f32.mrf.mxu0
  %v5039 = vadd.f32 0.0, %v5038
  %v5040 = vpop.f32.mrf.mxu0
  %5041 = vmatprep.mubr.f32.mxu0 0.0
  %5042 = vmatmul.mubr.f32.gmra.mxu0 %v4970
  %v5043 = vpop.f32.mrf.mxu0
  %v5044 = vadd.f32 0.0, %v5043
  %v5045 = vpop.f32.mrf.mxu0
  %5046 = vdwg.mxu0
  %v5048 = vsel %vm563, %v4756, 0
  %v5051 = vsel %vm563, %v4761, 0
  %5053 = vmatprep.subr.mxu0 0.0
  %5054 = vmatpush1.msra.mxu0 0.0
  %5055 = vmatprep.subr.mxu0 0.0
  %5056 = vmatpush1.msra.mxu0 0.0
  %5057 = vmatprep.subr.mxu0 0.0
  %5058 = vmatpush1.msra.mxu0 0.0
  %5059 = vmatprep.subr.mxu0 0.0
  %5060 = vmatpush1.msra.mxu0 0.0
  %5061 = vmatprep.subr.mxu0 0.0
  %5062 = vmatpush1.msra.mxu0 0.0
  %5063 = vmatprep.subr.mxu0 0.0
  %5064 = vmatpush1.msra.mxu0 0.0
  %5065 = vmatprep.subr.mxu0 0.0
  %5066 = vmatpush1.msra.mxu0 0.0
  %5067 = vmatprep.subr.mxu0 0.0
  %5068 = vmatpush1.msra.mxu0 0.0
  %5069 = vmatprep.subr.mxu0 0.0
  %5070 = vmatpush1.msra.mxu0 0.0
  %5071 = vmatprep.subr.mxu0 0.0
  %5072 = vmatpush1.msra.mxu0 0.0
  %5073 = vmatprep.subr.mxu0 0.0
  %5074 = vmatpush1.msra.mxu0 0.0
  %5075 = vmatprep.subr.mxu0 0.0
  %5076 = vmatpush1.msra.mxu0 0.0
  %5077 = vmatprep.subr.mxu0 0.0
  %5078 = vmatpush1.msra.mxu0 0.0
  %5079 = vmatprep.subr.mxu0 0.0
  %5080 = vmatpush1.msra.mxu0 0.0
  %5081 = vmatprep.subr.mxu0 0.0
  %5082 = vmatpush1.msra.mxu0 0.0
  %5083 = vmatprep.subr.mxu0 0.0
  %5084 = vmatpush1.msra.mxu0 %v3426
  %5085 = vmatprep.subr.mxu0 0.0
  %5086 = vmatpush2.msra.mxu0 0.0
  %5087 = vmatprep.subr.mxu0 0.0
  %5088 = vmatpush2.msra.mxu0 0.0
  %5089 = vmatprep.subr.mxu0 0.0
  %5090 = vmatpush2.msra.mxu0 0.0
  %5091 = vmatprep.subr.mxu0 0.0
  %5092 = vmatpush2.msra.mxu0 0.0
  %5093 = vmatprep.subr.mxu0 0.0
  %5094 = vmatpush2.msra.mxu0 0.0
  %5095 = vmatprep.subr.mxu0 0.0
  %5096 = vmatpush2.msra.mxu0 0.0
  %5097 = vmatprep.subr.mxu0 0.0
  %5098 = vmatpush2.msra.mxu0 0.0
  %5099 = vmatprep.subr.mxu0 0.0
  %5100 = vmatpush2.msra.mxu0 0.0
  %5101 = vmatprep.subr.mxu0 0.0
  %5102 = vmatpush2.msra.mxu0 0.0
  %5103 = vmatprep.subr.mxu0 0.0
  %5104 = vmatpush2.msra.mxu0 0.0
  %5105 = vmatprep.subr.mxu0 0.0
  %5106 = vmatpush2.msra.mxu0 0.0
  %5107 = vmatprep.subr.mxu0 0.0
  %5108 = vmatpush2.msra.mxu0 0.0
  %5109 = vmatprep.subr.mxu0 0.0
  %5110 = vmatpush2.msra.mxu0 0.0
  %5111 = vmatprep.subr.mxu0 0.0
  %5112 = vmatpush2.msra.mxu0 0.0
  %5113 = vmatprep.subr.mxu0 0.0
  %5114 = vmatpush2.msra.mxu0 0.0
  %5115 = vmatprep.subr.mxu0 0.0
  %5116 = vmatpush2.msra.mxu0 0.0
  %5117 = vmatprep.mubr.f32.mxu0 0.0
  %5118 = vmatmul.mubr.f32.gmra.mxu0 %v5048
  %v5119 = vpop.f32.mrf.mxu0
  %v5120 = vadd.f32 %v5039, %v5119
  %v5121 = vpop.f32.mrf.mxu0
  %5122 = vmatprep.mubr.f32.mxu0 0.0
  %5123 = vmatmul.mubr.f32.gmra.mxu0 %v5051
  %v5124 = vpop.f32.mrf.mxu0
  %v5125 = vadd.f32 %v5044, %v5124
  %v5126 = vpop.f32.mrf.mxu0
  %5127 = vdwg.mxu0
  %5128 = vrot.lane.b32.xlu0 %v3418, 112
  %v5129 = vpop.permute.xlu0 %5128
  %5130 = vrot.lane.b32.xlu0 %v3423, 112
  %v5131 = vpop.permute.xlu0 %5130
  %5132 = vrot.lane.b32.xlu0 %v3418, 80
  %v5133 = vpop.permute.xlu0 %5132
  %5134 = vrot.lane.b32.xlu0 %v3423, 80
  %v5135 = vpop.permute.xlu0 %5134
  %v5136 = vsel %vm563, %v5129, 0
  %v5138 = vsel %vm563, %v5131, 0
  %v5140 = vsel %vm563, %v5133, 0
  %v5142 = vsel %vm563, %v5135, 0
  %5144 = vmatprep.subr.mxu0 0.0
  %5145 = vmatpush1.xpose.msra.mxu0 0.0
  %5146 = vmatprep.subr.mxu0 0.0
  %5147 = vmatpush1.xpose.msra.mxu0 0.0
  %5148 = vmatprep.subr.mxu0 0.0
  %5149 = vmatpush1.xpose.msra.mxu0 0.0
  %5150 = vmatprep.subr.mxu0 0.0
  %5151 = vmatpush1.xpose.msra.mxu0 0.0
  %5152 = vmatprep.subr.mxu0 0.0
  %5153 = vmatpush1.xpose.msra.mxu0 0.0
  %5154 = vmatprep.subr.mxu0 0.0
  %5155 = vmatpush1.xpose.msra.mxu0 0.0
  %5156 = vmatprep.subr.mxu0 0.0
  %5157 = vmatpush1.xpose.msra.mxu0 0.0
  %5158 = vmatprep.subr.mxu0 0.0
  %5159 = vmatpush1.xpose.msra.mxu0 0.0
  %5160 = vmatprep.subr.mxu0 0.0
  %5161 = vmatpush1.xpose.msra.mxu0 0.0
  %5162 = vmatprep.subr.mxu0 0.0
  %5163 = vmatpush1.xpose.msra.mxu0 0.0
  %5164 = vmatprep.subr.mxu0 0.0
  %5165 = vmatpush1.xpose.msra.mxu0 0.0
  %5166 = vmatprep.subr.mxu0 0.0
  %5167 = vmatpush1.xpose.msra.mxu0 0.0
  %5168 = vmatprep.subr.mxu0 0.0
  %5169 = vmatpush1.xpose.msra.mxu0 0.0
  %5170 = vmatprep.subr.mxu0 0.0
  %5171 = vmatpush1.xpose.msra.mxu0 0.0
  %5172 = vmatprep.subr.mxu0 0.0
  %5173 = vmatpush1.xpose.msra.mxu0 %v5142
  %5174 = vmatprep.subr.mxu0 0.0
  %5175 = vmatpush1.xpose.msra.mxu0 %v5140
  %5176 = vmatprep.subr.mxu0 0.0
  %5177 = vmatpush2.xpose.msra.mxu0 0.0
  %5178 = vmatprep.subr.mxu0 0.0
  %5179 = vmatpush2.xpose.msra.mxu0 0.0
  %5180 = vmatprep.subr.mxu0 0.0
  %5181 = vmatpush2.xpose.msra.mxu0 0.0
  %5182 = vmatprep.subr.mxu0 0.0
  %5183 = vmatpush2.xpose.msra.mxu0 0.0
  %5184 = vmatprep.subr.mxu0 0.0
  %5185 = vmatpush2.xpose.msra.mxu0 0.0
  %5186 = vmatprep.subr.mxu0 0.0
  %5187 = vmatpush2.xpose.msra.mxu0 0.0
  %5188 = vmatprep.subr.mxu0 0.0
  %5189 = vmatpush2.xpose.msra.mxu0 0.0
  %5190 = vmatprep.subr.mxu0 0.0
  %5191 = vmatpush2.xpose.msra.mxu0 0.0
  %5192 = vmatprep.subr.mxu0 0.0
  %5193 = vmatpush2.xpose.msra.mxu0 0.0
  %5194 = vmatprep.subr.mxu0 0.0
  %5195 = vmatpush2.xpose.msra.mxu0 0.0
  %5196 = vmatprep.subr.mxu0 0.0
  %5197 = vmatpush2.xpose.msra.mxu0 0.0
  %5198 = vmatprep.subr.mxu0 0.0
  %5199 = vmatpush2.xpose.msra.mxu0 0.0
  %5200 = vmatprep.subr.mxu0 0.0
  %5201 = vmatpush2.xpose.msra.mxu0 0.0
  %5202 = vmatprep.subr.mxu0 0.0
  %5203 = vmatpush2.xpose.msra.mxu0 0.0
  %5204 = vmatprep.subr.mxu0 0.0
  %5205 = vmatpush2.xpose.msra.mxu0 0.0
  %5206 = vmatprep.subr.mxu0 0.0
  %5207 = vmatpush2.xpose.msra.mxu0 0.0
  %5208 = vmatprep.mubr.f32.mxu0 0.0
  %5209 = vmatmul.mubr.f32.gmra.mxu0 %v5136
  %v5210 = vpop.f32.mrf.mxu0
  %v5211 = vadd.f32 0.0, %v5210
  %v5212 = vpop.f32.mrf.mxu0
  %5213 = vmatprep.mubr.f32.mxu0 0.0
  %5214 = vmatmul.mubr.f32.gmra.mxu0 %v5138
  %v5215 = vpop.f32.mrf.mxu0
  %v5216 = vadd.f32 0.0, %v5215
  %v5217 = vpop.f32.mrf.mxu0
  %5218 = vdwg.mxu0
  %v5219 = vmul.f32 %v5211, 0.35355338
  %v5220 = vmul.f32 %v5216, 0.35355338
  %v5221 = vsel %vm649, %v5219, -inf
  %5222 = vmax.xlane.f32.xlu0 %v5221
  %v5223 = vpop.xlane.xlu0 %5222
  %v5224 = vsel %vm649, %v5220, -inf
  %5225 = vmax.xlane.f32.xlu0 %v5224
  %v5226 = vpop.xlane.xlu0 %5225
  %v5227 = vsub.f32 %v5219, %v5223
  %v5228 = vsub.f32 %v5220, %v5226
  %v5229 = vmul.f32 %v5227, 1.442695
  %v5230 = vpow.pop %v5229
  %v5231 = vmul.f32 %v5228, 1.442695
  %v5232 = vpow.pop %v5231
  %v5233 = vsel %vm649, %v5230, 0.0
  %5234 = vadd.xlane.f32.xlu0 %v5233
  %v5235 = vpop.xlane.xlu0 %5234
  %v5236 = vsel %vm649, %v5232, 0.0
  %5237 = vadd.xlane.f32.xlu0 %v5236
  %v5238 = vpop.xlane.xlu0 %5237
  %v5239 = vrcp.pop %v5235
  %v5240 = vmul.f32 %v5230, %v5239
  %v5241 = vrcp.pop %v5238
  %v5242 = vmul.f32 %v5232, %v5241
  %5243 = vrot.lane.b32.xlu0 %v3418, 48
  %v5244 = vpop.permute.xlu0 %5243
  %5245 = vrot.lane.b32.xlu0 %v3423, 48
  %v5246 = vpop.permute.xlu0 %5245
  %v5250 = vsel %vm649, %v5240, 0
  %v5253 = vsel %vm649, %v5242, 0
  %5255 = vmatprep.subr.mxu0 0.0
  %5256 = vmatpush1.msra.mxu0 0.0
  %5257 = vmatprep.subr.mxu0 0.0
  %5258 = vmatpush1.msra.mxu0 0.0
  %5259 = vmatprep.subr.mxu0 0.0
  %5260 = vmatpush1.msra.mxu0 0.0
  %5261 = vmatprep.subr.mxu0 0.0
  %5262 = vmatpush1.msra.mxu0 0.0
  %5263 = vmatprep.subr.mxu0 0.0
  %5264 = vmatpush1.msra.mxu0 0.0
  %5265 = vmatprep.subr.mxu0 0.0
  %5266 = vmatpush1.msra.mxu0 0.0
  %5267 = vmatprep.subr.mxu0 0.0
  %5268 = vmatpush1.msra.mxu0 0.0
  %5269 = vmatprep.subr.mxu0 0.0
  %5270 = vmatpush1.msra.mxu0 0.0
  %5271 = vmatprep.subr.mxu0 0.0
  %5272 = vmatpush1.msra.mxu0 0.0
  %5273 = vmatprep.subr.mxu0 0.0
  %5274 = vmatpush1.msra.mxu0 0.0
  %5275 = vmatprep.subr.mxu0 0.0
  %5276 = vmatpush1.msra.mxu0 0.0
  %5277 = vmatprep.subr.mxu0 0.0
  %5278 = vmatpush1.msra.mxu0 0.0
  %5279 = vmatprep.subr.mxu0 0.0
  %5280 = vmatpush1.msra.mxu0 0.0
  %5281 = vmatprep.subr.mxu0 0.0
  %5282 = vmatpush1.msra.mxu0 0.0
  %5283 = vmatprep.subr.mxu0 0.0
  %5284 = vmatpush1.msra.mxu0 %v5246
  %5285 = vmatprep.subr.mxu0 0.0
  %5286 = vmatpush1.msra.mxu0 %v5244
  %5287 = vmatprep.subr.mxu0 0.0
  %5288 = vmatpush2.msra.mxu0 0.0
  %5289 = vmatprep.subr.mxu0 0.0
  %5290 = vmatpush2.msra.mxu0 0.0
  %5291 = vmatprep.subr.mxu0 0.0
  %5292 = vmatpush2.msra.mxu0 0.0
  %5293 = vmatprep.subr.mxu0 0.0
  %5294 = vmatpush2.msra.mxu0 0.0
  %5295 = vmatprep.subr.mxu0 0.0
  %5296 = vmatpush2.msra.mxu0 0.0
  %5297 = vmatprep.subr.mxu0 0.0
  %5298 = vmatpush2.msra.mxu0 0.0
  %5299 = vmatprep.subr.mxu0 0.0
  %5300 = vmatpush2.msra.mxu0 0.0
  %5301 = vmatprep.subr.mxu0 0.0
  %5302 = vmatpush2.msra.mxu0 0.0
  %5303 = vmatprep.subr.mxu0 0.0
  %5304 = vmatpush2.msra.mxu0 0.0
  %5305 = vmatprep.subr.mxu0 0.0
  %5306 = vmatpush2.msra.mxu0 0.0
  %5307 = vmatprep.subr.mxu0 0.0
  %5308 = vmatpush2.msra.mxu0 0.0
  %5309 = vmatprep.subr.mxu0 0.0
  %5310 = vmatpush2.msra.mxu0 0.0
  %5311 = vmatprep.subr.mxu0 0.0
  %5312 = vmatpush2.msra.mxu0 0.0
  %5313 = vmatprep.subr.mxu0 0.0
  %5314 = vmatpush2.msra.mxu0 0.0
  %5315 = vmatprep.subr.mxu0 0.0
  %5316 = vmatpush2.msra.mxu0 0.0
  %5317 = vmatprep.subr.mxu0 0.0
  %5318 = vmatpush2.msra.mxu0 0.0
  %5319 = vmatprep.mubr.f32.mxu0 0.0
  %5320 = vmatmul.mubr.f32.gmra.mxu0 %v5250
  %v5321 = vpop.f32.mrf.mxu0
  %v5322 = vadd.f32 0.0, %v5321
  %v5323 = vpop.f32.mrf.mxu0
  %5324 = vmatprep.mubr.f32.mxu0 0.0
  %5325 = vmatmul.mubr.f32.gmra.mxu0 %v5253
  %v5326 = vpop.f32.mrf.mxu0
  %v5327 = vadd.f32 0.0, %v5326
  %v5328 = vpop.f32.mrf.mxu0
  %5329 = vdwg.mxu0
  %v5331 = vsel %vm563, %v5322, 0
  %v5334 = vsel %vm563, %v5327, 0
  %5336 = vmatprep.subr.mxu0 0.0
  %5337 = vmatpush1.msra.mxu0 0.0
  %5338 = vmatprep.subr.mxu0 0.0
  %5339 = vmatpush1.msra.mxu0 0.0
  %5340 = vmatprep.subr.mxu0 0.0
  %5341 = vmatpush1.msra.mxu0 0.0
  %5342 = vmatprep.subr.mxu0 0.0
  %5343 = vmatpush1.msra.mxu0 0.0
  %5344 = vmatprep.subr.mxu0 0.0
  %5345 = vmatpush1.msra.mxu0 0.0
  %5346 = vmatprep.subr.mxu0 0.0
  %5347 = vmatpush1.msra.mxu0 0.0
  %5348 = vmatprep.subr.mxu0 0.0
  %5349 = vmatpush1.msra.mxu0 0.0
  %5350 = vmatprep.subr.mxu0 0.0
  %5351 = vmatpush1.msra.mxu0 0.0
  %5352 = vmatprep.subr.mxu0 0.0
  %5353 = vmatpush1.msra.mxu0 0.0
  %5354 = vmatprep.subr.mxu0 0.0
  %5355 = vmatpush1.msra.mxu0 0.0
  %5356 = vmatprep.subr.mxu0 0.0
  %5357 = vmatpush1.msra.mxu0 0.0
  %5358 = vmatprep.subr.mxu0 0.0
  %5359 = vmatpush1.msra.mxu0 0.0
  %5360 = vmatprep.subr.mxu0 0.0
  %5361 = vmatpush1.msra.mxu0 0.0
  %5362 = vmatprep.subr.mxu0 0.0
  %5363 = vmatpush1.msra.mxu0 0.0
  %5364 = vmatprep.subr.mxu0 0.0
  %5365 = vmatpush1.msra.mxu0 0.0
  %5366 = vmatprep.subr.mxu0 0.0
  %5367 = vmatpush1.msra.mxu0 %v3428
  %5368 = vmatprep.subr.mxu0 0.0
  %5369 = vmatpush2.msra.mxu0 0.0
  %5370 = vmatprep.subr.mxu0 0.0
  %5371 = vmatpush2.msra.mxu0 0.0
  %5372 = vmatprep.subr.mxu0 0.0
  %5373 = vmatpush2.msra.mxu0 0.0
  %5374 = vmatprep.subr.mxu0 0.0
  %5375 = vmatpush2.msra.mxu0 0.0
  %5376 = vmatprep.subr.mxu0 0.0
  %5377 = vmatpush2.msra.mxu0 0.0
  %5378 = vmatprep.subr.mxu0 0.0
  %5379 = vmatpush2.msra.mxu0 0.0
  %5380 = vmatprep.subr.mxu0 0.0
  %5381 = vmatpush2.msra.mxu0 0.0
  %5382 = vmatprep.subr.mxu0 0.0
  %5383 = vmatpush2.msra.mxu0 0.0
  %5384 = vmatprep.subr.mxu0 0.0
  %5385 = vmatpush2.msra.mxu0 0.0
  %5386 = vmatprep.subr.mxu0 0.0
  %5387 = vmatpush2.msra.mxu0 0.0
  %5388 = vmatprep.subr.mxu0 0.0
  %5389 = vmatpush2.msra.mxu0 0.0
  %5390 = vmatprep.subr.mxu0 0.0
  %5391 = vmatpush2.msra.mxu0 0.0
  %5392 = vmatprep.subr.mxu0 0.0
  %5393 = vmatpush2.msra.mxu0 0.0
  %5394 = vmatprep.subr.mxu0 0.0
  %5395 = vmatpush2.msra.mxu0 0.0
  %5396 = vmatprep.subr.mxu0 0.0
  %5397 = vmatpush2.msra.mxu0 0.0
  %5398 = vmatprep.subr.mxu0 0.0
  %5399 = vmatpush2.msra.mxu0 0.0
  %5400 = vmatprep.mubr.f32.mxu0 0.0
  %5401 = vmatmul.mubr.f32.gmra.mxu0 %v5331
  %v5402 = vpop.f32.mrf.mxu0
  %v5403 = vadd.f32 0.0, %v5402
  %v5404 = vpop.f32.mrf.mxu0
  %5405 = vmatprep.mubr.f32.mxu0 0.0
  %5406 = vmatmul.mubr.f32.gmra.mxu0 %v5334
  %v5407 = vpop.f32.mrf.mxu0
  %v5408 = vadd.f32 0.0, %v5407
  %v5409 = vpop.f32.mrf.mxu0
  %5410 = vdwg.mxu0
  %v5411 = vadd.f32 %v5120, %v5403
  %v5412 = vadd.f32 %v5125, %v5408
  %5413 = vrot.lane.b32.xlu0 %v3418, 104
  %v5414 = vpop.permute.xlu0 %5413
  %5415 = vrot.lane.b32.xlu0 %v3423, 104
  %v5416 = vpop.permute.xlu0 %5415
  %5417 = vrot.lane.b32.xlu0 %v3418, 72
  %v5418 = vpop.permute.xlu0 %5417
  %5419 = vrot.lane.b32.xlu0 %v3423, 72
  %v5420 = vpop.permute.xlu0 %5419
  %v5421 = vsel %vm563, %v5414, 0
  %v5423 = vsel %vm563, %v5416, 0
  %v5425 = vsel %vm563, %v5418, 0
  %v5427 = vsel %vm563, %v5420, 0
  %5429 = vmatprep.subr.mxu0 0.0
  %5430 = vmatpush1.xpose.msra.mxu0 0.0
  %5431 = vmatprep.subr.mxu0 0.0
  %5432 = vmatpush1.xpose.msra.mxu0 0.0
  %5433 = vmatprep.subr.mxu0 0.0
  %5434 = vmatpush1.xpose.msra.mxu0 0.0
  %5435 = vmatprep.subr.mxu0 0.0
  %5436 = vmatpush1.xpose.msra.mxu0 0.0
  %5437 = vmatprep.subr.mxu0 0.0
  %5438 = vmatpush1.xpose.msra.mxu0 0.0
  %5439 = vmatprep.subr.mxu0 0.0
  %5440 = vmatpush1.xpose.msra.mxu0 0.0
  %5441 = vmatprep.subr.mxu0 0.0
  %5442 = vmatpush1.xpose.msra.mxu0 0.0
  %5443 = vmatprep.subr.mxu0 0.0
  %5444 = vmatpush1.xpose.msra.mxu0 0.0
  %5445 = vmatprep.subr.mxu0 0.0
  %5446 = vmatpush1.xpose.msra.mxu0 0.0
  %5447 = vmatprep.subr.mxu0 0.0
  %5448 = vmatpush1.xpose.msra.mxu0 0.0
  %5449 = vmatprep.subr.mxu0 0.0
  %5450 = vmatpush1.xpose.msra.mxu0 0.0
  %5451 = vmatprep.subr.mxu0 0.0
  %5452 = vmatpush1.xpose.msra.mxu0 0.0
  %5453 = vmatprep.subr.mxu0 0.0
  %5454 = vmatpush1.xpose.msra.mxu0 0.0
  %5455 = vmatprep.subr.mxu0 0.0
  %5456 = vmatpush1.xpose.msra.mxu0 0.0
  %5457 = vmatprep.subr.mxu0 0.0
  %5458 = vmatpush1.xpose.msra.mxu0 %v5427
  %5459 = vmatprep.subr.mxu0 0.0
  %5460 = vmatpush1.xpose.msra.mxu0 %v5425
  %5461 = vmatprep.subr.mxu0 0.0
  %5462 = vmatpush2.xpose.msra.mxu0 0.0
  %5463 = vmatprep.subr.mxu0 0.0
  %5464 = vmatpush2.xpose.msra.mxu0 0.0
  %5465 = vmatprep.subr.mxu0 0.0
  %5466 = vmatpush2.xpose.msra.mxu0 0.0
  %5467 = vmatprep.subr.mxu0 0.0
  %5468 = vmatpush2.xpose.msra.mxu0 0.0
  %5469 = vmatprep.subr.mxu0 0.0
  %5470 = vmatpush2.xpose.msra.mxu0 0.0
  %5471 = vmatprep.subr.mxu0 0.0
  %5472 = vmatpush2.xpose.msra.mxu0 0.0
  %5473 = vmatprep.subr.mxu0 0.0
  %5474 = vmatpush2.xpose.msra.mxu0 0.0
  %5475 = vmatprep.subr.mxu0 0.0
  %5476 = vmatpush2.xpose.msra.mxu0 0.0
  %5477 = vmatprep.subr.mxu0 0.0
  %5478 = vmatpush2.xpose.msra.mxu0 0.0
  %5479 = vmatprep.subr.mxu0 0.0
  %5480 = vmatpush2.xpose.msra.mxu0 0.0
  %5481 = vmatprep.subr.mxu0 0.0
  %5482 = vmatpush2.xpose.msra.mxu0 0.0
  %5483 = vmatprep.subr.mxu0 0.0
  %5484 = vmatpush2.xpose.msra.mxu0 0.0
  %5485 = vmatprep.subr.mxu0 0.0
  %5486 = vmatpush2.xpose.msra.mxu0 0.0
  %5487 = vmatprep.subr.mxu0 0.0
  %5488 = vmatpush2.xpose.msra.mxu0 0.0
  %5489 = vmatprep.subr.mxu0 0.0
  %5490 = vmatpush2.xpose.msra.mxu0 0.0
  %5491 = vmatprep.subr.mxu0 0.0
  %5492 = vmatpush2.xpose.msra.mxu0 0.0
  %5493 = vmatprep.mubr.f32.mxu0 0.0
  %5494 = vmatmul.mubr.f32.gmra.mxu0 %v5421
  %v5495 = vpop.f32.mrf.mxu0
  %v5496 = vadd.f32 0.0, %v5495
  %v5497 = vpop.f32.mrf.mxu0
  %5498 = vmatprep.mubr.f32.mxu0 0.0
  %5499 = vmatmul.mubr.f32.gmra.mxu0 %v5423
  %v5500 = vpop.f32.mrf.mxu0
  %v5501 = vadd.f32 0.0, %v5500
  %v5502 = vpop.f32.mrf.mxu0
  %5503 = vdwg.mxu0
  %v5504 = vmul.f32 %v5496, 0.35355338
  %v5505 = vmul.f32 %v5501, 0.35355338
  %v5506 = vsel %vm649, %v5504, -inf
  %5507 = vmax.xlane.f32.xlu0 %v5506
  %v5508 = vpop.xlane.xlu0 %5507
  %v5509 = vsel %vm649, %v5505, -inf
  %5510 = vmax.xlane.f32.xlu0 %v5509
  %v5511 = vpop.xlane.xlu0 %5510
  %v5512 = vsub.f32 %v5504, %v5508
  %v5513 = vsub.f32 %v5505, %v5511
  %v5514 = vmul.f32 %v5512, 1.442695
  %v5515 = vpow.pop %v5514
  %v5516 = vmul.f32 %v5513, 1.442695
  %v5517 = vpow.pop %v5516
  %v5518 = vsel %vm649, %v5515, 0.0
  %5519 = vadd.xlane.f32.xlu0 %v5518
  %v5520 = vpop.xlane.xlu0 %5519
  %v5521 = vsel %vm649, %v5517, 0.0
  %5522 = vadd.xlane.f32.xlu0 %v5521
  %v5523 = vpop.xlane.xlu0 %5522
  %v5524 = vrcp.pop %v5520
  %v5525 = vmul.f32 %v5515, %v5524
  %v5526 = vrcp.pop %v5523
  %v5527 = vmul.f32 %v5517, %v5526
  %5528 = vrot.lane.b32.xlu0 %v3418, 40
  %v5529 = vpop.permute.xlu0 %5528
  %5530 = vrot.lane.b32.xlu0 %v3423, 40
  %v5531 = vpop.permute.xlu0 %5530
  %v5535 = vsel %vm649, %v5525, 0
  %v5538 = vsel %vm649, %v5527, 0
  %5540 = vmatprep.subr.mxu0 0.0
  %5541 = vmatpush1.msra.mxu0 0.0
  %5542 = vmatprep.subr.mxu0 0.0
  %5543 = vmatpush1.msra.mxu0 0.0
  %5544 = vmatprep.subr.mxu0 0.0
  %5545 = vmatpush1.msra.mxu0 0.0
  %5546 = vmatprep.subr.mxu0 0.0
  %5547 = vmatpush1.msra.mxu0 0.0
  %5548 = vmatprep.subr.mxu0 0.0
  %5549 = vmatpush1.msra.mxu0 0.0
  %5550 = vmatprep.subr.mxu0 0.0
  %5551 = vmatpush1.msra.mxu0 0.0
  %5552 = vmatprep.subr.mxu0 0.0
  %5553 = vmatpush1.msra.mxu0 0.0
  %5554 = vmatprep.subr.mxu0 0.0
  %5555 = vmatpush1.msra.mxu0 0.0
  %5556 = vmatprep.subr.mxu0 0.0
  %5557 = vmatpush1.msra.mxu0 0.0
  %5558 = vmatprep.subr.mxu0 0.0
  %5559 = vmatpush1.msra.mxu0 0.0
  %5560 = vmatprep.subr.mxu0 0.0
  %5561 = vmatpush1.msra.mxu0 0.0
  %5562 = vmatprep.subr.mxu0 0.0
  %5563 = vmatpush1.msra.mxu0 0.0
  %5564 = vmatprep.subr.mxu0 0.0
  %5565 = vmatpush1.msra.mxu0 0.0
  %5566 = vmatprep.subr.mxu0 0.0
  %5567 = vmatpush1.msra.mxu0 0.0
  %5568 = vmatprep.subr.mxu0 0.0
  %5569 = vmatpush1.msra.mxu0 %v5531
  %5570 = vmatprep.subr.mxu0 0.0
  %5571 = vmatpush1.msra.mxu0 %v5529
  %5572 = vmatprep.subr.mxu0 0.0
  %5573 = vmatpush2.msra.mxu0 0.0
  %5574 = vmatprep.subr.mxu0 0.0
  %5575 = vmatpush2.msra.mxu0 0.0
  %5576 = vmatprep.subr.mxu0 0.0
  %5577 = vmatpush2.msra.mxu0 0.0
  %5578 = vmatprep.subr.mxu0 0.0
  %5579 = vmatpush2.msra.mxu0 0.0
  %5580 = vmatprep.subr.mxu0 0.0
  %5581 = vmatpush2.msra.mxu0 0.0
  %5582 = vmatprep.subr.mxu0 0.0
  %5583 = vmatpush2.msra.mxu0 0.0
  %5584 = vmatprep.subr.mxu0 0.0
  %5585 = vmatpush2.msra.mxu0 0.0
  %5586 = vmatprep.subr.mxu0 0.0
  %5587 = vmatpush2.msra.mxu0 0.0
  %5588 = vmatprep.subr.mxu0 0.0
  %5589 = vmatpush2.msra.mxu0 0.0
  %5590 = vmatprep.subr.mxu0 0.0
  %5591 = vmatpush2.msra.mxu0 0.0
  %5592 = vmatprep.subr.mxu0 0.0
  %5593 = vmatpush2.msra.mxu0 0.0
  %5594 = vmatprep.subr.mxu0 0.0
  %5595 = vmatpush2.msra.mxu0 0.0
  %5596 = vmatprep.subr.mxu0 0.0
  %5597 = vmatpush2.msra.mxu0 0.0
  %5598 = vmatprep.subr.mxu0 0.0
  %5599 = vmatpush2.msra.mxu0 0.0
  %5600 = vmatprep.subr.mxu0 0.0
  %5601 = vmatpush2.msra.mxu0 0.0
  %5602 = vmatprep.subr.mxu0 0.0
  %5603 = vmatpush2.msra.mxu0 0.0
  %5604 = vmatprep.mubr.f32.mxu0 0.0
  %5605 = vmatmul.mubr.f32.gmra.mxu0 %v5535
  %v5606 = vpop.f32.mrf.mxu0
  %v5607 = vadd.f32 0.0, %v5606
  %v5608 = vpop.f32.mrf.mxu0
  %5609 = vmatprep.mubr.f32.mxu0 0.0
  %5610 = vmatmul.mubr.f32.gmra.mxu0 %v5538
  %v5611 = vpop.f32.mrf.mxu0
  %v5612 = vadd.f32 0.0, %v5611
  %v5613 = vpop.f32.mrf.mxu0
  %5614 = vdwg.mxu0
  %v5616 = vsel %vm563, %v5607, 0
  %v5619 = vsel %vm563, %v5612, 0
  %5621 = vmatprep.subr.mxu0 0.0
  %5622 = vmatpush1.msra.mxu0 0.0
  %5623 = vmatprep.subr.mxu0 0.0
  %5624 = vmatpush1.msra.mxu0 0.0
  %5625 = vmatprep.subr.mxu0 0.0
  %5626 = vmatpush1.msra.mxu0 0.0
  %5627 = vmatprep.subr.mxu0 0.0
  %5628 = vmatpush1.msra.mxu0 0.0
  %5629 = vmatprep.subr.mxu0 0.0
  %5630 = vmatpush1.msra.mxu0 0.0
  %5631 = vmatprep.subr.mxu0 0.0
  %5632 = vmatpush1.msra.mxu0 0.0
  %5633 = vmatprep.subr.mxu0 0.0
  %5634 = vmatpush1.msra.mxu0 0.0
  %5635 = vmatprep.subr.mxu0 0.0
  %5636 = vmatpush1.msra.mxu0 0.0
  %5637 = vmatprep.subr.mxu0 0.0
  %5638 = vmatpush1.msra.mxu0 0.0
  %5639 = vmatprep.subr.mxu0 0.0
  %5640 = vmatpush1.msra.mxu0 0.0
  %5641 = vmatprep.subr.mxu0 0.0
  %5642 = vmatpush1.msra.mxu0 0.0
  %5643 = vmatprep.subr.mxu0 0.0
  %5644 = vmatpush1.msra.mxu0 0.0
  %5645 = vmatprep.subr.mxu0 0.0
  %5646 = vmatpush1.msra.mxu0 0.0
  %5647 = vmatprep.subr.mxu0 0.0
  %5648 = vmatpush1.msra.mxu0 0.0
  %5649 = vmatprep.subr.mxu0 0.0
  %5650 = vmatpush1.msra.mxu0 0.0
  %5651 = vmatprep.subr.mxu0 0.0
  %5652 = vmatpush1.msra.mxu0 %v3429
  %5653 = vmatprep.subr.mxu0 0.0
  %5654 = vmatpush2.msra.mxu0 0.0
  %5655 = vmatprep.subr.mxu0 0.0
  %5656 = vmatpush2.msra.mxu0 0.0
  %5657 = vmatprep.subr.mxu0 0.0
  %5658 = vmatpush2.msra.mxu0 0.0
  %5659 = vmatprep.subr.mxu0 0.0
  %5660 = vmatpush2.msra.mxu0 0.0
  %5661 = vmatprep.subr.mxu0 0.0
  %5662 = vmatpush2.msra.mxu0 0.0
  %5663 = vmatprep.subr.mxu0 0.0
  %5664 = vmatpush2.msra.mxu0 0.0
  %5665 = vmatprep.subr.mxu0 0.0
  %5666 = vmatpush2.msra.mxu0 0.0
  %5667 = vmatprep.subr.mxu0 0.0
  %5668 = vmatpush2.msra.mxu0 0.0
  %5669 = vmatprep.subr.mxu0 0.0
  %5670 = vmatpush2.msra.mxu0 0.0
  %5671 = vmatprep.subr.mxu0 0.0
  %5672 = vmatpush2.msra.mxu0 0.0
  %5673 = vmatprep.subr.mxu0 0.0
  %5674 = vmatpush2.msra.mxu0 0.0
  %5675 = vmatprep.subr.mxu0 0.0
  %5676 = vmatpush2.msra.mxu0 0.0
  %5677 = vmatprep.subr.mxu0 0.0
  %5678 = vmatpush2.msra.mxu0 0.0
  %5679 = vmatprep.subr.mxu0 0.0
  %5680 = vmatpush2.msra.mxu0 0.0
  %5681 = vmatprep.subr.mxu0 0.0
  %5682 = vmatpush2.msra.mxu0 0.0
  %5683 = vmatprep.subr.mxu0 0.0
  %5684 = vmatpush2.msra.mxu0 0.0
  %5685 = vmatprep.mubr.f32.mxu0 0.0
  %5686 = vmatmul.mubr.f32.gmra.mxu0 %v5616
  %v5687 = vpop.f32.mrf.mxu0
  %v5688 = vadd.f32 0.0, %v5687
  %v5689 = vpop.f32.mrf.mxu0
  %5690 = vmatprep.mubr.f32.mxu0 0.0
  %5691 = vmatmul.mubr.f32.gmra.mxu0 %v5619
  %v5692 = vpop.f32.mrf.mxu0
  %v5693 = vadd.f32 0.0, %v5692
  %v5694 = vpop.f32.mrf.mxu0
  %5695 = vdwg.mxu0
  %v5696 = vadd.f32 %v5411, %v5688
  %v5697 = vadd.f32 %v5412, %v5693
  %v5698 = vld [vmem:[%s43] sm:$0x1]
  %v5700 = vlaneseq
  %v5701 = vshrl.u32 %v5700, 7
  %v5702 = vsub.s32 0, %v5701
  %v5703 = vrot.slane %v5698, %v5702
  %v5705 = vadd.f32 %v4562, %v5703
  %v5706 = vadd.f32 %v4563, %v5703
  %v5707 = vadd.f32 %v5696, %v5703
  %v5708 = vadd.f32 %v5697, %v5703
  %v5709 = vadd.f32 %v3240, %v5705
  %v5710 = vadd.f32 %v3241, %v5706
  %v5711 = vadd.f32 %v3242, %v5707
  %v5712 = vadd.f32 %v3243, %v5708
  %v5713 = vld [vmem:[%s45] sm:$0x1]
  %v5714 = vld [vmem:[%s47] sm:$0x1]
  %v5715 = vsel %vm181, %v5709, 0.0
  %5716 = vadd.xlane.f32.xlu0 %v5715
  %v5717 = vpop.xlane.xlu0 %5716
  %v5718 = vsel %vm181, %v5710, 0.0
  %5719 = vadd.xlane.f32.xlu0 %v5718
  %v5720 = vpop.xlane.xlu0 %5719
  %v5721 = vsel %vm181, %v5711, 0.0
  %5722 = vadd.xlane.f32.xlu0 %v5721
  %v5723 = vpop.xlane.xlu0 %5722
  %v5724 = vsel %vm181, %v5712, 0.0
  %5725 = vadd.xlane.f32.xlu0 %v5724
  %v5726 = vpop.xlane.xlu0 %5725
  %v5727 = vmul.f32 %v5717, %v384
  %v5728 = vmul.f32 %v5720, %v384
  %v5729 = vmul.f32 %v5723, %v384
  %v5730 = vmul.f32 %v5726, %v384
  %v5731 = vsub.f32 %v5709, %v5727
  %v5732 = vsub.f32 %v5710, %v5728
  %v5733 = vsub.f32 %v5711, %v5729
  %v5734 = vsub.f32 %v5712, %v5730
  %v5735 = vmul.f32 %v5731, %v5731
  %v5736 = vmul.f32 %v5732, %v5732
  %v5737 = vmul.f32 %v5733, %v5733
  %v5738 = vmul.f32 %v5734, %v5734
  %v5739 = vsel %vm181, %v5735, 0.0
  %5740 = vadd.xlane.f32.xlu0 %v5739
  %v5741 = vpop.xlane.xlu0 %5740
  %v5742 = vsel %vm181, %v5736, 0.0
  %5743 = vadd.xlane.f32.xlu0 %v5742
  %v5744 = vpop.xlane.xlu0 %5743
  %v5745 = vsel %vm181, %v5737, 0.0
  %5746 = vadd.xlane.f32.xlu0 %v5745
  %v5747 = vpop.xlane.xlu0 %5746
  %v5748 = vsel %vm181, %v5738, 0.0
  %5749 = vadd.xlane.f32.xlu0 %v5748
  %v5750 = vpop.xlane.xlu0 %5749
  %v5751 = vmul.f32 %v5741, %v384
  %v5752 = vmul.f32 %v5744, %v384
  %v5753 = vmul.f32 %v5747, %v384
  %v5754 = vmul.f32 %v5750, %v384
  %v5755 = vadd.f32 %v5751, 1e-05
  %v5756 = vadd.f32 %v5752, 1e-05
  %v5757 = vadd.f32 %v5753, 1e-05
  %v5758 = vadd.f32 %v5754, 1e-05
  %v5759 = vrsqrt.pop %v5755
  %v5760 = vrsqrt.pop %v5756
  %v5761 = vrsqrt.pop %v5757
  %v5762 = vrsqrt.pop %v5758
  %v5763 = vmul.f32 %v5731, %v5759
  %v5764 = vmul.f32 %v5732, %v5760
  %v5765 = vmul.f32 %v5733, %v5761
  %v5766 = vmul.f32 %v5734, %v5762
  %v5768 = vlaneseq
  %v5769 = vshrl.u32 %v5768, 7
  %v5770 = vsub.s32 0, %v5769
  %v5771 = vrot.slane %v5713, %v5770
  %v5773 = vmul.f32 %v5763, %v5771
  %v5774 = vmul.f32 %v5764, %v5771
  %v5775 = vmul.f32 %v5765, %v5771
  %v5776 = vmul.f32 %v5766, %v5771
  %v5778 = vlaneseq
  %v5779 = vshrl.u32 %v5778, 7
  %v5780 = vsub.s32 0, %v5779
  %v5781 = vrot.slane %v5714, %v5780
  %v5783 = vadd.f32 %v5773, %v5781
  %v5784 = vadd.f32 %v5774, %v5781
  %v5785 = vadd.f32 %v5775, %v5781
  %v5786 = vadd.f32 %v5776, %v5781
  %v5787 = vld [vmem:[%s49] sm:$0xff]
  %v5788 = vld [vmem:[%s49 + $0x8] sm:$0xff]
  %v5789 = vld [vmem:[%s49 + $0x10] sm:$0xff]
  %v5790 = vld [vmem:[%s49 + $0x18] sm:$0xff]
  %v5791 = vld [vmem:[%s51] sm:$0x1]
  %v5793 = vlaneseq
  %v5794 = vshrl.u32 %v5793, 7
  %v5795 = vsub.s32 0, %v5794
  %v5796 = vrot.slane %v5791, %v5795
  %v5799 = vsel %vm181, %v5783, 0
  %v5802 = vsel %vm181, %v5784, 0
  %v5805 = vsel %vm181, %v5785, 0
  %v5808 = vsel %vm181, %v5786, 0
  %5810 = vmatprep.subr.mxu0 0.0
  %5811 = vmatpush1.msra.mxu0 0.0
  %5812 = vmatprep.subr.mxu0 0.0
  %5813 = vmatpush1.msra.mxu0 0.0
  %5814 = vmatprep.subr.mxu0 0.0
  %5815 = vmatpush1.msra.mxu0 0.0
  %5816 = vmatprep.subr.mxu0 0.0
  %5817 = vmatpush1.msra.mxu0 0.0
  %5818 = vmatprep.subr.mxu0 0.0
  %5819 = vmatpush1.msra.mxu0 0.0
  %5820 = vmatprep.subr.mxu0 0.0
  %5821 = vmatpush1.msra.mxu0 0.0
  %5822 = vmatprep.subr.mxu0 0.0
  %5823 = vmatpush1.msra.mxu0 0.0
  %5824 = vmatprep.subr.mxu0 0.0
  %5825 = vmatpush1.msra.mxu0 0.0
  %5826 = vmatprep.subr.mxu0 0.0
  %5827 = vmatpush1.msra.mxu0 0.0
  %5828 = vmatprep.subr.mxu0 0.0
  %5829 = vmatpush1.msra.mxu0 0.0
  %5830 = vmatprep.subr.mxu0 0.0
  %5831 = vmatpush1.msra.mxu0 0.0
  %5832 = vmatprep.subr.mxu0 0.0
  %5833 = vmatpush1.msra.mxu0 0.0
  %5834 = vmatprep.subr.mxu0 0.0
  %5835 = vmatpush1.msra.mxu0 %v5790
  %5836 = vmatprep.subr.mxu0 0.0
  %5837 = vmatpush1.msra.mxu0 %v5789
  %5838 = vmatprep.subr.mxu0 0.0
  %5839 = vmatpush1.msra.mxu0 %v5788
  %5840 = vmatprep.subr.mxu0 0.0
  %5841 = vmatpush1.msra.mxu0 %v5787
  %5842 = vmatprep.subr.mxu0 0.0
  %5843 = vmatpush2.msra.mxu0 0.0
  %5844 = vmatprep.subr.mxu0 0.0
  %5845 = vmatpush2.msra.mxu0 0.0
  %5846 = vmatprep.subr.mxu0 0.0
  %5847 = vmatpush2.msra.mxu0 0.0
  %5848 = vmatprep.subr.mxu0 0.0
  %5849 = vmatpush2.msra.mxu0 0.0
  %5850 = vmatprep.subr.mxu0 0.0
  %5851 = vmatpush2.msra.mxu0 0.0
  %5852 = vmatprep.subr.mxu0 0.0
  %5853 = vmatpush2.msra.mxu0 0.0
  %5854 = vmatprep.subr.mxu0 0.0
  %5855 = vmatpush2.msra.mxu0 0.0
  %5856 = vmatprep.subr.mxu0 0.0
  %5857 = vmatpush2.msra.mxu0 0.0
  %5858 = vmatprep.subr.mxu0 0.0
  %5859 = vmatpush2.msra.mxu0 0.0
  %5860 = vmatprep.subr.mxu0 0.0
  %5861 = vmatpush2.msra.mxu0 0.0
  %5862 = vmatprep.subr.mxu0 0.0
  %5863 = vmatpush2.msra.mxu0 0.0
  %5864 = vmatprep.subr.mxu0 0.0
  %5865 = vmatpush2.msra.mxu0 0.0
  %5866 = vmatprep.subr.mxu0 0.0
  %5867 = vmatpush2.msra.mxu0 0.0
  %5868 = vmatprep.subr.mxu0 0.0
  %5869 = vmatpush2.msra.mxu0 0.0
  %5870 = vmatprep.subr.mxu0 0.0
  %5871 = vmatpush2.msra.mxu0 0.0
  %5872 = vmatprep.subr.mxu0 0.0
  %5873 = vmatpush2.msra.mxu0 0.0
  %5874 = vmatprep.mubr.f32.mxu0 0.0
  %5875 = vmatmul.mubr.f32.gmra.mxu0 %v5799
  %v5876 = vpop.f32.mrf.mxu0
  %v5877 = vadd.f32 %v5796, %v5876
  %v5878 = vpop.f32.mrf.mxu0
  %5879 = vmatprep.mubr.f32.mxu0 0.0
  %5880 = vmatmul.mubr.f32.gmra.mxu0 %v5802
  %v5881 = vpop.f32.mrf.mxu0
  %v5882 = vadd.f32 %v5796, %v5881
  %v5883 = vpop.f32.mrf.mxu0
  %5884 = vmatprep.mubr.f32.mxu0 0.0
  %5885 = vmatmul.mubr.f32.gmra.mxu0 %v5805
  %v5886 = vpop.f32.mrf.mxu0
  %v5887 = vadd.f32 %v5796, %v5886
  %v5888 = vpop.f32.mrf.mxu0
  %5889 = vmatprep.mubr.f32.mxu0 0.0
  %5890 = vmatmul.mubr.f32.gmra.mxu0 %v5808
  %v5891 = vpop.f32.mrf.mxu0
  %v5892 = vadd.f32 %v5796, %v5891
  %v5893 = vpop.f32.mrf.mxu0
  %5894 = vdwg.mxu0
  %v5895 = vmul.f32 %v5877, 0.5
  %v5896 = vmul.f32 %v5882, 0.5
  %v5897 = vmul.f32 %v5887, 0.5
  %v5898 = vmul.f32 %v5892, 0.5
  %v5899 = vmul.f32 %v5877, 0.70710677
  %v5900 = vmul.f32 %v5882, 0.70710677
  %v5901 = vmul.f32 %v5887, 0.70710677
  %v5902 = vmul.f32 %v5892, 0.70710677
  %v5903 = vand.u32 2147483647, %v5899
  %v5904 = vand.u32 2147483647, %v5900
  %v5905 = vand.u32 2147483647, %v5901
  %v5906 = vand.u32 2147483647, %v5902
  %v5907 = vmul.f32 %v5903, 0.3275911
  %v5908 = vmul.f32 %v5904, 0.3275911
  %v5909 = vmul.f32 %v5905, 0.3275911
  %v5910 = vmul.f32 %v5906, 0.3275911
  %v5911 = vadd.f32 %v5907, 1.0
  %v5912 = vadd.f32 %v5908, 1.0
  %v5913 = vadd.f32 %v5909, 1.0
  %v5914 = vadd.f32 %v5910, 1.0
  %v5915 = vrcp.pop %v5911
  %v5916 = vmul.f32 1.0, %v5915
  %v5917 = vrcp.pop %v5912
  %v5918 = vmul.f32 1.0, %v5917
  %v5919 = vrcp.pop %v5913
  %v5920 = vmul.f32 1.0, %v5919
  %v5921 = vrcp.pop %v5914
  %v5922 = vmul.f32 1.0, %v5921
  %v5923 = vmul.f32 %v5916, 1.0614054
  %v5924 = vmul.f32 %v5918, 1.0614054
  %v5925 = vmul.f32 %v5920, 1.0614054
  %v5926 = vmul.f32 %v5922, 1.0614054
  %v5927 = vsub.f32 %v5923, 1.4531521
  %v5928 = vsub.f32 %v5924, 1.4531521
  %v5929 = vsub.f32 %v5925, 1.4531521
  %v5930 = vsub.f32 %v5926, 1.4531521
  %v5931 = vmul.f32 %v5927, %v5916
  %v5932 = vmul.f32 %v5928, %v5918
  %v5933 = vmul.f32 %v5929, %v5920
  %v5934 = vmul.f32 %v5930, %v5922
  %v5935 = vadd.f32 %v5931, 1.4214138
  %v5936 = vadd.f32 %v5932, 1.4214138
  %v5937 = vadd.f32 %v5933, 1.4214138
  %v5938 = vadd.f32 %v5934, 1.4214138
  %v5939 = vmul.f32 %v5935, %v5916
  %v5940 = vmul.f32 %v5936, %v5918
  %v5941 = vmul.f32 %v5937, %v5920
  %v5942 = vmul.f32 %v5938, %v5922
  %v5943 = vsub.f32 %v5939, 0.28449672
  %v5944 = vsub.f32 %v5940, 0.28449672
  %v5945 = vsub.f32 %v5941, 0.28449672
  %v5946 = vsub.f32 %v5942, 0.28449672
  %v5947 = vmul.f32 %v5943, %v5916
  %v5948 = vmul.f32 %v5944, %v5918
  %v5949 = vmul.f32 %v5945, %v5920
  %v5950 = vmul.f32 %v5946, %v5922
  %v5951 = vadd.f32 %v5947, 0.2548296
  %v5952 = vadd.f32 %v5948, 0.2548296
  %v5953 = vadd.f32 %v5949, 0.2548296
  %v5954 = vadd.f32 %v5950, 0.2548296
  %v5955 = vmul.f32 %v5951, %v5916
  %v5956 = vmul.f32 %v5952, %v5918
  %v5957 = vmul.f32 %v5953, %v5920
  %v5958 = vmul.f32 %v5954, %v5922
  %v5959 = vsub.f32 0.0, %v5899
  %v5960 = vsub.f32 0.0, %v5900
  %v5961 = vsub.f32 0.0, %v5901
  %v5962 = vsub.f32 0.0, %v5902
  %v5963 = vmul.f32 %v5959, %v5899
  %v5964 = vmul.f32 %v5960, %v5900
  %v5965 = vmul.f32 %v5961, %v5901
  %v5966 = vmul.f32 %v5962, %v5902
  %v5967 = vmul.f32 %v5963, 1.442695
  %v5968 = vpow.pop %v5967
  %v5969 = vmul.f32 %v5964, 1.442695
  %v5970 = vpow.pop %v5969
  %v5971 = vmul.f32 %v5965, 1.442695
  %v5972 = vpow.pop %v5971
  %v5973 = vmul.f32 %v5966, 1.442695
  %v5974 = vpow.pop %v5973
  %v5975 = vmul.f32 %v5955, %v5968
  %v5976 = vmul.f32 %v5956, %v5970
  %v5977 = vmul.f32 %v5957, %v5972
  %v5978 = vmul.f32 %v5958, %v5974
  %v5979 = vsub.f32 1.0, %v5975
  %v5980 = vsub.f32 1.0, %v5976
  %v5981 = vsub.f32 1.0, %v5977
  %v5982 = vsub.f32 1.0, %v5978
  %vm5983 = vcmp.lt.f32.partialorder %v5899, 0.0
  %vm5984 = vcmp.lt.f32.partialorder %v5900, 0.0
  %vm5985 = vcmp.lt.f32.partialorder %v5901, 0.0
  %vm5986 = vcmp.lt.f32.partialorder %v5902, 0.0
  %v5987 = vsub.f32 0.0, %v5979
  %v5988 = vsub.f32 0.0, %v5980
  %v5989 = vsub.f32 0.0, %v5981
  %v5990 = vsub.f32 0.0, %v5982
  %v5991 = vsel %vm5983, %v5987, %v5979
  %v5992 = vsel %vm5984, %v5988, %v5980
  %v5993 = vsel %vm5985, %v5989, %v5981
  %v5994 = vsel %vm5986, %v5990, %v5982
  %v5995 = vadd.f32 %v5991, 1.0
  %v5996 = vadd.f32 %v5992, 1.0
  %v5997 = vadd.f32 %v5993, 1.0
  %v5998 = vadd.f32 %v5994, 1.0
  %v5999 = vmul.f32 %v5895, %v5995
  %v6000 = vmul.f32 %v5896, %v5996
  %v6001 = vmul.f32 %v5897, %v5997
  %v6002 = vmul.f32 %v5898, %v5998
  %v6003 = vld [vmem:[%s53] sm:$0xff]
  %v6004 = vld [vmem:[%s53 + $0x8] sm:$0xff]
  %v6005 = vld [vmem:[%s53 + $0x10] sm:$0xff]
  %v6006 = vld [vmem:[%s53 + $0x18] sm:$0xff]
  %v6007 = vld [vmem:[%s53 + $0x20] sm:$0xff]
  %v6008 = vld [vmem:[%s53 + $0x28] sm:$0xff]
  %v6009 = vld [vmem:[%s53 + $0x30] sm:$0xff]
  %v6010 = vld [vmem:[%s53 + $0x38] sm:$0xff]
  %v6011 = vld [vmem:[%s53 + $0x40] sm:$0xff]
  %v6012 = vld [vmem:[%s53 + $0x48] sm:$0xff]
  %v6013 = vld [vmem:[%s53 + $0x50] sm:$0xff]
  %v6014 = vld [vmem:[%s53 + $0x58] sm:$0xff]
  %v6015 = vld [vmem:[%s53 + $0x60] sm:$0xff]
  %v6016 = vld [vmem:[%s53 + $0x68] sm:$0xff]
  %v6017 = vld [vmem:[%s53 + $0x70] sm:$0xff]
  %v6018 = vld [vmem:[%s53 + $0x78] sm:$0xff]
  %v6019 = vld [vmem:[%s55] sm:$0x1]
  %v6021 = vlaneseq
  %v6022 = vshrl.u32 %v6021, 7
  %v6023 = vsub.s32 0, %v6022
  %v6024 = vrot.slane %v6019, %v6023
  %6026 = vmatprep.subr.mxu0 0.0
  %6027 = vmatpush1.msra.mxu0 %v6018
  %6028 = vmatprep.subr.mxu0 0.0
  %6029 = vmatpush1.msra.mxu0 %v6017
  %6030 = vmatprep.subr.mxu0 0.0
  %6031 = vmatpush1.msra.mxu0 %v6016
  %6032 = vmatprep.subr.mxu0 0.0
  %6033 = vmatpush1.msra.mxu0 %v6015
  %6034 = vmatprep.subr.mxu0 0.0
  %6035 = vmatpush1.msra.mxu0 %v6014
  %6036 = vmatprep.subr.mxu0 0.0
  %6037 = vmatpush1.msra.mxu0 %v6013
  %6038 = vmatprep.subr.mxu0 0.0
  %6039 = vmatpush1.msra.mxu0 %v6012
  %6040 = vmatprep.subr.mxu0 0.0
  %6041 = vmatpush1.msra.mxu0 %v6011
  %6042 = vmatprep.subr.mxu0 0.0
  %6043 = vmatpush1.msra.mxu0 %v6010
  %6044 = vmatprep.subr.mxu0 0.0
  %6045 = vmatpush1.msra.mxu0 %v6009
  %6046 = vmatprep.subr.mxu0 0.0
  %6047 = vmatpush1.msra.mxu0 %v6008
  %6048 = vmatprep.subr.mxu0 0.0
  %6049 = vmatpush1.msra.mxu0 %v6007
  %6050 = vmatprep.subr.mxu0 0.0
  %6051 = vmatpush1.msra.mxu0 %v6006
  %6052 = vmatprep.subr.mxu0 0.0
  %6053 = vmatpush1.msra.mxu0 %v6005
  %6054 = vmatprep.subr.mxu0 0.0
  %6055 = vmatpush1.msra.mxu0 %v6004
  %6056 = vmatprep.subr.mxu0 0.0
  %6057 = vmatpush1.msra.mxu0 %v6003
  %6058 = vmatprep.subr.mxu0 0.0
  %6059 = vmatpush2.msra.mxu0 0.0
  %6060 = vmatprep.subr.mxu0 0.0
  %6061 = vmatpush2.msra.mxu0 0.0
  %6062 = vmatprep.subr.mxu0 0.0
  %6063 = vmatpush2.msra.mxu0 0.0
  %6064 = vmatprep.subr.mxu0 0.0
  %6065 = vmatpush2.msra.mxu0 0.0
  %6066 = vmatprep.subr.mxu0 0.0
  %6067 = vmatpush2.msra.mxu0 0.0
  %6068 = vmatprep.subr.mxu0 0.0
  %6069 = vmatpush2.msra.mxu0 0.0
  %6070 = vmatprep.subr.mxu0 0.0
  %6071 = vmatpush2.msra.mxu0 0.0
  %6072 = vmatprep.subr.mxu0 0.0
  %6073 = vmatpush2.msra.mxu0 0.0
  %6074 = vmatprep.subr.mxu0 0.0
  %6075 = vmatpush2.msra.mxu0 0.0
  %6076 = vmatprep.subr.mxu0 0.0
  %6077 = vmatpush2.msra.mxu0 0.0
  %6078 = vmatprep.subr.mxu0 0.0
  %6079 = vmatpush2.msra.mxu0 0.0
  %6080 = vmatprep.subr.mxu0 0.0
  %6081 = vmatpush2.msra.mxu0 0.0
  %6082 = vmatprep.subr.mxu0 0.0
  %6083 = vmatpush2.msra.mxu0 0.0
  %6084 = vmatprep.subr.mxu0 0.0
  %6085 = vmatpush2.msra.mxu0 0.0
  %6086 = vmatprep.subr.mxu0 0.0
  %6087 = vmatpush2.msra.mxu0 0.0
  %6088 = vmatprep.subr.mxu0 0.0
  %6089 = vmatpush2.msra.mxu0 0.0
  %6090 = vmatprep.mubr.f32.mxu0 0.0
  %6091 = vmatmul.mubr.f32.gmra.mxu0 %v5999
  %v6092 = vpop.f32.mrf.mxu0
  %v6093 = vadd.f32 %v6024, %v6092
  %v6094 = vpop.f32.mrf.mxu0
  %6095 = vmatprep.mubr.f32.mxu0 0.0
  %6096 = vmatmul.mubr.f32.gmra.mxu0 %v6000
  %v6097 = vpop.f32.mrf.mxu0
  %v6098 = vadd.f32 %v6024, %v6097
  %v6099 = vpop.f32.mrf.mxu0
  %6100 = vmatprep.mubr.f32.mxu0 0.0
  %6101 = vmatmul.mubr.f32.gmra.mxu0 %v6001
  %v6102 = vpop.f32.mrf.mxu0
  %v6103 = vadd.f32 %v6024, %v6102
  %v6104 = vpop.f32.mrf.mxu0
  %6105 = vmatprep.mubr.f32.mxu0 0.0
  %6106 = vmatmul.mubr.f32.gmra.mxu0 %v6002
  %v6107 = vpop.f32.mrf.mxu0
  %v6108 = vadd.f32 %v6024, %v6107
  %v6109 = vpop.f32.mrf.mxu0
  %6110 = vdwg.mxu0
  %v6111 = vadd.f32 %v5709, %v6093
  %v6112 = vadd.f32 %v5710, %v6098
  %v6113 = vadd.f32 %v5711, %v6103
  %v6114 = vadd.f32 %v5712, %v6108
  %v6115 = vld [vmem:[%s57] sm:$0x1]
  %v6116 = vld [vmem:[%s59] sm:$0x1]
  %v6117 = vsel %vm181, %v6111, 0.0
  %6118 = vadd.xlane.f32.xlu0 %v6117
  %v6119 = vpop.xlane.xlu0 %6118
  %v6120 = vsel %vm181, %v6112, 0.0
  %6121 = vadd.xlane.f32.xlu0 %v6120
  %v6122 = vpop.xlane.xlu0 %6121
  %v6123 = vsel %vm181, %v6113, 0.0
  %6124 = vadd.xlane.f32.xlu0 %v6123
  %v6125 = vpop.xlane.xlu0 %6124
  %v6126 = vsel %vm181, %v6114, 0.0
  %6127 = vadd.xlane.f32.xlu0 %v6126
  %v6128 = vpop.xlane.xlu0 %6127
  %v6129 = vmul.f32 %v6119, %v384
  %v6130 = vmul.f32 %v6122, %v384
  %v6131 = vmul.f32 %v6125, %v384
  %v6132 = vmul.f32 %v6128, %v384
  %v6133 = vsub.f32 %v6111, %v6129
  %v6134 = vsub.f32 %v6112, %v6130
  %v6135 = vsub.f32 %v6113, %v6131
  %v6136 = vsub.f32 %v6114, %v6132
  %v6137 = vmul.f32 %v6133, %v6133
  %v6138 = vmul.f32 %v6134, %v6134
  %v6139 = vmul.f32 %v6135, %v6135
  %v6140 = vmul.f32 %v6136, %v6136
  %v6141 = vsel %vm181, %v6137, 0.0
  %6142 = vadd.xlane.f32.xlu0 %v6141
  %v6143 = vpop.xlane.xlu0 %6142
  %v6144 = vsel %vm181, %v6138, 0.0
  %6145 = vadd.xlane.f32.xlu0 %v6144
  %v6146 = vpop.xlane.xlu0 %6145
  %v6147 = vsel %vm181, %v6139, 0.0
  %6148 = vadd.xlane.f32.xlu0 %v6147
  %v6149 = vpop.xlane.xlu0 %6148
  %v6150 = vsel %vm181, %v6140, 0.0
  %6151 = vadd.xlane.f32.xlu0 %v6150
  %v6152 = vpop.xlane.xlu0 %6151
  %v6153 = vmul.f32 %v6143, %v384
  %v6154 = vmul.f32 %v6146, %v384
  %v6155 = vmul.f32 %v6149, %v384
  %v6156 = vmul.f32 %v6152, %v384
  %v6157 = vadd.f32 %v6153, 1e-05
  %v6158 = vadd.f32 %v6154, 1e-05
  %v6159 = vadd.f32 %v6155, 1e-05
  %v6160 = vadd.f32 %v6156, 1e-05
  %v6161 = vrsqrt.pop %v6157
  %v6162 = vrsqrt.pop %v6158
  %v6163 = vrsqrt.pop %v6159
  %v6164 = vrsqrt.pop %v6160
  %v6165 = vmul.f32 %v6133, %v6161
  %v6166 = vmul.f32 %v6134, %v6162
  %v6167 = vmul.f32 %v6135, %v6163
  %v6168 = vmul.f32 %v6136, %v6164
  %v6170 = vlaneseq
  %v6171 = vshrl.u32 %v6170, 7
  %v6172 = vsub.s32 0, %v6171
  %v6173 = vrot.slane %v6115, %v6172
  %v6175 = vmul.f32 %v6165, %v6173
  %v6176 = vmul.f32 %v6166, %v6173
  %v6177 = vmul.f32 %v6167, %v6173
  %v6178 = vmul.f32 %v6168, %v6173
  %v6180 = vlaneseq
  %v6181 = vshrl.u32 %v6180, 7
  %v6182 = vsub.s32 0, %v6181
  %v6183 = vrot.slane %v6116, %v6182
  %v6185 = vadd.f32 %v6175, %v6183
  %v6186 = vadd.f32 %v6176, %v6183
  %v6187 = vadd.f32 %v6177, %v6183
  %v6188 = vadd.f32 %v6178, %v6183
  %6189 = vst.msk [vmem:[%s61] sm:$0xff] %vm181, %v6185
  %6190 = vst.msk [vmem:[%s61 + $0x8] sm:$0xff] %vm181, %v6186
  %6191 = vst.msk [vmem:[%s61 + $0x10] sm:$0xff] %vm181, %v6187
  %6192 = vst.msk [vmem:[%s61 + $0x18] sm:$0xff] %vm181, %v6188
  // Predicated region
  $region122: #{tiny_vit_forward.3} parent=0 // pred_check
    _
  $region123: #{tiny_vit_forward.3} parent=0 // pred_check_branch
    %6194 = sbr.rel (0) target = $region125
  $region124: #{tiny_vit_forward.3} parent=0 // pred_region
    _
  $region125: #{tiny_vit_forward.3} parent=0 // pred_fallthru
    _
  // Predicated region
  $region126: #{tiny_vit_forward.3} parent=0 // pred_check
    _
  $region127: #{tiny_vit_forward.3} parent=0 // pred_check_branch
    %6196 = sbr.rel (0) target = $region129
  $region128: #{tiny_vit_forward.3} parent=0 // pred_region
    _
  $region129: #{tiny_vit_forward.3} parent=0 // pred_fallthru
    _

// kernel: tiny_vit_forward.5
$region0: #{tiny_vit_forward.5}
  #allocation0 [shape = 'u32[]', space=smem, size = 0x4, offset = 0x4, fixed_abs, tag = 'smem constant byte address 0x4 - core index']
  #allocation1 [shape = 'u32[144,128]{1,0:T(1,128)}', space=vmem, size = 0x12000, scoped, tag = 'internal scratch']
  %s0 = inlined_call_operand.vmem [shape: f32[512,144], index: 0, kind: input, shape index: {}]
  %s1 = inlined_call_operand.vmem [shape: f32[144,8], index: 1, kind: input, shape index: {}]
  %s2 = inlined_call_operand.vmem [shape: f32[1,8], index: 2, kind: input, shape index: {}]
  %s3 = inlined_call_operand.vmem [shape: f32[1,8], index: 3, kind: input, shape index: {}]
  %s4 = inlined_call_operand.vmem [shape: f32[1,8], index: 4, kind: input, shape index: {}]
  %s5 = inlined_call_operand.vmem [shape: f32[8,4], index: 5, kind: input, shape index: {}]
  %s6 = inlined_call_operand.vmem [shape: f32[1,4], index: 6, kind: input, shape index: {}]
  %s7 = inlined_call_operand.vmem [shape: f32[512,4], index: 7, kind: output, shape index: {}]
  %s8 = sld [smem:[#allocation0]]
  $region38: #{tiny_vit_forward.5} parent=0
    _
  %s10 = ssub.s32 1, %s8
  %s11 = scalar_select 0, %s10, %s8
  // Predicated region
  $region2: #{tiny_vit_forward.5} parent=0 // pred_check
    _
  $region3: #{tiny_vit_forward.5} parent=0 // pred_check_branch
    %13 = sbr.rel (0) target = $region5
  $region4: #{tiny_vit_forward.5} parent=0 // pred_region
    _
  $region5: #{tiny_vit_forward.5} parent=0 // pred_fallthru
    _
  // Predicated region
  $region6: #{tiny_vit_forward.5} parent=0 // pred_check
    _
  $region7: #{tiny_vit_forward.5} parent=0 // pred_check_branch
    %15 = sbr.rel (0) target = $region9
  $region8: #{tiny_vit_forward.5} parent=0 // pred_region
    _
  $region9: #{tiny_vit_forward.5} parent=0 // pred_fallthru
    _
  // Predicated region
  $region10: #{tiny_vit_forward.5} parent=0 // pred_check
    _
  $region11: #{tiny_vit_forward.5} parent=0 // pred_check_branch
    %17 = sbr.rel (0) target = $region13
  $region12: #{tiny_vit_forward.5} parent=0 // pred_region
    _
  $region13: #{tiny_vit_forward.5} parent=0 // pred_fallthru
    _
  // Predicated region
  $region14: #{tiny_vit_forward.5} parent=0 // pred_check
    _
  $region15: #{tiny_vit_forward.5} parent=0 // pred_check_branch
    %19 = sbr.rel (0) target = $region17
  $region16: #{tiny_vit_forward.5} parent=0 // pred_region
    _
  $region17: #{tiny_vit_forward.5} parent=0 // pred_fallthru
    _
  // Predicated region
  $region18: #{tiny_vit_forward.5} parent=0 // pred_check
    _
  $region19: #{tiny_vit_forward.5} parent=0 // pred_check_branch
    %21 = sbr.rel (0) target = $region21
  $region20: #{tiny_vit_forward.5} parent=0 // pred_region
    _
  $region21: #{tiny_vit_forward.5} parent=0 // pred_fallthru
    _
  // Predicated region
  $region22: #{tiny_vit_forward.5} parent=0 // pred_check
    _
  $region23: #{tiny_vit_forward.5} parent=0 // pred_check_branch
    %23 = sbr.rel (0) target = $region25
  $region24: #{tiny_vit_forward.5} parent=0 // pred_region
    _
  $region25: #{tiny_vit_forward.5} parent=0 // pred_fallthru
    _
  // Predicated region
  $region26: #{tiny_vit_forward.5} parent=0 // pred_check
    _
  $region27: #{tiny_vit_forward.5} parent=0 // pred_check_branch
    %25 = sbr.rel (0) target = $region29
  $region28: #{tiny_vit_forward.5} parent=0 // pred_region
    _
  $region29: #{tiny_vit_forward.5} parent=0 // pred_fallthru
    _
  %v26 = vld [vmem:[%s0] sm:$0xff]
  %v27 = vld [vmem:[%s0 + $0x8] sm:$0xff]
  %v28 = vld [vmem:[%s0 + $0x10] sm:$0xff]
  %v29 = vld [vmem:[%s0 + $0x18] sm:$0xff]
  %v30 = vld [vmem:[%s0 + $0x20] sm:$0xff]
  %v31 = vld [vmem:[%s0 + $0x28] sm:$0xff]
  %v32 = vld [vmem:[%s0 + $0x30] sm:$0xff]
  %v33 = vld [vmem:[%s0 + $0x38] sm:$0xff]
  %v34 = vld [vmem:[%s0 + $0x40] sm:$0xff]
  %v35 = vld [vmem:[%s0 + $0x48] sm:$0xff]
  %v36 = vld [vmem:[%s0 + $0x50] sm:$0xff]
  %v37 = vld [vmem:[%s0 + $0x58] sm:$0xff]
  %v38 = vld [vmem:[%s0 + $0x60] sm:$0xff]
  %v39 = vld [vmem:[%s0 + $0x68] sm:$0xff]
  %v40 = vld [vmem:[%s0 + $0x70] sm:$0xff]
  %v41 = vld [vmem:[%s0 + $0x78] sm:$0xff]
  %v42 = vld [vmem:[%s0 + $0x80] sm:$0xff]
  %v43 = vld [vmem:[%s0 + $0x88] sm:$0xff]
  %v44 = vld [vmem:[%s0 + $0x90] sm:$0xff]
  %v45 = vld [vmem:[%s0 + $0x98] sm:$0xff]
  %v46 = vld [vmem:[%s0 + $0xa0] sm:$0xff]
  %v47 = vld [vmem:[%s0 + $0xa8] sm:$0xff]
  %v48 = vld [vmem:[%s0 + $0xb0] sm:$0xff]
  %v49 = vld [vmem:[%s0 + $0xb8] sm:$0xff]
  %v50 = vld [vmem:[%s0 + $0xc0] sm:$0xff]
  %v51 = vld [vmem:[%s0 + $0xc8] sm:$0xff]
  %v52 = vld [vmem:[%s0 + $0xd0] sm:$0xff]
  %v53 = vld [vmem:[%s0 + $0xd8] sm:$0xff]
  %v54 = vld [vmem:[%s0 + $0xe0] sm:$0xff]
  %v55 = vld [vmem:[%s0 + $0xe8] sm:$0xff]
  %v56 = vld [vmem:[%s0 + $0xf0] sm:$0xff]
  %v57 = vld [vmem:[%s0 + $0xf8] sm:$0xff]
  %v58 = vld [vmem:[%s0 + $0x100] sm:$0xff]
  %v59 = vld [vmem:[%s0 + $0x108] sm:$0xff]
  %v60 = vld [vmem:[%s0 + $0x110] sm:$0xff]
  %v61 = vld [vmem:[%s0 + $0x118] sm:$0xff]
  %v62 = vld [vmem:[%s0 + $0x120] sm:$0xff]
  %v63 = vld [vmem:[%s0 + $0x128] sm:$0xff]
  %v64 = vld [vmem:[%s0 + $0x130] sm:$0xff]
  %v65 = vld [vmem:[%s0 + $0x138] sm:$0xff]
  %v66 = vld [vmem:[%s0 + $0x140] sm:$0xff]
  %v67 = vld [vmem:[%s0 + $0x148] sm:$0xff]
  %v68 = vld [vmem:[%s0 + $0x150] sm:$0xff]
  %v69 = vld [vmem:[%s0 + $0x158] sm:$0xff]
  %v70 = vld [vmem:[%s0 + $0x160] sm:$0xff]
  %v71 = vld [vmem:[%s0 + $0x168] sm:$0xff]
  %v72 = vld [vmem:[%s0 + $0x170] sm:$0xff]
  %v73 = vld [vmem:[%s0 + $0x178] sm:$0xff]
  %v74 = vld [vmem:[%s0 + $0x180] sm:$0xff]
  %v75 = vld [vmem:[%s0 + $0x188] sm:$0xff]
  %v76 = vld [vmem:[%s0 + $0x190] sm:$0xff]
  %v77 = vld [vmem:[%s0 + $0x198] sm:$0xff]
  %v78 = vld [vmem:[%s0 + $0x1a0] sm:$0xff]
  %v79 = vld [vmem:[%s0 + $0x1a8] sm:$0xff]
  %v80 = vld [vmem:[%s0 + $0x1b0] sm:$0xff]
  %v81 = vld [vmem:[%s0 + $0x1b8] sm:$0xff]
  %v82 = vld [vmem:[%s0 + $0x1c0] sm:$0xff]
  %v83 = vld [vmem:[%s0 + $0x1c8] sm:$0xff]
  %v84 = vld [vmem:[%s0 + $0x1d0] sm:$0xff]
  %v85 = vld [vmem:[%s0 + $0x1d8] sm:$0xff]
  %v86 = vld [vmem:[%s0 + $0x1e0] sm:$0xff]
  %v87 = vld [vmem:[%s0 + $0x1e8] sm:$0xff]
  %v88 = vld [vmem:[%s0 + $0x1f0] sm:$0xff]
  %v89 = vld [vmem:[%s0 + $0x1f8] sm:$0xff]
  %v90 = vld [vmem:[%s0 + $0x200] sm:$0xff]
  %v91 = vld [vmem:[%s0 + $0x208] sm:$0xff]
  %v92 = vld [vmem:[%s0 + $0x210] sm:$0xff]
  %v93 = vld [vmem:[%s0 + $0x218] sm:$0xff]
  %v94 = vld [vmem:[%s0 + $0x220] sm:$0xff]
  %v95 = vld [vmem:[%s0 + $0x228] sm:$0xff]
  %v96 = vld [vmem:[%s0 + $0x230] sm:$0xff]
  %v97 = vld [vmem:[%s0 + $0x238] sm:$0xff]
  %v98 = vld [vmem:[%s0 + $0x240] sm:$0xff]
  %v99 = vld [vmem:[%s0 + $0x248] sm:$0xff]
  %v100 = vld [vmem:[%s0 + $0x250] sm:$0xff]
  %v101 = vld [vmem:[%s0 + $0x258] sm:$0xff]
  %v102 = vld [vmem:[%s0 + $0x260] sm:$0xff]
  %v103 = vld [vmem:[%s0 + $0x268] sm:$0xff]
  %v104 = vld [vmem:[%s0 + $0x270] sm:$0xff]
  %v105 = vld [vmem:[%s0 + $0x278] sm:$0xff]
  %v106 = vld [vmem:[%s0 + $0x280] sm:$0xff]
  %v107 = vld [vmem:[%s0 + $0x288] sm:$0xff]
  %v108 = vld [vmem:[%s0 + $0x290] sm:$0xff]
  %v109 = vld [vmem:[%s0 + $0x298] sm:$0xff]
  %v110 = vld [vmem:[%s0 + $0x2a0] sm:$0xff]
  %v111 = vld [vmem:[%s0 + $0x2a8] sm:$0xff]
  %v112 = vld [vmem:[%s0 + $0x2b0] sm:$0xff]
  %v113 = vld [vmem:[%s0 + $0x2b8] sm:$0xff]
  %v114 = vld [vmem:[%s0 + $0x2c0] sm:$0xff]
  %v115 = vld [vmem:[%s0 + $0x2c8] sm:$0xff]
  %v116 = vld [vmem:[%s0 + $0x2d0] sm:$0xff]
  %v117 = vld [vmem:[%s0 + $0x2d8] sm:$0xff]
  %v118 = vld [vmem:[%s0 + $0x2e0] sm:$0xff]
  %v119 = vld [vmem:[%s0 + $0x2e8] sm:$0xff]
  %v120 = vld [vmem:[%s0 + $0x2f0] sm:$0xff]
  %v121 = vld [vmem:[%s0 + $0x2f8] sm:$0xff]
  %v122 = vld [vmem:[%s0 + $0x300] sm:$0xff]
  %v123 = vld [vmem:[%s0 + $0x308] sm:$0xff]
  %v124 = vld [vmem:[%s0 + $0x310] sm:$0xff]
  %v125 = vld [vmem:[%s0 + $0x318] sm:$0xff]
  %v126 = vld [vmem:[%s0 + $0x320] sm:$0xff]
  %v127 = vld [vmem:[%s0 + $0x328] sm:$0xff]
  %v128 = vld [vmem:[%s0 + $0x330] sm:$0xff]
  %v129 = vld [vmem:[%s0 + $0x338] sm:$0xff]
  %v130 = vld [vmem:[%s0 + $0x340] sm:$0xff]
  %v131 = vld [vmem:[%s0 + $0x348] sm:$0xff]
  %v132 = vld [vmem:[%s0 + $0x350] sm:$0xff]
  %v133 = vld [vmem:[%s0 + $0x358] sm:$0xff]
  %v134 = vld [vmem:[%s0 + $0x360] sm:$0xff]
  %v135 = vld [vmem:[%s0 + $0x368] sm:$0xff]
  %v136 = vld [vmem:[%s0 + $0x370] sm:$0xff]
  %v137 = vld [vmem:[%s0 + $0x378] sm:$0xff]
  %v138 = vld [vmem:[%s0 + $0x380] sm:$0xff]
  %v139 = vld [vmem:[%s0 + $0x388] sm:$0xff]
  %v140 = vld [vmem:[%s0 + $0x390] sm:$0xff]
  %v141 = vld [vmem:[%s0 + $0x398] sm:$0xff]
  %v142 = vld [vmem:[%s0 + $0x3a0] sm:$0xff]
  %v143 = vld [vmem:[%s0 + $0x3a8] sm:$0xff]
  %v144 = vld [vmem:[%s0 + $0x3b0] sm:$0xff]
  %v145 = vld [vmem:[%s0 + $0x3b8] sm:$0xff]
  %v146 = vld [vmem:[%s0 + $0x3c0] sm:$0xff]
  %v147 = vld [vmem:[%s0 + $0x3c8] sm:$0xff]
  %v148 = vld [vmem:[%s0 + $0x3d0] sm:$0xff]
  %v149 = vld [vmem:[%s0 + $0x3d8] sm:$0xff]
  %v150 = vld [vmem:[%s0 + $0x3e0] sm:$0xff]
  %v151 = vld [vmem:[%s0 + $0x3e8] sm:$0xff]
  %v152 = vld [vmem:[%s0 + $0x3f0] sm:$0xff]
  %v153 = vld [vmem:[%s0 + $0x3f8] sm:$0xff]
  %v154 = vld [vmem:[%s1] sm:$0xff]
  %v155 = vld [vmem:[%s1 + $0x8] sm:$0xff]
  %v156 = vld [vmem:[%s1 + $0x10] sm:$0xff]
  %v157 = vld [vmem:[%s1 + $0x18] sm:$0xff]
  %v158 = vld [vmem:[%s1 + $0x20] sm:$0xff]
  %v159 = vld [vmem:[%s1 + $0x28] sm:$0xff]
  %v160 = vld [vmem:[%s1 + $0x30] sm:$0xff]
  %v161 = vld [vmem:[%s1 + $0x38] sm:$0xff]
  %v162 = vld [vmem:[%s1 + $0x40] sm:$0xff]
  %v163 = vld [vmem:[%s1 + $0x48] sm:$0xff]
  %v164 = vld [vmem:[%s1 + $0x50] sm:$0xff]
  %v165 = vld [vmem:[%s1 + $0x58] sm:$0xff]
  %v166 = vld [vmem:[%s1 + $0x60] sm:$0xff]
  %v167 = vld [vmem:[%s1 + $0x68] sm:$0xff]
  %v168 = vld [vmem:[%s1 + $0x70] sm:$0xff]
  %v169 = vld [vmem:[%s1 + $0x78] sm:$0xff]
  %v170 = vld [vmem:[%s1 + $0x80] sm:$0xff]
  %v171 = vld [vmem:[%s1 + $0x88] sm:$0xff]
  %v172 = vld [vmem:[%s2] sm:$0x1]
  %v174 = vlaneseq
  %v175 = vshrl.u32 %v174, 7
  %v176 = vsub.s32 0, %v175
  %v177 = vrot.slane %v172, %v176
  %vm179 = vcmask 130048
  %v181 = vsel %vm179, %v27, 0
  %v184 = vsel %vm179, %v29, 0
  %v187 = vsel %vm179, %v31, 0
  %v190 = vsel %vm179, %v33, 0
  %v193 = vsel %vm179, %v35, 0
  %v196 = vsel %vm179, %v37, 0
  %v199 = vsel %vm179, %v39, 0
  %v202 = vsel %vm179, %v41, 0
  %v205 = vsel %vm179, %v43, 0
  %v208 = vsel %vm179, %v45, 0
  %v211 = vsel %vm179, %v47, 0
  %v214 = vsel %vm179, %v49, 0
  %v217 = vsel %vm179, %v51, 0
  %v220 = vsel %vm179, %v53, 0
  %v223 = vsel %vm179, %v55, 0
  %v226 = vsel %vm179, %v57, 0
  %v229 = vsel %vm179, %v59, 0
  %v232 = vsel %vm179, %v61, 0
  %v235 = vsel %vm179, %v63, 0
  %v238 = vsel %vm179, %v65, 0
  %v241 = vsel %vm179, %v67, 0
  %v244 = vsel %vm179, %v69, 0
  %v247 = vsel %vm179, %v71, 0
  %v250 = vsel %vm179, %v73, 0
  %v253 = vsel %vm179, %v75, 0
  %v256 = vsel %vm179, %v77, 0
  %v259 = vsel %vm179, %v79, 0
  %v262 = vsel %vm179, %v81, 0
  %v265 = vsel %vm179, %v83, 0
  %v268 = vsel %vm179, %v85, 0
  %v271 = vsel %vm179, %v87, 0
  %v274 = vsel %vm179, %v89, 0
  %v277 = vsel %vm179, %v91, 0
  %v280 = vsel %vm179, %v93, 0
  %v283 = vsel %vm179, %v95, 0
  %v286 = vsel %vm179, %v97, 0
  %v289 = vsel %vm179, %v99, 0
  %v292 = vsel %vm179, %v101, 0
  %v295 = vsel %vm179, %v103, 0
  %v298 = vsel %vm179, %v105, 0
  %v301 = vsel %vm179, %v107, 0
  %v304 = vsel %vm179, %v109, 0
  %v307 = vsel %vm179, %v111, 0
  %v310 = vsel %vm179, %v113, 0
  %v313 = vsel %vm179, %v115, 0
  %v316 = vsel %vm179, %v117, 0
  %v319 = vsel %vm179, %v119, 0
  %v322 = vsel %vm179, %v121, 0
  %v325 = vsel %vm179, %v123, 0
  %v328 = vsel %vm179, %v125, 0
  %v331 = vsel %vm179, %v127, 0
  %v334 = vsel %vm179, %v129, 0
  %v337 = vsel %vm179, %v131, 0
  %v340 = vsel %vm179, %v133, 0
  %v343 = vsel %vm179, %v135, 0
  %v346 = vsel %vm179, %v137, 0
  %v349 = vsel %vm179, %v139, 0
  %v352 = vsel %vm179, %v141, 0
  %v355 = vsel %vm179, %v143, 0
  %v358 = vsel %vm179, %v145, 0
  %v361 = vsel %vm179, %v147, 0
  %v364 = vsel %vm179, %v149, 0
  %v367 = vsel %vm179, %v151, 0
  %v370 = vsel %vm179, %v153, 0
  %372 = vmatprep.subr.mxu0 0.0
  %373 = vmatpush1.msra.mxu0 %v169
  %374 = vmatprep.subr.mxu0 0.0
  %375 = vmatpush1.msra.mxu0 %v168
  %376 = vmatprep.subr.mxu0 0.0
  %377 = vmatpush1.msra.mxu0 %v167
  %378 = vmatprep.subr.mxu0 0.0
  %379 = vmatpush1.msra.mxu0 %v166
  %380 = vmatprep.subr.mxu0 0.0
  %381 = vmatpush1.msra.mxu0 %v165
  %382 = vmatprep.subr.mxu0 0.0
  %383 = vmatpush1.msra.mxu0 %v164
  %384 = vmatprep.subr.mxu0 0.0
  %385 = vmatpush1.msra.mxu0 %v163
  %386 = vmatprep.subr.mxu0 0.0
  %387 = vmatpush1.msra.mxu0 %v162
  %388 = vmatprep.subr.mxu0 0.0
  %389 = vmatpush1.msra.mxu0 %v161
  %390 = vmatprep.subr.mxu0 0.0
  %391 = vmatpush1.msra.mxu0 %v160
  %392 = vmatprep.subr.mxu0 0.0
  %393 = vmatpush1.msra.mxu0 %v159
  %394 = vmatprep.subr.mxu0 0.0
  %395 = vmatpush1.msra.mxu0 %v158
  %396 = vmatprep.subr.mxu0 0.0
  %397 = vmatpush1.msra.mxu0 %v157
  %398 = vmatprep.subr.mxu0 0.0
  %399 = vmatpush1.msra.mxu0 %v156
  %400 = vmatprep.subr.mxu0 0.0
  %401 = vmatpush1.msra.mxu0 %v155
  %402 = vmatprep.subr.mxu0 0.0
  %403 = vmatpush1.msra.mxu0 %v154
  %404 = vmatprep.subr.mxu0 0.0
  %405 = vmatpush2.msra.mxu0 0.0
  %406 = vmatprep.subr.mxu0 0.0
  %407 = vmatpush2.msra.mxu0 0.0
  %408 = vmatprep.subr.mxu0 0.0
  %409 = vmatpush2.msra.mxu0 0.0
  %410 = vmatprep.subr.mxu0 0.0
  %411 = vmatpush2.msra.mxu0 0.0
  %412 = vmatprep.subr.mxu0 0.0
  %413 = vmatpush2.msra.mxu0 0.0
  %414 = vmatprep.subr.mxu0 0.0
  %415 = vmatpush2.msra.mxu0 0.0
  %416 = vmatprep.subr.mxu0 0.0
  %417 = vmatpush2.msra.mxu0 0.0
  %418 = vmatprep.subr.mxu0 0.0
  %419 = vmatpush2.msra.mxu0 0.0
  %420 = vmatprep.subr.mxu0 0.0
  %421 = vmatpush2.msra.mxu0 0.0
  %422 = vmatprep.subr.mxu0 0.0
  %423 = vmatpush2.msra.mxu0 0.0
  %424 = vmatprep.subr.mxu0 0.0
  %425 = vmatpush2.msra.mxu0 0.0
  %426 = vmatprep.subr.mxu0 0.0
  %427 = vmatpush2.msra.mxu0 0.0
  %428 = vmatprep.subr.mxu0 0.0
  %429 = vmatpush2.msra.mxu0 0.0
  %430 = vmatprep.subr.mxu0 0.0
  %431 = vmatpush2.msra.mxu0 0.0
  %432 = vmatprep.subr.mxu0 0.0
  %433 = vmatpush2.msra.mxu0 %v171
  %434 = vmatprep.subr.mxu0 0.0
  %435 = vmatpush2.msra.mxu0 %v170
  %436 = vmatprep.mubr.f32.mxu0 %v181
  %437 = vmatmul.mubr.f32.gmra.mxu0 %v26
  %v438 = vpop.f32.mrf.mxu0
  %v439 = vadd.f32 %v177, %v438
  %v440 = vpop.f32.mrf.mxu0
  %441 = vmatprep.mubr.f32.mxu0 %v184
  %442 = vmatmul.mubr.f32.gmra.mxu0 %v28
  %v443 = vpop.f32.mrf.mxu0
  %v444 = vadd.f32 %v177, %v443
  %v445 = vpop.f32.mrf.mxu0
  %446 = vmatprep.mubr.f32.mxu0 %v187
  %447 = vmatmul.mubr.f32.gmra.mxu0 %v30
  %v448 = vpop.f32.mrf.mxu0
  %v449 = vadd.f32 %v177, %v448
  %v450 = vpop.f32.mrf.mxu0
  %451 = vmatprep.mubr.f32.mxu0 %v190
  %452 = vmatmul.mubr.f32.gmra.mxu0 %v32
  %v453 = vpop.f32.mrf.mxu0
  %v454 = vadd.f32 %v177, %v453
  %v455 = vpop.f32.mrf.mxu0
  %456 = vmatprep.mubr.f32.mxu0 %v193
  %457 = vmatmul.mubr.f32.gmra.mxu0 %v34
  %v458 = vpop.f32.mrf.mxu0
  %v459 = vadd.f32 %v177, %v458
  %v460 = vpop.f32.mrf.mxu0
  %461 = vmatprep.mubr.f32.mxu0 %v196
  %462 = vmatmul.mubr.f32.gmra.mxu0 %v36
  %v463 = vpop.f32.mrf.mxu0
  %v464 = vadd.f32 %v177, %v463
  %v465 = vpop.f32.mrf.mxu0
  %466 = vmatprep.mubr.f32.mxu0 %v199
  %467 = vmatmul.mubr.f32.gmra.mxu0 %v38
  %v468 = vpop.f32.mrf.mxu0
  %v469 = vadd.f32 %v177, %v468
  %v470 = vpop.f32.mrf.mxu0
  %471 = vmatprep.mubr.f32.mxu0 %v202
  %472 = vmatmul.mubr.f32.gmra.mxu0 %v40
  %v473 = vpop.f32.mrf.mxu0
  %v474 = vadd.f32 %v177, %v473
  %v475 = vpop.f32.mrf.mxu0
  %476 = vmatprep.mubr.f32.mxu0 %v205
  %477 = vmatmul.mubr.f32.gmra.mxu0 %v42
  %v478 = vpop.f32.mrf.mxu0
  %v479 = vadd.f32 %v177, %v478
  %v480 = vpop.f32.mrf.mxu0
  %481 = vmatprep.mubr.f32.mxu0 %v208
  %482 = vmatmul.mubr.f32.gmra.mxu0 %v44
  %v483 = vpop.f32.mrf.mxu0
  %v484 = vadd.f32 %v177, %v483
  %v485 = vpop.f32.mrf.mxu0
  %486 = vmatprep.mubr.f32.mxu0 %v211
  %487 = vmatmul.mubr.f32.gmra.mxu0 %v46
  %v488 = vpop.f32.mrf.mxu0
  %v489 = vadd.f32 %v177, %v488
  %v490 = vpop.f32.mrf.mxu0
  %491 = vmatprep.mubr.f32.mxu0 %v214
  %492 = vmatmul.mubr.f32.gmra.mxu0 %v48
  %v493 = vpop.f32.mrf.mxu0
  %v494 = vadd.f32 %v177, %v493
  %v495 = vpop.f32.mrf.mxu0
  %496 = vmatprep.mubr.f32.mxu0 %v217
  %497 = vmatmul.mubr.f32.gmra.mxu0 %v50
  %v498 = vpop.f32.mrf.mxu0
  %v499 = vadd.f32 %v177, %v498
  %v500 = vpop.f32.mrf.mxu0
  %501 = vmatprep.mubr.f32.mxu0 %v220
  %502 = vmatmul.mubr.f32.gmra.mxu0 %v52
  %v503 = vpop.f32.mrf.mxu0
  %v504 = vadd.f32 %v177, %v503
  %v505 = vpop.f32.mrf.mxu0
  %506 = vmatprep.mubr.f32.mxu0 %v223
  %507 = vmatmul.mubr.f32.gmra.mxu0 %v54
  %v508 = vpop.f32.mrf.mxu0
  %v509 = vadd.f32 %v177, %v508
  %v510 = vpop.f32.mrf.mxu0
  %511 = vmatprep.mubr.f32.mxu0 %v226
  %512 = vmatmul.mubr.f32.gmra.mxu0 %v56
  %v513 = vpop.f32.mrf.mxu0
  %v514 = vadd.f32 %v177, %v513
  %v515 = vpop.f32.mrf.mxu0
  %516 = vmatprep.mubr.f32.mxu0 %v229
  %517 = vmatmul.mubr.f32.gmra.mxu0 %v58
  %v518 = vpop.f32.mrf.mxu0
  %v519 = vadd.f32 %v177, %v518
  %v520 = vpop.f32.mrf.mxu0
  %521 = vmatprep.mubr.f32.mxu0 %v232
  %522 = vmatmul.mubr.f32.gmra.mxu0 %v60
  %v523 = vpop.f32.mrf.mxu0
  %v524 = vadd.f32 %v177, %v523
  %v525 = vpop.f32.mrf.mxu0
  %526 = vmatprep.mubr.f32.mxu0 %v235
  %527 = vmatmul.mubr.f32.gmra.mxu0 %v62
  %v528 = vpop.f32.mrf.mxu0
  %v529 = vadd.f32 %v177, %v528
  %v530 = vpop.f32.mrf.mxu0
  %531 = vmatprep.mubr.f32.mxu0 %v238
  %532 = vmatmul.mubr.f32.gmra.mxu0 %v64
  %v533 = vpop.f32.mrf.mxu0
  %v534 = vadd.f32 %v177, %v533
  %v535 = vpop.f32.mrf.mxu0
  %536 = vmatprep.mubr.f32.mxu0 %v241
  %537 = vmatmul.mubr.f32.gmra.mxu0 %v66
  %v538 = vpop.f32.mrf.mxu0
  %v539 = vadd.f32 %v177, %v538
  %v540 = vpop.f32.mrf.mxu0
  %541 = vmatprep.mubr.f32.mxu0 %v244
  %542 = vmatmul.mubr.f32.gmra.mxu0 %v68
  %v543 = vpop.f32.mrf.mxu0
  %v544 = vadd.f32 %v177, %v543
  %v545 = vpop.f32.mrf.mxu0
  %546 = vmatprep.mubr.f32.mxu0 %v247
  %547 = vmatmul.mubr.f32.gmra.mxu0 %v70
  %v548 = vpop.f32.mrf.mxu0
  %v549 = vadd.f32 %v177, %v548
  %v550 = vpop.f32.mrf.mxu0
  %551 = vmatprep.mubr.f32.mxu0 %v250
  %552 = vmatmul.mubr.f32.gmra.mxu0 %v72
  %v553 = vpop.f32.mrf.mxu0
  %v554 = vadd.f32 %v177, %v553
  %v555 = vpop.f32.mrf.mxu0
  %556 = vmatprep.mubr.f32.mxu0 %v253
  %557 = vmatmul.mubr.f32.gmra.mxu0 %v74
  %v558 = vpop.f32.mrf.mxu0
  %v559 = vadd.f32 %v177, %v558
  %v560 = vpop.f32.mrf.mxu0
  %561 = vmatprep.mubr.f32.mxu0 %v256
  %562 = vmatmul.mubr.f32.gmra.mxu0 %v76
  %v563 = vpop.f32.mrf.mxu0
  %v564 = vadd.f32 %v177, %v563
  %v565 = vpop.f32.mrf.mxu0
  %566 = vmatprep.mubr.f32.mxu0 %v259
  %567 = vmatmul.mubr.f32.gmra.mxu0 %v78
  %v568 = vpop.f32.mrf.mxu0
  %v569 = vadd.f32 %v177, %v568
  %v570 = vpop.f32.mrf.mxu0
  %571 = vmatprep.mubr.f32.mxu0 %v262
  %572 = vmatmul.mubr.f32.gmra.mxu0 %v80
  %v573 = vpop.f32.mrf.mxu0
  %v574 = vadd.f32 %v177, %v573
  %v575 = vpop.f32.mrf.mxu0
  %576 = vmatprep.mubr.f32.mxu0 %v265
  %577 = vmatmul.mubr.f32.gmra.mxu0 %v82
  %v578 = vpop.f32.mrf.mxu0
  %v579 = vadd.f32 %v177, %v578
  %v580 = vpop.f32.mrf.mxu0
  %581 = vmatprep.mubr.f32.mxu0 %v268
  %582 = vmatmul.mubr.f32.gmra.mxu0 %v84
  %v583 = vpop.f32.mrf.mxu0
  %v584 = vadd.f32 %v177, %v583
  %v585 = vpop.f32.mrf.mxu0
  %586 = vmatprep.mubr.f32.mxu0 %v271
  %587 = vmatmul.mubr.f32.gmra.mxu0 %v86
  %v588 = vpop.f32.mrf.mxu0
  %v589 = vadd.f32 %v177, %v588
  %v590 = vpop.f32.mrf.mxu0
  %591 = vmatprep.mubr.f32.mxu0 %v274
  %592 = vmatmul.mubr.f32.gmra.mxu0 %v88
  %v593 = vpop.f32.mrf.mxu0
  %v594 = vadd.f32 %v177, %v593
  %v595 = vpop.f32.mrf.mxu0
  %596 = vmatprep.mubr.f32.mxu0 %v277
  %597 = vmatmul.mubr.f32.gmra.mxu0 %v90
  %v598 = vpop.f32.mrf.mxu0
  %v599 = vadd.f32 %v177, %v598
  %v600 = vpop.f32.mrf.mxu0
  %601 = vmatprep.mubr.f32.mxu0 %v280
  %602 = vmatmul.mubr.f32.gmra.mxu0 %v92
  %v603 = vpop.f32.mrf.mxu0
  %v604 = vadd.f32 %v177, %v603
  %v605 = vpop.f32.mrf.mxu0
  %606 = vmatprep.mubr.f32.mxu0 %v283
  %607 = vmatmul.mubr.f32.gmra.mxu0 %v94
  %v608 = vpop.f32.mrf.mxu0
  %v609 = vadd.f32 %v177, %v608
  %v610 = vpop.f32.mrf.mxu0
  %611 = vmatprep.mubr.f32.mxu0 %v286
  %612 = vmatmul.mubr.f32.gmra.mxu0 %v96
  %v613 = vpop.f32.mrf.mxu0
  %v614 = vadd.f32 %v177, %v613
  %v615 = vpop.f32.mrf.mxu0
  %616 = vmatprep.mubr.f32.mxu0 %v289
  %617 = vmatmul.mubr.f32.gmra.mxu0 %v98
  %v618 = vpop.f32.mrf.mxu0
  %v619 = vadd.f32 %v177, %v618
  %v620 = vpop.f32.mrf.mxu0
  %621 = vmatprep.mubr.f32.mxu0 %v292
  %622 = vmatmul.mubr.f32.gmra.mxu0 %v100
  %v623 = vpop.f32.mrf.mxu0
  %v624 = vadd.f32 %v177, %v623
  %v625 = vpop.f32.mrf.mxu0
  %626 = vmatprep.mubr.f32.mxu0 %v295
  %627 = vmatmul.mubr.f32.gmra.mxu0 %v102
  %v628 = vpop.f32.mrf.mxu0
  %v629 = vadd.f32 %v177, %v628
  %v630 = vpop.f32.mrf.mxu0
  %631 = vmatprep.mubr.f32.mxu0 %v298
  %632 = vmatmul.mubr.f32.gmra.mxu0 %v104
  %v633 = vpop.f32.mrf.mxu0
  %v634 = vadd.f32 %v177, %v633
  %v635 = vpop.f32.mrf.mxu0
  %636 = vmatprep.mubr.f32.mxu0 %v301
  %637 = vmatmul.mubr.f32.gmra.mxu0 %v106
  %v638 = vpop.f32.mrf.mxu0
  %v639 = vadd.f32 %v177, %v638
  %v640 = vpop.f32.mrf.mxu0
  %641 = vmatprep.mubr.f32.mxu0 %v304
  %642 = vmatmul.mubr.f32.gmra.mxu0 %v108
  %v643 = vpop.f32.mrf.mxu0
  %v644 = vadd.f32 %v177, %v643
  %v645 = vpop.f32.mrf.mxu0
  %646 = vmatprep.mubr.f32.mxu0 %v307
  %647 = vmatmul.mubr.f32.gmra.mxu0 %v110
  %v648 = vpop.f32.mrf.mxu0
  %v649 = vadd.f32 %v177, %v648
  %v650 = vpop.f32.mrf.mxu0
  %651 = vmatprep.mubr.f32.mxu0 %v310
  %652 = vmatmul.mubr.f32.gmra.mxu0 %v112
  %v653 = vpop.f32.mrf.mxu0
  %v654 = vadd.f32 %v177, %v653
  %v655 = vpop.f32.mrf.mxu0
  %656 = vmatprep.mubr.f32.mxu0 %v313
  %657 = vmatmul.mubr.f32.gmra.mxu0 %v114
  %v658 = vpop.f32.mrf.mxu0
  %v659 = vadd.f32 %v177, %v658
  %v660 = vpop.f32.mrf.mxu0
  %661 = vmatprep.mubr.f32.mxu0 %v316
  %662 = vmatmul.mubr.f32.gmra.mxu0 %v116
  %v663 = vpop.f32.mrf.mxu0
  %v664 = vadd.f32 %v177, %v663
  %v665 = vpop.f32.mrf.mxu0
  %666 = vmatprep.mubr.f32.mxu0 %v319
  %667 = vmatmul.mubr.f32.gmra.mxu0 %v118
  %v668 = vpop.f32.mrf.mxu0
  %v669 = vadd.f32 %v177, %v668
  %v670 = vpop.f32.mrf.mxu0
  %671 = vmatprep.mubr.f32.mxu0 %v322
  %672 = vmatmul.mubr.f32.gmra.mxu0 %v120
  %v673 = vpop.f32.mrf.mxu0
  %v674 = vadd.f32 %v177, %v673
  %v675 = vpop.f32.mrf.mxu0
  %676 = vmatprep.mubr.f32.mxu0 %v325
  %677 = vmatmul.mubr.f32.gmra.mxu0 %v122
  %v678 = vpop.f32.mrf.mxu0
  %v679 = vadd.f32 %v177, %v678
  %v680 = vpop.f32.mrf.mxu0
  %681 = vmatprep.mubr.f32.mxu0 %v328
  %682 = vmatmul.mubr.f32.gmra.mxu0 %v124
  %v683 = vpop.f32.mrf.mxu0
  %v684 = vadd.f32 %v177, %v683
  %v685 = vpop.f32.mrf.mxu0
  %686 = vmatprep.mubr.f32.mxu0 %v331
  %687 = vmatmul.mubr.f32.gmra.mxu0 %v126
  %v688 = vpop.f32.mrf.mxu0
  %v689 = vadd.f32 %v177, %v688
  %v690 = vpop.f32.mrf.mxu0
  %691 = vmatprep.mubr.f32.mxu0 %v334
  %692 = vmatmul.mubr.f32.gmra.mxu0 %v128
  %v693 = vpop.f32.mrf.mxu0
  %v694 = vadd.f32 %v177, %v693
  %v695 = vpop.f32.mrf.mxu0
  %696 = vmatprep.mubr.f32.mxu0 %v337
  %697 = vmatmul.mubr.f32.gmra.mxu0 %v130
  %v698 = vpop.f32.mrf.mxu0
  %v699 = vadd.f32 %v177, %v698
  %v700 = vpop.f32.mrf.mxu0
  %701 = vmatprep.mubr.f32.mxu0 %v340
  %702 = vmatmul.mubr.f32.gmra.mxu0 %v132
  %v703 = vpop.f32.mrf.mxu0
  %v704 = vadd.f32 %v177, %v703
  %v705 = vpop.f32.mrf.mxu0
  %706 = vmatprep.mubr.f32.mxu0 %v343
  %707 = vmatmul.mubr.f32.gmra.mxu0 %v134
  %v708 = vpop.f32.mrf.mxu0
  %v709 = vadd.f32 %v177, %v708
  %v710 = vpop.f32.mrf.mxu0
  %711 = vmatprep.mubr.f32.mxu0 %v346
  %712 = vmatmul.mubr.f32.gmra.mxu0 %v136
  %v713 = vpop.f32.mrf.mxu0
  %v714 = vadd.f32 %v177, %v713
  %v715 = vpop.f32.mrf.mxu0
  %716 = vmatprep.mubr.f32.mxu0 %v349
  %717 = vmatmul.mubr.f32.gmra.mxu0 %v138
  %v718 = vpop.f32.mrf.mxu0
  %v719 = vadd.f32 %v177, %v718
  %v720 = vpop.f32.mrf.mxu0
  %721 = vmatprep.mubr.f32.mxu0 %v352
  %722 = vmatmul.mubr.f32.gmra.mxu0 %v140
  %v723 = vpop.f32.mrf.mxu0
  %v724 = vadd.f32 %v177, %v723
  %v725 = vpop.f32.mrf.mxu0
  %726 = vmatprep.mubr.f32.mxu0 %v355
  %727 = vmatmul.mubr.f32.gmra.mxu0 %v142
  %v728 = vpop.f32.mrf.mxu0
  %v729 = vadd.f32 %v177, %v728
  %v730 = vpop.f32.mrf.mxu0
  %731 = vmatprep.mubr.f32.mxu0 %v358
  %732 = vmatmul.mubr.f32.gmra.mxu0 %v144
  %v733 = vpop.f32.mrf.mxu0
  %v734 = vadd.f32 %v177, %v733
  %v735 = vpop.f32.mrf.mxu0
  %736 = vmatprep.mubr.f32.mxu0 %v361
  %737 = vmatmul.mubr.f32.gmra.mxu0 %v146
  %v738 = vpop.f32.mrf.mxu0
  %v739 = vadd.f32 %v177, %v738
  %v740 = vpop.f32.mrf.mxu0
  %741 = vmatprep.mubr.f32.mxu0 %v364
  %742 = vmatmul.mubr.f32.gmra.mxu0 %v148
  %v743 = vpop.f32.mrf.mxu0
  %v744 = vadd.f32 %v177, %v743
  %v745 = vpop.f32.mrf.mxu0
  %746 = vmatprep.mubr.f32.mxu0 %v367
  %747 = vmatmul.mubr.f32.gmra.mxu0 %v150
  %v748 = vpop.f32.mrf.mxu0
  %v749 = vadd.f32 %v177, %v748
  %v750 = vpop.f32.mrf.mxu0
  %751 = vmatprep.mubr.f32.mxu0 %v370
  %752 = vmatmul.mubr.f32.gmra.mxu0 %v152
  %v753 = vpop.f32.mrf.mxu0
  %v754 = vadd.f32 %v177, %v753
  %v755 = vpop.f32.mrf.mxu0
  %756 = vdwg.mxu0
  %vm757 = vcmask 64512
  %v758 = vsel %vm757, %v439, 0.0
  %v759 = vsel %vm757, %v444, 0.0
  %v760 = vadd.f32 %v758, %v759
  %v761 = vsel %vm757, %v449, 0.0
  %v762 = vadd.f32 %v760, %v761
  %v763 = vsel %vm757, %v454, 0.0
  %v764 = vadd.f32 %v762, %v763
  %v765 = vsel %vm757, %v459, 0.0
  %v766 = vadd.f32 %v764, %v765
  %v767 = vsel %vm757, %v464, 0.0
  %v768 = vadd.f32 %v766, %v767
  %v769 = vsel %vm757, %v469, 0.0
  %v770 = vadd.f32 %v768, %v769
  %v771 = vsel %vm757, %v474, 0.0
  %v772 = vadd.f32 %v770, %v771
  %v773 = vsel %vm757, %v479, 0.0
  %v774 = vadd.f32 %v772, %v773
  %v775 = vsel %vm757, %v484, 0.0
  %v776 = vadd.f32 %v774, %v775
  %v777 = vsel %vm757, %v489, 0.0
  %v778 = vadd.f32 %v776, %v777
  %v779 = vsel %vm757, %v494, 0.0
  %v780 = vadd.f32 %v778, %v779
  %v781 = vsel %vm757, %v499, 0.0
  %v782 = vadd.f32 %v780, %v781
  %v783 = vsel %vm757, %v504, 0.0
  %v784 = vadd.f32 %v782, %v783
  %v785 = vsel %vm757, %v509, 0.0
  %v786 = vadd.f32 %v784, %v785
  %v787 = vsel %vm757, %v514, 0.0
  %v788 = vadd.f32 %v786, %v787
  %v789 = vsel %vm757, %v519, 0.0
  %v790 = vadd.f32 %v788, %v789
  %v791 = vsel %vm757, %v524, 0.0
  %v792 = vadd.f32 %v790, %v791
  %v793 = vsel %vm757, %v529, 0.0
  %v794 = vadd.f32 %v792, %v793
  %v795 = vsel %vm757, %v534, 0.0
  %v796 = vadd.f32 %v794, %v795
  %v797 = vsel %vm757, %v539, 0.0
  %v798 = vadd.f32 %v796, %v797
  %v799 = vsel %vm757, %v544, 0.0
  %v800 = vadd.f32 %v798, %v799
  %v801 = vsel %vm757, %v549, 0.0
  %v802 = vadd.f32 %v800, %v801
  %v803 = vsel %vm757, %v554, 0.0
  %v804 = vadd.f32 %v802, %v803
  %v805 = vsel %vm757, %v559, 0.0
  %v806 = vadd.f32 %v804, %v805
  %v807 = vsel %vm757, %v564, 0.0
  %v808 = vadd.f32 %v806, %v807
  %v809 = vsel %vm757, %v569, 0.0
  %v810 = vadd.f32 %v808, %v809
  %v811 = vsel %vm757, %v574, 0.0
  %v812 = vadd.f32 %v810, %v811
  %v813 = vsel %vm757, %v579, 0.0
  %v814 = vadd.f32 %v812, %v813
  %v815 = vsel %vm757, %v584, 0.0
  %v816 = vadd.f32 %v814, %v815
  %v817 = vsel %vm757, %v589, 0.0
  %v818 = vadd.f32 %v816, %v817
  %v819 = vsel %vm757, %v594, 0.0
  %v820 = vadd.f32 %v818, %v819
  %v821 = vsel %vm757, %v599, 0.0
  %v822 = vadd.f32 %v820, %v821
  %v823 = vsel %vm757, %v604, 0.0
  %v824 = vadd.f32 %v822, %v823
  %v825 = vsel %vm757, %v609, 0.0
  %v826 = vadd.f32 %v824, %v825
  %v827 = vsel %vm757, %v614, 0.0
  %v828 = vadd.f32 %v826, %v827
  %v829 = vsel %vm757, %v619, 0.0
  %v830 = vadd.f32 %v828, %v829
  %v831 = vsel %vm757, %v624, 0.0
  %v832 = vadd.f32 %v830, %v831
  %v833 = vsel %vm757, %v629, 0.0
  %v834 = vadd.f32 %v832, %v833
  %v835 = vsel %vm757, %v634, 0.0
  %v836 = vadd.f32 %v834, %v835
  %v837 = vsel %vm757, %v639, 0.0
  %v838 = vadd.f32 %v836, %v837
  %v839 = vsel %vm757, %v644, 0.0
  %v840 = vadd.f32 %v838, %v839
  %v841 = vsel %vm757, %v649, 0.0
  %v842 = vadd.f32 %v840, %v841
  %v843 = vsel %vm757, %v654, 0.0
  %v844 = vadd.f32 %v842, %v843
  %v845 = vsel %vm757, %v659, 0.0
  %v846 = vadd.f32 %v844, %v845
  %v847 = vsel %vm757, %v664, 0.0
  %v848 = vadd.f32 %v846, %v847
  %v849 = vsel %vm757, %v669, 0.0
  %v850 = vadd.f32 %v848, %v849
  %v851 = vsel %vm757, %v674, 0.0
  %v852 = vadd.f32 %v850, %v851
  %v853 = vsel %vm757, %v679, 0.0
  %v854 = vadd.f32 %v852, %v853
  %v855 = vsel %vm757, %v684, 0.0
  %v856 = vadd.f32 %v854, %v855
  %v857 = vsel %vm757, %v689, 0.0
  %v858 = vadd.f32 %v856, %v857
  %v859 = vsel %vm757, %v694, 0.0
  %v860 = vadd.f32 %v858, %v859
  %v861 = vsel %vm757, %v699, 0.0
  %v862 = vadd.f32 %v860, %v861
  %v863 = vsel %vm757, %v704, 0.0
  %v864 = vadd.f32 %v862, %v863
  %v865 = vsel %vm757, %v709, 0.0
  %v866 = vadd.f32 %v864, %v865
  %v867 = vsel %vm757, %v714, 0.0
  %v868 = vadd.f32 %v866, %v867
  %v869 = vsel %vm757, %v719, 0.0
  %v870 = vadd.f32 %v868, %v869
  %v871 = vsel %vm757, %v724, 0.0
  %v872 = vadd.f32 %v870, %v871
  %v873 = vsel %vm757, %v729, 0.0
  %v874 = vadd.f32 %v872, %v873
  %v875 = vsel %vm757, %v734, 0.0
  %v876 = vadd.f32 %v874, %v875
  %v877 = vsel %vm757, %v739, 0.0
  %v878 = vadd.f32 %v876, %v877
  %v879 = vsel %vm757, %v744, 0.0
  %v880 = vadd.f32 %v878, %v879
  %v881 = vsel %vm757, %v749, 0.0
  %v882 = vadd.f32 %v880, %v881
  %v883 = vsel %vm757, %v754, 0.0
  %v884 = vadd.f32 %v882, %v883
  %v885 = vrot.slane %v884, 4
  %v886 = vadd.f32 %v884, %v885
  %v887 = vrot.slane %v886, 2
  %v888 = vadd.f32 %v886, %v887
  %v889 = vrot.slane %v888, 1
  %v890 = vadd.f32 %v888, %v889
  %v891 = vrcp.pop 512.0
  %v892 = vmul.f32 %v890, %v891
  %v893 = vsub.f32 %v439, %v892
  %v894 = vsub.f32 %v444, %v892
  %v895 = vsub.f32 %v449, %v892
  %v896 = vsub.f32 %v454, %v892
  %v897 = vsub.f32 %v459, %v892
  %v898 = vsub.f32 %v464, %v892
  %v899 = vsub.f32 %v469, %v892
  %v900 = vsub.f32 %v474, %v892
  %v901 = vsub.f32 %v479, %v892
  %v902 = vsub.f32 %v484, %v892
  %v903 = vsub.f32 %v489, %v892
  %v904 = vsub.f32 %v494, %v892
  %v905 = vsub.f32 %v499, %v892
  %v906 = vsub.f32 %v504, %v892
  %v907 = vsub.f32 %v509, %v892
  %v908 = vsub.f32 %v514, %v892
  %v909 = vsub.f32 %v519, %v892
  %v910 = vsub.f32 %v524, %v892
  %v911 = vsub.f32 %v529, %v892
  %v912 = vsub.f32 %v534, %v892
  %v913 = vsub.f32 %v539, %v892
  %v914 = vsub.f32 %v544, %v892
  %v915 = vsub.f32 %v549, %v892
  %v916 = vsub.f32 %v554, %v892
  %v917 = vsub.f32 %v559, %v892
  %v918 = vsub.f32 %v564, %v892
  %v919 = vsub.f32 %v569, %v892
  %v920 = vsub.f32 %v574, %v892
  %v921 = vsub.f32 %v579, %v892
  %v922 = vsub.f32 %v584, %v892
  %v923 = vsub.f32 %v589, %v892
  %v924 = vsub.f32 %v594, %v892
  %v925 = vsub.f32 %v599, %v892
  %v926 = vsub.f32 %v604, %v892
  %v927 = vsub.f32 %v609, %v892
  %v928 = vsub.f32 %v614, %v892
  %v929 = vsub.f32 %v619, %v892
  %v930 = vsub.f32 %v624, %v892
  %v931 = vsub.f32 %v629, %v892
  %v932 = vsub.f32 %v634, %v892
  %v933 = vsub.f32 %v639, %v892
  %v934 = vsub.f32 %v644, %v892
  %v935 = vsub.f32 %v649, %v892
  %v936 = vsub.f32 %v654, %v892
  %v937 = vsub.f32 %v659, %v892
  %v938 = vsub.f32 %v664, %v892
  %v939 = vsub.f32 %v669, %v892
  %v940 = vsub.f32 %v674, %v892
  %v941 = vsub.f32 %v679, %v892
  %v942 = vsub.f32 %v684, %v892
  %v943 = vsub.f32 %v689, %v892
  %v944 = vsub.f32 %v694, %v892
  %v945 = vsub.f32 %v699, %v892
  %v946 = vsub.f32 %v704, %v892
  %v947 = vsub.f32 %v709, %v892
  %v948 = vsub.f32 %v714, %v892
  %v949 = vsub.f32 %v719, %v892
  %v950 = vsub.f32 %v724, %v892
  %v951 = vsub.f32 %v729, %v892
  %v952 = vsub.f32 %v734, %v892
  %v953 = vsub.f32 %v739, %v892
  %v954 = vsub.f32 %v744, %v892
  %v955 = vsub.f32 %v749, %v892
  %v956 = vsub.f32 %v754, %v892
  %v957 = vmul.f32 %v893, %v893
  %v958 = vmul.f32 %v894, %v894
  %v959 = vmul.f32 %v895, %v895
  %v960 = vmul.f32 %v896, %v896
  %v961 = vmul.f32 %v897, %v897
  %v962 = vmul.f32 %v898, %v898
  %v963 = vmul.f32 %v899, %v899
  %v964 = vmul.f32 %v900, %v900
  %v965 = vmul.f32 %v901, %v901
  %v966 = vmul.f32 %v902, %v902
  %v967 = vmul.f32 %v903, %v903
  %v968 = vmul.f32 %v904, %v904
  %v969 = vmul.f32 %v905, %v905
  %v970 = vmul.f32 %v906, %v906
  %v971 = vmul.f32 %v907, %v907
  %v972 = vmul.f32 %v908, %v908
  %v973 = vmul.f32 %v909, %v909
  %v974 = vmul.f32 %v910, %v910
  %v975 = vmul.f32 %v911, %v911
  %v976 = vmul.f32 %v912, %v912
  %v977 = vmul.f32 %v913, %v913
  %v978 = vmul.f32 %v914, %v914
  %v979 = vmul.f32 %v915, %v915
  %v980 = vmul.f32 %v916, %v916
  %v981 = vmul.f32 %v917, %v917
  %v982 = vmul.f32 %v918, %v918
  %v983 = vmul.f32 %v919, %v919
  %v984 = vmul.f32 %v920, %v920
  %v985 = vmul.f32 %v921, %v921
  %v986 = vmul.f32 %v922, %v922
  %v987 = vmul.f32 %v923, %v923
  %v988 = vmul.f32 %v924, %v924
  %v989 = vmul.f32 %v925, %v925
  %v990 = vmul.f32 %v926, %v926
  %v991 = vmul.f32 %v927, %v927
  %v992 = vmul.f32 %v928, %v928
  %v993 = vmul.f32 %v929, %v929
  %v994 = vmul.f32 %v930, %v930
  %v995 = vmul.f32 %v931, %v931
  %v996 = vmul.f32 %v932, %v932
  %v997 = vmul.f32 %v933, %v933
  %v998 = vmul.f32 %v934, %v934
  %v999 = vmul.f32 %v935, %v935
  %v1000 = vmul.f32 %v936, %v936
  %v1001 = vmul.f32 %v937, %v937
  %v1002 = vmul.f32 %v938, %v938
  %v1003 = vmul.f32 %v939, %v939
  %v1004 = vmul.f32 %v940, %v940
  %v1005 = vmul.f32 %v941, %v941
  %v1006 = vmul.f32 %v942, %v942
  %v1007 = vmul.f32 %v943, %v943
  %v1008 = vmul.f32 %v944, %v944
  %v1009 = vmul.f32 %v945, %v945
  %v1010 = vmul.f32 %v946, %v946
  %v1011 = vmul.f32 %v947, %v947
  %v1012 = vmul.f32 %v948, %v948
  %v1013 = vmul.f32 %v949, %v949
  %v1014 = vmul.f32 %v950, %v950
  %v1015 = vmul.f32 %v951, %v951
  %v1016 = vmul.f32 %v952, %v952
  %v1017 = vmul.f32 %v953, %v953
  %v1018 = vmul.f32 %v954, %v954
  %v1019 = vmul.f32 %v955, %v955
  %v1020 = vmul.f32 %v956, %v956
  %v1021 = vsel %vm757, %v957, 0.0
  %v1022 = vsel %vm757, %v958, 0.0
  %v1023 = vadd.f32 %v1021, %v1022
  %v1024 = vsel %vm757, %v959, 0.0
  %v1025 = vadd.f32 %v1023, %v1024
  %v1026 = vsel %vm757, %v960, 0.0
  %v1027 = vadd.f32 %v1025, %v1026
  %v1028 = vsel %vm757, %v961, 0.0
  %v1029 = vadd.f32 %v1027, %v1028
  %v1030 = vsel %vm757, %v962, 0.0
  %v1031 = vadd.f32 %v1029, %v1030
  %v1032 = vsel %vm757, %v963, 0.0
  %v1033 = vadd.f32 %v1031, %v1032
  %v1034 = vsel %vm757, %v964, 0.0
  %v1035 = vadd.f32 %v1033, %v1034
  %v1036 = vsel %vm757, %v965, 0.0
  %v1037 = vadd.f32 %v1035, %v1036
  %v1038 = vsel %vm757, %v966, 0.0
  %v1039 = vadd.f32 %v1037, %v1038
  %v1040 = vsel %vm757, %v967, 0.0
  %v1041 = vadd.f32 %v1039, %v1040
  %v1042 = vsel %vm757, %v968, 0.0
  %v1043 = vadd.f32 %v1041, %v1042
  %v1044 = vsel %vm757, %v969, 0.0
  %v1045 = vadd.f32 %v1043, %v1044
  %v1046 = vsel %vm757, %v970, 0.0
  %v1047 = vadd.f32 %v1045, %v1046
  %v1048 = vsel %vm757, %v971, 0.0
  %v1049 = vadd.f32 %v1047, %v1048
  %v1050 = vsel %vm757, %v972, 0.0
  %v1051 = vadd.f32 %v1049, %v1050
  %v1052 = vsel %vm757, %v973, 0.0
  %v1053 = vadd.f32 %v1051, %v1052
  %v1054 = vsel %vm757, %v974, 0.0
  %v1055 = vadd.f32 %v1053, %v1054
  %v1056 = vsel %vm757, %v975, 0.0
  %v1057 = vadd.f32 %v1055, %v1056
  %v1058 = vsel %vm757, %v976, 0.0
  %v1059 = vadd.f32 %v1057, %v1058
  %v1060 = vsel %vm757, %v977, 0.0
  %v1061 = vadd.f32 %v1059, %v1060
  %v1062 = vsel %vm757, %v978, 0.0
  %v1063 = vadd.f32 %v1061, %v1062
  %v1064 = vsel %vm757, %v979, 0.0
  %v1065 = vadd.f32 %v1063, %v1064
  %v1066 = vsel %vm757, %v980, 0.0
  %v1067 = vadd.f32 %v1065, %v1066
  %v1068 = vsel %vm757, %v981, 0.0
  %v1069 = vadd.f32 %v1067, %v1068
  %v1070 = vsel %vm757, %v982, 0.0
  %v1071 = vadd.f32 %v1069, %v1070
  %v1072 = vsel %vm757, %v983, 0.0
  %v1073 = vadd.f32 %v1071, %v1072
  %v1074 = vsel %vm757, %v984, 0.0
  %v1075 = vadd.f32 %v1073, %v1074
  %v1076 = vsel %vm757, %v985, 0.0
  %v1077 = vadd.f32 %v1075, %v1076
  %v1078 = vsel %vm757, %v986, 0.0
  %v1079 = vadd.f32 %v1077, %v1078
  %v1080 = vsel %vm757, %v987, 0.0
  %v1081 = vadd.f32 %v1079, %v1080
  %v1082 = vsel %vm757, %v988, 0.0
  %v1083 = vadd.f32 %v1081, %v1082
  %v1084 = vsel %vm757, %v989, 0.0
  %v1085 = vadd.f32 %v1083, %v1084
  %v1086 = vsel %vm757, %v990, 0.0
  %v1087 = vadd.f32 %v1085, %v1086
  %v1088 = vsel %vm757, %v991, 0.0
  %v1089 = vadd.f32 %v1087, %v1088
  %v1090 = vsel %vm757, %v992, 0.0
  %v1091 = vadd.f32 %v1089, %v1090
  %v1092 = vsel %vm757, %v993, 0.0
  %v1093 = vadd.f32 %v1091, %v1092
  %v1094 = vsel %vm757, %v994, 0.0
  %v1095 = vadd.f32 %v1093, %v1094
  %v1096 = vsel %vm757, %v995, 0.0
  %v1097 = vadd.f32 %v1095, %v1096
  %v1098 = vsel %vm757, %v996, 0.0
  %v1099 = vadd.f32 %v1097, %v1098
  %v1100 = vsel %vm757, %v997, 0.0
  %v1101 = vadd.f32 %v1099, %v1100
  %v1102 = vsel %vm757, %v998, 0.0
  %v1103 = vadd.f32 %v1101, %v1102
  %v1104 = vsel %vm757, %v999, 0.0
  %v1105 = vadd.f32 %v1103, %v1104
  %v1106 = vsel %vm757, %v1000, 0.0
  %v1107 = vadd.f32 %v1105, %v1106
  %v1108 = vsel %vm757, %v1001, 0.0
  %v1109 = vadd.f32 %v1107, %v1108
  %v1110 = vsel %vm757, %v1002, 0.0
  %v1111 = vadd.f32 %v1109, %v1110
  %v1112 = vsel %vm757, %v1003, 0.0
  %v1113 = vadd.f32 %v1111, %v1112
  %v1114 = vsel %vm757, %v1004, 0.0
  %v1115 = vadd.f32 %v1113, %v1114
  %v1116 = vsel %vm757, %v1005, 0.0
  %v1117 = vadd.f32 %v1115, %v1116
  %v1118 = vsel %vm757, %v1006, 0.0
  %v1119 = vadd.f32 %v1117, %v1118
  %v1120 = vsel %vm757, %v1007, 0.0
  %v1121 = vadd.f32 %v1119, %v1120
  %v1122 = vsel %vm757, %v1008, 0.0
  %v1123 = vadd.f32 %v1121, %v1122
  %v1124 = vsel %vm757, %v1009, 0.0
  %v1125 = vadd.f32 %v1123, %v1124
  %v1126 = vsel %vm757, %v1010, 0.0
  %v1127 = vadd.f32 %v1125, %v1126
  %v1128 = vsel %vm757, %v1011, 0.0
  %v1129 = vadd.f32 %v1127, %v1128
  %v1130 = vsel %vm757, %v1012, 0.0
  %v1131 = vadd.f32 %v1129, %v1130
  %v1132 = vsel %vm757, %v1013, 0.0
  %v1133 = vadd.f32 %v1131, %v1132
  %v1134 = vsel %vm757, %v1014, 0.0
  %v1135 = vadd.f32 %v1133, %v1134
  %v1136 = vsel %vm757, %v1015, 0.0
  %v1137 = vadd.f32 %v1135, %v1136
  %v1138 = vsel %vm757, %v1016, 0.0
  %v1139 = vadd.f32 %v1137, %v1138
  %v1140 = vsel %vm757, %v1017, 0.0
  %v1141 = vadd.f32 %v1139, %v1140
  %v1142 = vsel %vm757, %v1018, 0.0
  %v1143 = vadd.f32 %v1141, %v1142
  %v1144 = vsel %vm757, %v1019, 0.0
  %v1145 = vadd.f32 %v1143, %v1144
  %v1146 = vsel %vm757, %v1020, 0.0
  %v1147 = vadd.f32 %v1145, %v1146
  %v1148 = vrot.slane %v1147, 4
  %v1149 = vadd.f32 %v1147, %v1148
  %v1150 = vrot.slane %v1149, 2
  %v1151 = vadd.f32 %v1149, %v1150
  %v1152 = vrot.slane %v1151, 1
  %v1153 = vadd.f32 %v1151, %v1152
  %v1154 = vmul.f32 %v1153, %v891
  %v1155 = vadd.f32 %v1154, 1e-05
  %v1156 = vrsqrt.pop %v1155
  %v1157 = vmul.f32 %v893, %v1156
  %v1158 = vmul.f32 %v894, %v1156
  %v1159 = vmul.f32 %v895, %v1156
  %v1160 = vmul.f32 %v896, %v1156
  %v1161 = vmul.f32 %v897, %v1156
  %v1162 = vmul.f32 %v898, %v1156
  %v1163 = vmul.f32 %v899, %v1156
  %v1164 = vmul.f32 %v900, %v1156
  %v1165 = vmul.f32 %v901, %v1156
  %v1166 = vmul.f32 %v902, %v1156
  %v1167 = vmul.f32 %v903, %v1156
  %v1168 = vmul.f32 %v904, %v1156
  %v1169 = vmul.f32 %v905, %v1156
  %v1170 = vmul.f32 %v906, %v1156
  %v1171 = vmul.f32 %v907, %v1156
  %v1172 = vmul.f32 %v908, %v1156
  %v1173 = vmul.f32 %v909, %v1156
  %v1174 = vmul.f32 %v910, %v1156
  %v1175 = vmul.f32 %v911, %v1156
  %v1176 = vmul.f32 %v912, %v1156
  %v1177 = vmul.f32 %v913, %v1156
  %v1178 = vmul.f32 %v914, %v1156
  %v1179 = vmul.f32 %v915, %v1156
  %v1180 = vmul.f32 %v916, %v1156
  %v1181 = vmul.f32 %v917, %v1156
  %v1182 = vmul.f32 %v918, %v1156
  %v1183 = vmul.f32 %v919, %v1156
  %v1184 = vmul.f32 %v920, %v1156
  %v1185 = vmul.f32 %v921, %v1156
  %v1186 = vmul.f32 %v922, %v1156
  %v1187 = vmul.f32 %v923, %v1156
  %v1188 = vmul.f32 %v924, %v1156
  %v1189 = vmul.f32 %v925, %v1156
  %v1190 = vmul.f32 %v926, %v1156
  %v1191 = vmul.f32 %v927, %v1156
  %v1192 = vmul.f32 %v928, %v1156
  %v1193 = vmul.f32 %v929, %v1156
  %v1194 = vmul.f32 %v930, %v1156
  %v1195 = vmul.f32 %v931, %v1156
  %v1196 = vmul.f32 %v932, %v1156
  %v1197 = vmul.f32 %v933, %v1156
  %v1198 = vmul.f32 %v934, %v1156
  %v1199 = vmul.f32 %v935, %v1156
  %v1200 = vmul.f32 %v936, %v1156
  %v1201 = vmul.f32 %v937, %v1156
  %v1202 = vmul.f32 %v938, %v1156
  %v1203 = vmul.f32 %v939, %v1156
  %v1204 = vmul.f32 %v940, %v1156
  %v1205 = vmul.f32 %v941, %v1156
  %v1206 = vmul.f32 %v942, %v1156
  %v1207 = vmul.f32 %v943, %v1156
  %v1208 = vmul.f32 %v944, %v1156
  %v1209 = vmul.f32 %v945, %v1156
  %v1210 = vmul.f32 %v946, %v1156
  %v1211 = vmul.f32 %v947, %v1156
  %v1212 = vmul.f32 %v948, %v1156
  %v1213 = vmul.f32 %v949, %v1156
  %v1214 = vmul.f32 %v950, %v1156
  %v1215 = vmul.f32 %v951, %v1156
  %v1216 = vmul.f32 %v952, %v1156
  %v1217 = vmul.f32 %v953, %v1156
  %v1218 = vmul.f32 %v954, %v1156
  %v1219 = vmul.f32 %v955, %v1156
  %v1220 = vmul.f32 %v956, %v1156
  %v1221 = vld [vmem:[%s3] sm:$0x1]
  %v1223 = vlaneseq
  %v1224 = vshrl.u32 %v1223, 7
  %v1225 = vsub.s32 0, %v1224
  %v1226 = vrot.slane %v1221, %v1225
  %v1228 = vmul.f32 %v1157, %v1226
  %v1229 = vmul.f32 %v1158, %v1226
  %v1230 = vmul.f32 %v1159, %v1226
  %v1231 = vmul.f32 %v1160, %v1226
  %v1232 = vmul.f32 %v1161, %v1226
  %v1233 = vmul.f32 %v1162, %v1226
  %v1234 = vmul.f32 %v1163, %v1226
  %v1235 = vmul.f32 %v1164, %v1226
  %v1236 = vmul.f32 %v1165, %v1226
  %v1237 = vmul.f32 %v1166, %v1226
  %v1238 = vmul.f32 %v1167, %v1226
  %v1239 = vmul.f32 %v1168, %v1226
  %v1240 = vmul.f32 %v1169, %v1226
  %v1241 = vmul.f32 %v1170, %v1226
  %v1242 = vmul.f32 %v1171, %v1226
  %v1243 = vmul.f32 %v1172, %v1226
  %v1244 = vmul.f32 %v1173, %v1226
  %v1245 = vmul.f32 %v1174, %v1226
  %v1246 = vmul.f32 %v1175, %v1226
  %v1247 = vmul.f32 %v1176, %v1226
  %v1248 = vmul.f32 %v1177, %v1226
  %v1249 = vmul.f32 %v1178, %v1226
  %v1250 = vmul.f32 %v1179, %v1226
  %v1251 = vmul.f32 %v1180, %v1226
  %v1252 = vmul.f32 %v1181, %v1226
  %v1253 = vmul.f32 %v1182, %v1226
  %v1254 = vmul.f32 %v1183, %v1226
  %v1255 = vmul.f32 %v1184, %v1226
  %v1256 = vmul.f32 %v1185, %v1226
  %v1257 = vmul.f32 %v1186, %v1226
  %v1258 = vmul.f32 %v1187, %v1226
  %v1259 = vmul.f32 %v1188, %v1226
  %v1260 = vmul.f32 %v1189, %v1226
  %v1261 = vmul.f32 %v1190, %v1226
  %v1262 = vmul.f32 %v1191, %v1226
  %v1263 = vmul.f32 %v1192, %v1226
  %v1264 = vmul.f32 %v1193, %v1226
  %v1265 = vmul.f32 %v1194, %v1226
  %v1266 = vmul.f32 %v1195, %v1226
  %v1267 = vmul.f32 %v1196, %v1226
  %v1268 = vmul.f32 %v1197, %v1226
  %v1269 = vmul.f32 %v1198, %v1226
  %v1270 = vmul.f32 %v1199, %v1226
  %v1271 = vmul.f32 %v1200, %v1226
  %v1272 = vmul.f32 %v1201, %v1226
  %v1273 = vmul.f32 %v1202, %v1226
  %v1274 = vmul.f32 %v1203, %v1226
  %v1275 = vmul.f32 %v1204, %v1226
  %v1276 = vmul.f32 %v1205, %v1226
  %v1277 = vmul.f32 %v1206, %v1226
  %v1278 = vmul.f32 %v1207, %v1226
  %v1279 = vmul.f32 %v1208, %v1226
  %v1280 = vmul.f32 %v1209, %v1226
  %v1281 = vmul.f32 %v1210, %v1226
  %v1282 = vmul.f32 %v1211, %v1226
  %v1283 = vmul.f32 %v1212, %v1226
  %v1284 = vmul.f32 %v1213, %v1226
  %v1285 = vmul.f32 %v1214, %v1226
  %v1286 = vmul.f32 %v1215, %v1226
  %v1287 = vmul.f32 %v1216, %v1226
  %v1288 = vmul.f32 %v1217, %v1226
  %v1289 = vmul.f32 %v1218, %v1226
  %v1290 = vmul.f32 %v1219, %v1226
  %v1291 = vmul.f32 %v1220, %v1226
  %v1292 = vld [vmem:[%s4] sm:$0x1]
  %v1294 = vlaneseq
  %v1295 = vshrl.u32 %v1294, 7
  %v1296 = vsub.s32 0, %v1295
  %v1297 = vrot.slane %v1292, %v1296
  %v1299 = vadd.f32 %v1228, %v1297
  %v1300 = vadd.f32 %v1229, %v1297
  %v1301 = vadd.f32 %v1230, %v1297
  %v1302 = vadd.f32 %v1231, %v1297
  %v1303 = vadd.f32 %v1232, %v1297
  %v1304 = vadd.f32 %v1233, %v1297
  %v1305 = vadd.f32 %v1234, %v1297
  %v1306 = vadd.f32 %v1235, %v1297
  %v1307 = vadd.f32 %v1236, %v1297
  %v1308 = vadd.f32 %v1237, %v1297
  %v1309 = vadd.f32 %v1238, %v1297
  %v1310 = vadd.f32 %v1239, %v1297
  %v1311 = vadd.f32 %v1240, %v1297
  %v1312 = vadd.f32 %v1241, %v1297
  %v1313 = vadd.f32 %v1242, %v1297
  %v1314 = vadd.f32 %v1243, %v1297
  %v1315 = vadd.f32 %v1244, %v1297
  %v1316 = vadd.f32 %v1245, %v1297
  %v1317 = vadd.f32 %v1246, %v1297
  %v1318 = vadd.f32 %v1247, %v1297
  %v1319 = vadd.f32 %v1248, %v1297
  %v1320 = vadd.f32 %v1249, %v1297
  %v1321 = vadd.f32 %v1250, %v1297
  %v1322 = vadd.f32 %v1251, %v1297
  %v1323 = vadd.f32 %v1252, %v1297
  %v1324 = vadd.f32 %v1253, %v1297
  %v1325 = vadd.f32 %v1254, %v1297
  %v1326 = vadd.f32 %v1255, %v1297
  %v1327 = vadd.f32 %v1256, %v1297
  %v1328 = vadd.f32 %v1257, %v1297
  %v1329 = vadd.f32 %v1258, %v1297
  %v1330 = vadd.f32 %v1259, %v1297
  %v1331 = vadd.f32 %v1260, %v1297
  %v1332 = vadd.f32 %v1261, %v1297
  %v1333 = vadd.f32 %v1262, %v1297
  %v1334 = vadd.f32 %v1263, %v1297
  %v1335 = vadd.f32 %v1264, %v1297
  %v1336 = vadd.f32 %v1265, %v1297
  %v1337 = vadd.f32 %v1266, %v1297
  %v1338 = vadd.f32 %v1267, %v1297
  %v1339 = vadd.f32 %v1268, %v1297
  %v1340 = vadd.f32 %v1269, %v1297
  %v1341 = vadd.f32 %v1270, %v1297
  %v1342 = vadd.f32 %v1271, %v1297
  %v1343 = vadd.f32 %v1272, %v1297
  %v1344 = vadd.f32 %v1273, %v1297
  %v1345 = vadd.f32 %v1274, %v1297
  %v1346 = vadd.f32 %v1275, %v1297
  %v1347 = vadd.f32 %v1276, %v1297
  %v1348 = vadd.f32 %v1277, %v1297
  %v1349 = vadd.f32 %v1278, %v1297
  %v1350 = vadd.f32 %v1279, %v1297
  %v1351 = vadd.f32 %v1280, %v1297
  %v1352 = vadd.f32 %v1281, %v1297
  %v1353 = vadd.f32 %v1282, %v1297
  %v1354 = vadd.f32 %v1283, %v1297
  %v1355 = vadd.f32 %v1284, %v1297
  %v1356 = vadd.f32 %v1285, %v1297
  %v1357 = vadd.f32 %v1286, %v1297
  %v1358 = vadd.f32 %v1287, %v1297
  %v1359 = vadd.f32 %v1288, %v1297
  %v1360 = vadd.f32 %v1289, %v1297
  %v1361 = vadd.f32 %v1290, %v1297
  %v1362 = vadd.f32 %v1291, %v1297
  %v1363 = vmax.f32 %v1299, 0.0
  %v1364 = vmax.f32 %v1300, 0.0
  %v1365 = vmax.f32 %v1301, 0.0
  %v1366 = vmax.f32 %v1302, 0.0
  %v1367 = vmax.f32 %v1303, 0.0
  %v1368 = vmax.f32 %v1304, 0.0
  %v1369 = vmax.f32 %v1305, 0.0
  %v1370 = vmax.f32 %v1306, 0.0
  %v1371 = vmax.f32 %v1307, 0.0
  %v1372 = vmax.f32 %v1308, 0.0
  %v1373 = vmax.f32 %v1309, 0.0
  %v1374 = vmax.f32 %v1310, 0.0
  %v1375 = vmax.f32 %v1311, 0.0
  %v1376 = vmax.f32 %v1312, 0.0
  %v1377 = vmax.f32 %v1313, 0.0
  %v1378 = vmax.f32 %v1314, 0.0
  %v1379 = vmax.f32 %v1315, 0.0
  %v1380 = vmax.f32 %v1316, 0.0
  %v1381 = vmax.f32 %v1317, 0.0
  %v1382 = vmax.f32 %v1318, 0.0
  %v1383 = vmax.f32 %v1319, 0.0
  %v1384 = vmax.f32 %v1320, 0.0
  %v1385 = vmax.f32 %v1321, 0.0
  %v1386 = vmax.f32 %v1322, 0.0
  %v1387 = vmax.f32 %v1323, 0.0
  %v1388 = vmax.f32 %v1324, 0.0
  %v1389 = vmax.f32 %v1325, 0.0
  %v1390 = vmax.f32 %v1326, 0.0
  %v1391 = vmax.f32 %v1327, 0.0
  %v1392 = vmax.f32 %v1328, 0.0
  %v1393 = vmax.f32 %v1329, 0.0
  %v1394 = vmax.f32 %v1330, 0.0
  %v1395 = vmax.f32 %v1331, 0.0
  %v1396 = vmax.f32 %v1332, 0.0
  %v1397 = vmax.f32 %v1333, 0.0
  %v1398 = vmax.f32 %v1334, 0.0
  %v1399 = vmax.f32 %v1335, 0.0
  %v1400 = vmax.f32 %v1336, 0.0
  %v1401 = vmax.f32 %v1337, 0.0
  %v1402 = vmax.f32 %v1338, 0.0
  %v1403 = vmax.f32 %v1339, 0.0
  %v1404 = vmax.f32 %v1340, 0.0
  %v1405 = vmax.f32 %v1341, 0.0
  %v1406 = vmax.f32 %v1342, 0.0
  %v1407 = vmax.f32 %v1343, 0.0
  %v1408 = vmax.f32 %v1344, 0.0
  %v1409 = vmax.f32 %v1345, 0.0
  %v1410 = vmax.f32 %v1346, 0.0
  %v1411 = vmax.f32 %v1347, 0.0
  %v1412 = vmax.f32 %v1348, 0.0
  %v1413 = vmax.f32 %v1349, 0.0
  %v1414 = vmax.f32 %v1350, 0.0
  %v1415 = vmax.f32 %v1351, 0.0
  %v1416 = vmax.f32 %v1352, 0.0
  %v1417 = vmax.f32 %v1353, 0.0
  %v1418 = vmax.f32 %v1354, 0.0
  %v1419 = vmax.f32 %v1355, 0.0
  %v1420 = vmax.f32 %v1356, 0.0
  %v1421 = vmax.f32 %v1357, 0.0
  %v1422 = vmax.f32 %v1358, 0.0
  %v1423 = vmax.f32 %v1359, 0.0
  %v1424 = vmax.f32 %v1360, 0.0
  %v1425 = vmax.f32 %v1361, 0.0
  %v1426 = vmax.f32 %v1362, 0.0
  %v1427 = vld [vmem:[%s5] sm:$0xff]
  %v1428 = vld [vmem:[%s6] sm:$0x1]
  %v1430 = vlaneseq
  %v1431 = vshrl.u32 %v1430, 7
  %v1432 = vsub.s32 0, %v1431
  %v1433 = vrot.slane %v1428, %v1432
  %v1436 = vsel %vm757, %v1363, 0
  %v1439 = vsel %vm757, %v1364, 0
  %v1442 = vsel %vm757, %v1365, 0
  %v1445 = vsel %vm757, %v1366, 0
  %v1448 = vsel %vm757, %v1367, 0
  %v1451 = vsel %vm757, %v1368, 0
  %v1454 = vsel %vm757, %v1369, 0
  %v1457 = vsel %vm757, %v1370, 0
  %v1460 = vsel %vm757, %v1371, 0
  %v1463 = vsel %vm757, %v1372, 0
  %v1466 = vsel %vm757, %v1373, 0
  %v1469 = vsel %vm757, %v1374, 0
  %v1472 = vsel %vm757, %v1375, 0
  %v1475 = vsel %vm757, %v1376, 0
  %v1478 = vsel %vm757, %v1377, 0
  %v1481 = vsel %vm757, %v1378, 0
  %v1484 = vsel %vm757, %v1379, 0
  %v1487 = vsel %vm757, %v1380, 0
  %v1490 = vsel %vm757, %v1381, 0
  %v1493 = vsel %vm757, %v1382, 0
  %v1496 = vsel %vm757, %v1383, 0
  %v1499 = vsel %vm757, %v1384, 0
  %v1502 = vsel %vm757, %v1385, 0
  %v1505 = vsel %vm757, %v1386, 0
  %v1508 = vsel %vm757, %v1387, 0
  %v1511 = vsel %vm757, %v1388, 0
  %v1514 = vsel %vm757, %v1389, 0
  %v1517 = vsel %vm757, %v1390, 0
  %v1520 = vsel %vm757, %v1391, 0
  %v1523 = vsel %vm757, %v1392, 0
  %v1526 = vsel %vm757, %v1393, 0
  %v1529 = vsel %vm757, %v1394, 0
  %v1532 = vsel %vm757, %v1395, 0
  %v1535 = vsel %vm757, %v1396, 0
  %v1538 = vsel %vm757, %v1397, 0
  %v1541 = vsel %vm757, %v1398, 0
  %v1544 = vsel %vm757, %v1399, 0
  %v1547 = vsel %vm757, %v1400, 0
  %v1550 = vsel %vm757, %v1401, 0
  %v1553 = vsel %vm757, %v1402, 0
  %v1556 = vsel %vm757, %v1403, 0
  %v1559 = vsel %vm757, %v1404, 0
  %v1562 = vsel %vm757, %v1405, 0
  %v1565 = vsel %vm757, %v1406, 0
  %v1568 = vsel %vm757, %v1407, 0
  %v1571 = vsel %vm757, %v1408, 0
  %v1574 = vsel %vm757, %v1409, 0
  %v1577 = vsel %vm757, %v1410, 0
  %v1580 = vsel %vm757, %v1411, 0
  %v1583 = vsel %vm757, %v1412, 0
  %v1586 = vsel %vm757, %v1413, 0
  %v1589 = vsel %vm757, %v1414, 0
  %v1592 = vsel %vm757, %v1415, 0
  %v1595 = vsel %vm757, %v1416, 0
  %v1598 = vsel %vm757, %v1417, 0
  %v1601 = vsel %vm757, %v1418, 0
  %v1604 = vsel %vm757, %v1419, 0
  %v1607 = vsel %vm757, %v1420, 0
  %v1610 = vsel %vm757, %v1421, 0
  %v1613 = vsel %vm757, %v1422, 0
  %v1616 = vsel %vm757, %v1423, 0
  %v1619 = vsel %vm757, %v1424, 0
  %v1622 = vsel %vm757, %v1425, 0
  %v1625 = vsel %vm757, %v1426, 0
  %1627 = vmatprep.subr.mxu0 0.0
  %1628 = vmatpush1.msra.mxu0 0.0
  %1629 = vmatprep.subr.mxu0 0.0
  %1630 = vmatpush1.msra.mxu0 0.0
  %1631 = vmatprep.subr.mxu0 0.0
  %1632 = vmatpush1.msra.mxu0 0.0
  %1633 = vmatprep.subr.mxu0 0.0
  %1634 = vmatpush1.msra.mxu0 0.0
  %1635 = vmatprep.subr.mxu0 0.0
  %1636 = vmatpush1.msra.mxu0 0.0
  %1637 = vmatprep.subr.mxu0 0.0
  %1638 = vmatpush1.msra.mxu0 0.0
  %1639 = vmatprep.subr.mxu0 0.0
  %1640 = vmatpush1.msra.mxu0 0.0
  %1641 = vmatprep.subr.mxu0 0.0
  %1642 = vmatpush1.msra.mxu0 0.0
  %1643 = vmatprep.subr.mxu0 0.0
  %1644 = vmatpush1.msra.mxu0 0.0
  %1645 = vmatprep.subr.mxu0 0.0
  %1646 = vmatpush1.msra.mxu0 0.0
  %1647 = vmatprep.subr.mxu0 0.0
  %1648 = vmatpush1.msra.mxu0 0.0
  %1649 = vmatprep.subr.mxu0 0.0
  %1650 = vmatpush1.msra.mxu0 0.0
  %1651 = vmatprep.subr.mxu0 0.0
  %1652 = vmatpush1.msra.mxu0 0.0
  %1653 = vmatprep.subr.mxu0 0.0
  %1654 = vmatpush1.msra.mxu0 0.0
  %1655 = vmatprep.subr.mxu0 0.0
  %1656 = vmatpush1.msra.mxu0 0.0
  %1657 = vmatprep.subr.mxu0 0.0
  %1658 = vmatpush1.msra.mxu0 %v1427
  %1659 = vmatprep.subr.mxu0 0.0
  %1660 = vmatpush2.msra.mxu0 0.0
  %1661 = vmatprep.subr.mxu0 0.0
  %1662 = vmatpush2.msra.mxu0 0.0
  %1663 = vmatprep.subr.mxu0 0.0
  %1664 = vmatpush2.msra.mxu0 0.0
  %1665 = vmatprep.subr.mxu0 0.0
  %1666 = vmatpush2.msra.mxu0 0.0
  %1667 = vmatprep.subr.mxu0 0.0
  %1668 = vmatpush2.msra.mxu0 0.0
  %1669 = vmatprep.subr.mxu0 0.0
  %1670 = vmatpush2.msra.mxu0 0.0
  %1671 = vmatprep.subr.mxu0 0.0
  %1672 = vmatpush2.msra.mxu0 0.0
  %1673 = vmatprep.subr.mxu0 0.0
  %1674 = vmatpush2.msra.mxu0 0.0
  %1675 = vmatprep.subr.mxu0 0.0
  %1676 = vmatpush2.msra.mxu0 0.0
  %1677 = vmatprep.subr.mxu0 0.0
  %1678 = vmatpush2.msra.mxu0 0.0
  %1679 = vmatprep.subr.mxu0 0.0
  %1680 = vmatpush2.msra.mxu0 0.0
  %1681 = vmatprep.subr.mxu0 0.0
  %1682 = vmatpush2.msra.mxu0 0.0
  %1683 = vmatprep.subr.mxu0 0.0
  %1684 = vmatpush2.msra.mxu0 0.0
  %1685 = vmatprep.subr.mxu0 0.0
  %1686 = vmatpush2.msra.mxu0 0.0
  %1687 = vmatprep.subr.mxu0 0.0
  %1688 = vmatpush2.msra.mxu0 0.0
  %1689 = vmatprep.subr.mxu0 0.0
  %1690 = vmatpush2.msra.mxu0 0.0
  %1691 = vmatprep.mubr.f32.mxu0 0.0
  %1692 = vmatmul.mubr.f32.gmra.mxu0 %v1436
  %v1693 = vpop.f32.mrf.mxu0
  %v1694 = vadd.f32 %v1433, %v1693
  %v1695 = vpop.f32.mrf.mxu0
  %1696 = vmatprep.mubr.f32.mxu0 0.0
  %1697 = vmatmul.mubr.f32.gmra.mxu0 %v1439
  %v1698 = vpop.f32.mrf.mxu0
  %v1699 = vadd.f32 %v1433, %v1698
  %v1700 = vpop.f32.mrf.mxu0
  %1701 = vmatprep.mubr.f32.mxu0 0.0
  %1702 = vmatmul.mubr.f32.gmra.mxu0 %v1442
  %v1703 = vpop.f32.mrf.mxu0
  %v1704 = vadd.f32 %v1433, %v1703
  %v1705 = vpop.f32.mrf.mxu0
  %1706 = vmatprep.mubr.f32.mxu0 0.0
  %1707 = vmatmul.mubr.f32.gmra.mxu0 %v1445
  %v1708 = vpop.f32.mrf.mxu0
  %v1709 = vadd.f32 %v1433, %v1708
  %v1710 = vpop.f32.mrf.mxu0
  %1711 = vmatprep.mubr.f32.mxu0 0.0
  %1712 = vmatmul.mubr.f32.gmra.mxu0 %v1448
  %v1713 = vpop.f32.mrf.mxu0
  %v1714 = vadd.f32 %v1433, %v1713
  %v1715 = vpop.f32.mrf.mxu0
  %1716 = vmatprep.mubr.f32.mxu0 0.0
  %1717 = vmatmul.mubr.f32.gmra.mxu0 %v1451
  %v1718 = vpop.f32.mrf.mxu0
  %v1719 = vadd.f32 %v1433, %v1718
  %v1720 = vpop.f32.mrf.mxu0
  %1721 = vmatprep.mubr.f32.mxu0 0.0
  %1722 = vmatmul.mubr.f32.gmra.mxu0 %v1454
  %v1723 = vpop.f32.mrf.mxu0
  %v1724 = vadd.f32 %v1433, %v1723
  %v1725 = vpop.f32.mrf.mxu0
  %1726 = vmatprep.mubr.f32.mxu0 0.0
  %1727 = vmatmul.mubr.f32.gmra.mxu0 %v1457
  %v1728 = vpop.f32.mrf.mxu0
  %v1729 = vadd.f32 %v1433, %v1728
  %v1730 = vpop.f32.mrf.mxu0
  %1731 = vmatprep.mubr.f32.mxu0 0.0
  %1732 = vmatmul.mubr.f32.gmra.mxu0 %v1460
  %v1733 = vpop.f32.mrf.mxu0
  %v1734 = vadd.f32 %v1433, %v1733
  %v1735 = vpop.f32.mrf.mxu0
  %1736 = vmatprep.mubr.f32.mxu0 0.0
  %1737 = vmatmul.mubr.f32.gmra.mxu0 %v1463
  %v1738 = vpop.f32.mrf.mxu0
  %v1739 = vadd.f32 %v1433, %v1738
  %v1740 = vpop.f32.mrf.mxu0
  %1741 = vmatprep.mubr.f32.mxu0 0.0
  %1742 = vmatmul.mubr.f32.gmra.mxu0 %v1466
  %v1743 = vpop.f32.mrf.mxu0
  %v1744 = vadd.f32 %v1433, %v1743
  %v1745 = vpop.f32.mrf.mxu0
  %1746 = vmatprep.mubr.f32.mxu0 0.0
  %1747 = vmatmul.mubr.f32.gmra.mxu0 %v1469
  %v1748 = vpop.f32.mrf.mxu0
  %v1749 = vadd.f32 %v1433, %v1748
  %v1750 = vpop.f32.mrf.mxu0
  %1751 = vmatprep.mubr.f32.mxu0 0.0
  %1752 = vmatmul.mubr.f32.gmra.mxu0 %v1472
  %v1753 = vpop.f32.mrf.mxu0
  %v1754 = vadd.f32 %v1433, %v1753
  %v1755 = vpop.f32.mrf.mxu0
  %1756 = vmatprep.mubr.f32.mxu0 0.0
  %1757 = vmatmul.mubr.f32.gmra.mxu0 %v1475
  %v1758 = vpop.f32.mrf.mxu0
  %v1759 = vadd.f32 %v1433, %v1758
  %v1760 = vpop.f32.mrf.mxu0
  %1761 = vmatprep.mubr.f32.mxu0 0.0
  %1762 = vmatmul.mubr.f32.gmra.mxu0 %v1478
  %v1763 = vpop.f32.mrf.mxu0
  %v1764 = vadd.f32 %v1433, %v1763
  %v1765 = vpop.f32.mrf.mxu0
  %1766 = vmatprep.mubr.f32.mxu0 0.0
  %1767 = vmatmul.mubr.f32.gmra.mxu0 %v1481
  %v1768 = vpop.f32.mrf.mxu0
  %v1769 = vadd.f32 %v1433, %v1768
  %v1770 = vpop.f32.mrf.mxu0
  %1771 = vmatprep.mubr.f32.mxu0 0.0
  %1772 = vmatmul.mubr.f32.gmra.mxu0 %v1484
  %v1773 = vpop.f32.mrf.mxu0
  %v1774 = vadd.f32 %v1433, %v1773
  %v1775 = vpop.f32.mrf.mxu0
  %1776 = vmatprep.mubr.f32.mxu0 0.0
  %1777 = vmatmul.mubr.f32.gmra.mxu0 %v1487
  %v1778 = vpop.f32.mrf.mxu0
  %v1779 = vadd.f32 %v1433, %v1778
  %v1780 = vpop.f32.mrf.mxu0
  %1781 = vmatprep.mubr.f32.mxu0 0.0
  %1782 = vmatmul.mubr.f32.gmra.mxu0 %v1490
  %v1783 = vpop.f32.mrf.mxu0
  %v1784 = vadd.f32 %v1433, %v1783
  %v1785 = vpop.f32.mrf.mxu0
  %1786 = vmatprep.mubr.f32.mxu0 0.0
  %1787 = vmatmul.mubr.f32.gmra.mxu0 %v1493
  %v1788 = vpop.f32.mrf.mxu0
  %v1789 = vadd.f32 %v1433, %v1788
  %v1790 = vpop.f32.mrf.mxu0
  %1791 = vmatprep.mubr.f32.mxu0 0.0
  %1792 = vmatmul.mubr.f32.gmra.mxu0 %v1496
  %v1793 = vpop.f32.mrf.mxu0
  %v1794 = vadd.f32 %v1433, %v1793
  %v1795 = vpop.f32.mrf.mxu0
  %1796 = vmatprep.mubr.f32.mxu0 0.0
  %1797 = vmatmul.mubr.f32.gmra.mxu0 %v1499
  %v1798 = vpop.f32.mrf.mxu0
  %v1799 = vadd.f32 %v1433, %v1798
  %v1800 = vpop.f32.mrf.mxu0
  %1801 = vmatprep.mubr.f32.mxu0 0.0
  %1802 = vmatmul.mubr.f32.gmra.mxu0 %v1502
  %v1803 = vpop.f32.mrf.mxu0
  %v1804 = vadd.f32 %v1433, %v1803
  %v1805 = vpop.f32.mrf.mxu0
  %1806 = vmatprep.mubr.f32.mxu0 0.0
  %1807 = vmatmul.mubr.f32.gmra.mxu0 %v1505
  %v1808 = vpop.f32.mrf.mxu0
  %v1809 = vadd.f32 %v1433, %v1808
  %v1810 = vpop.f32.mrf.mxu0
  %1811 = vmatprep.mubr.f32.mxu0 0.0
  %1812 = vmatmul.mubr.f32.gmra.mxu0 %v1508
  %v1813 = vpop.f32.mrf.mxu0
  %v1814 = vadd.f32 %v1433, %v1813
  %v1815 = vpop.f32.mrf.mxu0
  %1816 = vmatprep.mubr.f32.mxu0 0.0
  %1817 = vmatmul.mubr.f32.gmra.mxu0 %v1511
  %v1818 = vpop.f32.mrf.mxu0
  %v1819 = vadd.f32 %v1433, %v1818
  %v1820 = vpop.f32.mrf.mxu0
  %1821 = vmatprep.mubr.f32.mxu0 0.0
  %1822 = vmatmul.mubr.f32.gmra.mxu0 %v1514
  %v1823 = vpop.f32.mrf.mxu0
  %v1824 = vadd.f32 %v1433, %v1823
  %v1825 = vpop.f32.mrf.mxu0
  %1826 = vmatprep.mubr.f32.mxu0 0.0
  %1827 = vmatmul.mubr.f32.gmra.mxu0 %v1517
  %v1828 = vpop.f32.mrf.mxu0
  %v1829 = vadd.f32 %v1433, %v1828
  %v1830 = vpop.f32.mrf.mxu0
  %1831 = vmatprep.mubr.f32.mxu0 0.0
  %1832 = vmatmul.mubr.f32.gmra.mxu0 %v1520
  %v1833 = vpop.f32.mrf.mxu0
  %v1834 = vadd.f32 %v1433, %v1833
  %v1835 = vpop.f32.mrf.mxu0
  %1836 = vmatprep.mubr.f32.mxu0 0.0
  %1837 = vmatmul.mubr.f32.gmra.mxu0 %v1523
  %v1838 = vpop.f32.mrf.mxu0
  %v1839 = vadd.f32 %v1433, %v1838
  %v1840 = vpop.f32.mrf.mxu0
  %1841 = vmatprep.mubr.f32.mxu0 0.0
  %1842 = vmatmul.mubr.f32.gmra.mxu0 %v1526
  %v1843 = vpop.f32.mrf.mxu0
  %v1844 = vadd.f32 %v1433, %v1843
  %v1845 = vpop.f32.mrf.mxu0
  %1846 = vmatprep.mubr.f32.mxu0 0.0
  %1847 = vmatmul.mubr.f32.gmra.mxu0 %v1529
  %v1848 = vpop.f32.mrf.mxu0
  %v1849 = vadd.f32 %v1433, %v1848
  %v1850 = vpop.f32.mrf.mxu0
  %1851 = vmatprep.mubr.f32.mxu0 0.0
  %1852 = vmatmul.mubr.f32.gmra.mxu0 %v1532
  %v1853 = vpop.f32.mrf.mxu0
  %v1854 = vadd.f32 %v1433, %v1853
  %v1855 = vpop.f32.mrf.mxu0
  %1856 = vmatprep.mubr.f32.mxu0 0.0
  %1857 = vmatmul.mubr.f32.gmra.mxu0 %v1535
  %v1858 = vpop.f32.mrf.mxu0
  %v1859 = vadd.f32 %v1433, %v1858
  %v1860 = vpop.f32.mrf.mxu0
  %1861 = vmatprep.mubr.f32.mxu0 0.0
  %1862 = vmatmul.mubr.f32.gmra.mxu0 %v1538
  %v1863 = vpop.f32.mrf.mxu0
  %v1864 = vadd.f32 %v1433, %v1863
  %v1865 = vpop.f32.mrf.mxu0
  %1866 = vmatprep.mubr.f32.mxu0 0.0
  %1867 = vmatmul.mubr.f32.gmra.mxu0 %v1541
  %v1868 = vpop.f32.mrf.mxu0
  %v1869 = vadd.f32 %v1433, %v1868
  %v1870 = vpop.f32.mrf.mxu0
  %1871 = vmatprep.mubr.f32.mxu0 0.0
  %1872 = vmatmul.mubr.f32.gmra.mxu0 %v1544
  %v1873 = vpop.f32.mrf.mxu0
  %v1874 = vadd.f32 %v1433, %v1873
  %v1875 = vpop.f32.mrf.mxu0
  %1876 = vmatprep.mubr.f32.mxu0 0.0
  %1877 = vmatmul.mubr.f32.gmra.mxu0 %v1547
  %v1878 = vpop.f32.mrf.mxu0
  %v1879 = vadd.f32 %v1433, %v1878
  %v1880 = vpop.f32.mrf.mxu0
  %1881 = vmatprep.mubr.f32.mxu0 0.0
  %1882 = vmatmul.mubr.f32.gmra.mxu0 %v1550
  %v1883 = vpop.f32.mrf.mxu0
  %v1884 = vadd.f32 %v1433, %v1883
  %v1885 = vpop.f32.mrf.mxu0
  %1886 = vmatprep.mubr.f32.mxu0 0.0
  %1887 = vmatmul.mubr.f32.gmra.mxu0 %v1553
  %v1888 = vpop.f32.mrf.mxu0
  %v1889 = vadd.f32 %v1433, %v1888
  %v1890 = vpop.f32.mrf.mxu0
  %1891 = vmatprep.mubr.f32.mxu0 0.0
  %1892 = vmatmul.mubr.f32.gmra.mxu0 %v1556
  %v1893 = vpop.f32.mrf.mxu0
  %v1894 = vadd.f32 %v1433, %v1893
  %v1895 = vpop.f32.mrf.mxu0
  %1896 = vmatprep.mubr.f32.mxu0 0.0
  %1897 = vmatmul.mubr.f32.gmra.mxu0 %v1559
  %v1898 = vpop.f32.mrf.mxu0
  %v1899 = vadd.f32 %v1433, %v1898
  %v1900 = vpop.f32.mrf.mxu0
  %1901 = vmatprep.mubr.f32.mxu0 0.0
  %1902 = vmatmul.mubr.f32.gmra.mxu0 %v1562
  %v1903 = vpop.f32.mrf.mxu0
  %v1904 = vadd.f32 %v1433, %v1903
  %v1905 = vpop.f32.mrf.mxu0
  %1906 = vmatprep.mubr.f32.mxu0 0.0
  %1907 = vmatmul.mubr.f32.gmra.mxu0 %v1565
  %v1908 = vpop.f32.mrf.mxu0
  %v1909 = vadd.f32 %v1433, %v1908
  %v1910 = vpop.f32.mrf.mxu0
  %1911 = vmatprep.mubr.f32.mxu0 0.0
  %1912 = vmatmul.mubr.f32.gmra.mxu0 %v1568
  %v1913 = vpop.f32.mrf.mxu0
  %v1914 = vadd.f32 %v1433, %v1913
  %v1915 = vpop.f32.mrf.mxu0
  %1916 = vmatprep.mubr.f32.mxu0 0.0
  %1917 = vmatmul.mubr.f32.gmra.mxu0 %v1571
  %v1918 = vpop.f32.mrf.mxu0
  %v1919 = vadd.f32 %v1433, %v1918
  %v1920 = vpop.f32.mrf.mxu0
  %1921 = vmatprep.mubr.f32.mxu0 0.0
  %1922 = vmatmul.mubr.f32.gmra.mxu0 %v1574
  %v1923 = vpop.f32.mrf.mxu0
  %v1924 = vadd.f32 %v1433, %v1923
  %v1925 = vpop.f32.mrf.mxu0
  %1926 = vmatprep.mubr.f32.mxu0 0.0
  %1927 = vmatmul.mubr.f32.gmra.mxu0 %v1577
  %v1928 = vpop.f32.mrf.mxu0
  %v1929 = vadd.f32 %v1433, %v1928
  %v1930 = vpop.f32.mrf.mxu0
  %1931 = vmatprep.mubr.f32.mxu0 0.0
  %1932 = vmatmul.mubr.f32.gmra.mxu0 %v1580
  %v1933 = vpop.f32.mrf.mxu0
  %v1934 = vadd.f32 %v1433, %v1933
  %v1935 = vpop.f32.mrf.mxu0
  %1936 = vmatprep.mubr.f32.mxu0 0.0
  %1937 = vmatmul.mubr.f32.gmra.mxu0 %v1583
  %v1938 = vpop.f32.mrf.mxu0
  %v1939 = vadd.f32 %v1433, %v1938
  %v1940 = vpop.f32.mrf.mxu0
  %1941 = vmatprep.mubr.f32.mxu0 0.0
  %1942 = vmatmul.mubr.f32.gmra.mxu0 %v1586
  %v1943 = vpop.f32.mrf.mxu0
  %v1944 = vadd.f32 %v1433, %v1943
  %v1945 = vpop.f32.mrf.mxu0
  %1946 = vmatprep.mubr.f32.mxu0 0.0
  %1947 = vmatmul.mubr.f32.gmra.mxu0 %v1589
  %v1948 = vpop.f32.mrf.mxu0
  %v1949 = vadd.f32 %v1433, %v1948
  %v1950 = vpop.f32.mrf.mxu0
  %1951 = vmatprep.mubr.f32.mxu0 0.0
  %1952 = vmatmul.mubr.f32.gmra.mxu0 %v1592
  %v1953 = vpop.f32.mrf.mxu0
  %v1954 = vadd.f32 %v1433, %v1953
  %v1955 = vpop.f32.mrf.mxu0
  %1956 = vmatprep.mubr.f32.mxu0 0.0
  %1957 = vmatmul.mubr.f32.gmra.mxu0 %v1595
  %v1958 = vpop.f32.mrf.mxu0
  %v1959 = vadd.f32 %v1433, %v1958
  %v1960 = vpop.f32.mrf.mxu0
  %1961 = vmatprep.mubr.f32.mxu0 0.0
  %1962 = vmatmul.mubr.f32.gmra.mxu0 %v1598
  %v1963 = vpop.f32.mrf.mxu0
  %v1964 = vadd.f32 %v1433, %v1963
  %v1965 = vpop.f32.mrf.mxu0
  %1966 = vmatprep.mubr.f32.mxu0 0.0
  %1967 = vmatmul.mubr.f32.gmra.mxu0 %v1601
  %v1968 = vpop.f32.mrf.mxu0
  %v1969 = vadd.f32 %v1433, %v1968
  %v1970 = vpop.f32.mrf.mxu0
  %1971 = vmatprep.mubr.f32.mxu0 0.0
  %1972 = vmatmul.mubr.f32.gmra.mxu0 %v1604
  %v1973 = vpop.f32.mrf.mxu0
  %v1974 = vadd.f32 %v1433, %v1973
  %v1975 = vpop.f32.mrf.mxu0
  %1976 = vmatprep.mubr.f32.mxu0 0.0
  %1977 = vmatmul.mubr.f32.gmra.mxu0 %v1607
  %v1978 = vpop.f32.mrf.mxu0
  %v1979 = vadd.f32 %v1433, %v1978
  %v1980 = vpop.f32.mrf.mxu0
  %1981 = vmatprep.mubr.f32.mxu0 0.0
  %1982 = vmatmul.mubr.f32.gmra.mxu0 %v1610
  %v1983 = vpop.f32.mrf.mxu0
  %v1984 = vadd.f32 %v1433, %v1983
  %v1985 = vpop.f32.mrf.mxu0
  %1986 = vmatprep.mubr.f32.mxu0 0.0
  %1987 = vmatmul.mubr.f32.gmra.mxu0 %v1613
  %v1988 = vpop.f32.mrf.mxu0
  %v1989 = vadd.f32 %v1433, %v1988
  %v1990 = vpop.f32.mrf.mxu0
  %1991 = vmatprep.mubr.f32.mxu0 0.0
  %1992 = vmatmul.mubr.f32.gmra.mxu0 %v1616
  %v1993 = vpop.f32.mrf.mxu0
  %v1994 = vadd.f32 %v1433, %v1993
  %v1995 = vpop.f32.mrf.mxu0
  %1996 = vmatprep.mubr.f32.mxu0 0.0
  %1997 = vmatmul.mubr.f32.gmra.mxu0 %v1619
  %v1998 = vpop.f32.mrf.mxu0
  %v1999 = vadd.f32 %v1433, %v1998
  %v2000 = vpop.f32.mrf.mxu0
  %2001 = vmatprep.mubr.f32.mxu0 0.0
  %2002 = vmatmul.mubr.f32.gmra.mxu0 %v1622
  %v2003 = vpop.f32.mrf.mxu0
  %v2004 = vadd.f32 %v1433, %v2003
  %v2005 = vpop.f32.mrf.mxu0
  %2006 = vmatprep.mubr.f32.mxu0 0.0
  %2007 = vmatmul.mubr.f32.gmra.mxu0 %v1625
  %v2008 = vpop.f32.mrf.mxu0
  %v2009 = vadd.f32 %v1433, %v2008
  %v2010 = vpop.f32.mrf.mxu0
  %2011 = vdwg.mxu0
  %vm2012 = vcmask 31744
  %2013 = vst.msk [vmem:[%s7] sm:$0xff] %vm2012, %v1694
  %2014 = vst.msk [vmem:[%s7 + $0x8] sm:$0xff] %vm2012, %v1699
  %2015 = vst.msk [vmem:[%s7 + $0x10] sm:$0xff] %vm2012, %v1704
  %2016 = vst.msk [vmem:[%s7 + $0x18] sm:$0xff] %vm2012, %v1709
  %2017 = vst.msk [vmem:[%s7 + $0x20] sm:$0xff] %vm2012, %v1714
  %2018 = vst.msk [vmem:[%s7 + $0x28] sm:$0xff] %vm2012, %v1719
  %2019 = vst.msk [vmem:[%s7 + $0x30] sm:$0xff] %vm2012, %v1724
  %2020 = vst.msk [vmem:[%s7 + $0x38] sm:$0xff] %vm2012, %v1729
  %2021 = vst.msk [vmem:[%s7 + $0x40] sm:$0xff] %vm2012, %v1734
  %2022 = vst.msk [vmem:[%s7 + $0x48] sm:$0xff] %vm2012, %v1739
  %2023 = vst.msk [vmem:[%s7 + $0x50] sm:$0xff] %vm2012, %v1744
  %2024 = vst.msk [vmem:[%s7 + $0x58] sm:$0xff] %vm2012, %v1749
  %2025 = vst.msk [vmem:[%s7 + $0x60] sm:$0xff] %vm2012, %v1754
  %2026 = vst.msk [vmem:[%s7 + $0x68] sm:$0xff] %vm2012, %v1759
  %2027 = vst.msk [vmem:[%s7 + $0x70] sm:$0xff] %vm2012, %v1764
  %2028 = vst.msk [vmem:[%s7 + $0x78] sm:$0xff] %vm2012, %v1769
  %2029 = vst.msk [vmem:[%s7 + $0x80] sm:$0xff] %vm2012, %v1774
  %2030 = vst.msk [vmem:[%s7 + $0x88] sm:$0xff] %vm2012, %v1779
  %2031 = vst.msk [vmem:[%s7 + $0x90] sm:$0xff] %vm2012, %v1784
  %2032 = vst.msk [vmem:[%s7 + $0x98] sm:$0xff] %vm2012, %v1789
  %2033 = vst.msk [vmem:[%s7 + $0xa0] sm:$0xff] %vm2012, %v1794
  %2034 = vst.msk [vmem:[%s7 + $0xa8] sm:$0xff] %vm2012, %v1799
  %2035 = vst.msk [vmem:[%s7 + $0xb0] sm:$0xff] %vm2012, %v1804
  %2036 = vst.msk [vmem:[%s7 + $0xb8] sm:$0xff] %vm2012, %v1809
  %2037 = vst.msk [vmem:[%s7 + $0xc0] sm:$0xff] %vm2012, %v1814
  %2038 = vst.msk [vmem:[%s7 + $0xc8] sm:$0xff] %vm2012, %v1819
  %2039 = vst.msk [vmem:[%s7 + $0xd0] sm:$0xff] %vm2012, %v1824
  %2040 = vst.msk [vmem:[%s7 + $0xd8] sm:$0xff] %vm2012, %v1829
  %2041 = vst.msk [vmem:[%s7 + $0xe0] sm:$0xff] %vm2012, %v1834
  %2042 = vst.msk [vmem:[%s7 + $0xe8] sm:$0xff] %vm2012, %v1839
  %2043 = vst.msk [vmem:[%s7 + $0xf0] sm:$0xff] %vm2012, %v1844
  %2044 = vst.msk [vmem:[%s7 + $0xf8] sm:$0xff] %vm2012, %v1849
  %2045 = vst.msk [vmem:[%s7 + $0x100] sm:$0xff] %vm2012, %v1854
  %2046 = vst.msk [vmem:[%s7 + $0x108] sm:$0xff] %vm2012, %v1859
  %2047 = vst.msk [vmem:[%s7 + $0x110] sm:$0xff] %vm2012, %v1864
  %2048 = vst.msk [vmem:[%s7 + $0x118] sm:$0xff] %vm2012, %v1869
  %2049 = vst.msk [vmem:[%s7 + $0x120] sm:$0xff] %vm2012, %v1874
  %2050 = vst.msk [vmem:[%s7 + $0x128] sm:$0xff] %vm2012, %v1879
  %2051 = vst.msk [vmem:[%s7 + $0x130] sm:$0xff] %vm2012, %v1884
  %2052 = vst.msk [vmem:[%s7 + $0x138] sm:$0xff] %vm2012, %v1889
  %2053 = vst.msk [vmem:[%s7 + $0x140] sm:$0xff] %vm2012, %v1894
  %2054 = vst.msk [vmem:[%s7 + $0x148] sm:$0xff] %vm2012, %v1899
  %2055 = vst.msk [vmem:[%s7 + $0x150] sm:$0xff] %vm2012, %v1904
  %2056 = vst.msk [vmem:[%s7 + $0x158] sm:$0xff] %vm2012, %v1909
  %2057 = vst.msk [vmem:[%s7 + $0x160] sm:$0xff] %vm2012, %v1914
  %2058 = vst.msk [vmem:[%s7 + $0x168] sm:$0xff] %vm2012, %v1919
  %2059 = vst.msk [vmem:[%s7 + $0x170] sm:$0xff] %vm2012, %v1924
  %2060 = vst.msk [vmem:[%s7 + $0x178] sm:$0xff] %vm2012, %v1929
  %2061 = vst.msk [vmem:[%s7 + $0x180] sm:$0xff] %vm2012, %v1934
  %2062 = vst.msk [vmem:[%s7 + $0x188] sm:$0xff] %vm2012, %v1939
  %2063 = vst.msk [vmem:[%s7 + $0x190] sm:$0xff] %vm2012, %v1944
  %2064 = vst.msk [vmem:[%s7 + $0x198] sm:$0xff] %vm2012, %v1949
  %2065 = vst.msk [vmem:[%s7 + $0x1a0] sm:$0xff] %vm2012, %v1954
  %2066 = vst.msk [vmem:[%s7 + $0x1a8] sm:$0xff] %vm2012, %v1959
  %2067 = vst.msk [vmem:[%s7 + $0x1b0] sm:$0xff] %vm2012, %v1964
  %2068 = vst.msk [vmem:[%s7 + $0x1b8] sm:$0xff] %vm2012, %v1969
  %2069 = vst.msk [vmem:[%s7 + $0x1c0] sm:$0xff] %vm2012, %v1974
  %2070 = vst.msk [vmem:[%s7 + $0x1c8] sm:$0xff] %vm2012, %v1979
  %2071 = vst.msk [vmem:[%s7 + $0x1d0] sm:$0xff] %vm2012, %v1984
  %2072 = vst.msk [vmem:[%s7 + $0x1d8] sm:$0xff] %vm2012, %v1989
  %2073 = vst.msk [vmem:[%s7 + $0x1e0] sm:$0xff] %vm2012, %v1994
  %2074 = vst.msk [vmem:[%s7 + $0x1e8] sm:$0xff] %vm2012, %v1999
  %2075 = vst.msk [vmem:[%s7 + $0x1f0] sm:$0xff] %vm2012, %v2004
  %2076 = vst.msk [vmem:[%s7 + $0x1f8] sm:$0xff] %vm2012, %v2009
  // Predicated region
  $region30: #{tiny_vit_forward.5} parent=0 // pred_check
    _
  $region31: #{tiny_vit_forward.5} parent=0 // pred_check_branch
    %2078 = sbr.rel (0) target = $region33
  $region32: #{tiny_vit_forward.5} parent=0 // pred_region
    _
  $region33: #{tiny_vit_forward.5} parent=0 // pred_fallthru
    _
  // Predicated region
  $region34: #{tiny_vit_forward.5} parent=0 // pred_check
    _
  $region35: #{tiny_vit_forward.5} parent=0 // pred_check_branch
    %2080 = sbr.rel (0) target = $region37
  $region36: #{tiny_vit_forward.5} parent=0 // pred_region
    _
  $region37: #{tiny_vit_forward.5} parent=0 // pred_fallthru
    _

</llo_original>
